<compile_context>
chip_gen: v5e
topology: v5e:2x2
jax: 0.10.0
libtpu: 0.0.40
codegen_flags: <defaults>
</compile_context>

<pallas_src>
import math

import numpy as np
import jax
import jax.numpy as jnp
from jax import lax
from jax.experimental import pallas as pl
from jax.experimental.pallas import tpu as pltpu

# ----------------------------- configuration -----------------------------
D_MODEL = 32                 # projection_dim / transformer d_model
N_HEADS = 4
HEAD_DIM = D_MODEL // N_HEADS
FFN_DIM = 64
NUM_LAYERS = 2               # transformer decoder layers
PATCH_SIZE = 4
NUM_UPSAMPLER_LAYERS = 2
FINAL_IMAGE_SIZE = 16
NUM_OUTPUT_CHANNELS = 1
BATCH = 2
GRID_SIDE = FINAL_IMAGE_SIZE // PATCH_SIZE      # 4 patch tokens per side
N_TOK = GRID_SIDE * GRID_SIDE                   # 16 patch tokens
N_IMG = N_TOK + 1                               # + CLS -> 17
N_TXT = 8
LN_EPS = 1e-5
NEG_INF = -1e30

# Packed decoder-parameter layout (one (NUM_LAYERS*LAYER_ROWS, 128) f32 array).
LAYER_ROWS = 104
PACK_WIDTH = 128


def _upsampler_block_specs():
    channel_factor = D_MODEL // NUM_UPSAMPLER_LAYERS
    up_factor = PATCH_SIZE ** (1.0 / NUM_UPSAMPLER_LAYERS)
    in_ch = D_MODEL
    cur = FINAL_IMAGE_SIZE // PATCH_SIZE
    blocks = []
    for _ in range(NUM_UPSAMPLER_LAYERS - 1):
        out_ch = in_ch - channel_factor
        new = math.ceil(cur * up_factor)
        blocks.append(dict(in_ch=in_ch, out_ch=out_ch, in_size=cur, out_size=new))
        in_ch, cur = out_ch, new
    blocks.append(dict(in_ch=in_ch, out_ch=NUM_OUTPUT_CHANNELS,
                       in_size=cur, out_size=FINAL_IMAGE_SIZE))
    return blocks


_UPS_BLOCKS = _upsampler_block_specs()
UP_IN_DIM = _UPS_BLOCKS[0]["in_size"] ** 2 * _UPS_BLOCKS[0]["in_ch"]      # 512
UP_MID_DIM = _UPS_BLOCKS[0]["out_size"] ** 2 * _UPS_BLOCKS[0]["out_ch"]   # 1024
UP_OUT_DIM = _UPS_BLOCKS[-1]["out_size"] ** 2 * _UPS_BLOCKS[-1]["out_ch"]  # 256


# ----------------------------- fused Pallas kernel -----------------------------

def _fused_trans_decoder_kernel(
        tgt_ref, mem_ref, sbias_ref, cbias_ref, dec_ref, b1_ref, b2_ref,
        m1_hbm, m2_hbm,                       # HBM refs (memory_space=pl.ANY)
        out_ref,
        m1_vmem, m2_vmem, dma_sem):           # scratch
    """Whole TransDecoder forward in one kernel invocation (no grid)."""
    f32 = jnp.float32
    scale = 1.0 / math.sqrt(HEAD_DIM)

    # ---- kick off the upsampler weight DMAs; they finish behind decoder compute ----
    cp_m1 = pltpu.make_async_copy(m1_hbm, m1_vmem, dma_sem.at[0])
    cp_m2 = pltpu.make_async_copy(m2_hbm, m2_vmem, dma_sem.at[1])
    cp_m1.start()
    cp_m2.start()

    def mm(a, b):
        return jnp.dot(a, b, preferred_element_type=f32)

    def mm_t(a, bt):  # a @ bt.T
        return lax.dot_general(a, bt, (((1,), (1,)), ((), ())),
                               preferred_element_type=f32)

    def layer_norm(y, g, b):
        mu = jnp.mean(y, axis=-1, keepdims=True)
        var = jnp.mean(jnp.square(y - mu), axis=-1, keepdims=True)
        return (y - mu) * lax.rsqrt(var + LN_EPS) * g + b

    def attention(q, k, v, bias):
        # q: (Rq, D), k/v: (Rk, D), batch-stacked along rows.
        # bias: (Rq, Rk) additive; block-diagonal batch isolation (+ key padding mask
        # for cross attention).  One matmul pair + one softmax per head.
        heads = []
        for h in range(N_HEADS):
            sl = slice(h * HEAD_DIM, (h + 1) * HEAD_DIM)
            s = mm_t(q[:, sl], k[:, sl]) * scale + bias
            s = s - jnp.max(s, axis=-1, keepdims=True)
            p = jnp.exp(s)
            p = p * pl.reciprocal(jnp.sum(p, axis=-1, keepdims=True), approx=True)
            heads.append(mm(p, v[:, sl]))
        return jnp.concatenate(heads, axis=1)          # (Rq, D)

    x = tgt_ref[...]            # (B*N_IMG, D)
    mem = mem_ref[...]          # (B*N_TXT, D)
    self_bias = sbias_ref[...]  # (B*N_IMG, B*N_IMG) additive block-diag mask
    cross_bias = cbias_ref[...]  # (B*N_IMG, B*N_TXT) additive block-diag + attn mask

    for l in range(NUM_LAYERS):
        base = l * LAYER_ROWS
        blk_a = dec_ref[base:base + 32, :]             # [sa_w | sa_ow]
        blk_b = dec_ref[base + 32:base + 64, :]        # [ca_qw | ca_kvw | ca_ow]
        blk_c = dec_ref[base + 64:base + 96, :]        # [ff1_w | ff2_wT]
        blk_v = dec_ref[base + 96:base + 104, :]       # biases / LN params

        sa_w, sa_ow = blk_a[:, 0:96], blk_a[:, 96:128]
        ca_qw, ca_kvw, ca_ow = blk_b[:, 0:32], blk_b[:, 32:96], blk_b[:, 96:128]
        ff1_w, ff2_wt = blk_c[:, 0:64], blk_c[:, 64:128]
        sa_b, sa_ob = blk_v[0:1, 0:96], blk_v[0:1, 96:128]
        ca_qb, ca_kvb, ca_ob = blk_v[1:2, 0:32], blk_v[1:2, 32:96], blk_v[1:2, 96:128]
        ff1_b, ff2_b = blk_v[2:3, 0:64], blk_v[2:3, 64:96]
        ln1_g, ln1_b = blk_v[3:4, 0:32], blk_v[3:4, 32:64]
        ln2_g, ln2_b = blk_v[3:4, 64:96], blk_v[3:4, 96:128]
        ln3_g, ln3_b = blk_v[4:5, 0:32], blk_v[4:5, 32:64]

        # --- self attention (post-norm, no tgt mask, dropout=0 / eval) ---
        qkv = mm(x, sa_w) + sa_b                       # (B*N_IMG, 3D)
        sa = attention(qkv[:, 0:D_MODEL],
                       qkv[:, D_MODEL:2 * D_MODEL],
                       qkv[:, 2 * D_MODEL:3 * D_MODEL], self_bias)
        x = layer_norm(x + mm(sa, sa_ow) + sa_ob, ln1_g, ln1_b)

        # --- cross attention with memory (key-padding) mask ---
        q = mm(x, ca_qw) + ca_qb                       # (B*N_IMG, D)
        kv = mm(mem, ca_kvw) + ca_kvb                  # (B*N_TXT, 2D)
        ca = attention(q, kv[:, 0:D_MODEL], kv[:, D_MODEL:2 * D_MODEL], cross_bias)
        x = layer_norm(x + mm(ca, ca_ow) + ca_ob, ln2_g, ln2_b)

        # --- feed forward (ReLU) ---
        hidden = jnp.maximum(mm(x, ff1_w) + ff1_b, 0.0)
        ffn = mm_t(hidden, ff2_wt) + ff2_b
        x = layer_norm(x + ffn, ln3_g, ln3_b)

    # --- drop CLS token; flatten each batch's (16 tokens x 32 ch) into one
    #     lane-dense row with layout [token*32 + channel] (matches NCHW fold) ---
    # TODO(synk): replace the slice+concat flatten with a single jnp.reshape
    # relayout once the (16,32)->(1,512) minor-dim merge is verified to lower on
    # the target Mosaic toolchain; kept as explicit concat for compile safety.
    rows = []
    for b in range(BATCH):
        base_r = b * N_IMG + 1
        pieces = [x[base_r + t: base_r + t + 1, :] for t in range(N_TOK)]
        rows.append(jnp.concatenate(pieces, axis=1))   # (1, 512)
    xf = jnp.concatenate(rows, axis=0).astype(jnp.bfloat16)   # (B, 512)

    # --- whole upsampler: two bf16 MXU matmuls against the pre-folded matrices ---
    cp_m1.wait()
    h = jnp.dot(xf, m1_vmem[...], preferred_element_type=f32) + b1_ref[...]  # (B, 1024)
    h = jnp.maximum(h, 0.0).astype(jnp.bfloat16)
    cp_m2.wait()
    out_ref[...] = (jnp.dot(h, m2_vmem[...], preferred_element_type=f32)
                    + b2_ref[...])                                           # (B, 256)


# ----------------------------- host glue: bilinear / conv fold -----------------------------

def _bilinear_matrix(out_size, in_size):
    # PyTorch nn.Upsample(mode="bilinear", align_corners=False) 1-D weights.
    W = np.zeros((out_size, in_size), np.float64)
    if in_size == 1:
        W[:, 0] = 1.0
        return W
    scale = in_size / out_size
    for i in range(out_size):
        src = max((i + 0.5) * scale - 0.5, 0.0)
        i0 = min(int(np.floor(src)), in_size - 1)
        i1 = min(i0 + 1, in_size - 1)
        frac = src - i0
        W[i, i0] += 1.0 - frac
        W[i, i1] += frac
    return W


def _make_tap_matrices(in_size, out_size):
    # A_k maps flattened (in_size x in_size) -> shifted replicate-padded
    # upsampled (out_size x out_size) patch for conv tap k = dy*3+dx.
    w1d = _bilinear_matrix(out_size, in_size)
    wpad = np.vstack([w1d[:1], w1d, w1d[-1:]])           # replicate pad ('same', pad=1)
    U = np.kron(wpad, wpad)                              # ((out+2)^2, in^2)
    Hp = out_size + 2
    A = np.zeros((9, out_size * out_size, in_size * in_size), np.float64)
    for dy in range(3):
        for dx in range(3):
            k = dy * 3 + dx
            for y in range(out_size):
                rows = (y + dy) * Hp + dx + np.arange(out_size)
                A[k, y * out_size:(y + 1) * out_size, :] = U[rows, :]
    return A


def _fold_upsample_block(A, w, bias):
    # Fold bilinear upsample + replicate-pad + 3x3 conv into one matrix M so that
    # out_flat[p*Cout+co] = sum_{j,c} M[p*Cout+co, j*Cin+c] * x_flat[j*Cin+c] + b[co].
    out_ch, in_ch = w.shape[0], w.shape[1]
    hw_out, hw_in = A.shape[1], A.shape[2]
    w_np = np.asarray(w, np.float64)
    wt = np.transpose(w_np, (2, 3, 1, 0)).reshape(9, in_ch, out_ch)     # (9, Cin, Cout)
    M = np.einsum("kpj,kco->pojc", A, wt)                               # (HWout, Cout, HWin, Cin)
    Mt = M.reshape(hw_out * out_ch, hw_in * in_ch).T                    # (HWin*Cin, HWout*Cout)
    bflat = np.tile(np.asarray(bias, np.float64), hw_out).reshape(1, hw_out * out_ch)
    # bf16 weights: halves the dominant DMA and uses the bf16-native MXU.
    return jnp.asarray(Mt, jnp.bfloat16), jnp.asarray(bflat, jnp.float32)


# ----------------------------- parameters -----------------------------

def build_decoder_params(key):
    """All decoder params packed into a single (NUM_LAYERS*104, 128) f32 array."""
    D = D_MODEL

    def nxt():
        nonlocal key
        key, sub = jax.random.split(key)
        return sub

    def lin(shape, fan_in):
        bound = 1.0 / math.sqrt(fan_in)
        return np.asarray(jax.random.uniform(nxt(), shape, jnp.float32, -bound, bound))

    pack = np.zeros((NUM_LAYERS * LAYER_ROWS, PACK_WIDTH), np.float32)
    for l in range(NUM_LAYERS):
        r = l * LAYER_ROWS
        sa_in_w = lin((3 * D, D), D); sa_in_b = lin((3 * D,), D)
        sa_out_w = lin((D, D), D);    sa_out_b = lin((D,), D)
        ca_in_w = lin((3 * D, D), D); ca_in_b = lin((3 * D,), D)
        ca_out_w = lin((D, D), D);    ca_out_b = lin((D,), D)
        ff1_w = lin((FFN_DIM, D), D); ff1_b = lin((FFN_DIM,), D)
        ff2_w = lin((D, FFN_DIM), FFN_DIM); ff2_b = lin((D,), FFN_DIM)

        pack[r:r + 32, 0:96] = sa_in_w.T                  # x @ w layout (D, 3D)
        pack[r:r + 32, 96:128] = sa_out_w.T
        pack[r + 32:r + 64, 0:32] = ca_in_w[:D].T         # q projection
        pack[r + 32:r + 64, 32:96] = ca_in_w[D:].T        # kv projection (D, 2D)
        pack[r + 32:r + 64, 96:128] = ca_out_w.T
        pack[r + 64:r + 96, 0:64] = ff1_w.T
        pack[r + 64:r + 96, 64:128] = ff2_w               # (D, FFN) used transposed in-kernel
        pack[r + 96, 0:96] = sa_in_b
        pack[r + 96, 96:128] = sa_out_b
        pack[r + 97, 0:32] = ca_in_b[:D]
        pack[r + 97, 32:96] = ca_in_b[D:]
        pack[r + 97, 96:128] = ca_out_b
        pack[r + 98, 0:64] = ff1_b
        pack[r + 98, 64:96] = ff2_b
        pack[r + 99, 0:32] = 1.0      # ln1 gamma
        pack[r + 99, 64:96] = 1.0     # ln2 gamma
        pack[r + 100, 0:32] = 1.0     # ln3 gamma  (betas stay zero)
    return jnp.asarray(pack), key


def build_upsampler_params(key):
    # TODO(synk): upsampler_norm (group/layer/batch/instance) not exercised; norm=None path only.
    flat = []
    for blk in _UPS_BLOCKS:
        key, kw, kb = jax.random.split(key, 3)
        fan_in = blk["in_ch"] * 9
        bound = 1.0 / math.sqrt(fan_in)
        w = jax.random.uniform(kw, (blk["out_ch"], blk["in_ch"], 3, 3),
                               jnp.float32, -bound, bound)
        bias = jax.random.uniform(kb, (blk["out_ch"],), jnp.float32, -bound, bound)
        A = _make_tap_matrices(blk["in_size"], blk["out_size"])
        Mt, bflat = _fold_upsample_block(A, np.asarray(w), np.asarray(bias))
        flat.extend([Mt, bflat])
    return flat, key


# ----------------------------- forward pass -----------------------------

@jax.jit
def trans_decoder_forward(params, tgt, attention_mask, memory):
    B = tgt.shape[0]
    tgt2 = tgt.reshape(B * N_IMG, D_MODEL).astype(jnp.float32)
    mem2 = memory.reshape(B * N_TXT, D_MODEL).astype(jnp.float32)

    # Additive attention biases (batch block-diagonal; cross one also folds the
    # key-padding mask derived from attention_mask: False -> masked out).
    q_batch = jnp.arange(B * N_IMG, dtype=jnp.int32) // N_IMG
    kt_batch = jnp.arange(B * N_TXT, dtype=jnp.int32) // N_TXT
    self_bias = jnp.where(q_batch[:, None] == q_batch[None, :],
                          0.0, NEG_INF).astype(jnp.float32)              # (B*N_IMG, B*N_IMG)
    cross_valid = (q_batch[:, None] == kt_batch[None, :]) & attention_mask.reshape(-1)[None, :]
    cross_bias = jnp.where(cross_valid, 0.0, NEG_INF).astype(jnp.float32)  # (B*N_IMG, B*N_TXT)

    dec_pack = params["decoder"]
    m1, b1, m2, b2 = params["upsampler"]

    vmem_spec = pl.BlockSpec(memory_space=pltpu.MemorySpace.VMEM)
    hbm_spec = pl.BlockSpec(memory_space=pl.ANY)

    out_flat = pl.pallas_call(
        _fused_trans_decoder_kernel,
        out_shape=jax.ShapeDtypeStruct((B, UP_OUT_DIM), jnp.float32),
        in_specs=[vmem_spec] * 7 + [hbm_spec, hbm_spec],
        out_specs=vmem_spec,
        scratch_shapes=[
            pltpu.VMEM((UP_IN_DIM, UP_MID_DIM), jnp.bfloat16),   # m1 landing buffer
            pltpu.VMEM((UP_MID_DIM, UP_OUT_DIM), jnp.bfloat16),  # m2 landing buffer
            pltpu.SemaphoreType.DMA((2,)),
        ],
        cost_estimate=pl.CostEstimate(
            flops=5_000_000, transcendentals=16_000, bytes_accessed=1_800_000),
    )(tgt2, mem2, self_bias, cross_bias, dec_pack, b1, b2, m1, m2)

    # flat index = (y*W + x)*Cout + c  ->  NCHW like the PyTorch module output
    out = out_flat.reshape(B, FINAL_IMAGE_SIZE, FINAL_IMAGE_SIZE, NUM_OUTPUT_CHANNELS)
    return jnp.transpose(out, (0, 3, 1, 2))


# ----------------------------- main -----------------------------

if __name__ == "__main__":
    key = jax.random.PRNGKey(0)
    dec_pack, key = build_decoder_params(key)
    ups_params, key = build_upsampler_params(key)
    params = {"decoder": dec_pack, "upsampler": ups_params}

    key, k_tgt, k_mem = jax.random.split(key, 3)
    tgt = jax.random.normal(k_tgt, (BATCH, N_IMG, D_MODEL), jnp.float32)
    memory = jax.random.normal(k_mem, (BATCH, N_TXT, D_MODEL), jnp.float32)
    attention_mask = jnp.array(
        [[1, 1, 1, 1, 1, 1, 0, 0],
         [1, 1, 1, 1, 1, 1, 1, 1]], dtype=bool)            # (B, N_txt), True = valid

    out = trans_decoder_forward(params, tgt, attention_mask, memory)
    out = jax.block_until_ready(out)
    assert out.shape == (BATCH, NUM_OUTPUT_CHANNELS, FINAL_IMAGE_SIZE, FINAL_IMAGE_SIZE), out.shape
    assert bool(jnp.all(jnp.isfinite(out)))
    print("KERNEL_OK")
</pallas_src>

<mosaic_0001>
module attributes {stable_mosaic.version = 11 : i64} {
  func.func @_fused_trans_decoder_kernel(%arg0: memref<34x32xf32, #tpu.memory_space<vmem>>, %arg1: memref<16x32xf32, #tpu.memory_space<vmem>>, %arg2: memref<34x34xf32, #tpu.memory_space<vmem>>, %arg3: memref<34x16xf32, #tpu.memory_space<vmem>>, %arg4: memref<208x128xf32, #tpu.memory_space<vmem>>, %arg5: memref<1x1024xf32, #tpu.memory_space<vmem>>, %arg6: memref<1x256xf32, #tpu.memory_space<vmem>>, %arg7: memref<512x1024xbf16, #tpu.memory_space<any>>, %arg8: memref<1024x256xbf16, #tpu.memory_space<any>>, %arg9: memref<2x256xf32, #tpu.memory_space<vmem>>, %arg10: memref<512x1024xbf16, #tpu.memory_space<vmem>>, %arg11: memref<1024x256xbf16, #tpu.memory_space<vmem>>, %arg12: memref<2x!tpu.dma_semaphore, #tpu.memory_space<semaphore_mem>>) attributes {dimension_semantics = [], scalar_prefetch = 0 : i64, scratch_operands = 3 : i64, tpu.core_type = #tpu.core_type<tc>} {
    %c0_i32 = arith.constant 0 : i32
    %0 = tpu.memref_slice %arg12[%c0_i32] : memref<2x!tpu.dma_semaphore, #tpu.memory_space<semaphore_mem>> -> memref<1x!tpu.dma_semaphore, #tpu.memory_space<semaphore_mem>>
    %1 = tpu.memref_squeeze %0 : memref<1x!tpu.dma_semaphore, #tpu.memory_space<semaphore_mem>> -> memref<!tpu.dma_semaphore, #tpu.memory_space<semaphore_mem>>
    tpu.enqueue_dma source(%arg7 : memref<512x1024xbf16, #tpu.memory_space<any>>) target(%arg10 : memref<512x1024xbf16, #tpu.memory_space<vmem>>) target_semaphore(%1 : memref<!tpu.dma_semaphore, #tpu.memory_space<semaphore_mem>>)
    %c1_i32 = arith.constant 1 : i32
    %2 = tpu.memref_slice %arg12[%c1_i32] : memref<2x!tpu.dma_semaphore, #tpu.memory_space<semaphore_mem>> -> memref<1x!tpu.dma_semaphore, #tpu.memory_space<semaphore_mem>>
    %3 = tpu.memref_squeeze %2 : memref<1x!tpu.dma_semaphore, #tpu.memory_space<semaphore_mem>> -> memref<!tpu.dma_semaphore, #tpu.memory_space<semaphore_mem>>
    tpu.enqueue_dma source(%arg8 : memref<1024x256xbf16, #tpu.memory_space<any>>) target(%arg11 : memref<1024x256xbf16, #tpu.memory_space<vmem>>) target_semaphore(%3 : memref<!tpu.dma_semaphore, #tpu.memory_space<semaphore_mem>>)
    %c0 = arith.constant 0 : index
    %c0_0 = arith.constant 0 : index
    %4 = vector.load %arg0[%c0, %c0_0] : memref<34x32xf32, #tpu.memory_space<vmem>>, vector<34x32xf32>
    %c0_1 = arith.constant 0 : index
    %c0_2 = arith.constant 0 : index
    %5 = vector.load %arg1[%c0_1, %c0_2] : memref<16x32xf32, #tpu.memory_space<vmem>>, vector<16x32xf32>
    %c0_3 = arith.constant 0 : index
    %c0_4 = arith.constant 0 : index
    %6 = vector.load %arg2[%c0_3, %c0_4] : memref<34x34xf32, #tpu.memory_space<vmem>>, vector<34x34xf32>
    %c0_5 = arith.constant 0 : index
    %c0_6 = arith.constant 0 : index
    %7 = vector.load %arg3[%c0_5, %c0_6] : memref<34x16xf32, #tpu.memory_space<vmem>>, vector<34x16xf32>
    %c0_7 = arith.constant 0 : index
    %c0_8 = arith.constant 0 : index
    %8 = vector.load %arg4[%c0_7, %c0_8] : memref<208x128xf32, #tpu.memory_space<vmem>>, vector<32x128xf32>
    %c32 = arith.constant 32 : index
    %c0_9 = arith.constant 0 : index
    %9 = vector.load %arg4[%c32, %c0_9] : memref<208x128xf32, #tpu.memory_space<vmem>>, vector<32x128xf32>
    %c64 = arith.constant 64 : index
    %c0_10 = arith.constant 0 : index
    %10 = vector.load %arg4[%c64, %c0_10] : memref<208x128xf32, #tpu.memory_space<vmem>>, vector<32x128xf32>
    %c96 = arith.constant 96 : index
    %c0_11 = arith.constant 0 : index
    %11 = vector.load %arg4[%c96, %c0_11] : memref<208x128xf32, #tpu.memory_space<vmem>>, vector<8x128xf32>
    %12 = vector.extract_strided_slice %8 {offsets = [0, 0], sizes = [32, 96], strides = [1, 1]} : vector<32x128xf32> to vector<32x96xf32>
    %13 = vector.extract_strided_slice %8 {offsets = [0, 96], sizes = [32, 32], strides = [1, 1]} : vector<32x128xf32> to vector<32x32xf32>
    %14 = vector.extract_strided_slice %9 {offsets = [0, 0], sizes = [32, 32], strides = [1, 1]} : vector<32x128xf32> to vector<32x32xf32>
    %15 = vector.extract_strided_slice %9 {offsets = [0, 32], sizes = [32, 64], strides = [1, 1]} : vector<32x128xf32> to vector<32x64xf32>
    %16 = vector.extract_strided_slice %9 {offsets = [0, 96], sizes = [32, 32], strides = [1, 1]} : vector<32x128xf32> to vector<32x32xf32>
    %17 = vector.extract_strided_slice %10 {offsets = [0, 0], sizes = [32, 64], strides = [1, 1]} : vector<32x128xf32> to vector<32x64xf32>
    %18 = vector.extract_strided_slice %10 {offsets = [0, 64], sizes = [32, 64], strides = [1, 1]} : vector<32x128xf32> to vector<32x64xf32>
    %19 = vector.extract_strided_slice %11 {offsets = [0, 0], sizes = [1, 96], strides = [1, 1]} : vector<8x128xf32> to vector<1x96xf32>
    %20 = vector.extract_strided_slice %11 {offsets = [0, 96], sizes = [1, 32], strides = [1, 1]} : vector<8x128xf32> to vector<1x32xf32>
    %21 = vector.extract_strided_slice %11 {offsets = [1, 0], sizes = [1, 32], strides = [1, 1]} : vector<8x128xf32> to vector<1x32xf32>
    %22 = vector.extract_strided_slice %11 {offsets = [1, 32], sizes = [1, 64], strides = [1, 1]} : vector<8x128xf32> to vector<1x64xf32>
    %23 = vector.extract_strided_slice %11 {offsets = [1, 96], sizes = [1, 32], strides = [1, 1]} : vector<8x128xf32> to vector<1x32xf32>
    %24 = vector.extract_strided_slice %11 {offsets = [2, 0], sizes = [1, 64], strides = [1, 1]} : vector<8x128xf32> to vector<1x64xf32>
    %25 = vector.extract_strided_slice %11 {offsets = [2, 64], sizes = [1, 32], strides = [1, 1]} : vector<8x128xf32> to vector<1x32xf32>
    %26 = vector.extract_strided_slice %11 {offsets = [3, 0], sizes = [1, 32], strides = [1, 1]} : vector<8x128xf32> to vector<1x32xf32>
    %27 = vector.extract_strided_slice %11 {offsets = [3, 32], sizes = [1, 32], strides = [1, 1]} : vector<8x128xf32> to vector<1x32xf32>
    %28 = vector.extract_strided_slice %11 {offsets = [3, 64], sizes = [1, 32], strides = [1, 1]} : vector<8x128xf32> to vector<1x32xf32>
    %29 = vector.extract_strided_slice %11 {offsets = [3, 96], sizes = [1, 32], strides = [1, 1]} : vector<8x128xf32> to vector<1x32xf32>
    %30 = vector.extract_strided_slice %11 {offsets = [4, 0], sizes = [1, 32], strides = [1, 1]} : vector<8x128xf32> to vector<1x32xf32>
    %31 = vector.extract_strided_slice %11 {offsets = [4, 32], sizes = [1, 32], strides = [1, 1]} : vector<8x128xf32> to vector<1x32xf32>
    %cst = arith.constant dense<0.000000e+00> : vector<34x96xf32>
    %32 = tpu.matmul %4, %12, %cst {dimension_numbers = #tpu.dot_dimension_numbers<[1], [0], [0], [1], [0, 0, 1, 1], [], []>} : vector<34x32xf32>, vector<32x96xf32>, vector<34x96xf32> -> vector<34x96xf32>
    %33 = vector.broadcast %19 : vector<1x96xf32> to vector<34x96xf32>
    %34 = arith.addf %32, %33 : vector<34x96xf32>
    %35 = vector.extract_strided_slice %34 {offsets = [0, 0], sizes = [34, 32], strides = [1, 1]} : vector<34x96xf32> to vector<34x32xf32>
    %36 = vector.extract_strided_slice %34 {offsets = [0, 32], sizes = [34, 32], strides = [1, 1]} : vector<34x96xf32> to vector<34x32xf32>
    %37 = vector.extract_strided_slice %34 {offsets = [0, 64], sizes = [34, 32], strides = [1, 1]} : vector<34x96xf32> to vector<34x32xf32>
    %38 = vector.extract_strided_slice %35 {offsets = [0, 0], sizes = [34, 8], strides = [1, 1]} : vector<34x32xf32> to vector<34x8xf32>
    %39 = vector.extract_strided_slice %36 {offsets = [0, 0], sizes = [34, 8], strides = [1, 1]} : vector<34x32xf32> to vector<34x8xf32>
    %cst_12 = arith.constant dense<0.000000e+00> : vector<34x34xf32>
    %40 = tpu.matmul %38, %39, %cst_12 {dimension_numbers = #tpu.dot_dimension_numbers<[1], [1], [0], [0], [0, 0, 1, 0], [], []>} : vector<34x8xf32>, vector<34x8xf32>, vector<34x34xf32> -> vector<34x34xf32>
    %cst_13 = arith.constant 0.353553385 : f32
    %41 = vector.broadcast %cst_13 : f32 to vector<34x34xf32>
    %42 = arith.mulf %40, %41 : vector<34x34xf32>
    %43 = arith.addf %42, %6 : vector<34x34xf32>
    %cst_14 = arith.constant dense<0xFF800000> : vector<34xf32>
    %44 = vector.multi_reduction <maximumf>, %43, %cst_14 [1] : vector<34x34xf32> to vector<34xf32>
    %45 = vector.shape_cast %44 : vector<34xf32> to vector<34x1xf32>
    %46 = vector.broadcast %45 : vector<34x1xf32> to vector<34x34xf32>
    %47 = arith.subf %43, %46 : vector<34x34xf32>
    %48 = math.exp %47 : vector<34x34xf32>
    %cst_15 = arith.constant dense<0.000000e+00> : vector<34xf32>
    %49 = vector.multi_reduction <add>, %48, %cst_15 [1] : vector<34x34xf32> to vector<34xf32>
    %50 = vector.shape_cast %49 : vector<34xf32> to vector<34x1xf32>
    %51 = tpu.reciprocal %50 {approx = true} : vector<34x1xf32> -> vector<34x1xf32>
    %52 = vector.broadcast %51 : vector<34x1xf32> to vector<34x34xf32>
    %53 = arith.mulf %48, %52 : vector<34x34xf32>
    %54 = vector.extract_strided_slice %37 {offsets = [0, 0], sizes = [34, 8], strides = [1, 1]} : vector<34x32xf32> to vector<34x8xf32>
    %cst_16 = arith.constant dense<0.000000e+00> : vector<34x8xf32>
    %55 = tpu.matmul %53, %54, %cst_16 {dimension_numbers = #tpu.dot_dimension_numbers<[1], [0], [0], [1], [0, 0, 1, 1], [], []>} : vector<34x34xf32>, vector<34x8xf32>, vector<34x8xf32> -> vector<34x8xf32>
    %56 = vector.extract_strided_slice %35 {offsets = [0, 8], sizes = [34, 8], strides = [1, 1]} : vector<34x32xf32> to vector<34x8xf32>
    %57 = vector.extract_strided_slice %36 {offsets = [0, 8], sizes = [34, 8], strides = [1, 1]} : vector<34x32xf32> to vector<34x8xf32>
    %cst_17 = arith.constant dense<0.000000e+00> : vector<34x34xf32>
    %58 = tpu.matmul %56, %57, %cst_17 {dimension_numbers = #tpu.dot_dimension_numbers<[1], [1], [0], [0], [0, 0, 1, 0], [], []>} : vector<34x8xf32>, vector<34x8xf32>, vector<34x34xf32> -> vector<34x34xf32>
    %cst_18 = arith.constant 0.353553385 : f32
    %59 = vector.broadcast %cst_18 : f32 to vector<34x34xf32>
    %60 = arith.mulf %58, %59 : vector<34x34xf32>
    %61 = arith.addf %60, %6 : vector<34x34xf32>
    %cst_19 = arith.constant dense<0xFF800000> : vector<34xf32>
    %62 = vector.multi_reduction <maximumf>, %61, %cst_19 [1] : vector<34x34xf32> to vector<34xf32>
    %63 = vector.shape_cast %62 : vector<34xf32> to vector<34x1xf32>
    %64 = vector.broadcast %63 : vector<34x1xf32> to vector<34x34xf32>
    %65 = arith.subf %61, %64 : vector<34x34xf32>
    %66 = math.exp %65 : vector<34x34xf32>
    %cst_20 = arith.constant dense<0.000000e+00> : vector<34xf32>
    %67 = vector.multi_reduction <add>, %66, %cst_20 [1] : vector<34x34xf32> to vector<34xf32>
    %68 = vector.shape_cast %67 : vector<34xf32> to vector<34x1xf32>
    %69 = tpu.reciprocal %68 {approx = true} : vector<34x1xf32> -> vector<34x1xf32>
    %70 = vector.broadcast %69 : vector<34x1xf32> to vector<34x34xf32>
    %71 = arith.mulf %66, %70 : vector<34x34xf32>
    %72 = vector.extract_strided_slice %37 {offsets = [0, 8], sizes = [34, 8], strides = [1, 1]} : vector<34x32xf32> to vector<34x8xf32>
    %cst_21 = arith.constant dense<0.000000e+00> : vector<34x8xf32>
    %73 = tpu.matmul %71, %72, %cst_21 {dimension_numbers = #tpu.dot_dimension_numbers<[1], [0], [0], [1], [0, 0, 1, 1], [], []>} : vector<34x34xf32>, vector<34x8xf32>, vector<34x8xf32> -> vector<34x8xf32>
    %74 = vector.extract_strided_slice %35 {offsets = [0, 16], sizes = [34, 8], strides = [1, 1]} : vector<34x32xf32> to vector<34x8xf32>
    %75 = vector.extract_strided_slice %36 {offsets = [0, 16], sizes = [34, 8], strides = [1, 1]} : vector<34x32xf32> to vector<34x8xf32>
    %cst_22 = arith.constant dense<0.000000e+00> : vector<34x34xf32>
    %76 = tpu.matmul %74, %75, %cst_22 {dimension_numbers = #tpu.dot_dimension_numbers<[1], [1], [0], [0], [0, 0, 1, 0], [], []>} : vector<34x8xf32>, vector<34x8xf32>, vector<34x34xf32> -> vector<34x34xf32>
    %cst_23 = arith.constant 0.353553385 : f32
    %77 = vector.broadcast %cst_23 : f32 to vector<34x34xf32>
    %78 = arith.mulf %76, %77 : vector<34x34xf32>
    %79 = arith.addf %78, %6 : vector<34x34xf32>
    %cst_24 = arith.constant dense<0xFF800000> : vector<34xf32>
    %80 = vector.multi_reduction <maximumf>, %79, %cst_24 [1] : vector<34x34xf32> to vector<34xf32>
    %81 = vector.shape_cast %80 : vector<34xf32> to vector<34x1xf32>
    %82 = vector.broadcast %81 : vector<34x1xf32> to vector<34x34xf32>
    %83 = arith.subf %79, %82 : vector<34x34xf32>
    %84 = math.exp %83 : vector<34x34xf32>
    %cst_25 = arith.constant dense<0.000000e+00> : vector<34xf32>
    %85 = vector.multi_reduction <add>, %84, %cst_25 [1] : vector<34x34xf32> to vector<34xf32>
    %86 = vector.shape_cast %85 : vector<34xf32> to vector<34x1xf32>
    %87 = tpu.reciprocal %86 {approx = true} : vector<34x1xf32> -> vector<34x1xf32>
    %88 = vector.broadcast %87 : vector<34x1xf32> to vector<34x34xf32>
    %89 = arith.mulf %84, %88 : vector<34x34xf32>
    %90 = vector.extract_strided_slice %37 {offsets = [0, 16], sizes = [34, 8], strides = [1, 1]} : vector<34x32xf32> to vector<34x8xf32>
    %cst_26 = arith.constant dense<0.000000e+00> : vector<34x8xf32>
    %91 = tpu.matmul %89, %90, %cst_26 {dimension_numbers = #tpu.dot_dimension_numbers<[1], [0], [0], [1], [0, 0, 1, 1], [], []>} : vector<34x34xf32>, vector<34x8xf32>, vector<34x8xf32> -> vector<34x8xf32>
    %92 = vector.extract_strided_slice %35 {offsets = [0, 24], sizes = [34, 8], strides = [1, 1]} : vector<34x32xf32> to vector<34x8xf32>
    %93 = vector.extract_strided_slice %36 {offsets = [0, 24], sizes = [34, 8], strides = [1, 1]} : vector<34x32xf32> to vector<34x8xf32>
    %cst_27 = arith.constant dense<0.000000e+00> : vector<34x34xf32>
    %94 = tpu.matmul %92, %93, %cst_27 {dimension_numbers = #tpu.dot_dimension_numbers<[1], [1], [0], [0], [0, 0, 1, 0], [], []>} : vector<34x8xf32>, vector<34x8xf32>, vector<34x34xf32> -> vector<34x34xf32>
    %cst_28 = arith.constant 0.353553385 : f32
    %95 = vector.broadcast %cst_28 : f32 to vector<34x34xf32>
    %96 = arith.mulf %94, %95 : vector<34x34xf32>
    %97 = arith.addf %96, %6 : vector<34x34xf32>
    %cst_29 = arith.constant dense<0xFF800000> : vector<34xf32>
    %98 = vector.multi_reduction <maximumf>, %97, %cst_29 [1] : vector<34x34xf32> to vector<34xf32>
    %99 = vector.shape_cast %98 : vector<34xf32> to vector<34x1xf32>
    %100 = vector.broadcast %99 : vector<34x1xf32> to vector<34x34xf32>
    %101 = arith.subf %97, %100 : vector<34x34xf32>
    %102 = math.exp %101 : vector<34x34xf32>
    %cst_30 = arith.constant dense<0.000000e+00> : vector<34xf32>
    %103 = vector.multi_reduction <add>, %102, %cst_30 [1] : vector<34x34xf32> to vector<34xf32>
    %104 = vector.shape_cast %103 : vector<34xf32> to vector<34x1xf32>
    %105 = tpu.reciprocal %104 {approx = true} : vector<34x1xf32> -> vector<34x1xf32>
    %106 = vector.broadcast %105 : vector<34x1xf32> to vector<34x34xf32>
    %107 = arith.mulf %102, %106 : vector<34x34xf32>
    %108 = vector.extract_strided_slice %37 {offsets = [0, 24], sizes = [34, 8], strides = [1, 1]} : vector<34x32xf32> to vector<34x8xf32>
    %cst_31 = arith.constant dense<0.000000e+00> : vector<34x8xf32>
    %109 = tpu.matmul %107, %108, %cst_31 {dimension_numbers = #tpu.dot_dimension_numbers<[1], [0], [0], [1], [0, 0, 1, 1], [], []>} : vector<34x34xf32>, vector<34x8xf32>, vector<34x8xf32> -> vector<34x8xf32>
    %110 = tpu.concatenate %55, %73, %91, %109 in 1 : vector<34x8xf32>, vector<34x8xf32>, vector<34x8xf32>, vector<34x8xf32> -> vector<34x32xf32>
    %cst_32 = arith.constant dense<0.000000e+00> : vector<34x32xf32>
    %111 = tpu.matmul %110, %13, %cst_32 {dimension_numbers = #tpu.dot_dimension_numbers<[1], [0], [0], [1], [0, 0, 1, 1], [], []>} : vector<34x32xf32>, vector<32x32xf32>, vector<34x32xf32> -> vector<34x32xf32>
    %112 = arith.addf %4, %111 : vector<34x32xf32>
    %113 = vector.broadcast %20 : vector<1x32xf32> to vector<34x32xf32>
    %114 = arith.addf %112, %113 : vector<34x32xf32>
    %cst_33 = arith.constant dense<0.000000e+00> : vector<34xf32>
    %115 = vector.multi_reduction <add>, %114, %cst_33 [1] : vector<34x32xf32> to vector<34xf32>
    %116 = vector.shape_cast %115 : vector<34xf32> to vector<34x1xf32>
    %cst_34 = arith.constant 3.200000e+01 : f32
    %117 = vector.broadcast %cst_34 : f32 to vector<34x1xf32>
    %118 = arith.divf %116, %117 : vector<34x1xf32>
    %119 = vector.broadcast %118 : vector<34x1xf32> to vector<34x32xf32>
    %120 = arith.subf %114, %119 : vector<34x32xf32>
    %121 = arith.mulf %120, %120 : vector<34x32xf32>
    %cst_35 = arith.constant dense<0.000000e+00> : vector<34xf32>
    %122 = vector.multi_reduction <add>, %121, %cst_35 [1] : vector<34x32xf32> to vector<34xf32>
    %123 = vector.shape_cast %122 : vector<34xf32> to vector<34x1xf32>
    %cst_36 = arith.constant 3.200000e+01 : f32
    %124 = vector.broadcast %cst_36 : f32 to vector<34x1xf32>
    %125 = arith.divf %123, %124 : vector<34x1xf32>
    %126 = vector.broadcast %118 : vector<34x1xf32> to vector<34x32xf32>
    %127 = arith.subf %114, %126 : vector<34x32xf32>
    %cst_37 = arith.constant 9.99999974E-6 : f32
    %128 = vector.broadcast %cst_37 : f32 to vector<34x1xf32>
    %129 = arith.addf %125, %128 : vector<34x1xf32>
    %130 = math.rsqrt %129 : vector<34x1xf32>
    %131 = vector.broadcast %130 : vector<34x1xf32> to vector<34x32xf32>
    %132 = arith.mulf %127, %131 : vector<34x32xf32>
    %133 = vector.broadcast %26 : vector<1x32xf32> to vector<34x32xf32>
    %134 = arith.mulf %132, %133 : vector<34x32xf32>
    %135 = vector.broadcast %27 : vector<1x32xf32> to vector<34x32xf32>
    %136 = arith.addf %134, %135 : vector<34x32xf32>
    %cst_38 = arith.constant dense<0.000000e+00> : vector<34x32xf32>
    %137 = tpu.matmul %136, %14, %cst_38 {dimension_numbers = #tpu.dot_dimension_numbers<[1], [0], [0], [1], [0, 0, 1, 1], [], []>} : vector<34x32xf32>, vector<32x32xf32>, vector<34x32xf32> -> vector<34x32xf32>
    %138 = vector.broadcast %21 : vector<1x32xf32> to vector<34x32xf32>
    %139 = arith.addf %137, %138 : vector<34x32xf32>
    %cst_39 = arith.constant dense<0.000000e+00> : vector<16x64xf32>
    %140 = tpu.matmul %5, %15, %cst_39 {dimension_numbers = #tpu.dot_dimension_numbers<[1], [0], [0], [1], [0, 0, 1, 1], [], []>} : vector<16x32xf32>, vector<32x64xf32>, vector<16x64xf32> -> vector<16x64xf32>
    %141 = vector.broadcast %22 : vector<1x64xf32> to vector<16x64xf32>
    %142 = arith.addf %140, %141 : vector<16x64xf32>
    %143 = vector.extract_strided_slice %142 {offsets = [0, 0], sizes = [16, 32], strides = [1, 1]} : vector<16x64xf32> to vector<16x32xf32>
    %144 = vector.extract_strided_slice %142 {offsets = [0, 32], sizes = [16, 32], strides = [1, 1]} : vector<16x64xf32> to vector<16x32xf32>
    %145 = vector.extract_strided_slice %139 {offsets = [0, 0], sizes = [34, 8], strides = [1, 1]} : vector<34x32xf32> to vector<34x8xf32>
    %146 = vector.extract_strided_slice %143 {offsets = [0, 0], sizes = [16, 8], strides = [1, 1]} : vector<16x32xf32> to vector<16x8xf32>
    %cst_40 = arith.constant dense<0.000000e+00> : vector<34x16xf32>
    %147 = tpu.matmul %145, %146, %cst_40 {dimension_numbers = #tpu.dot_dimension_numbers<[1], [1], [0], [0], [0, 0, 1, 0], [], []>} : vector<34x8xf32>, vector<16x8xf32>, vector<34x16xf32> -> vector<34x16xf32>
    %cst_41 = arith.constant 0.353553385 : f32
    %148 = vector.broadcast %cst_41 : f32 to vector<34x16xf32>
    %149 = arith.mulf %147, %148 : vector<34x16xf32>
    %150 = arith.addf %149, %7 : vector<34x16xf32>
    %cst_42 = arith.constant dense<0xFF800000> : vector<34xf32>
    %151 = vector.multi_reduction <maximumf>, %150, %cst_42 [1] : vector<34x16xf32> to vector<34xf32>
    %152 = vector.shape_cast %151 : vector<34xf32> to vector<34x1xf32>
    %153 = vector.broadcast %152 : vector<34x1xf32> to vector<34x16xf32>
    %154 = arith.subf %150, %153 : vector<34x16xf32>
    %155 = math.exp %154 : vector<34x16xf32>
    %cst_43 = arith.constant dense<0.000000e+00> : vector<34xf32>
    %156 = vector.multi_reduction <add>, %155, %cst_43 [1] : vector<34x16xf32> to vector<34xf32>
    %157 = vector.shape_cast %156 : vector<34xf32> to vector<34x1xf32>
    %158 = tpu.reciprocal %157 {approx = true} : vector<34x1xf32> -> vector<34x1xf32>
    %159 = vector.broadcast %158 : vector<34x1xf32> to vector<34x16xf32>
    %160 = arith.mulf %155, %159 : vector<34x16xf32>
    %161 = vector.extract_strided_slice %144 {offsets = [0, 0], sizes = [16, 8], strides = [1, 1]} : vector<16x32xf32> to vector<16x8xf32>
    %cst_44 = arith.constant dense<0.000000e+00> : vector<34x8xf32>
    %162 = tpu.matmul %160, %161, %cst_44 {dimension_numbers = #tpu.dot_dimension_numbers<[1], [0], [0], [1], [0, 0, 1, 1], [], []>} : vector<34x16xf32>, vector<16x8xf32>, vector<34x8xf32> -> vector<34x8xf32>
    %163 = vector.extract_strided_slice %139 {offsets = [0, 8], sizes = [34, 8], strides = [1, 1]} : vector<34x32xf32> to vector<34x8xf32>
    %164 = vector.extract_strided_slice %143 {offsets = [0, 8], sizes = [16, 8], strides = [1, 1]} : vector<16x32xf32> to vector<16x8xf32>
    %cst_45 = arith.constant dense<0.000000e+00> : vector<34x16xf32>
    %165 = tpu.matmul %163, %164, %cst_45 {dimension_numbers = #tpu.dot_dimension_numbers<[1], [1], [0], [0], [0, 0, 1, 0], [], []>} : vector<34x8xf32>, vector<16x8xf32>, vector<34x16xf32> -> vector<34x16xf32>
    %cst_46 = arith.constant 0.353553385 : f32
    %166 = vector.broadcast %cst_46 : f32 to vector<34x16xf32>
    %167 = arith.mulf %165, %166 : vector<34x16xf32>
    %168 = arith.addf %167, %7 : vector<34x16xf32>
    %cst_47 = arith.constant dense<0xFF800000> : vector<34xf32>
    %169 = vector.multi_reduction <maximumf>, %168, %cst_47 [1] : vector<34x16xf32> to vector<34xf32>
    %170 = vector.shape_cast %169 : vector<34xf32> to vector<34x1xf32>
    %171 = vector.broadcast %170 : vector<34x1xf32> to vector<34x16xf32>
    %172 = arith.subf %168, %171 : vector<34x16xf32>
    %173 = math.exp %172 : vector<34x16xf32>
    %cst_48 = arith.constant dense<0.000000e+00> : vector<34xf32>
    %174 = vector.multi_reduction <add>, %173, %cst_48 [1] : vector<34x16xf32> to vector<34xf32>
    %175 = vector.shape_cast %174 : vector<34xf32> to vector<34x1xf32>
    %176 = tpu.reciprocal %175 {approx = true} : vector<34x1xf32> -> vector<34x1xf32>
    %177 = vector.broadcast %176 : vector<34x1xf32> to vector<34x16xf32>
    %178 = arith.mulf %173, %177 : vector<34x16xf32>
    %179 = vector.extract_strided_slice %144 {offsets = [0, 8], sizes = [16, 8], strides = [1, 1]} : vector<16x32xf32> to vector<16x8xf32>
    %cst_49 = arith.constant dense<0.000000e+00> : vector<34x8xf32>
    %180 = tpu.matmul %178, %179, %cst_49 {dimension_numbers = #tpu.dot_dimension_numbers<[1], [0], [0], [1], [0, 0, 1, 1], [], []>} : vector<34x16xf32>, vector<16x8xf32>, vector<34x8xf32> -> vector<34x8xf32>
    %181 = vector.extract_strided_slice %139 {offsets = [0, 16], sizes = [34, 8], strides = [1, 1]} : vector<34x32xf32> to vector<34x8xf32>
    %182 = vector.extract_strided_slice %143 {offsets = [0, 16], sizes = [16, 8], strides = [1, 1]} : vector<16x32xf32> to vector<16x8xf32>
    %cst_50 = arith.constant dense<0.000000e+00> : vector<34x16xf32>
    %183 = tpu.matmul %181, %182, %cst_50 {dimension_numbers = #tpu.dot_dimension_numbers<[1], [1], [0], [0], [0, 0, 1, 0], [], []>} : vector<34x8xf32>, vector<16x8xf32>, vector<34x16xf32> -> vector<34x16xf32>
    %cst_51 = arith.constant 0.353553385 : f32
    %184 = vector.broadcast %cst_51 : f32 to vector<34x16xf32>
    %185 = arith.mulf %183, %184 : vector<34x16xf32>
    %186 = arith.addf %185, %7 : vector<34x16xf32>
    %cst_52 = arith.constant dense<0xFF800000> : vector<34xf32>
    %187 = vector.multi_reduction <maximumf>, %186, %cst_52 [1] : vector<34x16xf32> to vector<34xf32>
    %188 = vector.shape_cast %187 : vector<34xf32> to vector<34x1xf32>
    %189 = vector.broadcast %188 : vector<34x1xf32> to vector<34x16xf32>
    %190 = arith.subf %186, %189 : vector<34x16xf32>
    %191 = math.exp %190 : vector<34x16xf32>
    %cst_53 = arith.constant dense<0.000000e+00> : vector<34xf32>
    %192 = vector.multi_reduction <add>, %191, %cst_53 [1] : vector<34x16xf32> to vector<34xf32>
    %193 = vector.shape_cast %192 : vector<34xf32> to vector<34x1xf32>
    %194 = tpu.reciprocal %193 {approx = true} : vector<34x1xf32> -> vector<34x1xf32>
    %195 = vector.broadcast %194 : vector<34x1xf32> to vector<34x16xf32>
    %196 = arith.mulf %191, %195 : vector<34x16xf32>
    %197 = vector.extract_strided_slice %144 {offsets = [0, 16], sizes = [16, 8], strides = [1, 1]} : vector<16x32xf32> to vector<16x8xf32>
    %cst_54 = arith.constant dense<0.000000e+00> : vector<34x8xf32>
    %198 = tpu.matmul %196, %197, %cst_54 {dimension_numbers = #tpu.dot_dimension_numbers<[1], [0], [0], [1], [0, 0, 1, 1], [], []>} : vector<34x16xf32>, vector<16x8xf32>, vector<34x8xf32> -> vector<34x8xf32>
    %199 = vector.extract_strided_slice %139 {offsets = [0, 24], sizes = [34, 8], strides = [1, 1]} : vector<34x32xf32> to vector<34x8xf32>
    %200 = vector.extract_strided_slice %143 {offsets = [0, 24], sizes = [16, 8], strides = [1, 1]} : vector<16x32xf32> to vector<16x8xf32>
    %cst_55 = arith.constant dense<0.000000e+00> : vector<34x16xf32>
    %201 = tpu.matmul %199, %200, %cst_55 {dimension_numbers = #tpu.dot_dimension_numbers<[1], [1], [0], [0], [0, 0, 1, 0], [], []>} : vector<34x8xf32>, vector<16x8xf32>, vector<34x16xf32> -> vector<34x16xf32>
    %cst_56 = arith.constant 0.353553385 : f32
    %202 = vector.broadcast %cst_56 : f32 to vector<34x16xf32>
    %203 = arith.mulf %201, %202 : vector<34x16xf32>
    %204 = arith.addf %203, %7 : vector<34x16xf32>
    %cst_57 = arith.constant dense<0xFF800000> : vector<34xf32>
    %205 = vector.multi_reduction <maximumf>, %204, %cst_57 [1] : vector<34x16xf32> to vector<34xf32>
    %206 = vector.shape_cast %205 : vector<34xf32> to vector<34x1xf32>
    %207 = vector.broadcast %206 : vector<34x1xf32> to vector<34x16xf32>
    %208 = arith.subf %204, %207 : vector<34x16xf32>
    %209 = math.exp %208 : vector<34x16xf32>
    %cst_58 = arith.constant dense<0.000000e+00> : vector<34xf32>
    %210 = vector.multi_reduction <add>, %209, %cst_58 [1] : vector<34x16xf32> to vector<34xf32>
    %211 = vector.shape_cast %210 : vector<34xf32> to vector<34x1xf32>
    %212 = tpu.reciprocal %211 {approx = true} : vector<34x1xf32> -> vector<34x1xf32>
    %213 = vector.broadcast %212 : vector<34x1xf32> to vector<34x16xf32>
    %214 = arith.mulf %209, %213 : vector<34x16xf32>
    %215 = vector.extract_strided_slice %144 {offsets = [0, 24], sizes = [16, 8], strides = [1, 1]} : vector<16x32xf32> to vector<16x8xf32>
    %cst_59 = arith.constant dense<0.000000e+00> : vector<34x8xf32>
    %216 = tpu.matmul %214, %215, %cst_59 {dimension_numbers = #tpu.dot_dimension_numbers<[1], [0], [0], [1], [0, 0, 1, 1], [], []>} : vector<34x16xf32>, vector<16x8xf32>, vector<34x8xf32> -> vector<34x8xf32>
    %217 = tpu.concatenate %162, %180, %198, %216 in 1 : vector<34x8xf32>, vector<34x8xf32>, vector<34x8xf32>, vector<34x8xf32> -> vector<34x32xf32>
    %cst_60 = arith.constant dense<0.000000e+00> : vector<34x32xf32>
    %218 = tpu.matmul %217, %16, %cst_60 {dimension_numbers = #tpu.dot_dimension_numbers<[1], [0], [0], [1], [0, 0, 1, 1], [], []>} : vector<34x32xf32>, vector<32x32xf32>, vector<34x32xf32> -> vector<34x32xf32>
    %219 = arith.addf %136, %218 : vector<34x32xf32>
    %220 = vector.broadcast %23 : vector<1x32xf32> to vector<34x32xf32>
    %221 = arith.addf %219, %220 : vector<34x32xf32>
    %cst_61 = arith.constant dense<0.000000e+00> : vector<34xf32>
    %222 = vector.multi_reduction <add>, %221, %cst_61 [1] : vector<34x32xf32> to vector<34xf32>
    %223 = vector.shape_cast %222 : vector<34xf32> to vector<34x1xf32>
    %cst_62 = arith.constant 3.200000e+01 : f32
    %224 = vector.broadcast %cst_62 : f32 to vector<34x1xf32>
    %225 = arith.divf %223, %224 : vector<34x1xf32>
    %226 = vector.broadcast %225 : vector<34x1xf32> to vector<34x32xf32>
    %227 = arith.subf %221, %226 : vector<34x32xf32>
    %228 = arith.mulf %227, %227 : vector<34x32xf32>
    %cst_63 = arith.constant dense<0.000000e+00> : vector<34xf32>
    %229 = vector.multi_reduction <add>, %228, %cst_63 [1] : vector<34x32xf32> to vector<34xf32>
    %230 = vector.shape_cast %229 : vector<34xf32> to vector<34x1xf32>
    %cst_64 = arith.constant 3.200000e+01 : f32
    %231 = vector.broadcast %cst_64 : f32 to vector<34x1xf32>
    %232 = arith.divf %230, %231 : vector<34x1xf32>
    %233 = vector.broadcast %225 : vector<34x1xf32> to vector<34x32xf32>
    %234 = arith.subf %221, %233 : vector<34x32xf32>
    %cst_65 = arith.constant 9.99999974E-6 : f32
    %235 = vector.broadcast %cst_65 : f32 to vector<34x1xf32>
    %236 = arith.addf %232, %235 : vector<34x1xf32>
    %237 = math.rsqrt %236 : vector<34x1xf32>
    %238 = vector.broadcast %237 : vector<34x1xf32> to vector<34x32xf32>
    %239 = arith.mulf %234, %238 : vector<34x32xf32>
    %240 = vector.broadcast %28 : vector<1x32xf32> to vector<34x32xf32>
    %241 = arith.mulf %239, %240 : vector<34x32xf32>
    %242 = vector.broadcast %29 : vector<1x32xf32> to vector<34x32xf32>
    %243 = arith.addf %241, %242 : vector<34x32xf32>
    %cst_66 = arith.constant dense<0.000000e+00> : vector<34x64xf32>
    %244 = tpu.matmul %243, %17, %cst_66 {dimension_numbers = #tpu.dot_dimension_numbers<[1], [0], [0], [1], [0, 0, 1, 1], [], []>} : vector<34x32xf32>, vector<32x64xf32>, vector<34x64xf32> -> vector<34x64xf32>
    %245 = vector.broadcast %24 : vector<1x64xf32> to vector<34x64xf32>
    %246 = arith.addf %244, %245 : vector<34x64xf32>
    %cst_67 = arith.constant 0.000000e+00 : f32
    %247 = vector.broadcast %cst_67 : f32 to vector<34x64xf32>
    %248 = arith.maximumf %246, %247 : vector<34x64xf32>
    %cst_68 = arith.constant dense<0.000000e+00> : vector<34x32xf32>
    %249 = tpu.matmul %248, %18, %cst_68 {dimension_numbers = #tpu.dot_dimension_numbers<[1], [1], [0], [0], [0, 0, 1, 0], [], []>} : vector<34x64xf32>, vector<32x64xf32>, vector<34x32xf32> -> vector<34x32xf32>
    %250 = vector.broadcast %25 : vector<1x32xf32> to vector<34x32xf32>
    %251 = arith.addf %249, %250 : vector<34x32xf32>
    %252 = arith.addf %243, %251 : vector<34x32xf32>
    %cst_69 = arith.constant dense<0.000000e+00> : vector<34xf32>
    %253 = vector.multi_reduction <add>, %252, %cst_69 [1] : vector<34x32xf32> to vector<34xf32>
    %254 = vector.shape_cast %253 : vector<34xf32> to vector<34x1xf32>
    %cst_70 = arith.constant 3.200000e+01 : f32
    %255 = vector.broadcast %cst_70 : f32 to vector<34x1xf32>
    %256 = arith.divf %254, %255 : vector<34x1xf32>
    %257 = vector.broadcast %256 : vector<34x1xf32> to vector<34x32xf32>
    %258 = arith.subf %252, %257 : vector<34x32xf32>
    %259 = arith.mulf %258, %258 : vector<34x32xf32>
    %cst_71 = arith.constant dense<0.000000e+00> : vector<34xf32>
    %260 = vector.multi_reduction <add>, %259, %cst_71 [1] : vector<34x32xf32> to vector<34xf32>
    %261 = vector.shape_cast %260 : vector<34xf32> to vector<34x1xf32>
    %cst_72 = arith.constant 3.200000e+01 : f32
    %262 = vector.broadcast %cst_72 : f32 to vector<34x1xf32>
    %263 = arith.divf %261, %262 : vector<34x1xf32>
    %264 = vector.broadcast %256 : vector<34x1xf32> to vector<34x32xf32>
    %265 = arith.subf %252, %264 : vector<34x32xf32>
    %cst_73 = arith.constant 9.99999974E-6 : f32
    %266 = vector.broadcast %cst_73 : f32 to vector<34x1xf32>
    %267 = arith.addf %263, %266 : vector<34x1xf32>
    %268 = math.rsqrt %267 : vector<34x1xf32>
    %269 = vector.broadcast %268 : vector<34x1xf32> to vector<34x32xf32>
    %270 = arith.mulf %265, %269 : vector<34x32xf32>
    %271 = vector.broadcast %30 : vector<1x32xf32> to vector<34x32xf32>
    %272 = arith.mulf %270, %271 : vector<34x32xf32>
    %273 = vector.broadcast %31 : vector<1x32xf32> to vector<34x32xf32>
    %274 = arith.addf %272, %273 : vector<34x32xf32>
    %c104 = arith.constant 104 : index
    %c0_74 = arith.constant 0 : index
    %275 = vector.load %arg4[%c104, %c0_74] : memref<208x128xf32, #tpu.memory_space<vmem>>, vector<32x128xf32>
    %c136 = arith.constant 136 : index
    %c0_75 = arith.constant 0 : index
    %276 = vector.load %arg4[%c136, %c0_75] : memref<208x128xf32, #tpu.memory_space<vmem>>, vector<32x128xf32>
    %c168 = arith.constant 168 : index
    %c0_76 = arith.constant 0 : index
    %277 = vector.load %arg4[%c168, %c0_76] : memref<208x128xf32, #tpu.memory_space<vmem>>, vector<32x128xf32>
    %c200 = arith.constant 200 : index
    %c0_77 = arith.constant 0 : index
    %278 = vector.load %arg4[%c200, %c0_77] : memref<208x128xf32, #tpu.memory_space<vmem>>, vector<8x128xf32>
    %279 = vector.extract_strided_slice %275 {offsets = [0, 0], sizes = [32, 96], strides = [1, 1]} : vector<32x128xf32> to vector<32x96xf32>
    %280 = vector.extract_strided_slice %275 {offsets = [0, 96], sizes = [32, 32], strides = [1, 1]} : vector<32x128xf32> to vector<32x32xf32>
    %281 = vector.extract_strided_slice %276 {offsets = [0, 0], sizes = [32, 32], strides = [1, 1]} : vector<32x128xf32> to vector<32x32xf32>
    %282 = vector.extract_strided_slice %276 {offsets = [0, 32], sizes = [32, 64], strides = [1, 1]} : vector<32x128xf32> to vector<32x64xf32>
    %283 = vector.extract_strided_slice %276 {offsets = [0, 96], sizes = [32, 32], strides = [1, 1]} : vector<32x128xf32> to vector<32x32xf32>
    %284 = vector.extract_strided_slice %277 {offsets = [0, 0], sizes = [32, 64], strides = [1, 1]} : vector<32x128xf32> to vector<32x64xf32>
    %285 = vector.extract_strided_slice %277 {offsets = [0, 64], sizes = [32, 64], strides = [1, 1]} : vector<32x128xf32> to vector<32x64xf32>
    %286 = vector.extract_strided_slice %278 {offsets = [0, 0], sizes = [1, 96], strides = [1, 1]} : vector<8x128xf32> to vector<1x96xf32>
    %287 = vector.extract_strided_slice %278 {offsets = [0, 96], sizes = [1, 32], strides = [1, 1]} : vector<8x128xf32> to vector<1x32xf32>
    %288 = vector.extract_strided_slice %278 {offsets = [1, 0], sizes = [1, 32], strides = [1, 1]} : vector<8x128xf32> to vector<1x32xf32>
    %289 = vector.extract_strided_slice %278 {offsets = [1, 32], sizes = [1, 64], strides = [1, 1]} : vector<8x128xf32> to vector<1x64xf32>
    %290 = vector.extract_strided_slice %278 {offsets = [1, 96], sizes = [1, 32], strides = [1, 1]} : vector<8x128xf32> to vector<1x32xf32>
    %291 = vector.extract_strided_slice %278 {offsets = [2, 0], sizes = [1, 64], strides = [1, 1]} : vector<8x128xf32> to vector<1x64xf32>
    %292 = vector.extract_strided_slice %278 {offsets = [2, 64], sizes = [1, 32], strides = [1, 1]} : vector<8x128xf32> to vector<1x32xf32>
    %293 = vector.extract_strided_slice %278 {offsets = [3, 0], sizes = [1, 32], strides = [1, 1]} : vector<8x128xf32> to vector<1x32xf32>
    %294 = vector.extract_strided_slice %278 {offsets = [3, 32], sizes = [1, 32], strides = [1, 1]} : vector<8x128xf32> to vector<1x32xf32>
    %295 = vector.extract_strided_slice %278 {offsets = [3, 64], sizes = [1, 32], strides = [1, 1]} : vector<8x128xf32> to vector<1x32xf32>
    %296 = vector.extract_strided_slice %278 {offsets = [3, 96], sizes = [1, 32], strides = [1, 1]} : vector<8x128xf32> to vector<1x32xf32>
    %297 = vector.extract_strided_slice %278 {offsets = [4, 0], sizes = [1, 32], strides = [1, 1]} : vector<8x128xf32> to vector<1x32xf32>
    %298 = vector.extract_strided_slice %278 {offsets = [4, 32], sizes = [1, 32], strides = [1, 1]} : vector<8x128xf32> to vector<1x32xf32>
    %cst_78 = arith.constant dense<0.000000e+00> : vector<34x96xf32>
    %299 = tpu.matmul %274, %279, %cst_78 {dimension_numbers = #tpu.dot_dimension_numbers<[1], [0], [0], [1], [0, 0, 1, 1], [], []>} : vector<34x32xf32>, vector<32x96xf32>, vector<34x96xf32> -> vector<34x96xf32>
    %300 = vector.broadcast %286 : vector<1x96xf32> to vector<34x96xf32>
    %301 = arith.addf %299, %300 : vector<34x96xf32>
    %302 = vector.extract_strided_slice %301 {offsets = [0, 0], sizes = [34, 32], strides = [1, 1]} : vector<34x96xf32> to vector<34x32xf32>
    %303 = vector.extract_strided_slice %301 {offsets = [0, 32], sizes = [34, 32], strides = [1, 1]} : vector<34x96xf32> to vector<34x32xf32>
    %304 = vector.extract_strided_slice %301 {offsets = [0, 64], sizes = [34, 32], strides = [1, 1]} : vector<34x96xf32> to vector<34x32xf32>
    %305 = vector.extract_strided_slice %302 {offsets = [0, 0], sizes = [34, 8], strides = [1, 1]} : vector<34x32xf32> to vector<34x8xf32>
    %306 = vector.extract_strided_slice %303 {offsets = [0, 0], sizes = [34, 8], strides = [1, 1]} : vector<34x32xf32> to vector<34x8xf32>
    %cst_79 = arith.constant dense<0.000000e+00> : vector<34x34xf32>
    %307 = tpu.matmul %305, %306, %cst_79 {dimension_numbers = #tpu.dot_dimension_numbers<[1], [1], [0], [0], [0, 0, 1, 0], [], []>} : vector<34x8xf32>, vector<34x8xf32>, vector<34x34xf32> -> vector<34x34xf32>
    %cst_80 = arith.constant 0.353553385 : f32
    %308 = vector.broadcast %cst_80 : f32 to vector<34x34xf32>
    %309 = arith.mulf %307, %308 : vector<34x34xf32>
    %310 = arith.addf %309, %6 : vector<34x34xf32>
    %cst_81 = arith.constant dense<0xFF800000> : vector<34xf32>
    %311 = vector.multi_reduction <maximumf>, %310, %cst_81 [1] : vector<34x34xf32> to vector<34xf32>
    %312 = vector.shape_cast %311 : vector<34xf32> to vector<34x1xf32>
    %313 = vector.broadcast %312 : vector<34x1xf32> to vector<34x34xf32>
    %314 = arith.subf %310, %313 : vector<34x34xf32>
    %315 = math.exp %314 : vector<34x34xf32>
    %cst_82 = arith.constant dense<0.000000e+00> : vector<34xf32>
    %316 = vector.multi_reduction <add>, %315, %cst_82 [1] : vector<34x34xf32> to vector<34xf32>
    %317 = vector.shape_cast %316 : vector<34xf32> to vector<34x1xf32>
    %318 = tpu.reciprocal %317 {approx = true} : vector<34x1xf32> -> vector<34x1xf32>
    %319 = vector.broadcast %318 : vector<34x1xf32> to vector<34x34xf32>
    %320 = arith.mulf %315, %319 : vector<34x34xf32>
    %321 = vector.extract_strided_slice %304 {offsets = [0, 0], sizes = [34, 8], strides = [1, 1]} : vector<34x32xf32> to vector<34x8xf32>
    %cst_83 = arith.constant dense<0.000000e+00> : vector<34x8xf32>
    %322 = tpu.matmul %320, %321, %cst_83 {dimension_numbers = #tpu.dot_dimension_numbers<[1], [0], [0], [1], [0, 0, 1, 1], [], []>} : vector<34x34xf32>, vector<34x8xf32>, vector<34x8xf32> -> vector<34x8xf32>
    %323 = vector.extract_strided_slice %302 {offsets = [0, 8], sizes = [34, 8], strides = [1, 1]} : vector<34x32xf32> to vector<34x8xf32>
    %324 = vector.extract_strided_slice %303 {offsets = [0, 8], sizes = [34, 8], strides = [1, 1]} : vector<34x32xf32> to vector<34x8xf32>
    %cst_84 = arith.constant dense<0.000000e+00> : vector<34x34xf32>
    %325 = tpu.matmul %323, %324, %cst_84 {dimension_numbers = #tpu.dot_dimension_numbers<[1], [1], [0], [0], [0, 0, 1, 0], [], []>} : vector<34x8xf32>, vector<34x8xf32>, vector<34x34xf32> -> vector<34x34xf32>
    %cst_85 = arith.constant 0.353553385 : f32
    %326 = vector.broadcast %cst_85 : f32 to vector<34x34xf32>
    %327 = arith.mulf %325, %326 : vector<34x34xf32>
    %328 = arith.addf %327, %6 : vector<34x34xf32>
    %cst_86 = arith.constant dense<0xFF800000> : vector<34xf32>
    %329 = vector.multi_reduction <maximumf>, %328, %cst_86 [1] : vector<34x34xf32> to vector<34xf32>
    %330 = vector.shape_cast %329 : vector<34xf32> to vector<34x1xf32>
    %331 = vector.broadcast %330 : vector<34x1xf32> to vector<34x34xf32>
    %332 = arith.subf %328, %331 : vector<34x34xf32>
    %333 = math.exp %332 : vector<34x34xf32>
    %cst_87 = arith.constant dense<0.000000e+00> : vector<34xf32>
    %334 = vector.multi_reduction <add>, %333, %cst_87 [1] : vector<34x34xf32> to vector<34xf32>
    %335 = vector.shape_cast %334 : vector<34xf32> to vector<34x1xf32>
    %336 = tpu.reciprocal %335 {approx = true} : vector<34x1xf32> -> vector<34x1xf32>
    %337 = vector.broadcast %336 : vector<34x1xf32> to vector<34x34xf32>
    %338 = arith.mulf %333, %337 : vector<34x34xf32>
    %339 = vector.extract_strided_slice %304 {offsets = [0, 8], sizes = [34, 8], strides = [1, 1]} : vector<34x32xf32> to vector<34x8xf32>
    %cst_88 = arith.constant dense<0.000000e+00> : vector<34x8xf32>
    %340 = tpu.matmul %338, %339, %cst_88 {dimension_numbers = #tpu.dot_dimension_numbers<[1], [0], [0], [1], [0, 0, 1, 1], [], []>} : vector<34x34xf32>, vector<34x8xf32>, vector<34x8xf32> -> vector<34x8xf32>
    %341 = vector.extract_strided_slice %302 {offsets = [0, 16], sizes = [34, 8], strides = [1, 1]} : vector<34x32xf32> to vector<34x8xf32>
    %342 = vector.extract_strided_slice %303 {offsets = [0, 16], sizes = [34, 8], strides = [1, 1]} : vector<34x32xf32> to vector<34x8xf32>
    %cst_89 = arith.constant dense<0.000000e+00> : vector<34x34xf32>
    %343 = tpu.matmul %341, %342, %cst_89 {dimension_numbers = #tpu.dot_dimension_numbers<[1], [1], [0], [0], [0, 0, 1, 0], [], []>} : vector<34x8xf32>, vector<34x8xf32>, vector<34x34xf32> -> vector<34x34xf32>
    %cst_90 = arith.constant 0.353553385 : f32
    %344 = vector.broadcast %cst_90 : f32 to vector<34x34xf32>
    %345 = arith.mulf %343, %344 : vector<34x34xf32>
    %346 = arith.addf %345, %6 : vector<34x34xf32>
    %cst_91 = arith.constant dense<0xFF800000> : vector<34xf32>
    %347 = vector.multi_reduction <maximumf>, %346, %cst_91 [1] : vector<34x34xf32> to vector<34xf32>
    %348 = vector.shape_cast %347 : vector<34xf32> to vector<34x1xf32>
    %349 = vector.broadcast %348 : vector<34x1xf32> to vector<34x34xf32>
    %350 = arith.subf %346, %349 : vector<34x34xf32>
    %351 = math.exp %350 : vector<34x34xf32>
    %cst_92 = arith.constant dense<0.000000e+00> : vector<34xf32>
    %352 = vector.multi_reduction <add>, %351, %cst_92 [1] : vector<34x34xf32> to vector<34xf32>
    %353 = vector.shape_cast %352 : vector<34xf32> to vector<34x1xf32>
    %354 = tpu.reciprocal %353 {approx = true} : vector<34x1xf32> -> vector<34x1xf32>
    %355 = vector.broadcast %354 : vector<34x1xf32> to vector<34x34xf32>
    %356 = arith.mulf %351, %355 : vector<34x34xf32>
    %357 = vector.extract_strided_slice %304 {offsets = [0, 16], sizes = [34, 8], strides = [1, 1]} : vector<34x32xf32> to vector<34x8xf32>
    %cst_93 = arith.constant dense<0.000000e+00> : vector<34x8xf32>
    %358 = tpu.matmul %356, %357, %cst_93 {dimension_numbers = #tpu.dot_dimension_numbers<[1], [0], [0], [1], [0, 0, 1, 1], [], []>} : vector<34x34xf32>, vector<34x8xf32>, vector<34x8xf32> -> vector<34x8xf32>
    %359 = vector.extract_strided_slice %302 {offsets = [0, 24], sizes = [34, 8], strides = [1, 1]} : vector<34x32xf32> to vector<34x8xf32>
    %360 = vector.extract_strided_slice %303 {offsets = [0, 24], sizes = [34, 8], strides = [1, 1]} : vector<34x32xf32> to vector<34x8xf32>
    %cst_94 = arith.constant dense<0.000000e+00> : vector<34x34xf32>
    %361 = tpu.matmul %359, %360, %cst_94 {dimension_numbers = #tpu.dot_dimension_numbers<[1], [1], [0], [0], [0, 0, 1, 0], [], []>} : vector<34x8xf32>, vector<34x8xf32>, vector<34x34xf32> -> vector<34x34xf32>
    %cst_95 = arith.constant 0.353553385 : f32
    %362 = vector.broadcast %cst_95 : f32 to vector<34x34xf32>
    %363 = arith.mulf %361, %362 : vector<34x34xf32>
    %364 = arith.addf %363, %6 : vector<34x34xf32>
    %cst_96 = arith.constant dense<0xFF800000> : vector<34xf32>
    %365 = vector.multi_reduction <maximumf>, %364, %cst_96 [1] : vector<34x34xf32> to vector<34xf32>
    %366 = vector.shape_cast %365 : vector<34xf32> to vector<34x1xf32>
    %367 = vector.broadcast %366 : vector<34x1xf32> to vector<34x34xf32>
    %368 = arith.subf %364, %367 : vector<34x34xf32>
    %369 = math.exp %368 : vector<34x34xf32>
    %cst_97 = arith.constant dense<0.000000e+00> : vector<34xf32>
    %370 = vector.multi_reduction <add>, %369, %cst_97 [1] : vector<34x34xf32> to vector<34xf32>
    %371 = vector.shape_cast %370 : vector<34xf32> to vector<34x1xf32>
    %372 = tpu.reciprocal %371 {approx = true} : vector<34x1xf32> -> vector<34x1xf32>
    %373 = vector.broadcast %372 : vector<34x1xf32> to vector<34x34xf32>
    %374 = arith.mulf %369, %373 : vector<34x34xf32>
    %375 = vector.extract_strided_slice %304 {offsets = [0, 24], sizes = [34, 8], strides = [1, 1]} : vector<34x32xf32> to vector<34x8xf32>
    %cst_98 = arith.constant dense<0.000000e+00> : vector<34x8xf32>
    %376 = tpu.matmul %374, %375, %cst_98 {dimension_numbers = #tpu.dot_dimension_numbers<[1], [0], [0], [1], [0, 0, 1, 1], [], []>} : vector<34x34xf32>, vector<34x8xf32>, vector<34x8xf32> -> vector<34x8xf32>
    %377 = tpu.concatenate %322, %340, %358, %376 in 1 : vector<34x8xf32>, vector<34x8xf32>, vector<34x8xf32>, vector<34x8xf32> -> vector<34x32xf32>
    %cst_99 = arith.constant dense<0.000000e+00> : vector<34x32xf32>
    %378 = tpu.matmul %377, %280, %cst_99 {dimension_numbers = #tpu.dot_dimension_numbers<[1], [0], [0], [1], [0, 0, 1, 1], [], []>} : vector<34x32xf32>, vector<32x32xf32>, vector<34x32xf32> -> vector<34x32xf32>
    %379 = arith.addf %274, %378 : vector<34x32xf32>
    %380 = vector.broadcast %287 : vector<1x32xf32> to vector<34x32xf32>
    %381 = arith.addf %379, %380 : vector<34x32xf32>
    %cst_100 = arith.constant dense<0.000000e+00> : vector<34xf32>
    %382 = vector.multi_reduction <add>, %381, %cst_100 [1] : vector<34x32xf32> to vector<34xf32>
    %383 = vector.shape_cast %382 : vector<34xf32> to vector<34x1xf32>
    %cst_101 = arith.constant 3.200000e+01 : f32
    %384 = vector.broadcast %cst_101 : f32 to vector<34x1xf32>
    %385 = arith.divf %383, %384 : vector<34x1xf32>
    %386 = vector.broadcast %385 : vector<34x1xf32> to vector<34x32xf32>
    %387 = arith.subf %381, %386 : vector<34x32xf32>
    %388 = arith.mulf %387, %387 : vector<34x32xf32>
    %cst_102 = arith.constant dense<0.000000e+00> : vector<34xf32>
    %389 = vector.multi_reduction <add>, %388, %cst_102 [1] : vector<34x32xf32> to vector<34xf32>
    %390 = vector.shape_cast %389 : vector<34xf32> to vector<34x1xf32>
    %cst_103 = arith.constant 3.200000e+01 : f32
    %391 = vector.broadcast %cst_103 : f32 to vector<34x1xf32>
    %392 = arith.divf %390, %391 : vector<34x1xf32>
    %393 = vector.broadcast %385 : vector<34x1xf32> to vector<34x32xf32>
    %394 = arith.subf %381, %393 : vector<34x32xf32>
    %cst_104 = arith.constant 9.99999974E-6 : f32
    %395 = vector.broadcast %cst_104 : f32 to vector<34x1xf32>
    %396 = arith.addf %392, %395 : vector<34x1xf32>
    %397 = math.rsqrt %396 : vector<34x1xf32>
    %398 = vector.broadcast %397 : vector<34x1xf32> to vector<34x32xf32>
    %399 = arith.mulf %394, %398 : vector<34x32xf32>
    %400 = vector.broadcast %293 : vector<1x32xf32> to vector<34x32xf32>
    %401 = arith.mulf %399, %400 : vector<34x32xf32>
    %402 = vector.broadcast %294 : vector<1x32xf32> to vector<34x32xf32>
    %403 = arith.addf %401, %402 : vector<34x32xf32>
    %cst_105 = arith.constant dense<0.000000e+00> : vector<34x32xf32>
    %404 = tpu.matmul %403, %281, %cst_105 {dimension_numbers = #tpu.dot_dimension_numbers<[1], [0], [0], [1], [0, 0, 1, 1], [], []>} : vector<34x32xf32>, vector<32x32xf32>, vector<34x32xf32> -> vector<34x32xf32>
    %405 = vector.broadcast %288 : vector<1x32xf32> to vector<34x32xf32>
    %406 = arith.addf %404, %405 : vector<34x32xf32>
    %cst_106 = arith.constant dense<0.000000e+00> : vector<16x64xf32>
    %407 = tpu.matmul %5, %282, %cst_106 {dimension_numbers = #tpu.dot_dimension_numbers<[1], [0], [0], [1], [0, 0, 1, 1], [], []>} : vector<16x32xf32>, vector<32x64xf32>, vector<16x64xf32> -> vector<16x64xf32>
    %408 = vector.broadcast %289 : vector<1x64xf32> to vector<16x64xf32>
    %409 = arith.addf %407, %408 : vector<16x64xf32>
    %410 = vector.extract_strided_slice %409 {offsets = [0, 0], sizes = [16, 32], strides = [1, 1]} : vector<16x64xf32> to vector<16x32xf32>
    %411 = vector.extract_strided_slice %409 {offsets = [0, 32], sizes = [16, 32], strides = [1, 1]} : vector<16x64xf32> to vector<16x32xf32>
    %412 = vector.extract_strided_slice %406 {offsets = [0, 0], sizes = [34, 8], strides = [1, 1]} : vector<34x32xf32> to vector<34x8xf32>
    %413 = vector.extract_strided_slice %410 {offsets = [0, 0], sizes = [16, 8], strides = [1, 1]} : vector<16x32xf32> to vector<16x8xf32>
    %cst_107 = arith.constant dense<0.000000e+00> : vector<34x16xf32>
    %414 = tpu.matmul %412, %413, %cst_107 {dimension_numbers = #tpu.dot_dimension_numbers<[1], [1], [0], [0], [0, 0, 1, 0], [], []>} : vector<34x8xf32>, vector<16x8xf32>, vector<34x16xf32> -> vector<34x16xf32>
    %cst_108 = arith.constant 0.353553385 : f32
    %415 = vector.broadcast %cst_108 : f32 to vector<34x16xf32>
    %416 = arith.mulf %414, %415 : vector<34x16xf32>
    %417 = arith.addf %416, %7 : vector<34x16xf32>
    %cst_109 = arith.constant dense<0xFF800000> : vector<34xf32>
    %418 = vector.multi_reduction <maximumf>, %417, %cst_109 [1] : vector<34x16xf32> to vector<34xf32>
    %419 = vector.shape_cast %418 : vector<34xf32> to vector<34x1xf32>
    %420 = vector.broadcast %419 : vector<34x1xf32> to vector<34x16xf32>
    %421 = arith.subf %417, %420 : vector<34x16xf32>
    %422 = math.exp %421 : vector<34x16xf32>
    %cst_110 = arith.constant dense<0.000000e+00> : vector<34xf32>
    %423 = vector.multi_reduction <add>, %422, %cst_110 [1] : vector<34x16xf32> to vector<34xf32>
    %424 = vector.shape_cast %423 : vector<34xf32> to vector<34x1xf32>
    %425 = tpu.reciprocal %424 {approx = true} : vector<34x1xf32> -> vector<34x1xf32>
    %426 = vector.broadcast %425 : vector<34x1xf32> to vector<34x16xf32>
    %427 = arith.mulf %422, %426 : vector<34x16xf32>
    %428 = vector.extract_strided_slice %411 {offsets = [0, 0], sizes = [16, 8], strides = [1, 1]} : vector<16x32xf32> to vector<16x8xf32>
    %cst_111 = arith.constant dense<0.000000e+00> : vector<34x8xf32>
    %429 = tpu.matmul %427, %428, %cst_111 {dimension_numbers = #tpu.dot_dimension_numbers<[1], [0], [0], [1], [0, 0, 1, 1], [], []>} : vector<34x16xf32>, vector<16x8xf32>, vector<34x8xf32> -> vector<34x8xf32>
    %430 = vector.extract_strided_slice %406 {offsets = [0, 8], sizes = [34, 8], strides = [1, 1]} : vector<34x32xf32> to vector<34x8xf32>
    %431 = vector.extract_strided_slice %410 {offsets = [0, 8], sizes = [16, 8], strides = [1, 1]} : vector<16x32xf32> to vector<16x8xf32>
    %cst_112 = arith.constant dense<0.000000e+00> : vector<34x16xf32>
    %432 = tpu.matmul %430, %431, %cst_112 {dimension_numbers = #tpu.dot_dimension_numbers<[1], [1], [0], [0], [0, 0, 1, 0], [], []>} : vector<34x8xf32>, vector<16x8xf32>, vector<34x16xf32> -> vector<34x16xf32>
    %cst_113 = arith.constant 0.353553385 : f32
    %433 = vector.broadcast %cst_113 : f32 to vector<34x16xf32>
    %434 = arith.mulf %432, %433 : vector<34x16xf32>
    %435 = arith.addf %434, %7 : vector<34x16xf32>
    %cst_114 = arith.constant dense<0xFF800000> : vector<34xf32>
    %436 = vector.multi_reduction <maximumf>, %435, %cst_114 [1] : vector<34x16xf32> to vector<34xf32>
    %437 = vector.shape_cast %436 : vector<34xf32> to vector<34x1xf32>
    %438 = vector.broadcast %437 : vector<34x1xf32> to vector<34x16xf32>
    %439 = arith.subf %435, %438 : vector<34x16xf32>
    %440 = math.exp %439 : vector<34x16xf32>
    %cst_115 = arith.constant dense<0.000000e+00> : vector<34xf32>
    %441 = vector.multi_reduction <add>, %440, %cst_115 [1] : vector<34x16xf32> to vector<34xf32>
    %442 = vector.shape_cast %441 : vector<34xf32> to vector<34x1xf32>
    %443 = tpu.reciprocal %442 {approx = true} : vector<34x1xf32> -> vector<34x1xf32>
    %444 = vector.broadcast %443 : vector<34x1xf32> to vector<34x16xf32>
    %445 = arith.mulf %440, %444 : vector<34x16xf32>
    %446 = vector.extract_strided_slice %411 {offsets = [0, 8], sizes = [16, 8], strides = [1, 1]} : vector<16x32xf32> to vector<16x8xf32>
    %cst_116 = arith.constant dense<0.000000e+00> : vector<34x8xf32>
    %447 = tpu.matmul %445, %446, %cst_116 {dimension_numbers = #tpu.dot_dimension_numbers<[1], [0], [0], [1], [0, 0, 1, 1], [], []>} : vector<34x16xf32>, vector<16x8xf32>, vector<34x8xf32> -> vector<34x8xf32>
    %448 = vector.extract_strided_slice %406 {offsets = [0, 16], sizes = [34, 8], strides = [1, 1]} : vector<34x32xf32> to vector<34x8xf32>
    %449 = vector.extract_strided_slice %410 {offsets = [0, 16], sizes = [16, 8], strides = [1, 1]} : vector<16x32xf32> to vector<16x8xf32>
    %cst_117 = arith.constant dense<0.000000e+00> : vector<34x16xf32>
    %450 = tpu.matmul %448, %449, %cst_117 {dimension_numbers = #tpu.dot_dimension_numbers<[1], [1], [0], [0], [0, 0, 1, 0], [], []>} : vector<34x8xf32>, vector<16x8xf32>, vector<34x16xf32> -> vector<34x16xf32>
    %cst_118 = arith.constant 0.353553385 : f32
    %451 = vector.broadcast %cst_118 : f32 to vector<34x16xf32>
    %452 = arith.mulf %450, %451 : vector<34x16xf32>
    %453 = arith.addf %452, %7 : vector<34x16xf32>
    %cst_119 = arith.constant dense<0xFF800000> : vector<34xf32>
    %454 = vector.multi_reduction <maximumf>, %453, %cst_119 [1] : vector<34x16xf32> to vector<34xf32>
    %455 = vector.shape_cast %454 : vector<34xf32> to vector<34x1xf32>
    %456 = vector.broadcast %455 : vector<34x1xf32> to vector<34x16xf32>
    %457 = arith.subf %453, %456 : vector<34x16xf32>
    %458 = math.exp %457 : vector<34x16xf32>
    %cst_120 = arith.constant dense<0.000000e+00> : vector<34xf32>
    %459 = vector.multi_reduction <add>, %458, %cst_120 [1] : vector<34x16xf32> to vector<34xf32>
    %460 = vector.shape_cast %459 : vector<34xf32> to vector<34x1xf32>
    %461 = tpu.reciprocal %460 {approx = true} : vector<34x1xf32> -> vector<34x1xf32>
    %462 = vector.broadcast %461 : vector<34x1xf32> to vector<34x16xf32>
    %463 = arith.mulf %458, %462 : vector<34x16xf32>
    %464 = vector.extract_strided_slice %411 {offsets = [0, 16], sizes = [16, 8], strides = [1, 1]} : vector<16x32xf32> to vector<16x8xf32>
    %cst_121 = arith.constant dense<0.000000e+00> : vector<34x8xf32>
    %465 = tpu.matmul %463, %464, %cst_121 {dimension_numbers = #tpu.dot_dimension_numbers<[1], [0], [0], [1], [0, 0, 1, 1], [], []>} : vector<34x16xf32>, vector<16x8xf32>, vector<34x8xf32> -> vector<34x8xf32>
    %466 = vector.extract_strided_slice %406 {offsets = [0, 24], sizes = [34, 8], strides = [1, 1]} : vector<34x32xf32> to vector<34x8xf32>
    %467 = vector.extract_strided_slice %410 {offsets = [0, 24], sizes = [16, 8], strides = [1, 1]} : vector<16x32xf32> to vector<16x8xf32>
    %cst_122 = arith.constant dense<0.000000e+00> : vector<34x16xf32>
    %468 = tpu.matmul %466, %467, %cst_122 {dimension_numbers = #tpu.dot_dimension_numbers<[1], [1], [0], [0], [0, 0, 1, 0], [], []>} : vector<34x8xf32>, vector<16x8xf32>, vector<34x16xf32> -> vector<34x16xf32>
    %cst_123 = arith.constant 0.353553385 : f32
    %469 = vector.broadcast %cst_123 : f32 to vector<34x16xf32>
    %470 = arith.mulf %468, %469 : vector<34x16xf32>
    %471 = arith.addf %470, %7 : vector<34x16xf32>
    %cst_124 = arith.constant dense<0xFF800000> : vector<34xf32>
    %472 = vector.multi_reduction <maximumf>, %471, %cst_124 [1] : vector<34x16xf32> to vector<34xf32>
    %473 = vector.shape_cast %472 : vector<34xf32> to vector<34x1xf32>
    %474 = vector.broadcast %473 : vector<34x1xf32> to vector<34x16xf32>
    %475 = arith.subf %471, %474 : vector<34x16xf32>
    %476 = math.exp %475 : vector<34x16xf32>
    %cst_125 = arith.constant dense<0.000000e+00> : vector<34xf32>
    %477 = vector.multi_reduction <add>, %476, %cst_125 [1] : vector<34x16xf32> to vector<34xf32>
    %478 = vector.shape_cast %477 : vector<34xf32> to vector<34x1xf32>
    %479 = tpu.reciprocal %478 {approx = true} : vector<34x1xf32> -> vector<34x1xf32>
    %480 = vector.broadcast %479 : vector<34x1xf32> to vector<34x16xf32>
    %481 = arith.mulf %476, %480 : vector<34x16xf32>
    %482 = vector.extract_strided_slice %411 {offsets = [0, 24], sizes = [16, 8], strides = [1, 1]} : vector<16x32xf32> to vector<16x8xf32>
    %cst_126 = arith.constant dense<0.000000e+00> : vector<34x8xf32>
    %483 = tpu.matmul %481, %482, %cst_126 {dimension_numbers = #tpu.dot_dimension_numbers<[1], [0], [0], [1], [0, 0, 1, 1], [], []>} : vector<34x16xf32>, vector<16x8xf32>, vector<34x8xf32> -> vector<34x8xf32>
    %484 = tpu.concatenate %429, %447, %465, %483 in 1 : vector<34x8xf32>, vector<34x8xf32>, vector<34x8xf32>, vector<34x8xf32> -> vector<34x32xf32>
    %cst_127 = arith.constant dense<0.000000e+00> : vector<34x32xf32>
    %485 = tpu.matmul %484, %283, %cst_127 {dimension_numbers = #tpu.dot_dimension_numbers<[1], [0], [0], [1], [0, 0, 1, 1], [], []>} : vector<34x32xf32>, vector<32x32xf32>, vector<34x32xf32> -> vector<34x32xf32>
    %486 = arith.addf %403, %485 : vector<34x32xf32>
    %487 = vector.broadcast %290 : vector<1x32xf32> to vector<34x32xf32>
    %488 = arith.addf %486, %487 : vector<34x32xf32>
    %cst_128 = arith.constant dense<0.000000e+00> : vector<34xf32>
    %489 = vector.multi_reduction <add>, %488, %cst_128 [1] : vector<34x32xf32> to vector<34xf32>
    %490 = vector.shape_cast %489 : vector<34xf32> to vector<34x1xf32>
    %cst_129 = arith.constant 3.200000e+01 : f32
    %491 = vector.broadcast %cst_129 : f32 to vector<34x1xf32>
    %492 = arith.divf %490, %491 : vector<34x1xf32>
    %493 = vector.broadcast %492 : vector<34x1xf32> to vector<34x32xf32>
    %494 = arith.subf %488, %493 : vector<34x32xf32>
    %495 = arith.mulf %494, %494 : vector<34x32xf32>
    %cst_130 = arith.constant dense<0.000000e+00> : vector<34xf32>
    %496 = vector.multi_reduction <add>, %495, %cst_130 [1] : vector<34x32xf32> to vector<34xf32>
    %497 = vector.shape_cast %496 : vector<34xf32> to vector<34x1xf32>
    %cst_131 = arith.constant 3.200000e+01 : f32
    %498 = vector.broadcast %cst_131 : f32 to vector<34x1xf32>
    %499 = arith.divf %497, %498 : vector<34x1xf32>
    %500 = vector.broadcast %492 : vector<34x1xf32> to vector<34x32xf32>
    %501 = arith.subf %488, %500 : vector<34x32xf32>
    %cst_132 = arith.constant 9.99999974E-6 : f32
    %502 = vector.broadcast %cst_132 : f32 to vector<34x1xf32>
    %503 = arith.addf %499, %502 : vector<34x1xf32>
    %504 = math.rsqrt %503 : vector<34x1xf32>
    %505 = vector.broadcast %504 : vector<34x1xf32> to vector<34x32xf32>
    %506 = arith.mulf %501, %505 : vector<34x32xf32>
    %507 = vector.broadcast %295 : vector<1x32xf32> to vector<34x32xf32>
    %508 = arith.mulf %506, %507 : vector<34x32xf32>
    %509 = vector.broadcast %296 : vector<1x32xf32> to vector<34x32xf32>
    %510 = arith.addf %508, %509 : vector<34x32xf32>
    %cst_133 = arith.constant dense<0.000000e+00> : vector<34x64xf32>
    %511 = tpu.matmul %510, %284, %cst_133 {dimension_numbers = #tpu.dot_dimension_numbers<[1], [0], [0], [1], [0, 0, 1, 1], [], []>} : vector<34x32xf32>, vector<32x64xf32>, vector<34x64xf32> -> vector<34x64xf32>
    %512 = vector.broadcast %291 : vector<1x64xf32> to vector<34x64xf32>
    %513 = arith.addf %511, %512 : vector<34x64xf32>
    %cst_134 = arith.constant 0.000000e+00 : f32
    %514 = vector.broadcast %cst_134 : f32 to vector<34x64xf32>
    %515 = arith.maximumf %513, %514 : vector<34x64xf32>
    %cst_135 = arith.constant dense<0.000000e+00> : vector<34x32xf32>
    %516 = tpu.matmul %515, %285, %cst_135 {dimension_numbers = #tpu.dot_dimension_numbers<[1], [1], [0], [0], [0, 0, 1, 0], [], []>} : vector<34x64xf32>, vector<32x64xf32>, vector<34x32xf32> -> vector<34x32xf32>
    %517 = vector.broadcast %292 : vector<1x32xf32> to vector<34x32xf32>
    %518 = arith.addf %516, %517 : vector<34x32xf32>
    %519 = arith.addf %510, %518 : vector<34x32xf32>
    %cst_136 = arith.constant dense<0.000000e+00> : vector<34xf32>
    %520 = vector.multi_reduction <add>, %519, %cst_136 [1] : vector<34x32xf32> to vector<34xf32>
    %521 = vector.shape_cast %520 : vector<34xf32> to vector<34x1xf32>
    %cst_137 = arith.constant 3.200000e+01 : f32
    %522 = vector.broadcast %cst_137 : f32 to vector<34x1xf32>
    %523 = arith.divf %521, %522 : vector<34x1xf32>
    %524 = vector.broadcast %523 : vector<34x1xf32> to vector<34x32xf32>
    %525 = arith.subf %519, %524 : vector<34x32xf32>
    %526 = arith.mulf %525, %525 : vector<34x32xf32>
    %cst_138 = arith.constant dense<0.000000e+00> : vector<34xf32>
    %527 = vector.multi_reduction <add>, %526, %cst_138 [1] : vector<34x32xf32> to vector<34xf32>
    %528 = vector.shape_cast %527 : vector<34xf32> to vector<34x1xf32>
    %cst_139 = arith.constant 3.200000e+01 : f32
    %529 = vector.broadcast %cst_139 : f32 to vector<34x1xf32>
    %530 = arith.divf %528, %529 : vector<34x1xf32>
    %531 = vector.broadcast %523 : vector<34x1xf32> to vector<34x32xf32>
    %532 = arith.subf %519, %531 : vector<34x32xf32>
    %cst_140 = arith.constant 9.99999974E-6 : f32
    %533 = vector.broadcast %cst_140 : f32 to vector<34x1xf32>
    %534 = arith.addf %530, %533 : vector<34x1xf32>
    %535 = math.rsqrt %534 : vector<34x1xf32>
    %536 = vector.broadcast %535 : vector<34x1xf32> to vector<34x32xf32>
    %537 = arith.mulf %532, %536 : vector<34x32xf32>
    %538 = vector.broadcast %297 : vector<1x32xf32> to vector<34x32xf32>
    %539 = arith.mulf %537, %538 : vector<34x32xf32>
    %540 = vector.broadcast %298 : vector<1x32xf32> to vector<34x32xf32>
    %541 = arith.addf %539, %540 : vector<34x32xf32>
    %542 = vector.extract_strided_slice %541 {offsets = [1, 0], sizes = [1, 32], strides = [1, 1]} : vector<34x32xf32> to vector<1x32xf32>
    %543 = vector.extract_strided_slice %541 {offsets = [2, 0], sizes = [1, 32], strides = [1, 1]} : vector<34x32xf32> to vector<1x32xf32>
    %544 = vector.extract_strided_slice %541 {offsets = [3, 0], sizes = [1, 32], strides = [1, 1]} : vector<34x32xf32> to vector<1x32xf32>
    %545 = vector.extract_strided_slice %541 {offsets = [4, 0], sizes = [1, 32], strides = [1, 1]} : vector<34x32xf32> to vector<1x32xf32>
    %546 = vector.extract_strided_slice %541 {offsets = [5, 0], sizes = [1, 32], strides = [1, 1]} : vector<34x32xf32> to vector<1x32xf32>
    %547 = vector.extract_strided_slice %541 {offsets = [6, 0], sizes = [1, 32], strides = [1, 1]} : vector<34x32xf32> to vector<1x32xf32>
    %548 = vector.extract_strided_slice %541 {offsets = [7, 0], sizes = [1, 32], strides = [1, 1]} : vector<34x32xf32> to vector<1x32xf32>
    %549 = vector.extract_strided_slice %541 {offsets = [8, 0], sizes = [1, 32], strides = [1, 1]} : vector<34x32xf32> to vector<1x32xf32>
    %550 = vector.extract_strided_slice %541 {offsets = [9, 0], sizes = [1, 32], strides = [1, 1]} : vector<34x32xf32> to vector<1x32xf32>
    %551 = vector.extract_strided_slice %541 {offsets = [10, 0], sizes = [1, 32], strides = [1, 1]} : vector<34x32xf32> to vector<1x32xf32>
    %552 = vector.extract_strided_slice %541 {offsets = [11, 0], sizes = [1, 32], strides = [1, 1]} : vector<34x32xf32> to vector<1x32xf32>
    %553 = vector.extract_strided_slice %541 {offsets = [12, 0], sizes = [1, 32], strides = [1, 1]} : vector<34x32xf32> to vector<1x32xf32>
    %554 = vector.extract_strided_slice %541 {offsets = [13, 0], sizes = [1, 32], strides = [1, 1]} : vector<34x32xf32> to vector<1x32xf32>
    %555 = vector.extract_strided_slice %541 {offsets = [14, 0], sizes = [1, 32], strides = [1, 1]} : vector<34x32xf32> to vector<1x32xf32>
    %556 = vector.extract_strided_slice %541 {offsets = [15, 0], sizes = [1, 32], strides = [1, 1]} : vector<34x32xf32> to vector<1x32xf32>
    %557 = vector.extract_strided_slice %541 {offsets = [16, 0], sizes = [1, 32], strides = [1, 1]} : vector<34x32xf32> to vector<1x32xf32>
    %558 = tpu.concatenate %542, %543, %544, %545, %546, %547, %548, %549, %550, %551, %552, %553, %554, %555, %556, %557 in 1 : vector<1x32xf32>, vector<1x32xf32>, vector<1x32xf32>, vector<1x32xf32>, vector<1x32xf32>, vector<1x32xf32>, vector<1x32xf32>, vector<1x32xf32>, vector<1x32xf32>, vector<1x32xf32>, vector<1x32xf32>, vector<1x32xf32>, vector<1x32xf32>, vector<1x32xf32>, vector<1x32xf32>, vector<1x32xf32> -> vector<1x512xf32>
    %559 = vector.extract_strided_slice %541 {offsets = [18, 0], sizes = [1, 32], strides = [1, 1]} : vector<34x32xf32> to vector<1x32xf32>
    %560 = vector.extract_strided_slice %541 {offsets = [19, 0], sizes = [1, 32], strides = [1, 1]} : vector<34x32xf32> to vector<1x32xf32>
    %561 = vector.extract_strided_slice %541 {offsets = [20, 0], sizes = [1, 32], strides = [1, 1]} : vector<34x32xf32> to vector<1x32xf32>
    %562 = vector.extract_strided_slice %541 {offsets = [21, 0], sizes = [1, 32], strides = [1, 1]} : vector<34x32xf32> to vector<1x32xf32>
    %563 = vector.extract_strided_slice %541 {offsets = [22, 0], sizes = [1, 32], strides = [1, 1]} : vector<34x32xf32> to vector<1x32xf32>
    %564 = vector.extract_strided_slice %541 {offsets = [23, 0], sizes = [1, 32], strides = [1, 1]} : vector<34x32xf32> to vector<1x32xf32>
    %565 = vector.extract_strided_slice %541 {offsets = [24, 0], sizes = [1, 32], strides = [1, 1]} : vector<34x32xf32> to vector<1x32xf32>
    %566 = vector.extract_strided_slice %541 {offsets = [25, 0], sizes = [1, 32], strides = [1, 1]} : vector<34x32xf32> to vector<1x32xf32>
    %567 = vector.extract_strided_slice %541 {offsets = [26, 0], sizes = [1, 32], strides = [1, 1]} : vector<34x32xf32> to vector<1x32xf32>
    %568 = vector.extract_strided_slice %541 {offsets = [27, 0], sizes = [1, 32], strides = [1, 1]} : vector<34x32xf32> to vector<1x32xf32>
    %569 = vector.extract_strided_slice %541 {offsets = [28, 0], sizes = [1, 32], strides = [1, 1]} : vector<34x32xf32> to vector<1x32xf32>
    %570 = vector.extract_strided_slice %541 {offsets = [29, 0], sizes = [1, 32], strides = [1, 1]} : vector<34x32xf32> to vector<1x32xf32>
    %571 = vector.extract_strided_slice %541 {offsets = [30, 0], sizes = [1, 32], strides = [1, 1]} : vector<34x32xf32> to vector<1x32xf32>
    %572 = vector.extract_strided_slice %541 {offsets = [31, 0], sizes = [1, 32], strides = [1, 1]} : vector<34x32xf32> to vector<1x32xf32>
    %573 = vector.extract_strided_slice %541 {offsets = [32, 0], sizes = [1, 32], strides = [1, 1]} : vector<34x32xf32> to vector<1x32xf32>
    %574 = vector.extract_strided_slice %541 {offsets = [33, 0], sizes = [1, 32], strides = [1, 1]} : vector<34x32xf32> to vector<1x32xf32>
    %575 = tpu.concatenate %559, %560, %561, %562, %563, %564, %565, %566, %567, %568, %569, %570, %571, %572, %573, %574 in 1 : vector<1x32xf32>, vector<1x32xf32>, vector<1x32xf32>, vector<1x32xf32>, vector<1x32xf32>, vector<1x32xf32>, vector<1x32xf32>, vector<1x32xf32>, vector<1x32xf32>, vector<1x32xf32>, vector<1x32xf32>, vector<1x32xf32>, vector<1x32xf32>, vector<1x32xf32>, vector<1x32xf32>, vector<1x32xf32> -> vector<1x512xf32>
    %576 = tpu.concatenate %558, %575 in 0 : vector<1x512xf32>, vector<1x512xf32> -> vector<2x512xf32>
    %577 = arith.truncf %576 : vector<2x512xf32> to vector<2x512xbf16>
    %c0_i32_141 = arith.constant 0 : i32
    %578 = tpu.memref_slice %arg12[%c0_i32_141] : memref<2x!tpu.dma_semaphore, #tpu.memory_space<semaphore_mem>> -> memref<1x!tpu.dma_semaphore, #tpu.memory_space<semaphore_mem>>
    %579 = tpu.memref_squeeze %578 : memref<1x!tpu.dma_semaphore, #tpu.memory_space<semaphore_mem>> -> memref<!tpu.dma_semaphore, #tpu.memory_space<semaphore_mem>>
    tpu.wait_dma2 semaphore(%579 : memref<!tpu.dma_semaphore, #tpu.memory_space<semaphore_mem>>) src(%arg7 : memref<512x1024xbf16, #tpu.memory_space<any>>) dst(%arg10 : memref<512x1024xbf16, #tpu.memory_space<vmem>>)
    %c0_142 = arith.constant 0 : index
    %c0_143 = arith.constant 0 : index
    %580 = vector.load %arg10[%c0_142, %c0_143] : memref<512x1024xbf16, #tpu.memory_space<vmem>>, vector<512x1024xbf16>
    %cst_144 = arith.constant dense<0.000000e+00> : vector<2x1024xf32>
    %581 = tpu.matmul %577, %580, %cst_144 {dimension_numbers = #tpu.dot_dimension_numbers<[1], [0], [0], [1], [0, 0, 1, 1], [], []>} : vector<2x512xbf16>, vector<512x1024xbf16>, vector<2x1024xf32> -> vector<2x1024xf32>
    %c0_145 = arith.constant 0 : index
    %c0_146 = arith.constant 0 : index
    %582 = vector.load %arg5[%c0_145, %c0_146] : memref<1x1024xf32, #tpu.memory_space<vmem>>, vector<1x1024xf32>
    %583 = vector.broadcast %582 : vector<1x1024xf32> to vector<2x1024xf32>
    %584 = arith.addf %581, %583 : vector<2x1024xf32>
    %cst_147 = arith.constant 0.000000e+00 : f32
    %585 = vector.broadcast %cst_147 : f32 to vector<2x1024xf32>
    %586 = arith.maximumf %584, %585 : vector<2x1024xf32>
    %587 = arith.truncf %586 : vector<2x1024xf32> to vector<2x1024xbf16>
    %c1_i32_148 = arith.constant 1 : i32
    %588 = tpu.memref_slice %arg12[%c1_i32_148] : memref<2x!tpu.dma_semaphore, #tpu.memory_space<semaphore_mem>> -> memref<1x!tpu.dma_semaphore, #tpu.memory_space<semaphore_mem>>
    %589 = tpu.memref_squeeze %588 : memref<1x!tpu.dma_semaphore, #tpu.memory_space<semaphore_mem>> -> memref<!tpu.dma_semaphore, #tpu.memory_space<semaphore_mem>>
    tpu.wait_dma2 semaphore(%589 : memref<!tpu.dma_semaphore, #tpu.memory_space<semaphore_mem>>) src(%arg8 : memref<1024x256xbf16, #tpu.memory_space<any>>) dst(%arg11 : memref<1024x256xbf16, #tpu.memory_space<vmem>>)
    %c0_149 = arith.constant 0 : index
    %c0_150 = arith.constant 0 : index
    %590 = vector.load %arg11[%c0_149, %c0_150] : memref<1024x256xbf16, #tpu.memory_space<vmem>>, vector<1024x256xbf16>
    %cst_151 = arith.constant dense<0.000000e+00> : vector<2x256xf32>
    %591 = tpu.matmul %587, %590, %cst_151 {dimension_numbers = #tpu.dot_dimension_numbers<[1], [0], [0], [1], [0, 0, 1, 1], [], []>} : vector<2x1024xbf16>, vector<1024x256xbf16>, vector<2x256xf32> -> vector<2x256xf32>
    %c0_152 = arith.constant 0 : index
    %c0_153 = arith.constant 0 : index
    %592 = vector.load %arg6[%c0_152, %c0_153] : memref<1x256xf32, #tpu.memory_space<vmem>>, vector<1x256xf32>
    %593 = vector.broadcast %592 : vector<1x256xf32> to vector<2x256xf32>
    %594 = arith.addf %591, %593 : vector<2x256xf32>
    %c0_154 = arith.constant 0 : index
    %c0_155 = arith.constant 0 : index
    %595 = vector.load %arg9[%c0_154, %c0_155] : memref<2x256xf32, #tpu.memory_space<vmem>>, vector<2x256xf32>
    tpu.vector_store %arg9[%c0_154, %c0_155], %594 {strides = array<i32>} : memref<2x256xf32, #tpu.memory_space<vmem>>, vector<2x256xf32>,
    return
  }
}

</mosaic_0001>

<llo_original>
// kernel: trans_decoder_forward.1
$region0: #{trans_decoder_forward.1}
  #allocation0 [shape = 'u32[]', space=smem, size = 0x4, offset = 0x4, fixed_abs, tag = 'smem constant byte address 0x4 - core index']
  #allocation1 [shape = 'u32[72,128]{1,0:T(1,128)}', space=vmem, size = 0x9000, scoped, tag = 'internal scratch']
  #allocation2 [shape = 'bf16[512,1024]{1,0:T(8,128)(2,1)}', space=vmem, size = 0x100000, scoped, tag = 'scratch operand']
  #allocation3 [shape = 'bf16[1024,256]{1,0:T(8,128)(2,1)}', space=vmem, size = 0x80000, scoped, tag = 'scratch operand']
  #allocation4 [shape = 's32[2]{0}', space=sflag, size = 0x8, scoped, tag = 'scratch operand']
  #allocation5 [shape = 's32[]', space=sflag, size = 0x4, offset = 0, fixed_abs, tag = 'sflag constant byte address 0x0 - dummy sync flag']
  #allocation6 [shape = 's32[]', space=sflag, size = 0x4, offset = 0, fixed_abs, tag = 'sflag constant byte address 0x0 - dummy sync flag']
  #allocation7 [shape = 'u32[]', space=smem, size = 0x4, offset = 0x44, fixed_abs, tag = 'smem constant byte address 0x44 - assertion arg 0']
  #allocation8 [shape = 'u32[]', space=smem, size = 0x4, offset = 0x48, fixed_abs, tag = 'smem constant byte address 0x48 - assertion arg 1']
  #allocation9 [shape = 's32[]', space=sflag, size = 0x4, offset = 0, fixed_abs, tag = 'sflag constant byte address 0x0 - dummy sync flag']
  #allocation10 [shape = 's32[]', space=sflag, size = 0x4, offset = 0, fixed_abs, tag = 'sflag constant byte address 0x0 - dummy sync flag']
  %s0 = inlined_call_operand.vmem [shape: f32[34,32], index: 0, kind: input, shape index: {}]
  %s1 = inlined_call_operand.vmem [shape: f32[16,32], index: 1, kind: input, shape index: {}]
  %s2 = inlined_call_operand.vmem [shape: f32[34,34], index: 2, kind: input, shape index: {}]
  %s3 = inlined_call_operand.vmem [shape: f32[34,16], index: 3, kind: input, shape index: {}]
  %s4 = inlined_call_operand.vmem [shape: f32[208,128], index: 4, kind: input, shape index: {}]
  %s5 = inlined_call_operand.vmem [shape: f32[1,1024], index: 5, kind: input, shape index: {}]
  %s6 = inlined_call_operand.vmem [shape: f32[1,256], index: 6, kind: input, shape index: {}]
  %s7 = inlined_call_operand.hbm [shape: bf16[512,1024], index: 7, kind: input, shape index: {}]
  %s8 = inlined_call_operand.hbm [shape: bf16[1024,256], index: 8, kind: input, shape index: {}]
  %s9 = inlined_call_operand.vmem [shape: f32[2,256], index: 9, kind: output, shape index: {}]
  %s10 = sld [smem:[#allocation0]]
  $region46: #{trans_decoder_forward.1} parent=0
    _
  %s12 = ssub.s32 1, %s10
  %s13 = scalar_select 0, %s12, %s10
  // Predicated region
  $region2: #{trans_decoder_forward.1} parent=0 // pred_check
    _
  $region3: #{trans_decoder_forward.1} parent=0 // pred_check_branch
    %15 = sbr.rel (0) target = $region5
  $region4: #{trans_decoder_forward.1} parent=0 // pred_region
    _
  $region5: #{trans_decoder_forward.1} parent=0 // pred_fallthru
    _
  // Predicated region
  $region6: #{trans_decoder_forward.1} parent=0 // pred_check
    _
  $region7: #{trans_decoder_forward.1} parent=0 // pred_check_branch
    %17 = sbr.rel (0) target = $region9
  $region8: #{trans_decoder_forward.1} parent=0 // pred_region
    _
  $region9: #{trans_decoder_forward.1} parent=0 // pred_fallthru
    _
  // Predicated region
  $region10: #{trans_decoder_forward.1} parent=0 // pred_check
    _
  $region11: #{trans_decoder_forward.1} parent=0 // pred_check_branch
    %19 = sbr.rel (0) target = $region13
  $region12: #{trans_decoder_forward.1} parent=0 // pred_region
    _
  $region13: #{trans_decoder_forward.1} parent=0 // pred_fallthru
    _
  // Predicated region
  $region14: #{trans_decoder_forward.1} parent=0 // pred_check
    _
  $region15: #{trans_decoder_forward.1} parent=0 // pred_check_branch
    %21 = sbr.rel (0) target = $region17
  $region16: #{trans_decoder_forward.1} parent=0 // pred_region
    _
  $region17: #{trans_decoder_forward.1} parent=0 // pred_fallthru
    _
  // Predicated region
  $region18: #{trans_decoder_forward.1} parent=0 // pred_check
    _
  $region19: #{trans_decoder_forward.1} parent=0 // pred_check_branch
    %23 = sbr.rel (0) target = $region21
  $region20: #{trans_decoder_forward.1} parent=0 // pred_region
    _
  $region21: #{trans_decoder_forward.1} parent=0 // pred_fallthru
    _
  // Predicated region
  $region22: #{trans_decoder_forward.1} parent=0 // pred_check
    _
  $region23: #{trans_decoder_forward.1} parent=0 // pred_check_branch
    %25 = sbr.rel (0) target = $region25
  $region24: #{trans_decoder_forward.1} parent=0 // pred_region
    _
  $region25: #{trans_decoder_forward.1} parent=0 // pred_fallthru
    _
  // Predicated region
  $region26: #{trans_decoder_forward.1} parent=0 // pred_check
    _
  $region27: #{trans_decoder_forward.1} parent=0 // pred_check_branch
    %27 = sbr.rel (0) target = $region29
  $region28: #{trans_decoder_forward.1} parent=0 // pred_region
    _
  $region29: #{trans_decoder_forward.1} parent=0 // pred_fallthru
    _
  // Predicated region
  $region30: #{trans_decoder_forward.1} parent=0 // pred_check
    _
  $region31: #{trans_decoder_forward.1} parent=0 // pred_check_branch
    %29 = sbr.rel target = $region33
  $region32: #{trans_decoder_forward.1} parent=0 // pred_region
    %30 = sst [smem:[#allocation7]] [#allocation6]
    %31 = sst [smem:[#allocation8]] [#allocation5]
  $region33: #{trans_decoder_forward.1} parent=0 // pred_fallthru
    _
  %33 = shalt.err (0)
  %s35 = sshll.u32 %s7, 4
  %s36 = int_to_ptr.hbm [resolvable:$true] %s35
  %s37 = sshll.u32 [#allocation2], 4
  %s38 = int_to_ptr.vmem [resolvable:$true] %s37
  %40 = dma.hbm_to_vmem [thread:$0]  %s36, 32768, %s38, [#allocation4]
  %s41 = scalar_lea.sflag [#allocation4], 1
  // Predicated region
  $region34: #{trans_decoder_forward.1} parent=0 // pred_check
    _
  $region35: #{trans_decoder_forward.1} parent=0 // pred_check_branch
    %43 = sbr.rel target = $region37
  $region36: #{trans_decoder_forward.1} parent=0 // pred_region
    %44 = sst [smem:[#allocation7]] [#allocation10]
    %45 = sst [smem:[#allocation8]] [#allocation9]
  $region37: #{trans_decoder_forward.1} parent=0 // pred_fallthru
    _
  %47 = shalt.err (0)
  %s49 = sshll.u32 %s8, 4
  %s50 = int_to_ptr.hbm [resolvable:$true] %s49
  %s51 = sshll.u32 [#allocation3], 4
  %s52 = int_to_ptr.vmem [resolvable:$true] %s51
  %54 = dma.hbm_to_vmem [thread:$0]  %s50, 16384, %s52, %s41
  %v55 = vld [vmem:[%s0] sm:$0xff]
  %v56 = vld [vmem:[%s0 + $0x8] sm:$0xff]
  %v57 = vld [vmem:[%s0 + $0x10] sm:$0xff]
  %v58 = vld [vmem:[%s0 + $0x18] sm:$0xff]
  %v59 = vld [vmem:[%s0 + $0x20] sm:$0x3]
  %v60 = vld [vmem:[%s1] sm:$0xff]
  %v61 = vld [vmem:[%s1 + $0x8] sm:$0xff]
  %v62 = vld [vmem:[%s2] sm:$0xff]
  %v63 = vld [vmem:[%s2 + $0x8] sm:$0xff]
  %v64 = vld [vmem:[%s2 + $0x10] sm:$0xff]
  %v65 = vld [vmem:[%s2 + $0x18] sm:$0xff]
  %v66 = vld [vmem:[%s2 + $0x20] sm:$0x3]
  %v67 = vld [vmem:[%s3] sm:$0xff]
  %v68 = vld [vmem:[%s3 + $0x8] sm:$0xff]
  %v69 = vld [vmem:[%s3 + $0x10] sm:$0xff]
  %v70 = vld [vmem:[%s3 + $0x18] sm:$0xff]
  %v71 = vld [vmem:[%s3 + $0x20] sm:$0x3]
  %v72 = vld [vmem:[%s4] sm:$0xff]
  %v73 = vld [vmem:[%s4 + $0x8] sm:$0xff]
  %v74 = vld [vmem:[%s4 + $0x10] sm:$0xff]
  %v75 = vld [vmem:[%s4 + $0x18] sm:$0xff]
  %v76 = vld [vmem:[%s4 + $0x20] sm:$0xff]
  %v77 = vld [vmem:[%s4 + $0x28] sm:$0xff]
  %v78 = vld [vmem:[%s4 + $0x30] sm:$0xff]
  %v79 = vld [vmem:[%s4 + $0x38] sm:$0xff]
  %v80 = vld [vmem:[%s4 + $0x40] sm:$0xff]
  %v81 = vld [vmem:[%s4 + $0x48] sm:$0xff]
  %v82 = vld [vmem:[%s4 + $0x50] sm:$0xff]
  %v83 = vld [vmem:[%s4 + $0x58] sm:$0xff]
  %v84 = vld [vmem:[%s4 + $0x60] sm:$0xff]
  %v85 = vperm.slane %v84, 0
  %vm86 = vcmask 261120
  %v88 = vsel %vm86, %v55, 0
  %v91 = vsel %vm86, %v56, 0
  %v94 = vsel %vm86, %v57, 0
  %v97 = vsel %vm86, %v58, 0
  %v100 = vsel %vm86, %v59, 0
  %102 = vmatpush.msra.mxu0 0.0
  %103 = vmatpush.msra.mxu0 0.0
  %104 = vmatpush.msra.mxu0 0.0
  %105 = vmatpush.msra.mxu0 0.0
  %106 = vmatpush.msra.mxu0 0.0
  %107 = vmatpush.msra.mxu0 0.0
  %108 = vmatpush.msra.mxu0 0.0
  %109 = vmatpush.msra.mxu0 0.0
  %110 = vmatpush.msra.mxu0 0.0
  %111 = vmatpush.msra.mxu0 0.0
  %112 = vmatpush.msra.mxu0 0.0
  %113 = vmatpush.msra.mxu0 0.0
  %114 = vmatpush.msra.mxu0 %v75
  %115 = vmatpush.msra.mxu0 %v74
  %116 = vmatpush.msra.mxu0 %v73
  %117 = vmatpush.msra.mxu0 %v72
  %118 = vmatmul.f32.gmra.mxu0 %v88
  %v119 = vpop.f32.mrf.mxu0
  %v120 = vadd.f32 %v85, %v119
  %121 = vmatmul.f32.gmra.mxu0 %v91
  %v122 = vpop.f32.mrf.mxu0
  %v123 = vadd.f32 %v85, %v122
  %124 = vmatmul.f32.gmra.mxu0 %v94
  %v125 = vpop.f32.mrf.mxu0
  %v126 = vadd.f32 %v85, %v125
  %127 = vmatmul.f32.gmra.mxu0 %v97
  %v128 = vpop.f32.mrf.mxu0
  %v129 = vadd.f32 %v85, %v128
  %130 = vmatmul.f32.gmra.mxu0 %v100
  %v131 = vpop.f32.mrf.mxu0
  %v132 = vadd.f32 %v85, %v131
  %133 = vdwg.mxu0
  %139 = vrot.lane.b32.xlu0 %v120, 96
  %v140 = vpop.permute.xlu0 %139
  %141 = vrot.lane.b32.xlu0 %v123, 96
  %v142 = vpop.permute.xlu0 %141
  %143 = vrot.lane.b32.xlu0 %v126, 96
  %v144 = vpop.permute.xlu0 %143
  %145 = vrot.lane.b32.xlu0 %v129, 96
  %v146 = vpop.permute.xlu0 %145
  %147 = vrot.lane.b32.xlu0 %v132, 96
  %v148 = vpop.permute.xlu0 %147
  %vm149 = vcmask 64512
  %v150 = vsel %vm149, %v120, 0
  %v152 = vsel %vm149, %v123, 0
  %v154 = vsel %vm149, %v126, 0
  %v156 = vsel %vm149, %v129, 0
  %v158 = vsel %vm149, %v132, 0
  %v160 = vsel %vm149, %v140, 0
  %v162 = vsel %vm149, %v142, 0
  %v164 = vsel %vm149, %v144, 0
  %v166 = vsel %vm149, %v146, 0
  %v168 = vsel %vm149, %v148, 0
  %170 = vmatpush.xpose.msra.mxu0 0.0
  %171 = vmatpush.xpose.msra.mxu0 0.0
  %172 = vmatpush.xpose.msra.mxu0 0.0
  %173 = vmatpush.xpose.msra.mxu0 0.0
  %174 = vmatpush.xpose.msra.mxu0 0.0
  %175 = vmatpush.xpose.msra.mxu0 0.0
  %176 = vmatpush.xpose.msra.mxu0 0.0
  %177 = vmatpush.xpose.msra.mxu0 0.0
  %178 = vmatpush.xpose.msra.mxu0 0.0
  %179 = vmatpush.xpose.msra.mxu0 0.0
  %180 = vmatpush.xpose.msra.mxu0 0.0
  %181 = vmatpush.xpose.msra.mxu0 %v168
  %182 = vmatpush.xpose.msra.mxu0 %v166
  %183 = vmatpush.xpose.msra.mxu0 %v164
  %184 = vmatpush.xpose.msra.mxu0 %v162
  %185 = vmatpush.xpose.msra.mxu0 %v160
  %186 = vmatmul.f32.gmra.mxu0 %v150
  %v187 = vpop.f32.mrf.mxu0
  %v188 = vadd.f32 0.0, %v187
  %189 = vmatmul.f32.gmra.mxu0 %v152
  %v190 = vpop.f32.mrf.mxu0
  %v191 = vadd.f32 0.0, %v190
  %192 = vmatmul.f32.gmra.mxu0 %v154
  %v193 = vpop.f32.mrf.mxu0
  %v194 = vadd.f32 0.0, %v193
  %195 = vmatmul.f32.gmra.mxu0 %v156
  %v196 = vpop.f32.mrf.mxu0
  %v197 = vadd.f32 0.0, %v196
  %198 = vmatmul.f32.gmra.mxu0 %v158
  %v199 = vpop.f32.mrf.mxu0
  %v200 = vadd.f32 0.0, %v199
  %201 = vdwg.mxu0
  %v202 = vmul.f32 %v188, 0.35355338
  %v203 = vmul.f32 %v191, 0.35355338
  %v204 = vmul.f32 %v194, 0.35355338
  %v205 = vmul.f32 %v197, 0.35355338
  %v206 = vmul.f32 %v200, 0.35355338
  %v207 = vadd.f32 %v202, %v62
  %v208 = vadd.f32 %v203, %v63
  %v209 = vadd.f32 %v204, %v64
  %v210 = vadd.f32 %v205, %v65
  %v211 = vadd.f32 %v206, %v66
  %vm212 = vcmask 277504
  %v213 = vsel %vm212, %v207, -inf
  %214 = vmax.xlane.f32.xlu0 %v213
  %v215 = vpop.xlane.xlu0 %214
  %v216 = vsel %vm212, %v208, -inf
  %217 = vmax.xlane.f32.xlu0 %v216
  %v218 = vpop.xlane.xlu0 %217
  %v219 = vsel %vm212, %v209, -inf
  %220 = vmax.xlane.f32.xlu0 %v219
  %v221 = vpop.xlane.xlu0 %220
  %v222 = vsel %vm212, %v210, -inf
  %223 = vmax.xlane.f32.xlu0 %v222
  %v224 = vpop.xlane.xlu0 %223
  %vm225 = vcmask 271360
  %v226 = vsel %vm225, %v211, -inf
  %227 = vmax.xlane.f32.xlu0 %v226
  %v228 = vpop.xlane.xlu0 %227
  %v229 = vsub.f32 %v207, %v215
  %v230 = vsub.f32 %v208, %v218
  %v231 = vsub.f32 %v209, %v221
  %v232 = vsub.f32 %v210, %v224
  %v233 = vsub.f32 %v211, %v228
  %v234 = vmul.f32 %v229, 1.442695
  %v235 = vpow.pop %v234
  %v236 = vmul.f32 %v230, 1.442695
  %v237 = vpow.pop %v236
  %v238 = vmul.f32 %v231, 1.442695
  %v239 = vpow.pop %v238
  %v240 = vmul.f32 %v232, 1.442695
  %v241 = vpow.pop %v240
  %v242 = vmul.f32 %v233, 1.442695
  %v243 = vpow.pop %v242
  %v244 = vsel %vm212, %v235, 0.0
  %245 = vadd.xlane.f32.xlu0 %v244
  %v246 = vpop.xlane.xlu0 %245
  %v247 = vsel %vm212, %v237, 0.0
  %248 = vadd.xlane.f32.xlu0 %v247
  %v249 = vpop.xlane.xlu0 %248
  %v250 = vsel %vm212, %v239, 0.0
  %251 = vadd.xlane.f32.xlu0 %v250
  %v252 = vpop.xlane.xlu0 %251
  %v253 = vsel %vm212, %v241, 0.0
  %254 = vadd.xlane.f32.xlu0 %v253
  %v255 = vpop.xlane.xlu0 %254
  %v256 = vsel %vm225, %v243, 0.0
  %257 = vadd.xlane.f32.xlu0 %v256
  %v258 = vpop.xlane.xlu0 %257
  %v259 = vrcp.pop %v246
  %v260 = vrcp.pop %v249
  %v261 = vrcp.pop %v252
  %v262 = vrcp.pop %v255
  %v263 = vrcp.pop %v258
  %v264 = vmul.f32 %v235, %v259
  %v265 = vmul.f32 %v237, %v260
  %v266 = vmul.f32 %v239, %v261
  %v267 = vmul.f32 %v241, %v262
  %v268 = vmul.f32 %v243, %v263
  %269 = vrot.lane.b32.xlu0 %v120, 64
  %v270 = vpop.permute.xlu0 %269
  %271 = vrot.lane.b32.xlu0 %v123, 64
  %v272 = vpop.permute.xlu0 %271
  %273 = vrot.lane.b32.xlu0 %v126, 64
  %v274 = vpop.permute.xlu0 %273
  %275 = vrot.lane.b32.xlu0 %v129, 64
  %v276 = vpop.permute.xlu0 %275
  %277 = vrot.lane.b32.xlu0 %v132, 64
  %v278 = vpop.permute.xlu0 %277
  %v284 = vsel %vm212, %v264, 0
  %v287 = vsel %vm212, %v265, 0
  %v290 = vsel %vm212, %v266, 0
  %v293 = vsel %vm212, %v267, 0
  %v296 = vsel %vm212, %v268, 0
  %vm298 = vcmask 1041408
  %v299 = vsel %vm298, %v278, 0
  %301 = vmatpush.msra.mxu0 0.0
  %302 = vmatpush.msra.mxu0 0.0
  %303 = vmatpush.msra.mxu0 0.0
  %304 = vmatpush.msra.mxu0 0.0
  %305 = vmatpush.msra.mxu0 0.0
  %306 = vmatpush.msra.mxu0 0.0
  %307 = vmatpush.msra.mxu0 0.0
  %308 = vmatpush.msra.mxu0 0.0
  %309 = vmatpush.msra.mxu0 0.0
  %310 = vmatpush.msra.mxu0 0.0
  %311 = vmatpush.msra.mxu0 0.0
  %312 = vmatpush.msra.mxu0 %v299
  %313 = vmatpush.msra.mxu0 %v276
  %314 = vmatpush.msra.mxu0 %v274
  %315 = vmatpush.msra.mxu0 %v272
  %316 = vmatpush.msra.mxu0 %v270
  %317 = vmatmul.f32.gmra.mxu0 %v284
  %v318 = vpop.f32.mrf.mxu0
  %v319 = vadd.f32 0.0, %v318
  %320 = vmatmul.f32.gmra.mxu0 %v287
  %v321 = vpop.f32.mrf.mxu0
  %v322 = vadd.f32 0.0, %v321
  %323 = vmatmul.f32.gmra.mxu0 %v290
  %v324 = vpop.f32.mrf.mxu0
  %v325 = vadd.f32 0.0, %v324
  %326 = vmatmul.f32.gmra.mxu0 %v293
  %v327 = vpop.f32.mrf.mxu0
  %v328 = vadd.f32 0.0, %v327
  %329 = vmatmul.f32.gmra.mxu0 %v296
  %v330 = vpop.f32.mrf.mxu0
  %v331 = vadd.f32 0.0, %v330
  %332 = vdwg.mxu0
  %333 = vrot.lane.b32.xlu0 %v120, 120
  %v334 = vpop.permute.xlu0 %333
  %335 = vrot.lane.b32.xlu0 %v123, 120
  %v336 = vpop.permute.xlu0 %335
  %337 = vrot.lane.b32.xlu0 %v126, 120
  %v338 = vpop.permute.xlu0 %337
  %339 = vrot.lane.b32.xlu0 %v129, 120
  %v340 = vpop.permute.xlu0 %339
  %341 = vrot.lane.b32.xlu0 %v132, 120
  %v342 = vpop.permute.xlu0 %341
  %343 = vrot.lane.b32.xlu0 %v120, 88
  %v344 = vpop.permute.xlu0 %343
  %345 = vrot.lane.b32.xlu0 %v123, 88
  %v346 = vpop.permute.xlu0 %345
  %347 = vrot.lane.b32.xlu0 %v126, 88
  %v348 = vpop.permute.xlu0 %347
  %349 = vrot.lane.b32.xlu0 %v129, 88
  %v350 = vpop.permute.xlu0 %349
  %351 = vrot.lane.b32.xlu0 %v132, 88
  %v352 = vpop.permute.xlu0 %351
  %v353 = vsel %vm149, %v334, 0
  %v355 = vsel %vm149, %v336, 0
  %v357 = vsel %vm149, %v338, 0
  %v359 = vsel %vm149, %v340, 0
  %v361 = vsel %vm149, %v342, 0
  %v363 = vsel %vm149, %v344, 0
  %v365 = vsel %vm149, %v346, 0
  %v367 = vsel %vm149, %v348, 0
  %v369 = vsel %vm149, %v350, 0
  %v371 = vsel %vm149, %v352, 0
  %373 = vmatpush.xpose.msra.mxu0 0.0
  %374 = vmatpush.xpose.msra.mxu0 0.0
  %375 = vmatpush.xpose.msra.mxu0 0.0
  %376 = vmatpush.xpose.msra.mxu0 0.0
  %377 = vmatpush.xpose.msra.mxu0 0.0
  %378 = vmatpush.xpose.msra.mxu0 0.0
  %379 = vmatpush.xpose.msra.mxu0 0.0
  %380 = vmatpush.xpose.msra.mxu0 0.0
  %381 = vmatpush.xpose.msra.mxu0 0.0
  %382 = vmatpush.xpose.msra.mxu0 0.0
  %383 = vmatpush.xpose.msra.mxu0 0.0
  %384 = vmatpush.xpose.msra.mxu0 %v371
  %385 = vmatpush.xpose.msra.mxu0 %v369
  %386 = vmatpush.xpose.msra.mxu0 %v367
  %387 = vmatpush.xpose.msra.mxu0 %v365
  %388 = vmatpush.xpose.msra.mxu0 %v363
  %389 = vmatmul.f32.gmra.mxu0 %v353
  %v390 = vpop.f32.mrf.mxu0
  %v391 = vadd.f32 0.0, %v390
  %392 = vmatmul.f32.gmra.mxu0 %v355
  %v393 = vpop.f32.mrf.mxu0
  %v394 = vadd.f32 0.0, %v393
  %395 = vmatmul.f32.gmra.mxu0 %v357
  %v396 = vpop.f32.mrf.mxu0
  %v397 = vadd.f32 0.0, %v396
  %398 = vmatmul.f32.gmra.mxu0 %v359
  %v399 = vpop.f32.mrf.mxu0
  %v400 = vadd.f32 0.0, %v399
  %401 = vmatmul.f32.gmra.mxu0 %v361
  %v402 = vpop.f32.mrf.mxu0
  %v403 = vadd.f32 0.0, %v402
  %404 = vdwg.mxu0
  %v405 = vmul.f32 %v391, 0.35355338
  %v406 = vmul.f32 %v394, 0.35355338
  %v407 = vmul.f32 %v397, 0.35355338
  %v408 = vmul.f32 %v400, 0.35355338
  %v409 = vmul.f32 %v403, 0.35355338
  %v410 = vadd.f32 %v405, %v62
  %v411 = vadd.f32 %v406, %v63
  %v412 = vadd.f32 %v407, %v64
  %v413 = vadd.f32 %v408, %v65
  %v414 = vadd.f32 %v409, %v66
  %v415 = vsel %vm212, %v410, -inf
  %416 = vmax.xlane.f32.xlu0 %v415
  %v417 = vpop.xlane.xlu0 %416
  %v418 = vsel %vm212, %v411, -inf
  %419 = vmax.xlane.f32.xlu0 %v418
  %v420 = vpop.xlane.xlu0 %419
  %v421 = vsel %vm212, %v412, -inf
  %422 = vmax.xlane.f32.xlu0 %v421
  %v423 = vpop.xlane.xlu0 %422
  %v424 = vsel %vm212, %v413, -inf
  %425 = vmax.xlane.f32.xlu0 %v424
  %v426 = vpop.xlane.xlu0 %425
  %v427 = vsel %vm225, %v414, -inf
  %428 = vmax.xlane.f32.xlu0 %v427
  %v429 = vpop.xlane.xlu0 %428
  %v430 = vsub.f32 %v410, %v417
  %v431 = vsub.f32 %v411, %v420
  %v432 = vsub.f32 %v412, %v423
  %v433 = vsub.f32 %v413, %v426
  %v434 = vsub.f32 %v414, %v429
  %v435 = vmul.f32 %v430, 1.442695
  %v436 = vpow.pop %v435
  %v437 = vmul.f32 %v431, 1.442695
  %v438 = vpow.pop %v437
  %v439 = vmul.f32 %v432, 1.442695
  %v440 = vpow.pop %v439
  %v441 = vmul.f32 %v433, 1.442695
  %v442 = vpow.pop %v441
  %v443 = vmul.f32 %v434, 1.442695
  %v444 = vpow.pop %v443
  %v445 = vsel %vm212, %v436, 0.0
  %446 = vadd.xlane.f32.xlu0 %v445
  %v447 = vpop.xlane.xlu0 %446
  %v448 = vsel %vm212, %v438, 0.0
  %449 = vadd.xlane.f32.xlu0 %v448
  %v450 = vpop.xlane.xlu0 %449
  %v451 = vsel %vm212, %v440, 0.0
  %452 = vadd.xlane.f32.xlu0 %v451
  %v453 = vpop.xlane.xlu0 %452
  %v454 = vsel %vm212, %v442, 0.0
  %455 = vadd.xlane.f32.xlu0 %v454
  %v456 = vpop.xlane.xlu0 %455
  %v457 = vsel %vm225, %v444, 0.0
  %458 = vadd.xlane.f32.xlu0 %v457
  %v459 = vpop.xlane.xlu0 %458
  %v460 = vrcp.pop %v447
  %v461 = vrcp.pop %v450
  %v462 = vrcp.pop %v453
  %v463 = vrcp.pop %v456
  %v464 = vrcp.pop %v459
  %v465 = vmul.f32 %v436, %v460
  %v466 = vmul.f32 %v438, %v461
  %v467 = vmul.f32 %v440, %v462
  %v468 = vmul.f32 %v442, %v463
  %v469 = vmul.f32 %v444, %v464
  %470 = vrot.lane.b32.xlu0 %v120, 56
  %v471 = vpop.permute.xlu0 %470
  %472 = vrot.lane.b32.xlu0 %v123, 56
  %v473 = vpop.permute.xlu0 %472
  %474 = vrot.lane.b32.xlu0 %v126, 56
  %v475 = vpop.permute.xlu0 %474
  %476 = vrot.lane.b32.xlu0 %v129, 56
  %v477 = vpop.permute.xlu0 %476
  %478 = vrot.lane.b32.xlu0 %v132, 56
  %v479 = vpop.permute.xlu0 %478
  %v485 = vsel %vm212, %v465, 0
  %v488 = vsel %vm212, %v466, 0
  %v491 = vsel %vm212, %v467, 0
  %v494 = vsel %vm212, %v468, 0
  %v497 = vsel %vm212, %v469, 0
  %v499 = vsel %vm298, %v479, 0
  %501 = vmatpush.msra.mxu0 0.0
  %502 = vmatpush.msra.mxu0 0.0
  %503 = vmatpush.msra.mxu0 0.0
  %504 = vmatpush.msra.mxu0 0.0
  %505 = vmatpush.msra.mxu0 0.0
  %506 = vmatpush.msra.mxu0 0.0
  %507 = vmatpush.msra.mxu0 0.0
  %508 = vmatpush.msra.mxu0 0.0
  %509 = vmatpush.msra.mxu0 0.0
  %510 = vmatpush.msra.mxu0 0.0
  %511 = vmatpush.msra.mxu0 0.0
  %512 = vmatpush.msra.mxu0 %v499
  %513 = vmatpush.msra.mxu0 %v477
  %514 = vmatpush.msra.mxu0 %v475
  %515 = vmatpush.msra.mxu0 %v473
  %516 = vmatpush.msra.mxu0 %v471
  %517 = vmatmul.f32.gmra.mxu0 %v485
  %v518 = vpop.f32.mrf.mxu0
  %v519 = vadd.f32 0.0, %v518
  %520 = vmatmul.f32.gmra.mxu0 %v488
  %v521 = vpop.f32.mrf.mxu0
  %v522 = vadd.f32 0.0, %v521
  %523 = vmatmul.f32.gmra.mxu0 %v491
  %v524 = vpop.f32.mrf.mxu0
  %v525 = vadd.f32 0.0, %v524
  %526 = vmatmul.f32.gmra.mxu0 %v494
  %v527 = vpop.f32.mrf.mxu0
  %v528 = vadd.f32 0.0, %v527
  %529 = vmatmul.f32.gmra.mxu0 %v497
  %v530 = vpop.f32.mrf.mxu0
  %v531 = vadd.f32 0.0, %v530
  %532 = vdwg.mxu0
  %533 = vrot.lane.b32.xlu0 %v120, 112
  %v534 = vpop.permute.xlu0 %533
  %535 = vrot.lane.b32.xlu0 %v123, 112
  %v536 = vpop.permute.xlu0 %535
  %537 = vrot.lane.b32.xlu0 %v126, 112
  %v538 = vpop.permute.xlu0 %537
  %539 = vrot.lane.b32.xlu0 %v129, 112
  %v540 = vpop.permute.xlu0 %539
  %541 = vrot.lane.b32.xlu0 %v132, 112
  %v542 = vpop.permute.xlu0 %541
  %543 = vrot.lane.b32.xlu0 %v120, 80
  %v544 = vpop.permute.xlu0 %543
  %545 = vrot.lane.b32.xlu0 %v123, 80
  %v546 = vpop.permute.xlu0 %545
  %547 = vrot.lane.b32.xlu0 %v126, 80
  %v548 = vpop.permute.xlu0 %547
  %549 = vrot.lane.b32.xlu0 %v129, 80
  %v550 = vpop.permute.xlu0 %549
  %551 = vrot.lane.b32.xlu0 %v132, 80
  %v552 = vpop.permute.xlu0 %551
  %v553 = vsel %vm149, %v534, 0
  %v555 = vsel %vm149, %v536, 0
  %v557 = vsel %vm149, %v538, 0
  %v559 = vsel %vm149, %v540, 0
  %v561 = vsel %vm149, %v542, 0
  %v563 = vsel %vm149, %v544, 0
  %v565 = vsel %vm149, %v546, 0
  %v567 = vsel %vm149, %v548, 0
  %v569 = vsel %vm149, %v550, 0
  %v571 = vsel %vm149, %v552, 0
  %573 = vmatpush.xpose.msra.mxu0 0.0
  %574 = vmatpush.xpose.msra.mxu0 0.0
  %575 = vmatpush.xpose.msra.mxu0 0.0
  %576 = vmatpush.xpose.msra.mxu0 0.0
  %577 = vmatpush.xpose.msra.mxu0 0.0
  %578 = vmatpush.xpose.msra.mxu0 0.0
  %579 = vmatpush.xpose.msra.mxu0 0.0
  %580 = vmatpush.xpose.msra.mxu0 0.0
  %581 = vmatpush.xpose.msra.mxu0 0.0
  %582 = vmatpush.xpose.msra.mxu0 0.0
  %583 = vmatpush.xpose.msra.mxu0 0.0
  %584 = vmatpush.xpose.msra.mxu0 %v571
  %585 = vmatpush.xpose.msra.mxu0 %v569
  %586 = vmatpush.xpose.msra.mxu0 %v567
  %587 = vmatpush.xpose.msra.mxu0 %v565
  %588 = vmatpush.xpose.msra.mxu0 %v563
  %589 = vmatmul.f32.gmra.mxu0 %v553
  %v590 = vpop.f32.mrf.mxu0
  %v591 = vadd.f32 0.0, %v590
  %592 = vmatmul.f32.gmra.mxu0 %v555
  %v593 = vpop.f32.mrf.mxu0
  %v594 = vadd.f32 0.0, %v593
  %595 = vmatmul.f32.gmra.mxu0 %v557
  %v596 = vpop.f32.mrf.mxu0
  %v597 = vadd.f32 0.0, %v596
  %598 = vmatmul.f32.gmra.mxu0 %v559
  %v599 = vpop.f32.mrf.mxu0
  %v600 = vadd.f32 0.0, %v599
  %601 = vmatmul.f32.gmra.mxu0 %v561
  %v602 = vpop.f32.mrf.mxu0
  %v603 = vadd.f32 0.0, %v602
  %604 = vdwg.mxu0
  %v605 = vmul.f32 %v591, 0.35355338
  %v606 = vmul.f32 %v594, 0.35355338
  %v607 = vmul.f32 %v597, 0.35355338
  %v608 = vmul.f32 %v600, 0.35355338
  %v609 = vmul.f32 %v603, 0.35355338
  %v610 = vadd.f32 %v605, %v62
  %v611 = vadd.f32 %v606, %v63
  %v612 = vadd.f32 %v607, %v64
  %v613 = vadd.f32 %v608, %v65
  %v614 = vadd.f32 %v609, %v66
  %v615 = vsel %vm212, %v610, -inf
  %616 = vmax.xlane.f32.xlu0 %v615
  %v617 = vpop.xlane.xlu0 %616
  %v618 = vsel %vm212, %v611, -inf
  %619 = vmax.xlane.f32.xlu0 %v618
  %v620 = vpop.xlane.xlu0 %619
  %v621 = vsel %vm212, %v612, -inf
  %622 = vmax.xlane.f32.xlu0 %v621
  %v623 = vpop.xlane.xlu0 %622
  %v624 = vsel %vm212, %v613, -inf
  %625 = vmax.xlane.f32.xlu0 %v624
  %v626 = vpop.xlane.xlu0 %625
  %v627 = vsel %vm225, %v614, -inf
  %628 = vmax.xlane.f32.xlu0 %v627
  %v629 = vpop.xlane.xlu0 %628
  %v630 = vsub.f32 %v610, %v617
  %v631 = vsub.f32 %v611, %v620
  %v632 = vsub.f32 %v612, %v623
  %v633 = vsub.f32 %v613, %v626
  %v634 = vsub.f32 %v614, %v629
  %v635 = vmul.f32 %v630, 1.442695
  %v636 = vpow.pop %v635
  %v637 = vmul.f32 %v631, 1.442695
  %v638 = vpow.pop %v637
  %v639 = vmul.f32 %v632, 1.442695
  %v640 = vpow.pop %v639
  %v641 = vmul.f32 %v633, 1.442695
  %v642 = vpow.pop %v641
  %v643 = vmul.f32 %v634, 1.442695
  %v644 = vpow.pop %v643
  %v645 = vsel %vm212, %v636, 0.0
  %646 = vadd.xlane.f32.xlu0 %v645
  %v647 = vpop.xlane.xlu0 %646
  %v648 = vsel %vm212, %v638, 0.0
  %649 = vadd.xlane.f32.xlu0 %v648
  %v650 = vpop.xlane.xlu0 %649
  %v651 = vsel %vm212, %v640, 0.0
  %652 = vadd.xlane.f32.xlu0 %v651
  %v653 = vpop.xlane.xlu0 %652
  %v654 = vsel %vm212, %v642, 0.0
  %655 = vadd.xlane.f32.xlu0 %v654
  %v656 = vpop.xlane.xlu0 %655
  %v657 = vsel %vm225, %v644, 0.0
  %658 = vadd.xlane.f32.xlu0 %v657
  %v659 = vpop.xlane.xlu0 %658
  %v660 = vrcp.pop %v647
  %v661 = vrcp.pop %v650
  %v662 = vrcp.pop %v653
  %v663 = vrcp.pop %v656
  %v664 = vrcp.pop %v659
  %v665 = vmul.f32 %v636, %v660
  %v666 = vmul.f32 %v638, %v661
  %v667 = vmul.f32 %v640, %v662
  %v668 = vmul.f32 %v642, %v663
  %v669 = vmul.f32 %v644, %v664
  %670 = vrot.lane.b32.xlu0 %v120, 48
  %v671 = vpop.permute.xlu0 %670
  %672 = vrot.lane.b32.xlu0 %v123, 48
  %v673 = vpop.permute.xlu0 %672
  %674 = vrot.lane.b32.xlu0 %v126, 48
  %v675 = vpop.permute.xlu0 %674
  %676 = vrot.lane.b32.xlu0 %v129, 48
  %v677 = vpop.permute.xlu0 %676
  %678 = vrot.lane.b32.xlu0 %v132, 48
  %v679 = vpop.permute.xlu0 %678
  %v685 = vsel %vm212, %v665, 0
  %v688 = vsel %vm212, %v666, 0
  %v691 = vsel %vm212, %v667, 0
  %v694 = vsel %vm212, %v668, 0
  %v697 = vsel %vm212, %v669, 0
  %v699 = vsel %vm298, %v679, 0
  %701 = vmatpush.msra.mxu0 0.0
  %702 = vmatpush.msra.mxu0 0.0
  %703 = vmatpush.msra.mxu0 0.0
  %704 = vmatpush.msra.mxu0 0.0
  %705 = vmatpush.msra.mxu0 0.0
  %706 = vmatpush.msra.mxu0 0.0
  %707 = vmatpush.msra.mxu0 0.0
  %708 = vmatpush.msra.mxu0 0.0
  %709 = vmatpush.msra.mxu0 0.0
  %710 = vmatpush.msra.mxu0 0.0
  %711 = vmatpush.msra.mxu0 0.0
  %712 = vmatpush.msra.mxu0 %v699
  %713 = vmatpush.msra.mxu0 %v677
  %714 = vmatpush.msra.mxu0 %v675
  %715 = vmatpush.msra.mxu0 %v673
  %716 = vmatpush.msra.mxu0 %v671
  %717 = vmatmul.f32.gmra.mxu0 %v685
  %v718 = vpop.f32.mrf.mxu0
  %v719 = vadd.f32 0.0, %v718
  %720 = vmatmul.f32.gmra.mxu0 %v688
  %v721 = vpop.f32.mrf.mxu0
  %v722 = vadd.f32 0.0, %v721
  %723 = vmatmul.f32.gmra.mxu0 %v691
  %v724 = vpop.f32.mrf.mxu0
  %v725 = vadd.f32 0.0, %v724
  %726 = vmatmul.f32.gmra.mxu0 %v694
  %v727 = vpop.f32.mrf.mxu0
  %v728 = vadd.f32 0.0, %v727
  %729 = vmatmul.f32.gmra.mxu0 %v697
  %v730 = vpop.f32.mrf.mxu0
  %v731 = vadd.f32 0.0, %v730
  %732 = vdwg.mxu0
  %733 = vrot.lane.b32.xlu0 %v120, 104
  %v734 = vpop.permute.xlu0 %733
  %735 = vrot.lane.b32.xlu0 %v123, 104
  %v736 = vpop.permute.xlu0 %735
  %737 = vrot.lane.b32.xlu0 %v126, 104
  %v738 = vpop.permute.xlu0 %737
  %739 = vrot.lane.b32.xlu0 %v129, 104
  %v740 = vpop.permute.xlu0 %739
  %741 = vrot.lane.b32.xlu0 %v132, 104
  %v742 = vpop.permute.xlu0 %741
  %743 = vrot.lane.b32.xlu0 %v120, 72
  %v744 = vpop.permute.xlu0 %743
  %745 = vrot.lane.b32.xlu0 %v123, 72
  %v746 = vpop.permute.xlu0 %745
  %747 = vrot.lane.b32.xlu0 %v126, 72
  %v748 = vpop.permute.xlu0 %747
  %749 = vrot.lane.b32.xlu0 %v129, 72
  %v750 = vpop.permute.xlu0 %749
  %751 = vrot.lane.b32.xlu0 %v132, 72
  %v752 = vpop.permute.xlu0 %751
  %v753 = vsel %vm149, %v734, 0
  %v755 = vsel %vm149, %v736, 0
  %v757 = vsel %vm149, %v738, 0
  %v759 = vsel %vm149, %v740, 0
  %v761 = vsel %vm149, %v742, 0
  %v763 = vsel %vm149, %v744, 0
  %v765 = vsel %vm149, %v746, 0
  %v767 = vsel %vm149, %v748, 0
  %v769 = vsel %vm149, %v750, 0
  %v771 = vsel %vm149, %v752, 0
  %773 = vmatpush.xpose.msra.mxu0 0.0
  %774 = vmatpush.xpose.msra.mxu0 0.0
  %775 = vmatpush.xpose.msra.mxu0 0.0
  %776 = vmatpush.xpose.msra.mxu0 0.0
  %777 = vmatpush.xpose.msra.mxu0 0.0
  %778 = vmatpush.xpose.msra.mxu0 0.0
  %779 = vmatpush.xpose.msra.mxu0 0.0
  %780 = vmatpush.xpose.msra.mxu0 0.0
  %781 = vmatpush.xpose.msra.mxu0 0.0
  %782 = vmatpush.xpose.msra.mxu0 0.0
  %783 = vmatpush.xpose.msra.mxu0 0.0
  %784 = vmatpush.xpose.msra.mxu0 %v771
  %785 = vmatpush.xpose.msra.mxu0 %v769
  %786 = vmatpush.xpose.msra.mxu0 %v767
  %787 = vmatpush.xpose.msra.mxu0 %v765
  %788 = vmatpush.xpose.msra.mxu0 %v763
  %789 = vmatmul.f32.gmra.mxu0 %v753
  %v790 = vpop.f32.mrf.mxu0
  %v791 = vadd.f32 0.0, %v790
  %792 = vmatmul.f32.gmra.mxu0 %v755
  %v793 = vpop.f32.mrf.mxu0
  %v794 = vadd.f32 0.0, %v793
  %795 = vmatmul.f32.gmra.mxu0 %v757
  %v796 = vpop.f32.mrf.mxu0
  %v797 = vadd.f32 0.0, %v796
  %798 = vmatmul.f32.gmra.mxu0 %v759
  %v799 = vpop.f32.mrf.mxu0
  %v800 = vadd.f32 0.0, %v799
  %801 = vmatmul.f32.gmra.mxu0 %v761
  %v802 = vpop.f32.mrf.mxu0
  %v803 = vadd.f32 0.0, %v802
  %804 = vdwg.mxu0
  %v805 = vmul.f32 %v791, 0.35355338
  %v806 = vmul.f32 %v794, 0.35355338
  %v807 = vmul.f32 %v797, 0.35355338
  %v808 = vmul.f32 %v800, 0.35355338
  %v809 = vmul.f32 %v803, 0.35355338
  %v810 = vadd.f32 %v805, %v62
  %v811 = vadd.f32 %v806, %v63
  %v812 = vadd.f32 %v807, %v64
  %v813 = vadd.f32 %v808, %v65
  %v814 = vadd.f32 %v809, %v66
  %v815 = vsel %vm212, %v810, -inf
  %816 = vmax.xlane.f32.xlu0 %v815
  %v817 = vpop.xlane.xlu0 %816
  %v818 = vsel %vm212, %v811, -inf
  %819 = vmax.xlane.f32.xlu0 %v818
  %v820 = vpop.xlane.xlu0 %819
  %v821 = vsel %vm212, %v812, -inf
  %822 = vmax.xlane.f32.xlu0 %v821
  %v823 = vpop.xlane.xlu0 %822
  %v824 = vsel %vm212, %v813, -inf
  %825 = vmax.xlane.f32.xlu0 %v824
  %v826 = vpop.xlane.xlu0 %825
  %v827 = vsel %vm225, %v814, -inf
  %828 = vmax.xlane.f32.xlu0 %v827
  %v829 = vpop.xlane.xlu0 %828
  %v830 = vsub.f32 %v810, %v817
  %v831 = vsub.f32 %v811, %v820
  %v832 = vsub.f32 %v812, %v823
  %v833 = vsub.f32 %v813, %v826
  %v834 = vsub.f32 %v814, %v829
  %v835 = vmul.f32 %v830, 1.442695
  %v836 = vpow.pop %v835
  %v837 = vmul.f32 %v831, 1.442695
  %v838 = vpow.pop %v837
  %v839 = vmul.f32 %v832, 1.442695
  %v840 = vpow.pop %v839
  %v841 = vmul.f32 %v833, 1.442695
  %v842 = vpow.pop %v841
  %v843 = vmul.f32 %v834, 1.442695
  %v844 = vpow.pop %v843
  %v845 = vsel %vm212, %v836, 0.0
  %846 = vadd.xlane.f32.xlu0 %v845
  %v847 = vpop.xlane.xlu0 %846
  %v848 = vsel %vm212, %v838, 0.0
  %849 = vadd.xlane.f32.xlu0 %v848
  %v850 = vpop.xlane.xlu0 %849
  %v851 = vsel %vm212, %v840, 0.0
  %852 = vadd.xlane.f32.xlu0 %v851
  %v853 = vpop.xlane.xlu0 %852
  %v854 = vsel %vm212, %v842, 0.0
  %855 = vadd.xlane.f32.xlu0 %v854
  %v856 = vpop.xlane.xlu0 %855
  %v857 = vsel %vm225, %v844, 0.0
  %858 = vadd.xlane.f32.xlu0 %v857
  %v859 = vpop.xlane.xlu0 %858
  %v860 = vrcp.pop %v847
  %v861 = vrcp.pop %v850
  %v862 = vrcp.pop %v853
  %v863 = vrcp.pop %v856
  %v864 = vrcp.pop %v859
  %v865 = vmul.f32 %v836, %v860
  %v866 = vmul.f32 %v838, %v861
  %v867 = vmul.f32 %v840, %v862
  %v868 = vmul.f32 %v842, %v863
  %v869 = vmul.f32 %v844, %v864
  %870 = vrot.lane.b32.xlu0 %v120, 40
  %v871 = vpop.permute.xlu0 %870
  %872 = vrot.lane.b32.xlu0 %v123, 40
  %v873 = vpop.permute.xlu0 %872
  %874 = vrot.lane.b32.xlu0 %v126, 40
  %v875 = vpop.permute.xlu0 %874
  %876 = vrot.lane.b32.xlu0 %v129, 40
  %v877 = vpop.permute.xlu0 %876
  %878 = vrot.lane.b32.xlu0 %v132, 40
  %v879 = vpop.permute.xlu0 %878
  %v885 = vsel %vm212, %v865, 0
  %v888 = vsel %vm212, %v866, 0
  %v891 = vsel %vm212, %v867, 0
  %v894 = vsel %vm212, %v868, 0
  %v897 = vsel %vm212, %v869, 0
  %v899 = vsel %vm298, %v879, 0
  %901 = vmatpush.msra.mxu0 0.0
  %902 = vmatpush.msra.mxu0 0.0
  %903 = vmatpush.msra.mxu0 0.0
  %904 = vmatpush.msra.mxu0 0.0
  %905 = vmatpush.msra.mxu0 0.0
  %906 = vmatpush.msra.mxu0 0.0
  %907 = vmatpush.msra.mxu0 0.0
  %908 = vmatpush.msra.mxu0 0.0
  %909 = vmatpush.msra.mxu0 0.0
  %910 = vmatpush.msra.mxu0 0.0
  %911 = vmatpush.msra.mxu0 0.0
  %912 = vmatpush.msra.mxu0 %v899
  %913 = vmatpush.msra.mxu0 %v877
  %914 = vmatpush.msra.mxu0 %v875
  %915 = vmatpush.msra.mxu0 %v873
  %916 = vmatpush.msra.mxu0 %v871
  %917 = vmatmul.f32.gmra.mxu0 %v885
  %v918 = vpop.f32.mrf.mxu0
  %v919 = vadd.f32 0.0, %v918
  %920 = vmatmul.f32.gmra.mxu0 %v888
  %v921 = vpop.f32.mrf.mxu0
  %v922 = vadd.f32 0.0, %v921
  %923 = vmatmul.f32.gmra.mxu0 %v891
  %v924 = vpop.f32.mrf.mxu0
  %v925 = vadd.f32 0.0, %v924
  %926 = vmatmul.f32.gmra.mxu0 %v894
  %v927 = vpop.f32.mrf.mxu0
  %v928 = vadd.f32 0.0, %v927
  %929 = vmatmul.f32.gmra.mxu0 %v897
  %v930 = vpop.f32.mrf.mxu0
  %v931 = vadd.f32 0.0, %v930
  %932 = vdwg.mxu0
  %938 = vrot.lane.b32.xlu0 %v519, 8
  %v939 = vpop.permute.xlu0 %938
  %940 = vrot.lane.b32.xlu0 %v522, 8
  %v941 = vpop.permute.xlu0 %940
  %942 = vrot.lane.b32.xlu0 %v525, 8
  %v943 = vpop.permute.xlu0 %942
  %944 = vrot.lane.b32.xlu0 %v528, 8
  %v945 = vpop.permute.xlu0 %944
  %946 = vrot.lane.b32.xlu0 %v531, 8
  %v947 = vpop.permute.xlu0 %946
  %958 = vrot.lane.b32.xlu0 %v719, 16
  %v959 = vpop.permute.xlu0 %958
  %960 = vrot.lane.b32.xlu0 %v722, 16
  %v961 = vpop.permute.xlu0 %960
  %962 = vrot.lane.b32.xlu0 %v725, 16
  %v963 = vpop.permute.xlu0 %962
  %964 = vrot.lane.b32.xlu0 %v728, 16
  %v965 = vpop.permute.xlu0 %964
  %966 = vrot.lane.b32.xlu0 %v731, 16
  %v967 = vpop.permute.xlu0 %966
  %978 = vrot.lane.b32.xlu0 %v919, 24
  %v979 = vpop.permute.xlu0 %978
  %980 = vrot.lane.b32.xlu0 %v922, 24
  %v981 = vpop.permute.xlu0 %980
  %982 = vrot.lane.b32.xlu0 %v925, 24
  %v983 = vpop.permute.xlu0 %982
  %984 = vrot.lane.b32.xlu0 %v928, 24
  %v985 = vpop.permute.xlu0 %984
  %986 = vrot.lane.b32.xlu0 %v931, 24
  %v987 = vpop.permute.xlu0 %986
  %v993 = vsel %vm149, %v319, %v939
  %v994 = vsel %vm149, %v322, %v941
  %v995 = vsel %vm149, %v325, %v943
  %v996 = vsel %vm149, %v328, %v945
  %v997 = vsel %vm149, %v331, %v947
  %vm998 = vcmask 130048
  %v999 = vsel %vm998, %v993, %v959
  %v1000 = vsel %vm998, %v994, %v961
  %v1001 = vsel %vm998, %v995, %v963
  %v1002 = vsel %vm998, %v996, %v965
  %v1003 = vsel %vm998, %v997, %v967
  %vm1004 = vcmask 195584
  %v1005 = vsel %vm1004, %v999, %v979
  %v1006 = vsel %vm1004, %v1000, %v981
  %v1007 = vsel %vm1004, %v1001, %v983
  %v1008 = vsel %vm1004, %v1002, %v985
  %v1009 = vsel %vm1004, %v1003, %v987
  %1014 = vrot.lane.b32.xlu0 %v72, 32
  %v1015 = vpop.permute.xlu0 %1014
  %1016 = vrot.lane.b32.xlu0 %v73, 32
  %v1017 = vpop.permute.xlu0 %1016
  %1018 = vrot.lane.b32.xlu0 %v74, 32
  %v1019 = vpop.permute.xlu0 %1018
  %1020 = vrot.lane.b32.xlu0 %v75, 32
  %v1021 = vpop.permute.xlu0 %1020
  %v1027 = vsel %vm86, %v1005, 0
  %v1030 = vsel %vm86, %v1006, 0
  %v1033 = vsel %vm86, %v1007, 0
  %v1036 = vsel %vm86, %v1008, 0
  %v1039 = vsel %vm86, %v1009, 0
  %1041 = vmatpush.msra.mxu0 0.0
  %1042 = vmatpush.msra.mxu0 0.0
  %1043 = vmatpush.msra.mxu0 0.0
  %1044 = vmatpush.msra.mxu0 0.0
  %1045 = vmatpush.msra.mxu0 0.0
  %1046 = vmatpush.msra.mxu0 0.0
  %1047 = vmatpush.msra.mxu0 0.0
  %1048 = vmatpush.msra.mxu0 0.0
  %1049 = vmatpush.msra.mxu0 0.0
  %1050 = vmatpush.msra.mxu0 0.0
  %1051 = vmatpush.msra.mxu0 0.0
  %1052 = vmatpush.msra.mxu0 0.0
  %1053 = vmatpush.msra.mxu0 %v1021
  %1054 = vmatpush.msra.mxu0 %v1019
  %1055 = vmatpush.msra.mxu0 %v1017
  %1056 = vmatpush.msra.mxu0 %v1015
  %1057 = vmatmul.f32.gmra.mxu0 %v1027
  %v1058 = vpop.f32.mrf.mxu0
  %v1059 = vadd.f32 0.0, %v1058
  %1060 = vmatmul.f32.gmra.mxu0 %v1030
  %v1061 = vpop.f32.mrf.mxu0
  %v1062 = vadd.f32 0.0, %v1061
  %1063 = vmatmul.f32.gmra.mxu0 %v1033
  %v1064 = vpop.f32.mrf.mxu0
  %v1065 = vadd.f32 0.0, %v1064
  %1066 = vmatmul.f32.gmra.mxu0 %v1036
  %v1067 = vpop.f32.mrf.mxu0
  %v1068 = vadd.f32 0.0, %v1067
  %1069 = vmatmul.f32.gmra.mxu0 %v1039
  %v1070 = vpop.f32.mrf.mxu0
  %v1071 = vadd.f32 0.0, %v1070
  %1072 = vdwg.mxu0
  %v1073 = vadd.f32 %v55, %v1059
  %v1074 = vadd.f32 %v56, %v1062
  %v1075 = vadd.f32 %v57, %v1065
  %v1076 = vadd.f32 %v58, %v1068
  %v1077 = vadd.f32 %v59, %v1071
  %1079 = vrot.lane.b32.xlu0 %v85, 32
  %v1080 = vpop.permute.xlu0 %1079
  %v1082 = vadd.f32 %v1073, %v1080
  %v1083 = vadd.f32 %v1074, %v1080
  %v1084 = vadd.f32 %v1075, %v1080
  %v1085 = vadd.f32 %v1076, %v1080
  %v1086 = vadd.f32 %v1077, %v1080
  %v1087 = vsel %vm86, %v1082, 0.0
  %1088 = vadd.xlane.f32.xlu0 %v1087
  %v1089 = vpop.xlane.xlu0 %1088
  %v1090 = vsel %vm86, %v1083, 0.0
  %1091 = vadd.xlane.f32.xlu0 %v1090
  %v1092 = vpop.xlane.xlu0 %1091
  %v1093 = vsel %vm86, %v1084, 0.0
  %1094 = vadd.xlane.f32.xlu0 %v1093
  %v1095 = vpop.xlane.xlu0 %1094
  %v1096 = vsel %vm86, %v1085, 0.0
  %1097 = vadd.xlane.f32.xlu0 %v1096
  %v1098 = vpop.xlane.xlu0 %1097
  %vm1099 = vcmask 254976
  %v1100 = vsel %vm1099, %v1086, 0.0
  %1101 = vadd.xlane.f32.xlu0 %v1100
  %v1102 = vpop.xlane.xlu0 %1101
  %v1103 = vrcp.pop 32.0
  %v1104 = vmul.f32 32.0, %v1103
  %v1105 = vsub.f32 1.0, %v1104
  %v1106 = vmul.f32 %v1103, %v1105
  %v1107 = vadd.f32 %v1103, %v1106
  %vm1108 = vweird.f32 %v1103
  %v1109 = vsel %vm1108, %v1103, %v1107
  %v1110 = vmul.f32 %v1089, %v1109
  %v1111 = vmul.f32 %v1092, %v1109
  %v1112 = vmul.f32 %v1095, %v1109
  %v1113 = vmul.f32 %v1098, %v1109
  %v1114 = vmul.f32 %v1102, %v1109
  %v1115 = vsub.f32 %v1082, %v1110
  %v1116 = vsub.f32 %v1083, %v1111
  %v1117 = vsub.f32 %v1084, %v1112
  %v1118 = vsub.f32 %v1085, %v1113
  %v1119 = vsub.f32 %v1086, %v1114
  %v1120 = vmul.f32 %v1115, %v1115
  %v1121 = vmul.f32 %v1116, %v1116
  %v1122 = vmul.f32 %v1117, %v1117
  %v1123 = vmul.f32 %v1118, %v1118
  %v1124 = vmul.f32 %v1119, %v1119
  %v1125 = vsel %vm86, %v1120, 0.0
  %1126 = vadd.xlane.f32.xlu0 %v1125
  %v1127 = vpop.xlane.xlu0 %1126
  %v1128 = vsel %vm86, %v1121, 0.0
  %1129 = vadd.xlane.f32.xlu0 %v1128
  %v1130 = vpop.xlane.xlu0 %1129
  %v1131 = vsel %vm86, %v1122, 0.0
  %1132 = vadd.xlane.f32.xlu0 %v1131
  %v1133 = vpop.xlane.xlu0 %1132
  %v1134 = vsel %vm86, %v1123, 0.0
  %1135 = vadd.xlane.f32.xlu0 %v1134
  %v1136 = vpop.xlane.xlu0 %1135
  %v1137 = vsel %vm1099, %v1124, 0.0
  %1138 = vadd.xlane.f32.xlu0 %v1137
  %v1139 = vpop.xlane.xlu0 %1138
  %v1140 = vmul.f32 %v1127, %v1109
  %v1141 = vmul.f32 %v1130, %v1109
  %v1142 = vmul.f32 %v1133, %v1109
  %v1143 = vmul.f32 %v1136, %v1109
  %v1144 = vmul.f32 %v1139, %v1109
  %v1145 = vadd.f32 %v1140, 1e-05
  %v1146 = vadd.f32 %v1141, 1e-05
  %v1147 = vadd.f32 %v1142, 1e-05
  %v1148 = vadd.f32 %v1143, 1e-05
  %v1149 = vadd.f32 %v1144, 1e-05
  %v1150 = vrsqrt.pop %v1145
  %v1151 = vmul.f32 %v1150, %v1145
  %v1152 = vmul.f32 %v1151, %v1150
  %v1153 = vmul.f32 0.5, %v1152
  %v1154 = vsub.f32 1.5, %v1153
  %v1155 = vmul.f32 %v1150, %v1154
  %vm1156 = vweird.f32 %v1145
  %vm1157 = vweird.f32 %v1150
  %vm1158 = vmor %vm1156, %vm1157
  %v1159 = vsel %vm1158, %v1150, %v1155
  %v1160 = vrsqrt.pop %v1146
  %v1161 = vmul.f32 %v1160, %v1146
  %v1162 = vmul.f32 %v1161, %v1160
  %v1163 = vmul.f32 0.5, %v1162
  %v1164 = vsub.f32 1.5, %v1163
  %v1165 = vmul.f32 %v1160, %v1164
  %vm1166 = vweird.f32 %v1146
  %vm1167 = vweird.f32 %v1160
  %vm1168 = vmor %vm1166, %vm1167
  %v1169 = vsel %vm1168, %v1160, %v1165
  %v1170 = vrsqrt.pop %v1147
  %v1171 = vmul.f32 %v1170, %v1147
  %v1172 = vmul.f32 %v1171, %v1170
  %v1173 = vmul.f32 0.5, %v1172
  %v1174 = vsub.f32 1.5, %v1173
  %v1175 = vmul.f32 %v1170, %v1174
  %vm1176 = vweird.f32 %v1147
  %vm1177 = vweird.f32 %v1170
  %vm1178 = vmor %vm1176, %vm1177
  %v1179 = vsel %vm1178, %v1170, %v1175
  %v1180 = vrsqrt.pop %v1148
  %v1181 = vmul.f32 %v1180, %v1148
  %v1182 = vmul.f32 %v1181, %v1180
  %v1183 = vmul.f32 0.5, %v1182
  %v1184 = vsub.f32 1.5, %v1183
  %v1185 = vmul.f32 %v1180, %v1184
  %vm1186 = vweird.f32 %v1148
  %vm1187 = vweird.f32 %v1180
  %vm1188 = vmor %vm1186, %vm1187
  %v1189 = vsel %vm1188, %v1180, %v1185
  %v1190 = vrsqrt.pop %v1149
  %v1191 = vmul.f32 %v1190, %v1149
  %v1192 = vmul.f32 %v1191, %v1190
  %v1193 = vmul.f32 0.5, %v1192
  %v1194 = vsub.f32 1.5, %v1193
  %v1195 = vmul.f32 %v1190, %v1194
  %vm1196 = vweird.f32 %v1149
  %vm1197 = vweird.f32 %v1190
  %vm1198 = vmor %vm1196, %vm1197
  %v1199 = vsel %vm1198, %v1190, %v1195
  %v1200 = vmul.f32 %v1115, %v1159
  %v1201 = vmul.f32 %v1116, %v1169
  %v1202 = vmul.f32 %v1117, %v1179
  %v1203 = vmul.f32 %v1118, %v1189
  %v1204 = vmul.f32 %v1119, %v1199
  %v1205 = vperm.slane %v84, 3
  %v1206 = vmul.f32 %v1200, %v1205
  %v1207 = vmul.f32 %v1201, %v1205
  %v1208 = vmul.f32 %v1202, %v1205
  %v1209 = vmul.f32 %v1203, %v1205
  %v1210 = vmul.f32 %v1204, %v1205
  %1212 = vrot.lane.b32.xlu0 %v1205, 96
  %v1213 = vpop.permute.xlu0 %1212
  %v1215 = vadd.f32 %v1206, %v1213
  %v1216 = vadd.f32 %v1207, %v1213
  %v1217 = vadd.f32 %v1208, %v1213
  %v1218 = vadd.f32 %v1209, %v1213
  %v1219 = vadd.f32 %v1210, %v1213
  %v1220 = vperm.slane %v84, 1
  %v1222 = vsel %vm86, %v1215, 0
  %v1225 = vsel %vm86, %v1216, 0
  %v1228 = vsel %vm86, %v1217, 0
  %v1231 = vsel %vm86, %v1218, 0
  %v1234 = vsel %vm86, %v1219, 0
  %1236 = vmatpush.msra.mxu0 0.0
  %1237 = vmatpush.msra.mxu0 0.0
  %1238 = vmatpush.msra.mxu0 0.0
  %1239 = vmatpush.msra.mxu0 0.0
  %1240 = vmatpush.msra.mxu0 0.0
  %1241 = vmatpush.msra.mxu0 0.0
  %1242 = vmatpush.msra.mxu0 0.0
  %1243 = vmatpush.msra.mxu0 0.0
  %1244 = vmatpush.msra.mxu0 0.0
  %1245 = vmatpush.msra.mxu0 0.0
  %1246 = vmatpush.msra.mxu0 0.0
  %1247 = vmatpush.msra.mxu0 0.0
  %1248 = vmatpush.msra.mxu0 %v79
  %1249 = vmatpush.msra.mxu0 %v78
  %1250 = vmatpush.msra.mxu0 %v77
  %1251 = vmatpush.msra.mxu0 %v76
  %1252 = vmatmul.f32.gmra.mxu0 %v1222
  %v1253 = vpop.f32.mrf.mxu0
  %v1254 = vadd.f32 %v1220, %v1253
  %1255 = vmatmul.f32.gmra.mxu0 %v1225
  %v1256 = vpop.f32.mrf.mxu0
  %v1257 = vadd.f32 %v1220, %v1256
  %1258 = vmatmul.f32.gmra.mxu0 %v1228
  %v1259 = vpop.f32.mrf.mxu0
  %v1260 = vadd.f32 %v1220, %v1259
  %1261 = vmatmul.f32.gmra.mxu0 %v1231
  %v1262 = vpop.f32.mrf.mxu0
  %v1263 = vadd.f32 %v1220, %v1262
  %1264 = vmatmul.f32.gmra.mxu0 %v1234
  %v1265 = vpop.f32.mrf.mxu0
  %v1266 = vadd.f32 %v1220, %v1265
  %1267 = vdwg.mxu0
  %1272 = vrot.lane.b32.xlu0 %v76, 96
  %v1273 = vpop.permute.xlu0 %1272
  %1274 = vrot.lane.b32.xlu0 %v77, 96
  %v1275 = vpop.permute.xlu0 %1274
  %1276 = vrot.lane.b32.xlu0 %v78, 96
  %v1277 = vpop.permute.xlu0 %1276
  %1278 = vrot.lane.b32.xlu0 %v79, 96
  %v1279 = vpop.permute.xlu0 %1278
  %1285 = vrot.lane.b32.xlu0 %v1220, 96
  %v1286 = vpop.permute.xlu0 %1285
  %v1289 = vsel %vm86, %v60, 0
  %v1292 = vsel %vm86, %v61, 0
  %1294 = vmatpush.msra.mxu0 0.0
  %1295 = vmatpush.msra.mxu0 0.0
  %1296 = vmatpush.msra.mxu0 0.0
  %1297 = vmatpush.msra.mxu0 0.0
  %1298 = vmatpush.msra.mxu0 0.0
  %1299 = vmatpush.msra.mxu0 0.0
  %1300 = vmatpush.msra.mxu0 0.0
  %1301 = vmatpush.msra.mxu0 0.0
  %1302 = vmatpush.msra.mxu0 0.0
  %1303 = vmatpush.msra.mxu0 0.0
  %1304 = vmatpush.msra.mxu0 0.0
  %1305 = vmatpush.msra.mxu0 0.0
  %1306 = vmatpush.msra.mxu0 %v1279
  %1307 = vmatpush.msra.mxu0 %v1277
  %1308 = vmatpush.msra.mxu0 %v1275
  %1309 = vmatpush.msra.mxu0 %v1273
  %1310 = vmatmul.f32.gmra.mxu0 %v1289
  %v1311 = vpop.f32.mrf.mxu0
  %v1312 = vadd.f32 %v1286, %v1311
  %1313 = vmatmul.f32.gmra.mxu0 %v1292
  %v1314 = vpop.f32.mrf.mxu0
  %v1315 = vadd.f32 %v1286, %v1314
  %1316 = vdwg.mxu0
  %v1318 = vsel %vm149, %v1254, 0
  %v1321 = vsel %vm149, %v1257, 0
  %v1324 = vsel %vm149, %v1260, 0
  %v1327 = vsel %vm149, %v1263, 0
  %v1330 = vsel %vm149, %v1266, 0
  %v1333 = vsel %vm149, %v1312, 0
  %v1336 = vsel %vm149, %v1315, 0
  %1338 = vmatpush.xpose.msra.mxu0 0.0
  %1339 = vmatpush.xpose.msra.mxu0 0.0
  %1340 = vmatpush.xpose.msra.mxu0 0.0
  %1341 = vmatpush.xpose.msra.mxu0 0.0
  %1342 = vmatpush.xpose.msra.mxu0 0.0
  %1343 = vmatpush.xpose.msra.mxu0 0.0
  %1344 = vmatpush.xpose.msra.mxu0 0.0
  %1345 = vmatpush.xpose.msra.mxu0 0.0
  %1346 = vmatpush.xpose.msra.mxu0 0.0
  %1347 = vmatpush.xpose.msra.mxu0 0.0
  %1348 = vmatpush.xpose.msra.mxu0 0.0
  %1349 = vmatpush.xpose.msra.mxu0 0.0
  %1350 = vmatpush.xpose.msra.mxu0 0.0
  %1351 = vmatpush.xpose.msra.mxu0 0.0
  %1352 = vmatpush.xpose.msra.mxu0 %v1336
  %1353 = vmatpush.xpose.msra.mxu0 %v1333
  %1354 = vmatmul.f32.gmra.mxu0 %v1318
  %v1355 = vpop.f32.mrf.mxu0
  %v1356 = vadd.f32 0.0, %v1355
  %1357 = vmatmul.f32.gmra.mxu0 %v1321
  %v1358 = vpop.f32.mrf.mxu0
  %v1359 = vadd.f32 0.0, %v1358
  %1360 = vmatmul.f32.gmra.mxu0 %v1324
  %v1361 = vpop.f32.mrf.mxu0
  %v1362 = vadd.f32 0.0, %v1361
  %1363 = vmatmul.f32.gmra.mxu0 %v1327
  %v1364 = vpop.f32.mrf.mxu0
  %v1365 = vadd.f32 0.0, %v1364
  %1366 = vmatmul.f32.gmra.mxu0 %v1330
  %v1367 = vpop.f32.mrf.mxu0
  %v1368 = vadd.f32 0.0, %v1367
  %1369 = vdwg.mxu0
  %v1370 = vmul.f32 %v1356, 0.35355338
  %v1371 = vmul.f32 %v1359, 0.35355338
  %v1372 = vmul.f32 %v1362, 0.35355338
  %v1373 = vmul.f32 %v1365, 0.35355338
  %v1374 = vmul.f32 %v1368, 0.35355338
  %v1375 = vadd.f32 %v1370, %v67
  %v1376 = vadd.f32 %v1371, %v68
  %v1377 = vadd.f32 %v1372, %v69
  %v1378 = vadd.f32 %v1373, %v70
  %v1379 = vadd.f32 %v1374, %v71
  %v1380 = vsel %vm998, %v1375, -inf
  %1381 = vmax.xlane.f32.xlu0 %v1380
  %v1382 = vpop.xlane.xlu0 %1381
  %v1383 = vsel %vm998, %v1376, -inf
  %1384 = vmax.xlane.f32.xlu0 %v1383
  %v1385 = vpop.xlane.xlu0 %1384
  %v1386 = vsel %vm998, %v1377, -inf
  %1387 = vmax.xlane.f32.xlu0 %v1386
  %v1388 = vpop.xlane.xlu0 %1387
  %v1389 = vsel %vm998, %v1378, -inf
  %1390 = vmax.xlane.f32.xlu0 %v1389
  %v1391 = vpop.xlane.xlu0 %1390
  %vm1392 = vcmask 123904
  %v1393 = vsel %vm1392, %v1379, -inf
  %1394 = vmax.xlane.f32.xlu0 %v1393
  %v1395 = vpop.xlane.xlu0 %1394
  %v1396 = vsub.f32 %v1375, %v1382
  %v1397 = vsub.f32 %v1376, %v1385
  %v1398 = vsub.f32 %v1377, %v1388
  %v1399 = vsub.f32 %v1378, %v1391
  %v1400 = vsub.f32 %v1379, %v1395
  %v1401 = vmul.f32 %v1396, 1.442695
  %v1402 = vpow.pop %v1401
  %v1403 = vmul.f32 %v1397, 1.442695
  %v1404 = vpow.pop %v1403
  %v1405 = vmul.f32 %v1398, 1.442695
  %v1406 = vpow.pop %v1405
  %v1407 = vmul.f32 %v1399, 1.442695
  %v1408 = vpow.pop %v1407
  %v1409 = vmul.f32 %v1400, 1.442695
  %v1410 = vpow.pop %v1409
  %v1411 = vsel %vm998, %v1402, 0.0
  %1412 = vadd.xlane.f32.xlu0 %v1411
  %v1413 = vpop.xlane.xlu0 %1412
  %v1414 = vsel %vm998, %v1404, 0.0
  %1415 = vadd.xlane.f32.xlu0 %v1414
  %v1416 = vpop.xlane.xlu0 %1415
  %v1417 = vsel %vm998, %v1406, 0.0
  %1418 = vadd.xlane.f32.xlu0 %v1417
  %v1419 = vpop.xlane.xlu0 %1418
  %v1420 = vsel %vm998, %v1408, 0.0
  %1421 = vadd.xlane.f32.xlu0 %v1420
  %v1422 = vpop.xlane.xlu0 %1421
  %v1423 = vsel %vm1392, %v1410, 0.0
  %1424 = vadd.xlane.f32.xlu0 %v1423
  %v1425 = vpop.xlane.xlu0 %1424
  %v1426 = vrcp.pop %v1413
  %v1427 = vrcp.pop %v1416
  %v1428 = vrcp.pop %v1419
  %v1429 = vrcp.pop %v1422
  %v1430 = vrcp.pop %v1425
  %v1431 = vmul.f32 %v1402, %v1426
  %v1432 = vmul.f32 %v1404, %v1427
  %v1433 = vmul.f32 %v1406, %v1428
  %v1434 = vmul.f32 %v1408, %v1429
  %v1435 = vmul.f32 %v1410, %v1430
  %1436 = vrot.lane.b32.xlu0 %v1312, 96
  %v1437 = vpop.permute.xlu0 %1436
  %1438 = vrot.lane.b32.xlu0 %v1315, 96
  %v1439 = vpop.permute.xlu0 %1438
  %v1443 = vsel %vm998, %v1431, 0
  %v1446 = vsel %vm998, %v1432, 0
  %v1449 = vsel %vm998, %v1433, 0
  %v1452 = vsel %vm998, %v1434, 0
  %v1455 = vsel %vm998, %v1435, 0
  %1457 = vmatpush.msra.mxu0 0.0
  %1458 = vmatpush.msra.mxu0 0.0
  %1459 = vmatpush.msra.mxu0 0.0
  %1460 = vmatpush.msra.mxu0 0.0
  %1461 = vmatpush.msra.mxu0 0.0
  %1462 = vmatpush.msra.mxu0 0.0
  %1463 = vmatpush.msra.mxu0 0.0
  %1464 = vmatpush.msra.mxu0 0.0
  %1465 = vmatpush.msra.mxu0 0.0
  %1466 = vmatpush.msra.mxu0 0.0
  %1467 = vmatpush.msra.mxu0 0.0
  %1468 = vmatpush.msra.mxu0 0.0
  %1469 = vmatpush.msra.mxu0 0.0
  %1470 = vmatpush.msra.mxu0 0.0
  %1471 = vmatpush.msra.mxu0 %v1439
  %1472 = vmatpush.msra.mxu0 %v1437
  %1473 = vmatmul.f32.gmra.mxu0 %v1443
  %v1474 = vpop.f32.mrf.mxu0
  %v1475 = vadd.f32 0.0, %v1474
  %1476 = vmatmul.f32.gmra.mxu0 %v1446
  %v1477 = vpop.f32.mrf.mxu0
  %v1478 = vadd.f32 0.0, %v1477
  %1479 = vmatmul.f32.gmra.mxu0 %v1449
  %v1480 = vpop.f32.mrf.mxu0
  %v1481 = vadd.f32 0.0, %v1480
  %1482 = vmatmul.f32.gmra.mxu0 %v1452
  %v1483 = vpop.f32.mrf.mxu0
  %v1484 = vadd.f32 0.0, %v1483
  %1485 = vmatmul.f32.gmra.mxu0 %v1455
  %v1486 = vpop.f32.mrf.mxu0
  %v1487 = vadd.f32 0.0, %v1486
  %1488 = vdwg.mxu0
  %1489 = vrot.lane.b32.xlu0 %v1254, 120
  %v1490 = vpop.permute.xlu0 %1489
  %1491 = vrot.lane.b32.xlu0 %v1257, 120
  %v1492 = vpop.permute.xlu0 %1491
  %1493 = vrot.lane.b32.xlu0 %v1260, 120
  %v1494 = vpop.permute.xlu0 %1493
  %1495 = vrot.lane.b32.xlu0 %v1263, 120
  %v1496 = vpop.permute.xlu0 %1495
  %1497 = vrot.lane.b32.xlu0 %v1266, 120
  %v1498 = vpop.permute.xlu0 %1497
  %1499 = vrot.lane.b32.xlu0 %v1312, 120
  %v1500 = vpop.permute.xlu0 %1499
  %1501 = vrot.lane.b32.xlu0 %v1315, 120
  %v1502 = vpop.permute.xlu0 %1501
  %v1503 = vsel %vm149, %v1490, 0
  %v1505 = vsel %vm149, %v1492, 0
  %v1507 = vsel %vm149, %v1494, 0
  %v1509 = vsel %vm149, %v1496, 0
  %v1511 = vsel %vm149, %v1498, 0
  %v1513 = vsel %vm149, %v1500, 0
  %v1515 = vsel %vm149, %v1502, 0
  %1517 = vmatpush.xpose.msra.mxu0 0.0
  %1518 = vmatpush.xpose.msra.mxu0 0.0
  %1519 = vmatpush.xpose.msra.mxu0 0.0
  %1520 = vmatpush.xpose.msra.mxu0 0.0
  %1521 = vmatpush.xpose.msra.mxu0 0.0
  %1522 = vmatpush.xpose.msra.mxu0 0.0
  %1523 = vmatpush.xpose.msra.mxu0 0.0
  %1524 = vmatpush.xpose.msra.mxu0 0.0
  %1525 = vmatpush.xpose.msra.mxu0 0.0
  %1526 = vmatpush.xpose.msra.mxu0 0.0
  %1527 = vmatpush.xpose.msra.mxu0 0.0
  %1528 = vmatpush.xpose.msra.mxu0 0.0
  %1529 = vmatpush.xpose.msra.mxu0 0.0
  %1530 = vmatpush.xpose.msra.mxu0 0.0
  %1531 = vmatpush.xpose.msra.mxu0 %v1515
  %1532 = vmatpush.xpose.msra.mxu0 %v1513
  %1533 = vmatmul.f32.gmra.mxu0 %v1503
  %v1534 = vpop.f32.mrf.mxu0
  %v1535 = vadd.f32 0.0, %v1534
  %1536 = vmatmul.f32.gmra.mxu0 %v1505
  %v1537 = vpop.f32.mrf.mxu0
  %v1538 = vadd.f32 0.0, %v1537
  %1539 = vmatmul.f32.gmra.mxu0 %v1507
  %v1540 = vpop.f32.mrf.mxu0
  %v1541 = vadd.f32 0.0, %v1540
  %1542 = vmatmul.f32.gmra.mxu0 %v1509
  %v1543 = vpop.f32.mrf.mxu0
  %v1544 = vadd.f32 0.0, %v1543
  %1545 = vmatmul.f32.gmra.mxu0 %v1511
  %v1546 = vpop.f32.mrf.mxu0
  %v1547 = vadd.f32 0.0, %v1546
  %1548 = vdwg.mxu0
  %v1549 = vmul.f32 %v1535, 0.35355338
  %v1550 = vmul.f32 %v1538, 0.35355338
  %v1551 = vmul.f32 %v1541, 0.35355338
  %v1552 = vmul.f32 %v1544, 0.35355338
  %v1553 = vmul.f32 %v1547, 0.35355338
  %v1554 = vadd.f32 %v1549, %v67
  %v1555 = vadd.f32 %v1550, %v68
  %v1556 = vadd.f32 %v1551, %v69
  %v1557 = vadd.f32 %v1552, %v70
  %v1558 = vadd.f32 %v1553, %v71
  %v1559 = vsel %vm998, %v1554, -inf
  %1560 = vmax.xlane.f32.xlu0 %v1559
  %v1561 = vpop.xlane.xlu0 %1560
  %v1562 = vsel %vm998, %v1555, -inf
  %1563 = vmax.xlane.f32.xlu0 %v1562
  %v1564 = vpop.xlane.xlu0 %1563
  %v1565 = vsel %vm998, %v1556, -inf
  %1566 = vmax.xlane.f32.xlu0 %v1565
  %v1567 = vpop.xlane.xlu0 %1566
  %v1568 = vsel %vm998, %v1557, -inf
  %1569 = vmax.xlane.f32.xlu0 %v1568
  %v1570 = vpop.xlane.xlu0 %1569
  %v1571 = vsel %vm1392, %v1558, -inf
  %1572 = vmax.xlane.f32.xlu0 %v1571
  %v1573 = vpop.xlane.xlu0 %1572
  %v1574 = vsub.f32 %v1554, %v1561
  %v1575 = vsub.f32 %v1555, %v1564
  %v1576 = vsub.f32 %v1556, %v1567
  %v1577 = vsub.f32 %v1557, %v1570
  %v1578 = vsub.f32 %v1558, %v1573
  %v1579 = vmul.f32 %v1574, 1.442695
  %v1580 = vpow.pop %v1579
  %v1581 = vmul.f32 %v1575, 1.442695
  %v1582 = vpow.pop %v1581
  %v1583 = vmul.f32 %v1576, 1.442695
  %v1584 = vpow.pop %v1583
  %v1585 = vmul.f32 %v1577, 1.442695
  %v1586 = vpow.pop %v1585
  %v1587 = vmul.f32 %v1578, 1.442695
  %v1588 = vpow.pop %v1587
  %v1589 = vsel %vm998, %v1580, 0.0
  %1590 = vadd.xlane.f32.xlu0 %v1589
  %v1591 = vpop.xlane.xlu0 %1590
  %v1592 = vsel %vm998, %v1582, 0.0
  %1593 = vadd.xlane.f32.xlu0 %v1592
  %v1594 = vpop.xlane.xlu0 %1593
  %v1595 = vsel %vm998, %v1584, 0.0
  %1596 = vadd.xlane.f32.xlu0 %v1595
  %v1597 = vpop.xlane.xlu0 %1596
  %v1598 = vsel %vm998, %v1586, 0.0
  %1599 = vadd.xlane.f32.xlu0 %v1598
  %v1600 = vpop.xlane.xlu0 %1599
  %v1601 = vsel %vm1392, %v1588, 0.0
  %1602 = vadd.xlane.f32.xlu0 %v1601
  %v1603 = vpop.xlane.xlu0 %1602
  %v1604 = vrcp.pop %v1591
  %v1605 = vrcp.pop %v1594
  %v1606 = vrcp.pop %v1597
  %v1607 = vrcp.pop %v1600
  %v1608 = vrcp.pop %v1603
  %v1609 = vmul.f32 %v1580, %v1604
  %v1610 = vmul.f32 %v1582, %v1605
  %v1611 = vmul.f32 %v1584, %v1606
  %v1612 = vmul.f32 %v1586, %v1607
  %v1613 = vmul.f32 %v1588, %v1608
  %1614 = vrot.lane.b32.xlu0 %v1312, 88
  %v1615 = vpop.permute.xlu0 %1614
  %1616 = vrot.lane.b32.xlu0 %v1315, 88
  %v1617 = vpop.permute.xlu0 %1616
  %v1621 = vsel %vm998, %v1609, 0
  %v1624 = vsel %vm998, %v1610, 0
  %v1627 = vsel %vm998, %v1611, 0
  %v1630 = vsel %vm998, %v1612, 0
  %v1633 = vsel %vm998, %v1613, 0
  %1635 = vmatpush.msra.mxu0 0.0
  %1636 = vmatpush.msra.mxu0 0.0
  %1637 = vmatpush.msra.mxu0 0.0
  %1638 = vmatpush.msra.mxu0 0.0
  %1639 = vmatpush.msra.mxu0 0.0
  %1640 = vmatpush.msra.mxu0 0.0
  %1641 = vmatpush.msra.mxu0 0.0
  %1642 = vmatpush.msra.mxu0 0.0
  %1643 = vmatpush.msra.mxu0 0.0
  %1644 = vmatpush.msra.mxu0 0.0
  %1645 = vmatpush.msra.mxu0 0.0
  %1646 = vmatpush.msra.mxu0 0.0
  %1647 = vmatpush.msra.mxu0 0.0
  %1648 = vmatpush.msra.mxu0 0.0
  %1649 = vmatpush.msra.mxu0 %v1617
  %1650 = vmatpush.msra.mxu0 %v1615
  %1651 = vmatmul.f32.gmra.mxu0 %v1621
  %v1652 = vpop.f32.mrf.mxu0
  %v1653 = vadd.f32 0.0, %v1652
  %1654 = vmatmul.f32.gmra.mxu0 %v1624
  %v1655 = vpop.f32.mrf.mxu0
  %v1656 = vadd.f32 0.0, %v1655
  %1657 = vmatmul.f32.gmra.mxu0 %v1627
  %v1658 = vpop.f32.mrf.mxu0
  %v1659 = vadd.f32 0.0, %v1658
  %1660 = vmatmul.f32.gmra.mxu0 %v1630
  %v1661 = vpop.f32.mrf.mxu0
  %v1662 = vadd.f32 0.0, %v1661
  %1663 = vmatmul.f32.gmra.mxu0 %v1633
  %v1664 = vpop.f32.mrf.mxu0
  %v1665 = vadd.f32 0.0, %v1664
  %1666 = vdwg.mxu0
  %1667 = vrot.lane.b32.xlu0 %v1254, 112
  %v1668 = vpop.permute.xlu0 %1667
  %1669 = vrot.lane.b32.xlu0 %v1257, 112
  %v1670 = vpop.permute.xlu0 %1669
  %1671 = vrot.lane.b32.xlu0 %v1260, 112
  %v1672 = vpop.permute.xlu0 %1671
  %1673 = vrot.lane.b32.xlu0 %v1263, 112
  %v1674 = vpop.permute.xlu0 %1673
  %1675 = vrot.lane.b32.xlu0 %v1266, 112
  %v1676 = vpop.permute.xlu0 %1675
  %1677 = vrot.lane.b32.xlu0 %v1312, 112
  %v1678 = vpop.permute.xlu0 %1677
  %1679 = vrot.lane.b32.xlu0 %v1315, 112
  %v1680 = vpop.permute.xlu0 %1679
  %v1681 = vsel %vm149, %v1668, 0
  %v1683 = vsel %vm149, %v1670, 0
  %v1685 = vsel %vm149, %v1672, 0
  %v1687 = vsel %vm149, %v1674, 0
  %v1689 = vsel %vm149, %v1676, 0
  %v1691 = vsel %vm149, %v1678, 0
  %v1693 = vsel %vm149, %v1680, 0
  %1695 = vmatpush.xpose.msra.mxu0 0.0
  %1696 = vmatpush.xpose.msra.mxu0 0.0
  %1697 = vmatpush.xpose.msra.mxu0 0.0
  %1698 = vmatpush.xpose.msra.mxu0 0.0
  %1699 = vmatpush.xpose.msra.mxu0 0.0
  %1700 = vmatpush.xpose.msra.mxu0 0.0
  %1701 = vmatpush.xpose.msra.mxu0 0.0
  %1702 = vmatpush.xpose.msra.mxu0 0.0
  %1703 = vmatpush.xpose.msra.mxu0 0.0
  %1704 = vmatpush.xpose.msra.mxu0 0.0
  %1705 = vmatpush.xpose.msra.mxu0 0.0
  %1706 = vmatpush.xpose.msra.mxu0 0.0
  %1707 = vmatpush.xpose.msra.mxu0 0.0
  %1708 = vmatpush.xpose.msra.mxu0 0.0
  %1709 = vmatpush.xpose.msra.mxu0 %v1693
  %1710 = vmatpush.xpose.msra.mxu0 %v1691
  %1711 = vmatmul.f32.gmra.mxu0 %v1681
  %v1712 = vpop.f32.mrf.mxu0
  %v1713 = vadd.f32 0.0, %v1712
  %1714 = vmatmul.f32.gmra.mxu0 %v1683
  %v1715 = vpop.f32.mrf.mxu0
  %v1716 = vadd.f32 0.0, %v1715
  %1717 = vmatmul.f32.gmra.mxu0 %v1685
  %v1718 = vpop.f32.mrf.mxu0
  %v1719 = vadd.f32 0.0, %v1718
  %1720 = vmatmul.f32.gmra.mxu0 %v1687
  %v1721 = vpop.f32.mrf.mxu0
  %v1722 = vadd.f32 0.0, %v1721
  %1723 = vmatmul.f32.gmra.mxu0 %v1689
  %v1724 = vpop.f32.mrf.mxu0
  %v1725 = vadd.f32 0.0, %v1724
  %1726 = vdwg.mxu0
  %v1727 = vmul.f32 %v1713, 0.35355338
  %v1728 = vmul.f32 %v1716, 0.35355338
  %v1729 = vmul.f32 %v1719, 0.35355338
  %v1730 = vmul.f32 %v1722, 0.35355338
  %v1731 = vmul.f32 %v1725, 0.35355338
  %v1732 = vadd.f32 %v1727, %v67
  %v1733 = vadd.f32 %v1728, %v68
  %v1734 = vadd.f32 %v1729, %v69
  %v1735 = vadd.f32 %v1730, %v70
  %v1736 = vadd.f32 %v1731, %v71
  %v1737 = vsel %vm998, %v1732, -inf
  %1738 = vmax.xlane.f32.xlu0 %v1737
  %v1739 = vpop.xlane.xlu0 %1738
  %v1740 = vsel %vm998, %v1733, -inf
  %1741 = vmax.xlane.f32.xlu0 %v1740
  %v1742 = vpop.xlane.xlu0 %1741
  %v1743 = vsel %vm998, %v1734, -inf
  %1744 = vmax.xlane.f32.xlu0 %v1743
  %v1745 = vpop.xlane.xlu0 %1744
  %v1746 = vsel %vm998, %v1735, -inf
  %1747 = vmax.xlane.f32.xlu0 %v1746
  %v1748 = vpop.xlane.xlu0 %1747
  %v1749 = vsel %vm1392, %v1736, -inf
  %1750 = vmax.xlane.f32.xlu0 %v1749
  %v1751 = vpop.xlane.xlu0 %1750
  %v1752 = vsub.f32 %v1732, %v1739
  %v1753 = vsub.f32 %v1733, %v1742
  %v1754 = vsub.f32 %v1734, %v1745
  %v1755 = vsub.f32 %v1735, %v1748
  %v1756 = vsub.f32 %v1736, %v1751
  %v1757 = vmul.f32 %v1752, 1.442695
  %v1758 = vpow.pop %v1757
  %v1759 = vmul.f32 %v1753, 1.442695
  %v1760 = vpow.pop %v1759
  %v1761 = vmul.f32 %v1754, 1.442695
  %v1762 = vpow.pop %v1761
  %v1763 = vmul.f32 %v1755, 1.442695
  %v1764 = vpow.pop %v1763
  %v1765 = vmul.f32 %v1756, 1.442695
  %v1766 = vpow.pop %v1765
  %v1767 = vsel %vm998, %v1758, 0.0
  %1768 = vadd.xlane.f32.xlu0 %v1767
  %v1769 = vpop.xlane.xlu0 %1768
  %v1770 = vsel %vm998, %v1760, 0.0
  %1771 = vadd.xlane.f32.xlu0 %v1770
  %v1772 = vpop.xlane.xlu0 %1771
  %v1773 = vsel %vm998, %v1762, 0.0
  %1774 = vadd.xlane.f32.xlu0 %v1773
  %v1775 = vpop.xlane.xlu0 %1774
  %v1776 = vsel %vm998, %v1764, 0.0
  %1777 = vadd.xlane.f32.xlu0 %v1776
  %v1778 = vpop.xlane.xlu0 %1777
  %v1779 = vsel %vm1392, %v1766, 0.0
  %1780 = vadd.xlane.f32.xlu0 %v1779
  %v1781 = vpop.xlane.xlu0 %1780
  %v1782 = vrcp.pop %v1769
  %v1783 = vrcp.pop %v1772
  %v1784 = vrcp.pop %v1775
  %v1785 = vrcp.pop %v1778
  %v1786 = vrcp.pop %v1781
  %v1787 = vmul.f32 %v1758, %v1782
  %v1788 = vmul.f32 %v1760, %v1783
  %v1789 = vmul.f32 %v1762, %v1784
  %v1790 = vmul.f32 %v1764, %v1785
  %v1791 = vmul.f32 %v1766, %v1786
  %1792 = vrot.lane.b32.xlu0 %v1312, 80
  %v1793 = vpop.permute.xlu0 %1792
  %1794 = vrot.lane.b32.xlu0 %v1315, 80
  %v1795 = vpop.permute.xlu0 %1794
  %v1799 = vsel %vm998, %v1787, 0
  %v1802 = vsel %vm998, %v1788, 0
  %v1805 = vsel %vm998, %v1789, 0
  %v1808 = vsel %vm998, %v1790, 0
  %v1811 = vsel %vm998, %v1791, 0
  %1813 = vmatpush.msra.mxu0 0.0
  %1814 = vmatpush.msra.mxu0 0.0
  %1815 = vmatpush.msra.mxu0 0.0
  %1816 = vmatpush.msra.mxu0 0.0
  %1817 = vmatpush.msra.mxu0 0.0
  %1818 = vmatpush.msra.mxu0 0.0
  %1819 = vmatpush.msra.mxu0 0.0
  %1820 = vmatpush.msra.mxu0 0.0
  %1821 = vmatpush.msra.mxu0 0.0
  %1822 = vmatpush.msra.mxu0 0.0
  %1823 = vmatpush.msra.mxu0 0.0
  %1824 = vmatpush.msra.mxu0 0.0
  %1825 = vmatpush.msra.mxu0 0.0
  %1826 = vmatpush.msra.mxu0 0.0
  %1827 = vmatpush.msra.mxu0 %v1795
  %1828 = vmatpush.msra.mxu0 %v1793
  %1829 = vmatmul.f32.gmra.mxu0 %v1799
  %v1830 = vpop.f32.mrf.mxu0
  %v1831 = vadd.f32 0.0, %v1830
  %1832 = vmatmul.f32.gmra.mxu0 %v1802
  %v1833 = vpop.f32.mrf.mxu0
  %v1834 = vadd.f32 0.0, %v1833
  %1835 = vmatmul.f32.gmra.mxu0 %v1805
  %v1836 = vpop.f32.mrf.mxu0
  %v1837 = vadd.f32 0.0, %v1836
  %1838 = vmatmul.f32.gmra.mxu0 %v1808
  %v1839 = vpop.f32.mrf.mxu0
  %v1840 = vadd.f32 0.0, %v1839
  %1841 = vmatmul.f32.gmra.mxu0 %v1811
  %v1842 = vpop.f32.mrf.mxu0
  %v1843 = vadd.f32 0.0, %v1842
  %1844 = vdwg.mxu0
  %1845 = vrot.lane.b32.xlu0 %v1254, 104
  %v1846 = vpop.permute.xlu0 %1845
  %1847 = vrot.lane.b32.xlu0 %v1257, 104
  %v1848 = vpop.permute.xlu0 %1847
  %1849 = vrot.lane.b32.xlu0 %v1260, 104
  %v1850 = vpop.permute.xlu0 %1849
  %1851 = vrot.lane.b32.xlu0 %v1263, 104
  %v1852 = vpop.permute.xlu0 %1851
  %1853 = vrot.lane.b32.xlu0 %v1266, 104
  %v1854 = vpop.permute.xlu0 %1853
  %1855 = vrot.lane.b32.xlu0 %v1312, 104
  %v1856 = vpop.permute.xlu0 %1855
  %1857 = vrot.lane.b32.xlu0 %v1315, 104
  %v1858 = vpop.permute.xlu0 %1857
  %v1859 = vsel %vm149, %v1846, 0
  %v1861 = vsel %vm149, %v1848, 0
  %v1863 = vsel %vm149, %v1850, 0
  %v1865 = vsel %vm149, %v1852, 0
  %v1867 = vsel %vm149, %v1854, 0
  %v1869 = vsel %vm149, %v1856, 0
  %v1871 = vsel %vm149, %v1858, 0
  %1873 = vmatpush.xpose.msra.mxu0 0.0
  %1874 = vmatpush.xpose.msra.mxu0 0.0
  %1875 = vmatpush.xpose.msra.mxu0 0.0
  %1876 = vmatpush.xpose.msra.mxu0 0.0
  %1877 = vmatpush.xpose.msra.mxu0 0.0
  %1878 = vmatpush.xpose.msra.mxu0 0.0
  %1879 = vmatpush.xpose.msra.mxu0 0.0
  %1880 = vmatpush.xpose.msra.mxu0 0.0
  %1881 = vmatpush.xpose.msra.mxu0 0.0
  %1882 = vmatpush.xpose.msra.mxu0 0.0
  %1883 = vmatpush.xpose.msra.mxu0 0.0
  %1884 = vmatpush.xpose.msra.mxu0 0.0
  %1885 = vmatpush.xpose.msra.mxu0 0.0
  %1886 = vmatpush.xpose.msra.mxu0 0.0
  %1887 = vmatpush.xpose.msra.mxu0 %v1871
  %1888 = vmatpush.xpose.msra.mxu0 %v1869
  %1889 = vmatmul.f32.gmra.mxu0 %v1859
  %v1890 = vpop.f32.mrf.mxu0
  %v1891 = vadd.f32 0.0, %v1890
  %1892 = vmatmul.f32.gmra.mxu0 %v1861
  %v1893 = vpop.f32.mrf.mxu0
  %v1894 = vadd.f32 0.0, %v1893
  %1895 = vmatmul.f32.gmra.mxu0 %v1863
  %v1896 = vpop.f32.mrf.mxu0
  %v1897 = vadd.f32 0.0, %v1896
  %1898 = vmatmul.f32.gmra.mxu0 %v1865
  %v1899 = vpop.f32.mrf.mxu0
  %v1900 = vadd.f32 0.0, %v1899
  %1901 = vmatmul.f32.gmra.mxu0 %v1867
  %v1902 = vpop.f32.mrf.mxu0
  %v1903 = vadd.f32 0.0, %v1902
  %1904 = vdwg.mxu0
  %v1905 = vmul.f32 %v1891, 0.35355338
  %v1906 = vmul.f32 %v1894, 0.35355338
  %v1907 = vmul.f32 %v1897, 0.35355338
  %v1908 = vmul.f32 %v1900, 0.35355338
  %v1909 = vmul.f32 %v1903, 0.35355338
  %v1910 = vadd.f32 %v1905, %v67
  %v1911 = vadd.f32 %v1906, %v68
  %v1912 = vadd.f32 %v1907, %v69
  %v1913 = vadd.f32 %v1908, %v70
  %v1914 = vadd.f32 %v1909, %v71
  %v1915 = vsel %vm998, %v1910, -inf
  %1916 = vmax.xlane.f32.xlu0 %v1915
  %v1917 = vpop.xlane.xlu0 %1916
  %v1918 = vsel %vm998, %v1911, -inf
  %1919 = vmax.xlane.f32.xlu0 %v1918
  %v1920 = vpop.xlane.xlu0 %1919
  %v1921 = vsel %vm998, %v1912, -inf
  %1922 = vmax.xlane.f32.xlu0 %v1921
  %v1923 = vpop.xlane.xlu0 %1922
  %v1924 = vsel %vm998, %v1913, -inf
  %1925 = vmax.xlane.f32.xlu0 %v1924
  %v1926 = vpop.xlane.xlu0 %1925
  %v1927 = vsel %vm1392, %v1914, -inf
  %1928 = vmax.xlane.f32.xlu0 %v1927
  %v1929 = vpop.xlane.xlu0 %1928
  %v1930 = vsub.f32 %v1910, %v1917
  %v1931 = vsub.f32 %v1911, %v1920
  %v1932 = vsub.f32 %v1912, %v1923
  %v1933 = vsub.f32 %v1913, %v1926
  %v1934 = vsub.f32 %v1914, %v1929
  %v1935 = vmul.f32 %v1930, 1.442695
  %v1936 = vpow.pop %v1935
  %v1937 = vmul.f32 %v1931, 1.442695
  %v1938 = vpow.pop %v1937
  %v1939 = vmul.f32 %v1932, 1.442695
  %v1940 = vpow.pop %v1939
  %v1941 = vmul.f32 %v1933, 1.442695
  %v1942 = vpow.pop %v1941
  %v1943 = vmul.f32 %v1934, 1.442695
  %v1944 = vpow.pop %v1943
  %v1945 = vsel %vm998, %v1936, 0.0
  %1946 = vadd.xlane.f32.xlu0 %v1945
  %v1947 = vpop.xlane.xlu0 %1946
  %v1948 = vsel %vm998, %v1938, 0.0
  %1949 = vadd.xlane.f32.xlu0 %v1948
  %v1950 = vpop.xlane.xlu0 %1949
  %v1951 = vsel %vm998, %v1940, 0.0
  %1952 = vadd.xlane.f32.xlu0 %v1951
  %v1953 = vpop.xlane.xlu0 %1952
  %v1954 = vsel %vm998, %v1942, 0.0
  %1955 = vadd.xlane.f32.xlu0 %v1954
  %v1956 = vpop.xlane.xlu0 %1955
  %v1957 = vsel %vm1392, %v1944, 0.0
  %1958 = vadd.xlane.f32.xlu0 %v1957
  %v1959 = vpop.xlane.xlu0 %1958
  %v1960 = vrcp.pop %v1947
  %v1961 = vrcp.pop %v1950
  %v1962 = vrcp.pop %v1953
  %v1963 = vrcp.pop %v1956
  %v1964 = vrcp.pop %v1959
  %v1965 = vmul.f32 %v1936, %v1960
  %v1966 = vmul.f32 %v1938, %v1961
  %v1967 = vmul.f32 %v1940, %v1962
  %v1968 = vmul.f32 %v1942, %v1963
  %v1969 = vmul.f32 %v1944, %v1964
  %1970 = vrot.lane.b32.xlu0 %v1312, 72
  %v1971 = vpop.permute.xlu0 %1970
  %1972 = vrot.lane.b32.xlu0 %v1315, 72
  %v1973 = vpop.permute.xlu0 %1972
  %v1977 = vsel %vm998, %v1965, 0
  %v1980 = vsel %vm998, %v1966, 0
  %v1983 = vsel %vm998, %v1967, 0
  %v1986 = vsel %vm998, %v1968, 0
  %v1989 = vsel %vm998, %v1969, 0
  %1991 = vmatpush.msra.mxu0 0.0
  %1992 = vmatpush.msra.mxu0 0.0
  %1993 = vmatpush.msra.mxu0 0.0
  %1994 = vmatpush.msra.mxu0 0.0
  %1995 = vmatpush.msra.mxu0 0.0
  %1996 = vmatpush.msra.mxu0 0.0
  %1997 = vmatpush.msra.mxu0 0.0
  %1998 = vmatpush.msra.mxu0 0.0
  %1999 = vmatpush.msra.mxu0 0.0
  %2000 = vmatpush.msra.mxu0 0.0
  %2001 = vmatpush.msra.mxu0 0.0
  %2002 = vmatpush.msra.mxu0 0.0
  %2003 = vmatpush.msra.mxu0 0.0
  %2004 = vmatpush.msra.mxu0 0.0
  %2005 = vmatpush.msra.mxu0 %v1973
  %2006 = vmatpush.msra.mxu0 %v1971
  %2007 = vmatmul.f32.gmra.mxu0 %v1977
  %v2008 = vpop.f32.mrf.mxu0
  %v2009 = vadd.f32 0.0, %v2008
  %2010 = vmatmul.f32.gmra.mxu0 %v1980
  %v2011 = vpop.f32.mrf.mxu0
  %v2012 = vadd.f32 0.0, %v2011
  %2013 = vmatmul.f32.gmra.mxu0 %v1983
  %v2014 = vpop.f32.mrf.mxu0
  %v2015 = vadd.f32 0.0, %v2014
  %2016 = vmatmul.f32.gmra.mxu0 %v1986
  %v2017 = vpop.f32.mrf.mxu0
  %v2018 = vadd.f32 0.0, %v2017
  %2019 = vmatmul.f32.gmra.mxu0 %v1989
  %v2020 = vpop.f32.mrf.mxu0
  %v2021 = vadd.f32 0.0, %v2020
  %2022 = vdwg.mxu0
  %2028 = vrot.lane.b32.xlu0 %v1653, 8
  %v2029 = vpop.permute.xlu0 %2028
  %2030 = vrot.lane.b32.xlu0 %v1656, 8
  %v2031 = vpop.permute.xlu0 %2030
  %2032 = vrot.lane.b32.xlu0 %v1659, 8
  %v2033 = vpop.permute.xlu0 %2032
  %2034 = vrot.lane.b32.xlu0 %v1662, 8
  %v2035 = vpop.permute.xlu0 %2034
  %2036 = vrot.lane.b32.xlu0 %v1665, 8
  %v2037 = vpop.permute.xlu0 %2036
  %2048 = vrot.lane.b32.xlu0 %v1831, 16
  %v2049 = vpop.permute.xlu0 %2048
  %2050 = vrot.lane.b32.xlu0 %v1834, 16
  %v2051 = vpop.permute.xlu0 %2050
  %2052 = vrot.lane.b32.xlu0 %v1837, 16
  %v2053 = vpop.permute.xlu0 %2052
  %2054 = vrot.lane.b32.xlu0 %v1840, 16
  %v2055 = vpop.permute.xlu0 %2054
  %2056 = vrot.lane.b32.xlu0 %v1843, 16
  %v2057 = vpop.permute.xlu0 %2056
  %2068 = vrot.lane.b32.xlu0 %v2009, 24
  %v2069 = vpop.permute.xlu0 %2068
  %2070 = vrot.lane.b32.xlu0 %v2012, 24
  %v2071 = vpop.permute.xlu0 %2070
  %2072 = vrot.lane.b32.xlu0 %v2015, 24
  %v2073 = vpop.permute.xlu0 %2072
  %2074 = vrot.lane.b32.xlu0 %v2018, 24
  %v2075 = vpop.permute.xlu0 %2074
  %2076 = vrot.lane.b32.xlu0 %v2021, 24
  %v2077 = vpop.permute.xlu0 %2076
  %v2083 = vsel %vm149, %v1475, %v2029
  %v2084 = vsel %vm149, %v1478, %v2031
  %v2085 = vsel %vm149, %v1481, %v2033
  %v2086 = vsel %vm149, %v1484, %v2035
  %v2087 = vsel %vm149, %v1487, %v2037
  %v2088 = vsel %vm998, %v2083, %v2049
  %v2089 = vsel %vm998, %v2084, %v2051
  %v2090 = vsel %vm998, %v2085, %v2053
  %v2091 = vsel %vm998, %v2086, %v2055
  %v2092 = vsel %vm998, %v2087, %v2057
  %v2093 = vsel %vm1004, %v2088, %v2069
  %v2094 = vsel %vm1004, %v2089, %v2071
  %v2095 = vsel %vm1004, %v2090, %v2073
  %v2096 = vsel %vm1004, %v2091, %v2075
  %v2097 = vsel %vm1004, %v2092, %v2077
  %2098 = vrot.lane.b32.xlu0 %v76, 32
  %v2099 = vpop.permute.xlu0 %2098
  %2100 = vrot.lane.b32.xlu0 %v77, 32
  %v2101 = vpop.permute.xlu0 %2100
  %2102 = vrot.lane.b32.xlu0 %v78, 32
  %v2103 = vpop.permute.xlu0 %2102
  %2104 = vrot.lane.b32.xlu0 %v79, 32
  %v2105 = vpop.permute.xlu0 %2104
  %v2111 = vsel %vm86, %v2093, 0
  %v2114 = vsel %vm86, %v2094, 0
  %v2117 = vsel %vm86, %v2095, 0
  %v2120 = vsel %vm86, %v2096, 0
  %v2123 = vsel %vm86, %v2097, 0
  %2125 = vmatpush.msra.mxu0 0.0
  %2126 = vmatpush.msra.mxu0 0.0
  %2127 = vmatpush.msra.mxu0 0.0
  %2128 = vmatpush.msra.mxu0 0.0
  %2129 = vmatpush.msra.mxu0 0.0
  %2130 = vmatpush.msra.mxu0 0.0
  %2131 = vmatpush.msra.mxu0 0.0
  %2132 = vmatpush.msra.mxu0 0.0
  %2133 = vmatpush.msra.mxu0 0.0
  %2134 = vmatpush.msra.mxu0 0.0
  %2135 = vmatpush.msra.mxu0 0.0
  %2136 = vmatpush.msra.mxu0 0.0
  %2137 = vmatpush.msra.mxu0 %v2105
  %2138 = vmatpush.msra.mxu0 %v2103
  %2139 = vmatpush.msra.mxu0 %v2101
  %2140 = vmatpush.msra.mxu0 %v2099
  %2141 = vmatmul.f32.gmra.mxu0 %v2111
  %v2142 = vpop.f32.mrf.mxu0
  %v2143 = vadd.f32 0.0, %v2142
  %2144 = vmatmul.f32.gmra.mxu0 %v2114
  %v2145 = vpop.f32.mrf.mxu0
  %v2146 = vadd.f32 0.0, %v2145
  %2147 = vmatmul.f32.gmra.mxu0 %v2117
  %v2148 = vpop.f32.mrf.mxu0
  %v2149 = vadd.f32 0.0, %v2148
  %2150 = vmatmul.f32.gmra.mxu0 %v2120
  %v2151 = vpop.f32.mrf.mxu0
  %v2152 = vadd.f32 0.0, %v2151
  %2153 = vmatmul.f32.gmra.mxu0 %v2123
  %v2154 = vpop.f32.mrf.mxu0
  %v2155 = vadd.f32 0.0, %v2154
  %2156 = vdwg.mxu0
  %v2157 = vadd.f32 %v1215, %v2143
  %v2158 = vadd.f32 %v1216, %v2146
  %v2159 = vadd.f32 %v1217, %v2149
  %v2160 = vadd.f32 %v1218, %v2152
  %v2161 = vadd.f32 %v1219, %v2155
  %2162 = vrot.lane.b32.xlu0 %v1220, 32
  %v2163 = vpop.permute.xlu0 %2162
  %v2165 = vadd.f32 %v2157, %v2163
  %v2166 = vadd.f32 %v2158, %v2163
  %v2167 = vadd.f32 %v2159, %v2163
  %v2168 = vadd.f32 %v2160, %v2163
  %v2169 = vadd.f32 %v2161, %v2163
  %v2170 = vsel %vm86, %v2165, 0.0
  %2171 = vadd.xlane.f32.xlu0 %v2170
  %v2172 = vpop.xlane.xlu0 %2171
  %v2173 = vsel %vm86, %v2166, 0.0
  %2174 = vadd.xlane.f32.xlu0 %v2173
  %v2175 = vpop.xlane.xlu0 %2174
  %v2176 = vsel %vm86, %v2167, 0.0
  %2177 = vadd.xlane.f32.xlu0 %v2176
  %v2178 = vpop.xlane.xlu0 %2177
  %v2179 = vsel %vm86, %v2168, 0.0
  %2180 = vadd.xlane.f32.xlu0 %v2179
  %v2181 = vpop.xlane.xlu0 %2180
  %v2182 = vsel %vm1099, %v2169, 0.0
  %2183 = vadd.xlane.f32.xlu0 %v2182
  %v2184 = vpop.xlane.xlu0 %2183
  %v2185 = vmul.f32 %v2172, %v1109
  %v2186 = vmul.f32 %v2175, %v1109
  %v2187 = vmul.f32 %v2178, %v1109
  %v2188 = vmul.f32 %v2181, %v1109
  %v2189 = vmul.f32 %v2184, %v1109
  %v2190 = vsub.f32 %v2165, %v2185
  %v2191 = vsub.f32 %v2166, %v2186
  %v2192 = vsub.f32 %v2167, %v2187
  %v2193 = vsub.f32 %v2168, %v2188
  %v2194 = vsub.f32 %v2169, %v2189
  %v2195 = vmul.f32 %v2190, %v2190
  %v2196 = vmul.f32 %v2191, %v2191
  %v2197 = vmul.f32 %v2192, %v2192
  %v2198 = vmul.f32 %v2193, %v2193
  %v2199 = vmul.f32 %v2194, %v2194
  %v2200 = vsel %vm86, %v2195, 0.0
  %2201 = vadd.xlane.f32.xlu0 %v2200
  %v2202 = vpop.xlane.xlu0 %2201
  %v2203 = vsel %vm86, %v2196, 0.0
  %2204 = vadd.xlane.f32.xlu0 %v2203
  %v2205 = vpop.xlane.xlu0 %2204
  %v2206 = vsel %vm86, %v2197, 0.0
  %2207 = vadd.xlane.f32.xlu0 %v2206
  %v2208 = vpop.xlane.xlu0 %2207
  %v2209 = vsel %vm86, %v2198, 0.0
  %2210 = vadd.xlane.f32.xlu0 %v2209
  %v2211 = vpop.xlane.xlu0 %2210
  %v2212 = vsel %vm1099, %v2199, 0.0
  %2213 = vadd.xlane.f32.xlu0 %v2212
  %v2214 = vpop.xlane.xlu0 %2213
  %v2215 = vmul.f32 %v2202, %v1109
  %v2216 = vmul.f32 %v2205, %v1109
  %v2217 = vmul.f32 %v2208, %v1109
  %v2218 = vmul.f32 %v2211, %v1109
  %v2219 = vmul.f32 %v2214, %v1109
  %v2220 = vadd.f32 %v2215, 1e-05
  %v2221 = vadd.f32 %v2216, 1e-05
  %v2222 = vadd.f32 %v2217, 1e-05
  %v2223 = vadd.f32 %v2218, 1e-05
  %v2224 = vadd.f32 %v2219, 1e-05
  %v2225 = vrsqrt.pop %v2220
  %v2226 = vmul.f32 %v2225, %v2220
  %v2227 = vmul.f32 %v2226, %v2225
  %v2228 = vmul.f32 0.5, %v2227
  %v2229 = vsub.f32 1.5, %v2228
  %v2230 = vmul.f32 %v2225, %v2229
  %vm2231 = vweird.f32 %v2220
  %vm2232 = vweird.f32 %v2225
  %vm2233 = vmor %vm2231, %vm2232
  %v2234 = vsel %vm2233, %v2225, %v2230
  %v2235 = vrsqrt.pop %v2221
  %v2236 = vmul.f32 %v2235, %v2221
  %v2237 = vmul.f32 %v2236, %v2235
  %v2238 = vmul.f32 0.5, %v2237
  %v2239 = vsub.f32 1.5, %v2238
  %v2240 = vmul.f32 %v2235, %v2239
  %vm2241 = vweird.f32 %v2221
  %vm2242 = vweird.f32 %v2235
  %vm2243 = vmor %vm2241, %vm2242
  %v2244 = vsel %vm2243, %v2235, %v2240
  %v2245 = vrsqrt.pop %v2222
  %v2246 = vmul.f32 %v2245, %v2222
  %v2247 = vmul.f32 %v2246, %v2245
  %v2248 = vmul.f32 0.5, %v2247
  %v2249 = vsub.f32 1.5, %v2248
  %v2250 = vmul.f32 %v2245, %v2249
  %vm2251 = vweird.f32 %v2222
  %vm2252 = vweird.f32 %v2245
  %vm2253 = vmor %vm2251, %vm2252
  %v2254 = vsel %vm2253, %v2245, %v2250
  %v2255 = vrsqrt.pop %v2223
  %v2256 = vmul.f32 %v2255, %v2223
  %v2257 = vmul.f32 %v2256, %v2255
  %v2258 = vmul.f32 0.5, %v2257
  %v2259 = vsub.f32 1.5, %v2258
  %v2260 = vmul.f32 %v2255, %v2259
  %vm2261 = vweird.f32 %v2223
  %vm2262 = vweird.f32 %v2255
  %vm2263 = vmor %vm2261, %vm2262
  %v2264 = vsel %vm2263, %v2255, %v2260
  %v2265 = vrsqrt.pop %v2224
  %v2266 = vmul.f32 %v2265, %v2224
  %v2267 = vmul.f32 %v2266, %v2265
  %v2268 = vmul.f32 0.5, %v2267
  %v2269 = vsub.f32 1.5, %v2268
  %v2270 = vmul.f32 %v2265, %v2269
  %vm2271 = vweird.f32 %v2224
  %vm2272 = vweird.f32 %v2265
  %vm2273 = vmor %vm2271, %vm2272
  %v2274 = vsel %vm2273, %v2265, %v2270
  %v2275 = vmul.f32 %v2190, %v2234
  %v2276 = vmul.f32 %v2191, %v2244
  %v2277 = vmul.f32 %v2192, %v2254
  %v2278 = vmul.f32 %v2193, %v2264
  %v2279 = vmul.f32 %v2194, %v2274
  %2280 = vrot.lane.b32.xlu0 %v1205, 64
  %v2281 = vpop.permute.xlu0 %2280
  %v2283 = vmul.f32 %v2275, %v2281
  %v2284 = vmul.f32 %v2276, %v2281
  %v2285 = vmul.f32 %v2277, %v2281
  %v2286 = vmul.f32 %v2278, %v2281
  %v2287 = vmul.f32 %v2279, %v2281
  %2288 = vrot.lane.b32.xlu0 %v1205, 32
  %v2289 = vpop.permute.xlu0 %2288
  %v2291 = vadd.f32 %v2283, %v2289
  %v2292 = vadd.f32 %v2284, %v2289
  %v2293 = vadd.f32 %v2285, %v2289
  %v2294 = vadd.f32 %v2286, %v2289
  %v2295 = vadd.f32 %v2287, %v2289
  %v2296 = vperm.slane %v84, 2
  %v2298 = vsel %vm86, %v2291, 0
  %v2301 = vsel %vm86, %v2292, 0
  %v2304 = vsel %vm86, %v2293, 0
  %v2307 = vsel %vm86, %v2294, 0
  %v2310 = vsel %vm86, %v2295, 0
  %2312 = vmatpush.msra.mxu0 0.0
  %2313 = vmatpush.msra.mxu0 0.0
  %2314 = vmatpush.msra.mxu0 0.0
  %2315 = vmatpush.msra.mxu0 0.0
  %2316 = vmatpush.msra.mxu0 0.0
  %2317 = vmatpush.msra.mxu0 0.0
  %2318 = vmatpush.msra.mxu0 0.0
  %2319 = vmatpush.msra.mxu0 0.0
  %2320 = vmatpush.msra.mxu0 0.0
  %2321 = vmatpush.msra.mxu0 0.0
  %2322 = vmatpush.msra.mxu0 0.0
  %2323 = vmatpush.msra.mxu0 0.0
  %2324 = vmatpush.msra.mxu0 %v83
  %2325 = vmatpush.msra.mxu0 %v82
  %2326 = vmatpush.msra.mxu0 %v81
  %2327 = vmatpush.msra.mxu0 %v80
  %2328 = vmatmul.f32.gmra.mxu0 %v2298
  %v2329 = vpop.f32.mrf.mxu0
  %v2330 = vadd.f32 %v2296, %v2329
  %2331 = vmatmul.f32.gmra.mxu0 %v2301
  %v2332 = vpop.f32.mrf.mxu0
  %v2333 = vadd.f32 %v2296, %v2332
  %2334 = vmatmul.f32.gmra.mxu0 %v2304
  %v2335 = vpop.f32.mrf.mxu0
  %v2336 = vadd.f32 %v2296, %v2335
  %2337 = vmatmul.f32.gmra.mxu0 %v2307
  %v2338 = vpop.f32.mrf.mxu0
  %v2339 = vadd.f32 %v2296, %v2338
  %2340 = vmatmul.f32.gmra.mxu0 %v2310
  %v2341 = vpop.f32.mrf.mxu0
  %v2342 = vadd.f32 %v2296, %v2341
  %2343 = vdwg.mxu0
  %v2344 = vmax.f32 %v2330, 0.0
  %v2345 = vmax.f32 %v2333, 0.0
  %v2346 = vmax.f32 %v2336, 0.0
  %v2347 = vmax.f32 %v2339, 0.0
  %v2348 = vmax.f32 %v2342, 0.0
  %2353 = vrot.lane.b32.xlu0 %v80, 64
  %v2354 = vpop.permute.xlu0 %2353
  %2355 = vrot.lane.b32.xlu0 %v81, 64
  %v2356 = vpop.permute.xlu0 %2355
  %2357 = vrot.lane.b32.xlu0 %v82, 64
  %v2358 = vpop.permute.xlu0 %2357
  %2359 = vrot.lane.b32.xlu0 %v83, 64
  %v2360 = vpop.permute.xlu0 %2359
  %2362 = vrot.lane.b32.xlu0 %v2296, 64
  %v2363 = vpop.permute.xlu0 %2362
  %vm2365 = vcmask 523264
  %v2367 = vsel %vm2365, %v2344, 0
  %v2370 = vsel %vm2365, %v2345, 0
  %v2373 = vsel %vm2365, %v2346, 0
  %v2376 = vsel %vm2365, %v2347, 0
  %v2379 = vsel %vm2365, %v2348, 0
  %v2381 = vsel %vm2365, %v2354, 0
  %v2383 = vsel %vm2365, %v2356, 0
  %v2385 = vsel %vm2365, %v2358, 0
  %v2387 = vsel %vm2365, %v2360, 0
  %2389 = vmatpush.xpose.msra.mxu0 0.0
  %2390 = vmatpush.xpose.msra.mxu0 0.0
  %2391 = vmatpush.xpose.msra.mxu0 0.0
  %2392 = vmatpush.xpose.msra.mxu0 0.0
  %2393 = vmatpush.xpose.msra.mxu0 0.0
  %2394 = vmatpush.xpose.msra.mxu0 0.0
  %2395 = vmatpush.xpose.msra.mxu0 0.0
  %2396 = vmatpush.xpose.msra.mxu0 0.0
  %2397 = vmatpush.xpose.msra.mxu0 0.0
  %2398 = vmatpush.xpose.msra.mxu0 0.0
  %2399 = vmatpush.xpose.msra.mxu0 0.0
  %2400 = vmatpush.xpose.msra.mxu0 0.0
  %2401 = vmatpush.xpose.msra.mxu0 %v2387
  %2402 = vmatpush.xpose.msra.mxu0 %v2385
  %2403 = vmatpush.xpose.msra.mxu0 %v2383
  %2404 = vmatpush.xpose.msra.mxu0 %v2381
  %2405 = vmatmul.f32.gmra.mxu0 %v2367
  %v2406 = vpop.f32.mrf.mxu0
  %v2407 = vadd.f32 %v2363, %v2406
  %2408 = vmatmul.f32.gmra.mxu0 %v2370
  %v2409 = vpop.f32.mrf.mxu0
  %v2410 = vadd.f32 %v2363, %v2409
  %2411 = vmatmul.f32.gmra.mxu0 %v2373
  %v2412 = vpop.f32.mrf.mxu0
  %v2413 = vadd.f32 %v2363, %v2412
  %2414 = vmatmul.f32.gmra.mxu0 %v2376
  %v2415 = vpop.f32.mrf.mxu0
  %v2416 = vadd.f32 %v2363, %v2415
  %2417 = vmatmul.f32.gmra.mxu0 %v2379
  %v2418 = vpop.f32.mrf.mxu0
  %v2419 = vadd.f32 %v2363, %v2418
  %2420 = vdwg.mxu0
  %v2421 = vadd.f32 %v2291, %v2407
  %v2422 = vadd.f32 %v2292, %v2410
  %v2423 = vadd.f32 %v2293, %v2413
  %v2424 = vadd.f32 %v2294, %v2416
  %v2425 = vadd.f32 %v2295, %v2419
  %v2426 = vsel %vm86, %v2421, 0.0
  %2427 = vadd.xlane.f32.xlu0 %v2426
  %v2428 = vpop.xlane.xlu0 %2427
  %v2429 = vsel %vm86, %v2422, 0.0
  %2430 = vadd.xlane.f32.xlu0 %v2429
  %v2431 = vpop.xlane.xlu0 %2430
  %v2432 = vsel %vm86, %v2423, 0.0
  %2433 = vadd.xlane.f32.xlu0 %v2432
  %v2434 = vpop.xlane.xlu0 %2433
  %v2435 = vsel %vm86, %v2424, 0.0
  %2436 = vadd.xlane.f32.xlu0 %v2435
  %v2437 = vpop.xlane.xlu0 %2436
  %v2438 = vsel %vm1099, %v2425, 0.0
  %2439 = vadd.xlane.f32.xlu0 %v2438
  %v2440 = vpop.xlane.xlu0 %2439
  %v2441 = vmul.f32 %v2428, %v1109
  %v2442 = vmul.f32 %v2431, %v1109
  %v2443 = vmul.f32 %v2434, %v1109
  %v2444 = vmul.f32 %v2437, %v1109
  %v2445 = vmul.f32 %v2440, %v1109
  %v2446 = vsub.f32 %v2421, %v2441
  %v2447 = vsub.f32 %v2422, %v2442
  %v2448 = vsub.f32 %v2423, %v2443
  %v2449 = vsub.f32 %v2424, %v2444
  %v2450 = vsub.f32 %v2425, %v2445
  %v2451 = vmul.f32 %v2446, %v2446
  %v2452 = vmul.f32 %v2447, %v2447
  %v2453 = vmul.f32 %v2448, %v2448
  %v2454 = vmul.f32 %v2449, %v2449
  %v2455 = vmul.f32 %v2450, %v2450
  %v2456 = vsel %vm86, %v2451, 0.0
  %2457 = vadd.xlane.f32.xlu0 %v2456
  %v2458 = vpop.xlane.xlu0 %2457
  %v2459 = vsel %vm86, %v2452, 0.0
  %2460 = vadd.xlane.f32.xlu0 %v2459
  %v2461 = vpop.xlane.xlu0 %2460
  %v2462 = vsel %vm86, %v2453, 0.0
  %2463 = vadd.xlane.f32.xlu0 %v2462
  %v2464 = vpop.xlane.xlu0 %2463
  %v2465 = vsel %vm86, %v2454, 0.0
  %2466 = vadd.xlane.f32.xlu0 %v2465
  %v2467 = vpop.xlane.xlu0 %2466
  %v2468 = vsel %vm1099, %v2455, 0.0
  %2469 = vadd.xlane.f32.xlu0 %v2468
  %v2470 = vpop.xlane.xlu0 %2469
  %v2471 = vmul.f32 %v2458, %v1109
  %v2472 = vmul.f32 %v2461, %v1109
  %v2473 = vmul.f32 %v2464, %v1109
  %v2474 = vmul.f32 %v2467, %v1109
  %v2475 = vmul.f32 %v2470, %v1109
  %v2476 = vadd.f32 %v2471, 1e-05
  %v2477 = vadd.f32 %v2472, 1e-05
  %v2478 = vadd.f32 %v2473, 1e-05
  %v2479 = vadd.f32 %v2474, 1e-05
  %v2480 = vadd.f32 %v2475, 1e-05
  %v2481 = vrsqrt.pop %v2476
  %v2482 = vmul.f32 %v2481, %v2476
  %v2483 = vmul.f32 %v2482, %v2481
  %v2484 = vmul.f32 0.5, %v2483
  %v2485 = vsub.f32 1.5, %v2484
  %v2486 = vmul.f32 %v2481, %v2485
  %vm2487 = vweird.f32 %v2476
  %vm2488 = vweird.f32 %v2481
  %vm2489 = vmor %vm2487, %vm2488
  %v2490 = vsel %vm2489, %v2481, %v2486
  %v2491 = vrsqrt.pop %v2477
  %v2492 = vmul.f32 %v2491, %v2477
  %v2493 = vmul.f32 %v2492, %v2491
  %v2494 = vmul.f32 0.5, %v2493
  %v2495 = vsub.f32 1.5, %v2494
  %v2496 = vmul.f32 %v2491, %v2495
  %vm2497 = vweird.f32 %v2477
  %vm2498 = vweird.f32 %v2491
  %vm2499 = vmor %vm2497, %vm2498
  %v2500 = vsel %vm2499, %v2491, %v2496
  %v2501 = vrsqrt.pop %v2478
  %v2502 = vmul.f32 %v2501, %v2478
  %v2503 = vmul.f32 %v2502, %v2501
  %v2504 = vmul.f32 0.5, %v2503
  %v2505 = vsub.f32 1.5, %v2504
  %v2506 = vmul.f32 %v2501, %v2505
  %vm2507 = vweird.f32 %v2478
  %vm2508 = vweird.f32 %v2501
  %vm2509 = vmor %vm2507, %vm2508
  %v2510 = vsel %vm2509, %v2501, %v2506
  %v2511 = vrsqrt.pop %v2479
  %v2512 = vmul.f32 %v2511, %v2479
  %v2513 = vmul.f32 %v2512, %v2511
  %v2514 = vmul.f32 0.5, %v2513
  %v2515 = vsub.f32 1.5, %v2514
  %v2516 = vmul.f32 %v2511, %v2515
  %vm2517 = vweird.f32 %v2479
  %vm2518 = vweird.f32 %v2511
  %vm2519 = vmor %vm2517, %vm2518
  %v2520 = vsel %vm2519, %v2511, %v2516
  %v2521 = vrsqrt.pop %v2480
  %v2522 = vmul.f32 %v2521, %v2480
  %v2523 = vmul.f32 %v2522, %v2521
  %v2524 = vmul.f32 0.5, %v2523
  %v2525 = vsub.f32 1.5, %v2524
  %v2526 = vmul.f32 %v2521, %v2525
  %vm2527 = vweird.f32 %v2480
  %vm2528 = vweird.f32 %v2521
  %vm2529 = vmor %vm2527, %vm2528
  %v2530 = vsel %vm2529, %v2521, %v2526
  %v2531 = vmul.f32 %v2446, %v2490
  %v2532 = vmul.f32 %v2447, %v2500
  %v2533 = vmul.f32 %v2448, %v2510
  %v2534 = vmul.f32 %v2449, %v2520
  %v2535 = vmul.f32 %v2450, %v2530
  %v2536 = vperm.slane %v84, 4
  %v2537 = vmul.f32 %v2531, %v2536
  %v2538 = vmul.f32 %v2532, %v2536
  %v2539 = vmul.f32 %v2533, %v2536
  %v2540 = vmul.f32 %v2534, %v2536
  %v2541 = vmul.f32 %v2535, %v2536
  %2543 = vrot.lane.b32.xlu0 %v2536, 96
  %v2544 = vpop.permute.xlu0 %2543
  %v2546 = vadd.f32 %v2537, %v2544
  %v2547 = vadd.f32 %v2538, %v2544
  %v2548 = vadd.f32 %v2539, %v2544
  %v2549 = vadd.f32 %v2540, %v2544
  %v2550 = vadd.f32 %v2541, %v2544
  %v2551 = vld [vmem:[%s4 + $0x68] sm:$0xff]
  %v2552 = vld [vmem:[%s4 + $0x70] sm:$0xff]
  %v2553 = vld [vmem:[%s4 + $0x78] sm:$0xff]
  %v2554 = vld [vmem:[%s4 + $0x80] sm:$0xff]
  %v2555 = vld [vmem:[%s4 + $0x88] sm:$0xff]
  %v2556 = vld [vmem:[%s4 + $0x90] sm:$0xff]
  %v2557 = vld [vmem:[%s4 + $0x98] sm:$0xff]
  %v2558 = vld [vmem:[%s4 + $0xa0] sm:$0xff]
  %v2559 = vld [vmem:[%s4 + $0xa8] sm:$0xff]
  %v2560 = vld [vmem:[%s4 + $0xb0] sm:$0xff]
  %v2561 = vld [vmem:[%s4 + $0xb8] sm:$0xff]
  %v2562 = vld [vmem:[%s4 + $0xc0] sm:$0xff]
  %v2563 = vld [vmem:[%s4 + $0xc8] sm:$0xff]
  %v2564 = vperm.slane %v2563, 0
  %v2566 = vsel %vm86, %v2546, 0
  %v2569 = vsel %vm86, %v2547, 0
  %v2572 = vsel %vm86, %v2548, 0
  %v2575 = vsel %vm86, %v2549, 0
  %v2578 = vsel %vm86, %v2550, 0
  %2580 = vmatpush.msra.mxu0 0.0
  %2581 = vmatpush.msra.mxu0 0.0
  %2582 = vmatpush.msra.mxu0 0.0
  %2583 = vmatpush.msra.mxu0 0.0
  %2584 = vmatpush.msra.mxu0 0.0
  %2585 = vmatpush.msra.mxu0 0.0
  %2586 = vmatpush.msra.mxu0 0.0
  %2587 = vmatpush.msra.mxu0 0.0
  %2588 = vmatpush.msra.mxu0 0.0
  %2589 = vmatpush.msra.mxu0 0.0
  %2590 = vmatpush.msra.mxu0 0.0
  %2591 = vmatpush.msra.mxu0 0.0
  %2592 = vmatpush.msra.mxu0 %v2554
  %2593 = vmatpush.msra.mxu0 %v2553
  %2594 = vmatpush.msra.mxu0 %v2552
  %2595 = vmatpush.msra.mxu0 %v2551
  %2596 = vmatmul.f32.gmra.mxu0 %v2566
  %v2597 = vpop.f32.mrf.mxu0
  %v2598 = vadd.f32 %v2564, %v2597
  %2599 = vmatmul.f32.gmra.mxu0 %v2569
  %v2600 = vpop.f32.mrf.mxu0
  %v2601 = vadd.f32 %v2564, %v2600
  %2602 = vmatmul.f32.gmra.mxu0 %v2572
  %v2603 = vpop.f32.mrf.mxu0
  %v2604 = vadd.f32 %v2564, %v2603
  %2605 = vmatmul.f32.gmra.mxu0 %v2575
  %v2606 = vpop.f32.mrf.mxu0
  %v2607 = vadd.f32 %v2564, %v2606
  %2608 = vmatmul.f32.gmra.mxu0 %v2578
  %v2609 = vpop.f32.mrf.mxu0
  %v2610 = vadd.f32 %v2564, %v2609
  %2611 = vdwg.mxu0
  %2617 = vrot.lane.b32.xlu0 %v2598, 96
  %v2618 = vpop.permute.xlu0 %2617
  %2619 = vrot.lane.b32.xlu0 %v2601, 96
  %v2620 = vpop.permute.xlu0 %2619
  %2621 = vrot.lane.b32.xlu0 %v2604, 96
  %v2622 = vpop.permute.xlu0 %2621
  %2623 = vrot.lane.b32.xlu0 %v2607, 96
  %v2624 = vpop.permute.xlu0 %2623
  %2625 = vrot.lane.b32.xlu0 %v2610, 96
  %v2626 = vpop.permute.xlu0 %2625
  %v2627 = vsel %vm149, %v2598, 0
  %v2629 = vsel %vm149, %v2601, 0
  %v2631 = vsel %vm149, %v2604, 0
  %v2633 = vsel %vm149, %v2607, 0
  %v2635 = vsel %vm149, %v2610, 0
  %v2637 = vsel %vm149, %v2618, 0
  %v2639 = vsel %vm149, %v2620, 0
  %v2641 = vsel %vm149, %v2622, 0
  %v2643 = vsel %vm149, %v2624, 0
  %v2645 = vsel %vm149, %v2626, 0
  %2647 = vmatpush.xpose.msra.mxu0 0.0
  %2648 = vmatpush.xpose.msra.mxu0 0.0
  %2649 = vmatpush.xpose.msra.mxu0 0.0
  %2650 = vmatpush.xpose.msra.mxu0 0.0
  %2651 = vmatpush.xpose.msra.mxu0 0.0
  %2652 = vmatpush.xpose.msra.mxu0 0.0
  %2653 = vmatpush.xpose.msra.mxu0 0.0
  %2654 = vmatpush.xpose.msra.mxu0 0.0
  %2655 = vmatpush.xpose.msra.mxu0 0.0
  %2656 = vmatpush.xpose.msra.mxu0 0.0
  %2657 = vmatpush.xpose.msra.mxu0 0.0
  %2658 = vmatpush.xpose.msra.mxu0 %v2645
  %2659 = vmatpush.xpose.msra.mxu0 %v2643
  %2660 = vmatpush.xpose.msra.mxu0 %v2641
  %2661 = vmatpush.xpose.msra.mxu0 %v2639
  %2662 = vmatpush.xpose.msra.mxu0 %v2637
  %2663 = vmatmul.f32.gmra.mxu0 %v2627
  %v2664 = vpop.f32.mrf.mxu0
  %v2665 = vadd.f32 0.0, %v2664
  %2666 = vmatmul.f32.gmra.mxu0 %v2629
  %v2667 = vpop.f32.mrf.mxu0
  %v2668 = vadd.f32 0.0, %v2667
  %2669 = vmatmul.f32.gmra.mxu0 %v2631
  %v2670 = vpop.f32.mrf.mxu0
  %v2671 = vadd.f32 0.0, %v2670
  %2672 = vmatmul.f32.gmra.mxu0 %v2633
  %v2673 = vpop.f32.mrf.mxu0
  %v2674 = vadd.f32 0.0, %v2673
  %2675 = vmatmul.f32.gmra.mxu0 %v2635
  %v2676 = vpop.f32.mrf.mxu0
  %v2677 = vadd.f32 0.0, %v2676
  %2678 = vdwg.mxu0
  %v2679 = vmul.f32 %v2665, 0.35355338
  %v2680 = vmul.f32 %v2668, 0.35355338
  %v2681 = vmul.f32 %v2671, 0.35355338
  %v2682 = vmul.f32 %v2674, 0.35355338
  %v2683 = vmul.f32 %v2677, 0.35355338
  %v2684 = vadd.f32 %v2679, %v62
  %v2685 = vadd.f32 %v2680, %v63
  %v2686 = vadd.f32 %v2681, %v64
  %v2687 = vadd.f32 %v2682, %v65
  %v2688 = vadd.f32 %v2683, %v66
  %v2689 = vsel %vm212, %v2684, -inf
  %2690 = vmax.xlane.f32.xlu0 %v2689
  %v2691 = vpop.xlane.xlu0 %2690
  %v2692 = vsel %vm212, %v2685, -inf
  %2693 = vmax.xlane.f32.xlu0 %v2692
  %v2694 = vpop.xlane.xlu0 %2693
  %v2695 = vsel %vm212, %v2686, -inf
  %2696 = vmax.xlane.f32.xlu0 %v2695
  %v2697 = vpop.xlane.xlu0 %2696
  %v2698 = vsel %vm212, %v2687, -inf
  %2699 = vmax.xlane.f32.xlu0 %v2698
  %v2700 = vpop.xlane.xlu0 %2699
  %v2701 = vsel %vm225, %v2688, -inf
  %2702 = vmax.xlane.f32.xlu0 %v2701
  %v2703 = vpop.xlane.xlu0 %2702
  %v2704 = vsub.f32 %v2684, %v2691
  %v2705 = vsub.f32 %v2685, %v2694
  %v2706 = vsub.f32 %v2686, %v2697
  %v2707 = vsub.f32 %v2687, %v2700
  %v2708 = vsub.f32 %v2688, %v2703
  %v2709 = vmul.f32 %v2704, 1.442695
  %v2710 = vpow.pop %v2709
  %v2711 = vmul.f32 %v2705, 1.442695
  %v2712 = vpow.pop %v2711
  %v2713 = vmul.f32 %v2706, 1.442695
  %v2714 = vpow.pop %v2713
  %v2715 = vmul.f32 %v2707, 1.442695
  %v2716 = vpow.pop %v2715
  %v2717 = vmul.f32 %v2708, 1.442695
  %v2718 = vpow.pop %v2717
  %v2719 = vsel %vm212, %v2710, 0.0
  %2720 = vadd.xlane.f32.xlu0 %v2719
  %v2721 = vpop.xlane.xlu0 %2720
  %v2722 = vsel %vm212, %v2712, 0.0
  %2723 = vadd.xlane.f32.xlu0 %v2722
  %v2724 = vpop.xlane.xlu0 %2723
  %v2725 = vsel %vm212, %v2714, 0.0
  %2726 = vadd.xlane.f32.xlu0 %v2725
  %v2727 = vpop.xlane.xlu0 %2726
  %v2728 = vsel %vm212, %v2716, 0.0
  %2729 = vadd.xlane.f32.xlu0 %v2728
  %v2730 = vpop.xlane.xlu0 %2729
  %v2731 = vsel %vm225, %v2718, 0.0
  %2732 = vadd.xlane.f32.xlu0 %v2731
  %v2733 = vpop.xlane.xlu0 %2732
  %v2734 = vrcp.pop %v2721
  %v2735 = vrcp.pop %v2724
  %v2736 = vrcp.pop %v2727
  %v2737 = vrcp.pop %v2730
  %v2738 = vrcp.pop %v2733
  %v2739 = vmul.f32 %v2710, %v2734
  %v2740 = vmul.f32 %v2712, %v2735
  %v2741 = vmul.f32 %v2714, %v2736
  %v2742 = vmul.f32 %v2716, %v2737
  %v2743 = vmul.f32 %v2718, %v2738
  %2744 = vrot.lane.b32.xlu0 %v2598, 64
  %v2745 = vpop.permute.xlu0 %2744
  %2746 = vrot.lane.b32.xlu0 %v2601, 64
  %v2747 = vpop.permute.xlu0 %2746
  %2748 = vrot.lane.b32.xlu0 %v2604, 64
  %v2749 = vpop.permute.xlu0 %2748
  %2750 = vrot.lane.b32.xlu0 %v2607, 64
  %v2751 = vpop.permute.xlu0 %2750
  %2752 = vrot.lane.b32.xlu0 %v2610, 64
  %v2753 = vpop.permute.xlu0 %2752
  %v2759 = vsel %vm212, %v2739, 0
  %v2762 = vsel %vm212, %v2740, 0
  %v2765 = vsel %vm212, %v2741, 0
  %v2768 = vsel %vm212, %v2742, 0
  %v2771 = vsel %vm212, %v2743, 0
  %v2773 = vsel %vm298, %v2753, 0
  %2775 = vmatpush.msra.mxu0 0.0
  %2776 = vmatpush.msra.mxu0 0.0
  %2777 = vmatpush.msra.mxu0 0.0
  %2778 = vmatpush.msra.mxu0 0.0
  %2779 = vmatpush.msra.mxu0 0.0
  %2780 = vmatpush.msra.mxu0 0.0
  %2781 = vmatpush.msra.mxu0 0.0
  %2782 = vmatpush.msra.mxu0 0.0
  %2783 = vmatpush.msra.mxu0 0.0
  %2784 = vmatpush.msra.mxu0 0.0
  %2785 = vmatpush.msra.mxu0 0.0
  %2786 = vmatpush.msra.mxu0 %v2773
  %2787 = vmatpush.msra.mxu0 %v2751
  %2788 = vmatpush.msra.mxu0 %v2749
  %2789 = vmatpush.msra.mxu0 %v2747
  %2790 = vmatpush.msra.mxu0 %v2745
  %2791 = vmatmul.f32.gmra.mxu0 %v2759
  %v2792 = vpop.f32.mrf.mxu0
  %v2793 = vadd.f32 0.0, %v2792
  %2794 = vmatmul.f32.gmra.mxu0 %v2762
  %v2795 = vpop.f32.mrf.mxu0
  %v2796 = vadd.f32 0.0, %v2795
  %2797 = vmatmul.f32.gmra.mxu0 %v2765
  %v2798 = vpop.f32.mrf.mxu0
  %v2799 = vadd.f32 0.0, %v2798
  %2800 = vmatmul.f32.gmra.mxu0 %v2768
  %v2801 = vpop.f32.mrf.mxu0
  %v2802 = vadd.f32 0.0, %v2801
  %2803 = vmatmul.f32.gmra.mxu0 %v2771
  %v2804 = vpop.f32.mrf.mxu0
  %v2805 = vadd.f32 0.0, %v2804
  %2806 = vdwg.mxu0
  %2807 = vrot.lane.b32.xlu0 %v2598, 120
  %v2808 = vpop.permute.xlu0 %2807
  %2809 = vrot.lane.b32.xlu0 %v2601, 120
  %v2810 = vpop.permute.xlu0 %2809
  %2811 = vrot.lane.b32.xlu0 %v2604, 120
  %v2812 = vpop.permute.xlu0 %2811
  %2813 = vrot.lane.b32.xlu0 %v2607, 120
  %v2814 = vpop.permute.xlu0 %2813
  %2815 = vrot.lane.b32.xlu0 %v2610, 120
  %v2816 = vpop.permute.xlu0 %2815
  %2817 = vrot.lane.b32.xlu0 %v2598, 88
  %v2818 = vpop.permute.xlu0 %2817
  %2819 = vrot.lane.b32.xlu0 %v2601, 88
  %v2820 = vpop.permute.xlu0 %2819
  %2821 = vrot.lane.b32.xlu0 %v2604, 88
  %v2822 = vpop.permute.xlu0 %2821
  %2823 = vrot.lane.b32.xlu0 %v2607, 88
  %v2824 = vpop.permute.xlu0 %2823
  %2825 = vrot.lane.b32.xlu0 %v2610, 88
  %v2826 = vpop.permute.xlu0 %2825
  %v2827 = vsel %vm149, %v2808, 0
  %v2829 = vsel %vm149, %v2810, 0
  %v2831 = vsel %vm149, %v2812, 0
  %v2833 = vsel %vm149, %v2814, 0
  %v2835 = vsel %vm149, %v2816, 0
  %v2837 = vsel %vm149, %v2818, 0
  %v2839 = vsel %vm149, %v2820, 0
  %v2841 = vsel %vm149, %v2822, 0
  %v2843 = vsel %vm149, %v2824, 0
  %v2845 = vsel %vm149, %v2826, 0
  %2847 = vmatpush.xpose.msra.mxu0 0.0
  %2848 = vmatpush.xpose.msra.mxu0 0.0
  %2849 = vmatpush.xpose.msra.mxu0 0.0
  %2850 = vmatpush.xpose.msra.mxu0 0.0
  %2851 = vmatpush.xpose.msra.mxu0 0.0
  %2852 = vmatpush.xpose.msra.mxu0 0.0
  %2853 = vmatpush.xpose.msra.mxu0 0.0
  %2854 = vmatpush.xpose.msra.mxu0 0.0
  %2855 = vmatpush.xpose.msra.mxu0 0.0
  %2856 = vmatpush.xpose.msra.mxu0 0.0
  %2857 = vmatpush.xpose.msra.mxu0 0.0
  %2858 = vmatpush.xpose.msra.mxu0 %v2845
  %2859 = vmatpush.xpose.msra.mxu0 %v2843
  %2860 = vmatpush.xpose.msra.mxu0 %v2841
  %2861 = vmatpush.xpose.msra.mxu0 %v2839
  %2862 = vmatpush.xpose.msra.mxu0 %v2837
  %2863 = vmatmul.f32.gmra.mxu0 %v2827
  %v2864 = vpop.f32.mrf.mxu0
  %v2865 = vadd.f32 0.0, %v2864
  %2866 = vmatmul.f32.gmra.mxu0 %v2829
  %v2867 = vpop.f32.mrf.mxu0
  %v2868 = vadd.f32 0.0, %v2867
  %2869 = vmatmul.f32.gmra.mxu0 %v2831
  %v2870 = vpop.f32.mrf.mxu0
  %v2871 = vadd.f32 0.0, %v2870
  %2872 = vmatmul.f32.gmra.mxu0 %v2833
  %v2873 = vpop.f32.mrf.mxu0
  %v2874 = vadd.f32 0.0, %v2873
  %2875 = vmatmul.f32.gmra.mxu0 %v2835
  %v2876 = vpop.f32.mrf.mxu0
  %v2877 = vadd.f32 0.0, %v2876
  %2878 = vdwg.mxu0
  %v2879 = vmul.f32 %v2865, 0.35355338
  %v2880 = vmul.f32 %v2868, 0.35355338
  %v2881 = vmul.f32 %v2871, 0.35355338
  %v2882 = vmul.f32 %v2874, 0.35355338
  %v2883 = vmul.f32 %v2877, 0.35355338
  %v2884 = vadd.f32 %v2879, %v62
  %v2885 = vadd.f32 %v2880, %v63
  %v2886 = vadd.f32 %v2881, %v64
  %v2887 = vadd.f32 %v2882, %v65
  %v2888 = vadd.f32 %v2883, %v66
  %v2889 = vsel %vm212, %v2884, -inf
  %2890 = vmax.xlane.f32.xlu0 %v2889
  %v2891 = vpop.xlane.xlu0 %2890
  %v2892 = vsel %vm212, %v2885, -inf
  %2893 = vmax.xlane.f32.xlu0 %v2892
  %v2894 = vpop.xlane.xlu0 %2893
  %v2895 = vsel %vm212, %v2886, -inf
  %2896 = vmax.xlane.f32.xlu0 %v2895
  %v2897 = vpop.xlane.xlu0 %2896
  %v2898 = vsel %vm212, %v2887, -inf
  %2899 = vmax.xlane.f32.xlu0 %v2898
  %v2900 = vpop.xlane.xlu0 %2899
  %v2901 = vsel %vm225, %v2888, -inf
  %2902 = vmax.xlane.f32.xlu0 %v2901
  %v2903 = vpop.xlane.xlu0 %2902
  %v2904 = vsub.f32 %v2884, %v2891
  %v2905 = vsub.f32 %v2885, %v2894
  %v2906 = vsub.f32 %v2886, %v2897
  %v2907 = vsub.f32 %v2887, %v2900
  %v2908 = vsub.f32 %v2888, %v2903
  %v2909 = vmul.f32 %v2904, 1.442695
  %v2910 = vpow.pop %v2909
  %v2911 = vmul.f32 %v2905, 1.442695
  %v2912 = vpow.pop %v2911
  %v2913 = vmul.f32 %v2906, 1.442695
  %v2914 = vpow.pop %v2913
  %v2915 = vmul.f32 %v2907, 1.442695
  %v2916 = vpow.pop %v2915
  %v2917 = vmul.f32 %v2908, 1.442695
  %v2918 = vpow.pop %v2917
  %v2919 = vsel %vm212, %v2910, 0.0
  %2920 = vadd.xlane.f32.xlu0 %v2919
  %v2921 = vpop.xlane.xlu0 %2920
  %v2922 = vsel %vm212, %v2912, 0.0
  %2923 = vadd.xlane.f32.xlu0 %v2922
  %v2924 = vpop.xlane.xlu0 %2923
  %v2925 = vsel %vm212, %v2914, 0.0
  %2926 = vadd.xlane.f32.xlu0 %v2925
  %v2927 = vpop.xlane.xlu0 %2926
  %v2928 = vsel %vm212, %v2916, 0.0
  %2929 = vadd.xlane.f32.xlu0 %v2928
  %v2930 = vpop.xlane.xlu0 %2929
  %v2931 = vsel %vm225, %v2918, 0.0
  %2932 = vadd.xlane.f32.xlu0 %v2931
  %v2933 = vpop.xlane.xlu0 %2932
  %v2934 = vrcp.pop %v2921
  %v2935 = vrcp.pop %v2924
  %v2936 = vrcp.pop %v2927
  %v2937 = vrcp.pop %v2930
  %v2938 = vrcp.pop %v2933
  %v2939 = vmul.f32 %v2910, %v2934
  %v2940 = vmul.f32 %v2912, %v2935
  %v2941 = vmul.f32 %v2914, %v2936
  %v2942 = vmul.f32 %v2916, %v2937
  %v2943 = vmul.f32 %v2918, %v2938
  %2944 = vrot.lane.b32.xlu0 %v2598, 56
  %v2945 = vpop.permute.xlu0 %2944
  %2946 = vrot.lane.b32.xlu0 %v2601, 56
  %v2947 = vpop.permute.xlu0 %2946
  %2948 = vrot.lane.b32.xlu0 %v2604, 56
  %v2949 = vpop.permute.xlu0 %2948
  %2950 = vrot.lane.b32.xlu0 %v2607, 56
  %v2951 = vpop.permute.xlu0 %2950
  %2952 = vrot.lane.b32.xlu0 %v2610, 56
  %v2953 = vpop.permute.xlu0 %2952
  %v2959 = vsel %vm212, %v2939, 0
  %v2962 = vsel %vm212, %v2940, 0
  %v2965 = vsel %vm212, %v2941, 0
  %v2968 = vsel %vm212, %v2942, 0
  %v2971 = vsel %vm212, %v2943, 0
  %v2973 = vsel %vm298, %v2953, 0
  %2975 = vmatpush.msra.mxu0 0.0
  %2976 = vmatpush.msra.mxu0 0.0
  %2977 = vmatpush.msra.mxu0 0.0
  %2978 = vmatpush.msra.mxu0 0.0
  %2979 = vmatpush.msra.mxu0 0.0
  %2980 = vmatpush.msra.mxu0 0.0
  %2981 = vmatpush.msra.mxu0 0.0
  %2982 = vmatpush.msra.mxu0 0.0
  %2983 = vmatpush.msra.mxu0 0.0
  %2984 = vmatpush.msra.mxu0 0.0
  %2985 = vmatpush.msra.mxu0 0.0
  %2986 = vmatpush.msra.mxu0 %v2973
  %2987 = vmatpush.msra.mxu0 %v2951
  %2988 = vmatpush.msra.mxu0 %v2949
  %2989 = vmatpush.msra.mxu0 %v2947
  %2990 = vmatpush.msra.mxu0 %v2945
  %2991 = vmatmul.f32.gmra.mxu0 %v2959
  %v2992 = vpop.f32.mrf.mxu0
  %v2993 = vadd.f32 0.0, %v2992
  %2994 = vmatmul.f32.gmra.mxu0 %v2962
  %v2995 = vpop.f32.mrf.mxu0
  %v2996 = vadd.f32 0.0, %v2995
  %2997 = vmatmul.f32.gmra.mxu0 %v2965
  %v2998 = vpop.f32.mrf.mxu0
  %v2999 = vadd.f32 0.0, %v2998
  %3000 = vmatmul.f32.gmra.mxu0 %v2968
  %v3001 = vpop.f32.mrf.mxu0
  %v3002 = vadd.f32 0.0, %v3001
  %3003 = vmatmul.f32.gmra.mxu0 %v2971
  %v3004 = vpop.f32.mrf.mxu0
  %v3005 = vadd.f32 0.0, %v3004
  %3006 = vdwg.mxu0
  %3007 = vrot.lane.b32.xlu0 %v2598, 112
  %v3008 = vpop.permute.xlu0 %3007
  %3009 = vrot.lane.b32.xlu0 %v2601, 112
  %v3010 = vpop.permute.xlu0 %3009
  %3011 = vrot.lane.b32.xlu0 %v2604, 112
  %v3012 = vpop.permute.xlu0 %3011
  %3013 = vrot.lane.b32.xlu0 %v2607, 112
  %v3014 = vpop.permute.xlu0 %3013
  %3015 = vrot.lane.b32.xlu0 %v2610, 112
  %v3016 = vpop.permute.xlu0 %3015
  %3017 = vrot.lane.b32.xlu0 %v2598, 80
  %v3018 = vpop.permute.xlu0 %3017
  %3019 = vrot.lane.b32.xlu0 %v2601, 80
  %v3020 = vpop.permute.xlu0 %3019
  %3021 = vrot.lane.b32.xlu0 %v2604, 80
  %v3022 = vpop.permute.xlu0 %3021
  %3023 = vrot.lane.b32.xlu0 %v2607, 80
  %v3024 = vpop.permute.xlu0 %3023
  %3025 = vrot.lane.b32.xlu0 %v2610, 80
  %v3026 = vpop.permute.xlu0 %3025
  %v3027 = vsel %vm149, %v3008, 0
  %v3029 = vsel %vm149, %v3010, 0
  %v3031 = vsel %vm149, %v3012, 0
  %v3033 = vsel %vm149, %v3014, 0
  %v3035 = vsel %vm149, %v3016, 0
  %v3037 = vsel %vm149, %v3018, 0
  %v3039 = vsel %vm149, %v3020, 0
  %v3041 = vsel %vm149, %v3022, 0
  %v3043 = vsel %vm149, %v3024, 0
  %v3045 = vsel %vm149, %v3026, 0
  %3047 = vmatpush.xpose.msra.mxu0 0.0
  %3048 = vmatpush.xpose.msra.mxu0 0.0
  %3049 = vmatpush.xpose.msra.mxu0 0.0
  %3050 = vmatpush.xpose.msra.mxu0 0.0
  %3051 = vmatpush.xpose.msra.mxu0 0.0
  %3052 = vmatpush.xpose.msra.mxu0 0.0
  %3053 = vmatpush.xpose.msra.mxu0 0.0
  %3054 = vmatpush.xpose.msra.mxu0 0.0
  %3055 = vmatpush.xpose.msra.mxu0 0.0
  %3056 = vmatpush.xpose.msra.mxu0 0.0
  %3057 = vmatpush.xpose.msra.mxu0 0.0
  %3058 = vmatpush.xpose.msra.mxu0 %v3045
  %3059 = vmatpush.xpose.msra.mxu0 %v3043
  %3060 = vmatpush.xpose.msra.mxu0 %v3041
  %3061 = vmatpush.xpose.msra.mxu0 %v3039
  %3062 = vmatpush.xpose.msra.mxu0 %v3037
  %3063 = vmatmul.f32.gmra.mxu0 %v3027
  %v3064 = vpop.f32.mrf.mxu0
  %v3065 = vadd.f32 0.0, %v3064
  %3066 = vmatmul.f32.gmra.mxu0 %v3029
  %v3067 = vpop.f32.mrf.mxu0
  %v3068 = vadd.f32 0.0, %v3067
  %3069 = vmatmul.f32.gmra.mxu0 %v3031
  %v3070 = vpop.f32.mrf.mxu0
  %v3071 = vadd.f32 0.0, %v3070
  %3072 = vmatmul.f32.gmra.mxu0 %v3033
  %v3073 = vpop.f32.mrf.mxu0
  %v3074 = vadd.f32 0.0, %v3073
  %3075 = vmatmul.f32.gmra.mxu0 %v3035
  %v3076 = vpop.f32.mrf.mxu0
  %v3077 = vadd.f32 0.0, %v3076
  %3078 = vdwg.mxu0
  %v3079 = vmul.f32 %v3065, 0.35355338
  %v3080 = vmul.f32 %v3068, 0.35355338
  %v3081 = vmul.f32 %v3071, 0.35355338
  %v3082 = vmul.f32 %v3074, 0.35355338
  %v3083 = vmul.f32 %v3077, 0.35355338
  %v3084 = vadd.f32 %v3079, %v62
  %v3085 = vadd.f32 %v3080, %v63
  %v3086 = vadd.f32 %v3081, %v64
  %v3087 = vadd.f32 %v3082, %v65
  %v3088 = vadd.f32 %v3083, %v66
  %v3089 = vsel %vm212, %v3084, -inf
  %3090 = vmax.xlane.f32.xlu0 %v3089
  %v3091 = vpop.xlane.xlu0 %3090
  %v3092 = vsel %vm212, %v3085, -inf
  %3093 = vmax.xlane.f32.xlu0 %v3092
  %v3094 = vpop.xlane.xlu0 %3093
  %v3095 = vsel %vm212, %v3086, -inf
  %3096 = vmax.xlane.f32.xlu0 %v3095
  %v3097 = vpop.xlane.xlu0 %3096
  %v3098 = vsel %vm212, %v3087, -inf
  %3099 = vmax.xlane.f32.xlu0 %v3098
  %v3100 = vpop.xlane.xlu0 %3099
  %v3101 = vsel %vm225, %v3088, -inf
  %3102 = vmax.xlane.f32.xlu0 %v3101
  %v3103 = vpop.xlane.xlu0 %3102
  %v3104 = vsub.f32 %v3084, %v3091
  %v3105 = vsub.f32 %v3085, %v3094
  %v3106 = vsub.f32 %v3086, %v3097
  %v3107 = vsub.f32 %v3087, %v3100
  %v3108 = vsub.f32 %v3088, %v3103
  %v3109 = vmul.f32 %v3104, 1.442695
  %v3110 = vpow.pop %v3109
  %v3111 = vmul.f32 %v3105, 1.442695
  %v3112 = vpow.pop %v3111
  %v3113 = vmul.f32 %v3106, 1.442695
  %v3114 = vpow.pop %v3113
  %v3115 = vmul.f32 %v3107, 1.442695
  %v3116 = vpow.pop %v3115
  %v3117 = vmul.f32 %v3108, 1.442695
  %v3118 = vpow.pop %v3117
  %v3119 = vsel %vm212, %v3110, 0.0
  %3120 = vadd.xlane.f32.xlu0 %v3119
  %v3121 = vpop.xlane.xlu0 %3120
  %v3122 = vsel %vm212, %v3112, 0.0
  %3123 = vadd.xlane.f32.xlu0 %v3122
  %v3124 = vpop.xlane.xlu0 %3123
  %v3125 = vsel %vm212, %v3114, 0.0
  %3126 = vadd.xlane.f32.xlu0 %v3125
  %v3127 = vpop.xlane.xlu0 %3126
  %v3128 = vsel %vm212, %v3116, 0.0
  %3129 = vadd.xlane.f32.xlu0 %v3128
  %v3130 = vpop.xlane.xlu0 %3129
  %v3131 = vsel %vm225, %v3118, 0.0
  %3132 = vadd.xlane.f32.xlu0 %v3131
  %v3133 = vpop.xlane.xlu0 %3132
  %v3134 = vrcp.pop %v3121
  %v3135 = vrcp.pop %v3124
  %v3136 = vrcp.pop %v3127
  %v3137 = vrcp.pop %v3130
  %v3138 = vrcp.pop %v3133
  %v3139 = vmul.f32 %v3110, %v3134
  %v3140 = vmul.f32 %v3112, %v3135
  %v3141 = vmul.f32 %v3114, %v3136
  %v3142 = vmul.f32 %v3116, %v3137
  %v3143 = vmul.f32 %v3118, %v3138
  %3144 = vrot.lane.b32.xlu0 %v2598, 48
  %v3145 = vpop.permute.xlu0 %3144
  %3146 = vrot.lane.b32.xlu0 %v2601, 48
  %v3147 = vpop.permute.xlu0 %3146
  %3148 = vrot.lane.b32.xlu0 %v2604, 48
  %v3149 = vpop.permute.xlu0 %3148
  %3150 = vrot.lane.b32.xlu0 %v2607, 48
  %v3151 = vpop.permute.xlu0 %3150
  %3152 = vrot.lane.b32.xlu0 %v2610, 48
  %v3153 = vpop.permute.xlu0 %3152
  %v3159 = vsel %vm212, %v3139, 0
  %v3162 = vsel %vm212, %v3140, 0
  %v3165 = vsel %vm212, %v3141, 0
  %v3168 = vsel %vm212, %v3142, 0
  %v3171 = vsel %vm212, %v3143, 0
  %v3173 = vsel %vm298, %v3153, 0
  %3175 = vmatpush.msra.mxu0 0.0
  %3176 = vmatpush.msra.mxu0 0.0
  %3177 = vmatpush.msra.mxu0 0.0
  %3178 = vmatpush.msra.mxu0 0.0
  %3179 = vmatpush.msra.mxu0 0.0
  %3180 = vmatpush.msra.mxu0 0.0
  %3181 = vmatpush.msra.mxu0 0.0
  %3182 = vmatpush.msra.mxu0 0.0
  %3183 = vmatpush.msra.mxu0 0.0
  %3184 = vmatpush.msra.mxu0 0.0
  %3185 = vmatpush.msra.mxu0 0.0
  %3186 = vmatpush.msra.mxu0 %v3173
  %3187 = vmatpush.msra.mxu0 %v3151
  %3188 = vmatpush.msra.mxu0 %v3149
  %3189 = vmatpush.msra.mxu0 %v3147
  %3190 = vmatpush.msra.mxu0 %v3145
  %3191 = vmatmul.f32.gmra.mxu0 %v3159
  %v3192 = vpop.f32.mrf.mxu0
  %v3193 = vadd.f32 0.0, %v3192
  %3194 = vmatmul.f32.gmra.mxu0 %v3162
  %v3195 = vpop.f32.mrf.mxu0
  %v3196 = vadd.f32 0.0, %v3195
  %3197 = vmatmul.f32.gmra.mxu0 %v3165
  %v3198 = vpop.f32.mrf.mxu0
  %v3199 = vadd.f32 0.0, %v3198
  %3200 = vmatmul.f32.gmra.mxu0 %v3168
  %v3201 = vpop.f32.mrf.mxu0
  %v3202 = vadd.f32 0.0, %v3201
  %3203 = vmatmul.f32.gmra.mxu0 %v3171
  %v3204 = vpop.f32.mrf.mxu0
  %v3205 = vadd.f32 0.0, %v3204
  %3206 = vdwg.mxu0
  %3207 = vrot.lane.b32.xlu0 %v2598, 104
  %v3208 = vpop.permute.xlu0 %3207
  %3209 = vrot.lane.b32.xlu0 %v2601, 104
  %v3210 = vpop.permute.xlu0 %3209
  %3211 = vrot.lane.b32.xlu0 %v2604, 104
  %v3212 = vpop.permute.xlu0 %3211
  %3213 = vrot.lane.b32.xlu0 %v2607, 104
  %v3214 = vpop.permute.xlu0 %3213
  %3215 = vrot.lane.b32.xlu0 %v2610, 104
  %v3216 = vpop.permute.xlu0 %3215
  %3217 = vrot.lane.b32.xlu0 %v2598, 72
  %v3218 = vpop.permute.xlu0 %3217
  %3219 = vrot.lane.b32.xlu0 %v2601, 72
  %v3220 = vpop.permute.xlu0 %3219
  %3221 = vrot.lane.b32.xlu0 %v2604, 72
  %v3222 = vpop.permute.xlu0 %3221
  %3223 = vrot.lane.b32.xlu0 %v2607, 72
  %v3224 = vpop.permute.xlu0 %3223
  %3225 = vrot.lane.b32.xlu0 %v2610, 72
  %v3226 = vpop.permute.xlu0 %3225
  %v3227 = vsel %vm149, %v3208, 0
  %v3229 = vsel %vm149, %v3210, 0
  %v3231 = vsel %vm149, %v3212, 0
  %v3233 = vsel %vm149, %v3214, 0
  %v3235 = vsel %vm149, %v3216, 0
  %v3237 = vsel %vm149, %v3218, 0
  %v3239 = vsel %vm149, %v3220, 0
  %v3241 = vsel %vm149, %v3222, 0
  %v3243 = vsel %vm149, %v3224, 0
  %v3245 = vsel %vm149, %v3226, 0
  %3247 = vmatpush.xpose.msra.mxu0 0.0
  %3248 = vmatpush.xpose.msra.mxu0 0.0
  %3249 = vmatpush.xpose.msra.mxu0 0.0
  %3250 = vmatpush.xpose.msra.mxu0 0.0
  %3251 = vmatpush.xpose.msra.mxu0 0.0
  %3252 = vmatpush.xpose.msra.mxu0 0.0
  %3253 = vmatpush.xpose.msra.mxu0 0.0
  %3254 = vmatpush.xpose.msra.mxu0 0.0
  %3255 = vmatpush.xpose.msra.mxu0 0.0
  %3256 = vmatpush.xpose.msra.mxu0 0.0
  %3257 = vmatpush.xpose.msra.mxu0 0.0
  %3258 = vmatpush.xpose.msra.mxu0 %v3245
  %3259 = vmatpush.xpose.msra.mxu0 %v3243
  %3260 = vmatpush.xpose.msra.mxu0 %v3241
  %3261 = vmatpush.xpose.msra.mxu0 %v3239
  %3262 = vmatpush.xpose.msra.mxu0 %v3237
  %3263 = vmatmul.f32.gmra.mxu0 %v3227
  %v3264 = vpop.f32.mrf.mxu0
  %v3265 = vadd.f32 0.0, %v3264
  %3266 = vmatmul.f32.gmra.mxu0 %v3229
  %v3267 = vpop.f32.mrf.mxu0
  %v3268 = vadd.f32 0.0, %v3267
  %3269 = vmatmul.f32.gmra.mxu0 %v3231
  %v3270 = vpop.f32.mrf.mxu0
  %v3271 = vadd.f32 0.0, %v3270
  %3272 = vmatmul.f32.gmra.mxu0 %v3233
  %v3273 = vpop.f32.mrf.mxu0
  %v3274 = vadd.f32 0.0, %v3273
  %3275 = vmatmul.f32.gmra.mxu0 %v3235
  %v3276 = vpop.f32.mrf.mxu0
  %v3277 = vadd.f32 0.0, %v3276
  %3278 = vdwg.mxu0
  %v3279 = vmul.f32 %v3265, 0.35355338
  %v3280 = vmul.f32 %v3268, 0.35355338
  %v3281 = vmul.f32 %v3271, 0.35355338
  %v3282 = vmul.f32 %v3274, 0.35355338
  %v3283 = vmul.f32 %v3277, 0.35355338
  %v3284 = vadd.f32 %v3279, %v62
  %v3285 = vadd.f32 %v3280, %v63
  %v3286 = vadd.f32 %v3281, %v64
  %v3287 = vadd.f32 %v3282, %v65
  %v3288 = vadd.f32 %v3283, %v66
  %v3289 = vsel %vm212, %v3284, -inf
  %3290 = vmax.xlane.f32.xlu0 %v3289
  %v3291 = vpop.xlane.xlu0 %3290
  %v3292 = vsel %vm212, %v3285, -inf
  %3293 = vmax.xlane.f32.xlu0 %v3292
  %v3294 = vpop.xlane.xlu0 %3293
  %v3295 = vsel %vm212, %v3286, -inf
  %3296 = vmax.xlane.f32.xlu0 %v3295
  %v3297 = vpop.xlane.xlu0 %3296
  %v3298 = vsel %vm212, %v3287, -inf
  %3299 = vmax.xlane.f32.xlu0 %v3298
  %v3300 = vpop.xlane.xlu0 %3299
  %v3301 = vsel %vm225, %v3288, -inf
  %3302 = vmax.xlane.f32.xlu0 %v3301
  %v3303 = vpop.xlane.xlu0 %3302
  %v3304 = vsub.f32 %v3284, %v3291
  %v3305 = vsub.f32 %v3285, %v3294
  %v3306 = vsub.f32 %v3286, %v3297
  %v3307 = vsub.f32 %v3287, %v3300
  %v3308 = vsub.f32 %v3288, %v3303
  %v3309 = vmul.f32 %v3304, 1.442695
  %v3310 = vpow.pop %v3309
  %v3311 = vmul.f32 %v3305, 1.442695
  %v3312 = vpow.pop %v3311
  %v3313 = vmul.f32 %v3306, 1.442695
  %v3314 = vpow.pop %v3313
  %v3315 = vmul.f32 %v3307, 1.442695
  %v3316 = vpow.pop %v3315
  %v3317 = vmul.f32 %v3308, 1.442695
  %v3318 = vpow.pop %v3317
  %v3319 = vsel %vm212, %v3310, 0.0
  %3320 = vadd.xlane.f32.xlu0 %v3319
  %v3321 = vpop.xlane.xlu0 %3320
  %v3322 = vsel %vm212, %v3312, 0.0
  %3323 = vadd.xlane.f32.xlu0 %v3322
  %v3324 = vpop.xlane.xlu0 %3323
  %v3325 = vsel %vm212, %v3314, 0.0
  %3326 = vadd.xlane.f32.xlu0 %v3325
  %v3327 = vpop.xlane.xlu0 %3326
  %v3328 = vsel %vm212, %v3316, 0.0
  %3329 = vadd.xlane.f32.xlu0 %v3328
  %v3330 = vpop.xlane.xlu0 %3329
  %v3331 = vsel %vm225, %v3318, 0.0
  %3332 = vadd.xlane.f32.xlu0 %v3331
  %v3333 = vpop.xlane.xlu0 %3332
  %v3334 = vrcp.pop %v3321
  %v3335 = vrcp.pop %v3324
  %v3336 = vrcp.pop %v3327
  %v3337 = vrcp.pop %v3330
  %v3338 = vrcp.pop %v3333
  %v3339 = vmul.f32 %v3310, %v3334
  %v3340 = vmul.f32 %v3312, %v3335
  %v3341 = vmul.f32 %v3314, %v3336
  %v3342 = vmul.f32 %v3316, %v3337
  %v3343 = vmul.f32 %v3318, %v3338
  %3344 = vrot.lane.b32.xlu0 %v2598, 40
  %v3345 = vpop.permute.xlu0 %3344
  %3346 = vrot.lane.b32.xlu0 %v2601, 40
  %v3347 = vpop.permute.xlu0 %3346
  %3348 = vrot.lane.b32.xlu0 %v2604, 40
  %v3349 = vpop.permute.xlu0 %3348
  %3350 = vrot.lane.b32.xlu0 %v2607, 40
  %v3351 = vpop.permute.xlu0 %3350
  %3352 = vrot.lane.b32.xlu0 %v2610, 40
  %v3353 = vpop.permute.xlu0 %3352
  %v3359 = vsel %vm212, %v3339, 0
  %v3362 = vsel %vm212, %v3340, 0
  %v3365 = vsel %vm212, %v3341, 0
  %v3368 = vsel %vm212, %v3342, 0
  %v3371 = vsel %vm212, %v3343, 0
  %v3373 = vsel %vm298, %v3353, 0
  %3375 = vmatpush.msra.mxu0 0.0
  %3376 = vmatpush.msra.mxu0 0.0
  %3377 = vmatpush.msra.mxu0 0.0
  %3378 = vmatpush.msra.mxu0 0.0
  %3379 = vmatpush.msra.mxu0 0.0
  %3380 = vmatpush.msra.mxu0 0.0
  %3381 = vmatpush.msra.mxu0 0.0
  %3382 = vmatpush.msra.mxu0 0.0
  %3383 = vmatpush.msra.mxu0 0.0
  %3384 = vmatpush.msra.mxu0 0.0
  %3385 = vmatpush.msra.mxu0 0.0
  %3386 = vmatpush.msra.mxu0 %v3373
  %3387 = vmatpush.msra.mxu0 %v3351
  %3388 = vmatpush.msra.mxu0 %v3349
  %3389 = vmatpush.msra.mxu0 %v3347
  %3390 = vmatpush.msra.mxu0 %v3345
  %3391 = vmatmul.f32.gmra.mxu0 %v3359
  %v3392 = vpop.f32.mrf.mxu0
  %v3393 = vadd.f32 0.0, %v3392
  %3394 = vmatmul.f32.gmra.mxu0 %v3362
  %v3395 = vpop.f32.mrf.mxu0
  %v3396 = vadd.f32 0.0, %v3395
  %3397 = vmatmul.f32.gmra.mxu0 %v3365
  %v3398 = vpop.f32.mrf.mxu0
  %v3399 = vadd.f32 0.0, %v3398
  %3400 = vmatmul.f32.gmra.mxu0 %v3368
  %v3401 = vpop.f32.mrf.mxu0
  %v3402 = vadd.f32 0.0, %v3401
  %3403 = vmatmul.f32.gmra.mxu0 %v3371
  %v3404 = vpop.f32.mrf.mxu0
  %v3405 = vadd.f32 0.0, %v3404
  %3406 = vdwg.mxu0
  %3412 = vrot.lane.b32.xlu0 %v2993, 8
  %v3413 = vpop.permute.xlu0 %3412
  %3414 = vrot.lane.b32.xlu0 %v2996, 8
  %v3415 = vpop.permute.xlu0 %3414
  %3416 = vrot.lane.b32.xlu0 %v2999, 8
  %v3417 = vpop.permute.xlu0 %3416
  %3418 = vrot.lane.b32.xlu0 %v3002, 8
  %v3419 = vpop.permute.xlu0 %3418
  %3420 = vrot.lane.b32.xlu0 %v3005, 8
  %v3421 = vpop.permute.xlu0 %3420
  %3432 = vrot.lane.b32.xlu0 %v3193, 16
  %v3433 = vpop.permute.xlu0 %3432
  %3434 = vrot.lane.b32.xlu0 %v3196, 16
  %v3435 = vpop.permute.xlu0 %3434
  %3436 = vrot.lane.b32.xlu0 %v3199, 16
  %v3437 = vpop.permute.xlu0 %3436
  %3438 = vrot.lane.b32.xlu0 %v3202, 16
  %v3439 = vpop.permute.xlu0 %3438
  %3440 = vrot.lane.b32.xlu0 %v3205, 16
  %v3441 = vpop.permute.xlu0 %3440
  %3452 = vrot.lane.b32.xlu0 %v3393, 24
  %v3453 = vpop.permute.xlu0 %3452
  %3454 = vrot.lane.b32.xlu0 %v3396, 24
  %v3455 = vpop.permute.xlu0 %3454
  %3456 = vrot.lane.b32.xlu0 %v3399, 24
  %v3457 = vpop.permute.xlu0 %3456
  %3458 = vrot.lane.b32.xlu0 %v3402, 24
  %v3459 = vpop.permute.xlu0 %3458
  %3460 = vrot.lane.b32.xlu0 %v3405, 24
  %v3461 = vpop.permute.xlu0 %3460
  %v3467 = vsel %vm149, %v2793, %v3413
  %v3468 = vsel %vm149, %v2796, %v3415
  %v3469 = vsel %vm149, %v2799, %v3417
  %v3470 = vsel %vm149, %v2802, %v3419
  %v3471 = vsel %vm149, %v2805, %v3421
  %v3472 = vsel %vm998, %v3467, %v3433
  %v3473 = vsel %vm998, %v3468, %v3435
  %v3474 = vsel %vm998, %v3469, %v3437
  %v3475 = vsel %vm998, %v3470, %v3439
  %v3476 = vsel %vm998, %v3471, %v3441
  %v3477 = vsel %vm1004, %v3472, %v3453
  %v3478 = vsel %vm1004, %v3473, %v3455
  %v3479 = vsel %vm1004, %v3474, %v3457
  %v3480 = vsel %vm1004, %v3475, %v3459
  %v3481 = vsel %vm1004, %v3476, %v3461
  %3486 = vrot.lane.b32.xlu0 %v2551, 32
  %v3487 = vpop.permute.xlu0 %3486
  %3488 = vrot.lane.b32.xlu0 %v2552, 32
  %v3489 = vpop.permute.xlu0 %3488
  %3490 = vrot.lane.b32.xlu0 %v2553, 32
  %v3491 = vpop.permute.xlu0 %3490
  %3492 = vrot.lane.b32.xlu0 %v2554, 32
  %v3493 = vpop.permute.xlu0 %3492
  %v3499 = vsel %vm86, %v3477, 0
  %v3502 = vsel %vm86, %v3478, 0
  %v3505 = vsel %vm86, %v3479, 0
  %v3508 = vsel %vm86, %v3480, 0
  %v3511 = vsel %vm86, %v3481, 0
  %3513 = vmatpush.msra.mxu0 0.0
  %3514 = vmatpush.msra.mxu0 0.0
  %3515 = vmatpush.msra.mxu0 0.0
  %3516 = vmatpush.msra.mxu0 0.0
  %3517 = vmatpush.msra.mxu0 0.0
  %3518 = vmatpush.msra.mxu0 0.0
  %3519 = vmatpush.msra.mxu0 0.0
  %3520 = vmatpush.msra.mxu0 0.0
  %3521 = vmatpush.msra.mxu0 0.0
  %3522 = vmatpush.msra.mxu0 0.0
  %3523 = vmatpush.msra.mxu0 0.0
  %3524 = vmatpush.msra.mxu0 0.0
  %3525 = vmatpush.msra.mxu0 %v3493
  %3526 = vmatpush.msra.mxu0 %v3491
  %3527 = vmatpush.msra.mxu0 %v3489
  %3528 = vmatpush.msra.mxu0 %v3487
  %3529 = vmatmul.f32.gmra.mxu0 %v3499
  %v3530 = vpop.f32.mrf.mxu0
  %v3531 = vadd.f32 0.0, %v3530
  %3532 = vmatmul.f32.gmra.mxu0 %v3502
  %v3533 = vpop.f32.mrf.mxu0
  %v3534 = vadd.f32 0.0, %v3533
  %3535 = vmatmul.f32.gmra.mxu0 %v3505
  %v3536 = vpop.f32.mrf.mxu0
  %v3537 = vadd.f32 0.0, %v3536
  %3538 = vmatmul.f32.gmra.mxu0 %v3508
  %v3539 = vpop.f32.mrf.mxu0
  %v3540 = vadd.f32 0.0, %v3539
  %3541 = vmatmul.f32.gmra.mxu0 %v3511
  %v3542 = vpop.f32.mrf.mxu0
  %v3543 = vadd.f32 0.0, %v3542
  %3544 = vdwg.mxu0
  %v3545 = vadd.f32 %v2546, %v3531
  %v3546 = vadd.f32 %v2547, %v3534
  %v3547 = vadd.f32 %v2548, %v3537
  %v3548 = vadd.f32 %v2549, %v3540
  %v3549 = vadd.f32 %v2550, %v3543
  %3551 = vrot.lane.b32.xlu0 %v2564, 32
  %v3552 = vpop.permute.xlu0 %3551
  %v3554 = vadd.f32 %v3545, %v3552
  %v3555 = vadd.f32 %v3546, %v3552
  %v3556 = vadd.f32 %v3547, %v3552
  %v3557 = vadd.f32 %v3548, %v3552
  %v3558 = vadd.f32 %v3549, %v3552
  %v3559 = vsel %vm86, %v3554, 0.0
  %3560 = vadd.xlane.f32.xlu0 %v3559
  %v3561 = vpop.xlane.xlu0 %3560
  %v3562 = vsel %vm86, %v3555, 0.0
  %3563 = vadd.xlane.f32.xlu0 %v3562
  %v3564 = vpop.xlane.xlu0 %3563
  %v3565 = vsel %vm86, %v3556, 0.0
  %3566 = vadd.xlane.f32.xlu0 %v3565
  %v3567 = vpop.xlane.xlu0 %3566
  %v3568 = vsel %vm86, %v3557, 0.0
  %3569 = vadd.xlane.f32.xlu0 %v3568
  %v3570 = vpop.xlane.xlu0 %3569
  %v3571 = vsel %vm1099, %v3558, 0.0
  %3572 = vadd.xlane.f32.xlu0 %v3571
  %v3573 = vpop.xlane.xlu0 %3572
  %v3574 = vmul.f32 %v3561, %v1109
  %v3575 = vmul.f32 %v3564, %v1109
  %v3576 = vmul.f32 %v3567, %v1109
  %v3577 = vmul.f32 %v3570, %v1109
  %v3578 = vmul.f32 %v3573, %v1109
  %v3579 = vsub.f32 %v3554, %v3574
  %v3580 = vsub.f32 %v3555, %v3575
  %v3581 = vsub.f32 %v3556, %v3576
  %v3582 = vsub.f32 %v3557, %v3577
  %v3583 = vsub.f32 %v3558, %v3578
  %v3584 = vmul.f32 %v3579, %v3579
  %v3585 = vmul.f32 %v3580, %v3580
  %v3586 = vmul.f32 %v3581, %v3581
  %v3587 = vmul.f32 %v3582, %v3582
  %v3588 = vmul.f32 %v3583, %v3583
  %v3589 = vsel %vm86, %v3584, 0.0
  %3590 = vadd.xlane.f32.xlu0 %v3589
  %v3591 = vpop.xlane.xlu0 %3590
  %v3592 = vsel %vm86, %v3585, 0.0
  %3593 = vadd.xlane.f32.xlu0 %v3592
  %v3594 = vpop.xlane.xlu0 %3593
  %v3595 = vsel %vm86, %v3586, 0.0
  %3596 = vadd.xlane.f32.xlu0 %v3595
  %v3597 = vpop.xlane.xlu0 %3596
  %v3598 = vsel %vm86, %v3587, 0.0
  %3599 = vadd.xlane.f32.xlu0 %v3598
  %v3600 = vpop.xlane.xlu0 %3599
  %v3601 = vsel %vm1099, %v3588, 0.0
  %3602 = vadd.xlane.f32.xlu0 %v3601
  %v3603 = vpop.xlane.xlu0 %3602
  %v3604 = vmul.f32 %v3591, %v1109
  %v3605 = vmul.f32 %v3594, %v1109
  %v3606 = vmul.f32 %v3597, %v1109
  %v3607 = vmul.f32 %v3600, %v1109
  %v3608 = vmul.f32 %v3603, %v1109
  %v3609 = vadd.f32 %v3604, 1e-05
  %v3610 = vadd.f32 %v3605, 1e-05
  %v3611 = vadd.f32 %v3606, 1e-05
  %v3612 = vadd.f32 %v3607, 1e-05
  %v3613 = vadd.f32 %v3608, 1e-05
  %v3614 = vrsqrt.pop %v3609
  %v3615 = vmul.f32 %v3614, %v3609
  %v3616 = vmul.f32 %v3615, %v3614
  %v3617 = vmul.f32 0.5, %v3616
  %v3618 = vsub.f32 1.5, %v3617
  %v3619 = vmul.f32 %v3614, %v3618
  %vm3620 = vweird.f32 %v3609
  %vm3621 = vweird.f32 %v3614
  %vm3622 = vmor %vm3620, %vm3621
  %v3623 = vsel %vm3622, %v3614, %v3619
  %v3624 = vrsqrt.pop %v3610
  %v3625 = vmul.f32 %v3624, %v3610
  %v3626 = vmul.f32 %v3625, %v3624
  %v3627 = vmul.f32 0.5, %v3626
  %v3628 = vsub.f32 1.5, %v3627
  %v3629 = vmul.f32 %v3624, %v3628
  %vm3630 = vweird.f32 %v3610
  %vm3631 = vweird.f32 %v3624
  %vm3632 = vmor %vm3630, %vm3631
  %v3633 = vsel %vm3632, %v3624, %v3629
  %v3634 = vrsqrt.pop %v3611
  %v3635 = vmul.f32 %v3634, %v3611
  %v3636 = vmul.f32 %v3635, %v3634
  %v3637 = vmul.f32 0.5, %v3636
  %v3638 = vsub.f32 1.5, %v3637
  %v3639 = vmul.f32 %v3634, %v3638
  %vm3640 = vweird.f32 %v3611
  %vm3641 = vweird.f32 %v3634
  %vm3642 = vmor %vm3640, %vm3641
  %v3643 = vsel %vm3642, %v3634, %v3639
  %v3644 = vrsqrt.pop %v3612
  %v3645 = vmul.f32 %v3644, %v3612
  %v3646 = vmul.f32 %v3645, %v3644
  %v3647 = vmul.f32 0.5, %v3646
  %v3648 = vsub.f32 1.5, %v3647
  %v3649 = vmul.f32 %v3644, %v3648
  %vm3650 = vweird.f32 %v3612
  %vm3651 = vweird.f32 %v3644
  %vm3652 = vmor %vm3650, %vm3651
  %v3653 = vsel %vm3652, %v3644, %v3649
  %v3654 = vrsqrt.pop %v3613
  %v3655 = vmul.f32 %v3654, %v3613
  %v3656 = vmul.f32 %v3655, %v3654
  %v3657 = vmul.f32 0.5, %v3656
  %v3658 = vsub.f32 1.5, %v3657
  %v3659 = vmul.f32 %v3654, %v3658
  %vm3660 = vweird.f32 %v3613
  %vm3661 = vweird.f32 %v3654
  %vm3662 = vmor %vm3660, %vm3661
  %v3663 = vsel %vm3662, %v3654, %v3659
  %v3664 = vmul.f32 %v3579, %v3623
  %v3665 = vmul.f32 %v3580, %v3633
  %v3666 = vmul.f32 %v3581, %v3643
  %v3667 = vmul.f32 %v3582, %v3653
  %v3668 = vmul.f32 %v3583, %v3663
  %v3669 = vperm.slane %v2563, 3
  %v3670 = vmul.f32 %v3664, %v3669
  %v3671 = vmul.f32 %v3665, %v3669
  %v3672 = vmul.f32 %v3666, %v3669
  %v3673 = vmul.f32 %v3667, %v3669
  %v3674 = vmul.f32 %v3668, %v3669
  %3676 = vrot.lane.b32.xlu0 %v3669, 96
  %v3677 = vpop.permute.xlu0 %3676
  %v3679 = vadd.f32 %v3670, %v3677
  %v3680 = vadd.f32 %v3671, %v3677
  %v3681 = vadd.f32 %v3672, %v3677
  %v3682 = vadd.f32 %v3673, %v3677
  %v3683 = vadd.f32 %v3674, %v3677
  %v3684 = vperm.slane %v2563, 1
  %v3686 = vsel %vm86, %v3679, 0
  %v3689 = vsel %vm86, %v3680, 0
  %v3692 = vsel %vm86, %v3681, 0
  %v3695 = vsel %vm86, %v3682, 0
  %v3698 = vsel %vm86, %v3683, 0
  %3700 = vmatpush.msra.mxu0 0.0
  %3701 = vmatpush.msra.mxu0 0.0
  %3702 = vmatpush.msra.mxu0 0.0
  %3703 = vmatpush.msra.mxu0 0.0
  %3704 = vmatpush.msra.mxu0 0.0
  %3705 = vmatpush.msra.mxu0 0.0
  %3706 = vmatpush.msra.mxu0 0.0
  %3707 = vmatpush.msra.mxu0 0.0
  %3708 = vmatpush.msra.mxu0 0.0
  %3709 = vmatpush.msra.mxu0 0.0
  %3710 = vmatpush.msra.mxu0 0.0
  %3711 = vmatpush.msra.mxu0 0.0
  %3712 = vmatpush.msra.mxu0 %v2558
  %3713 = vmatpush.msra.mxu0 %v2557
  %3714 = vmatpush.msra.mxu0 %v2556
  %3715 = vmatpush.msra.mxu0 %v2555
  %3716 = vmatmul.f32.gmra.mxu0 %v3686
  %v3717 = vpop.f32.mrf.mxu0
  %v3718 = vadd.f32 %v3684, %v3717
  %3719 = vmatmul.f32.gmra.mxu0 %v3689
  %v3720 = vpop.f32.mrf.mxu0
  %v3721 = vadd.f32 %v3684, %v3720
  %3722 = vmatmul.f32.gmra.mxu0 %v3692
  %v3723 = vpop.f32.mrf.mxu0
  %v3724 = vadd.f32 %v3684, %v3723
  %3725 = vmatmul.f32.gmra.mxu0 %v3695
  %v3726 = vpop.f32.mrf.mxu0
  %v3727 = vadd.f32 %v3684, %v3726
  %3728 = vmatmul.f32.gmra.mxu0 %v3698
  %v3729 = vpop.f32.mrf.mxu0
  %v3730 = vadd.f32 %v3684, %v3729
  %3731 = vdwg.mxu0
  %3736 = vrot.lane.b32.xlu0 %v2555, 96
  %v3737 = vpop.permute.xlu0 %3736
  %3738 = vrot.lane.b32.xlu0 %v2556, 96
  %v3739 = vpop.permute.xlu0 %3738
  %3740 = vrot.lane.b32.xlu0 %v2557, 96
  %v3741 = vpop.permute.xlu0 %3740
  %3742 = vrot.lane.b32.xlu0 %v2558, 96
  %v3743 = vpop.permute.xlu0 %3742
  %3749 = vrot.lane.b32.xlu0 %v3684, 96
  %v3750 = vpop.permute.xlu0 %3749
  %3752 = vmatpush.msra.mxu0 0.0
  %3753 = vmatpush.msra.mxu0 0.0
  %3754 = vmatpush.msra.mxu0 0.0
  %3755 = vmatpush.msra.mxu0 0.0
  %3756 = vmatpush.msra.mxu0 0.0
  %3757 = vmatpush.msra.mxu0 0.0
  %3758 = vmatpush.msra.mxu0 0.0
  %3759 = vmatpush.msra.mxu0 0.0
  %3760 = vmatpush.msra.mxu0 0.0
  %3761 = vmatpush.msra.mxu0 0.0
  %3762 = vmatpush.msra.mxu0 0.0
  %3763 = vmatpush.msra.mxu0 0.0
  %3764 = vmatpush.msra.mxu0 %v3743
  %3765 = vmatpush.msra.mxu0 %v3741
  %3766 = vmatpush.msra.mxu0 %v3739
  %3767 = vmatpush.msra.mxu0 %v3737
  %3768 = vmatmul.f32.gmra.mxu0 %v1289
  %v3769 = vpop.f32.mrf.mxu0
  %v3770 = vadd.f32 %v3750, %v3769
  %3771 = vmatmul.f32.gmra.mxu0 %v1292
  %v3772 = vpop.f32.mrf.mxu0
  %v3773 = vadd.f32 %v3750, %v3772
  %3774 = vdwg.mxu0
  %v3776 = vsel %vm149, %v3718, 0
  %v3779 = vsel %vm149, %v3721, 0
  %v3782 = vsel %vm149, %v3724, 0
  %v3785 = vsel %vm149, %v3727, 0
  %v3788 = vsel %vm149, %v3730, 0
  %v3791 = vsel %vm149, %v3770, 0
  %v3794 = vsel %vm149, %v3773, 0
  %3796 = vmatpush.xpose.msra.mxu0 0.0
  %3797 = vmatpush.xpose.msra.mxu0 0.0
  %3798 = vmatpush.xpose.msra.mxu0 0.0
  %3799 = vmatpush.xpose.msra.mxu0 0.0
  %3800 = vmatpush.xpose.msra.mxu0 0.0
  %3801 = vmatpush.xpose.msra.mxu0 0.0
  %3802 = vmatpush.xpose.msra.mxu0 0.0
  %3803 = vmatpush.xpose.msra.mxu0 0.0
  %3804 = vmatpush.xpose.msra.mxu0 0.0
  %3805 = vmatpush.xpose.msra.mxu0 0.0
  %3806 = vmatpush.xpose.msra.mxu0 0.0
  %3807 = vmatpush.xpose.msra.mxu0 0.0
  %3808 = vmatpush.xpose.msra.mxu0 0.0
  %3809 = vmatpush.xpose.msra.mxu0 0.0
  %3810 = vmatpush.xpose.msra.mxu0 %v3794
  %3811 = vmatpush.xpose.msra.mxu0 %v3791
  %3812 = vmatmul.f32.gmra.mxu0 %v3776
  %v3813 = vpop.f32.mrf.mxu0
  %v3814 = vadd.f32 0.0, %v3813
  %3815 = vmatmul.f32.gmra.mxu0 %v3779
  %v3816 = vpop.f32.mrf.mxu0
  %v3817 = vadd.f32 0.0, %v3816
  %3818 = vmatmul.f32.gmra.mxu0 %v3782
  %v3819 = vpop.f32.mrf.mxu0
  %v3820 = vadd.f32 0.0, %v3819
  %3821 = vmatmul.f32.gmra.mxu0 %v3785
  %v3822 = vpop.f32.mrf.mxu0
  %v3823 = vadd.f32 0.0, %v3822
  %3824 = vmatmul.f32.gmra.mxu0 %v3788
  %v3825 = vpop.f32.mrf.mxu0
  %v3826 = vadd.f32 0.0, %v3825
  %3827 = vdwg.mxu0
  %v3828 = vmul.f32 %v3814, 0.35355338
  %v3829 = vmul.f32 %v3817, 0.35355338
  %v3830 = vmul.f32 %v3820, 0.35355338
  %v3831 = vmul.f32 %v3823, 0.35355338
  %v3832 = vmul.f32 %v3826, 0.35355338
  %v3833 = vadd.f32 %v3828, %v67
  %v3834 = vadd.f32 %v3829, %v68
  %v3835 = vadd.f32 %v3830, %v69
  %v3836 = vadd.f32 %v3831, %v70
  %v3837 = vadd.f32 %v3832, %v71
  %v3838 = vsel %vm998, %v3833, -inf
  %3839 = vmax.xlane.f32.xlu0 %v3838
  %v3840 = vpop.xlane.xlu0 %3839
  %v3841 = vsel %vm998, %v3834, -inf
  %3842 = vmax.xlane.f32.xlu0 %v3841
  %v3843 = vpop.xlane.xlu0 %3842
  %v3844 = vsel %vm998, %v3835, -inf
  %3845 = vmax.xlane.f32.xlu0 %v3844
  %v3846 = vpop.xlane.xlu0 %3845
  %v3847 = vsel %vm998, %v3836, -inf
  %3848 = vmax.xlane.f32.xlu0 %v3847
  %v3849 = vpop.xlane.xlu0 %3848
  %v3850 = vsel %vm1392, %v3837, -inf
  %3851 = vmax.xlane.f32.xlu0 %v3850
  %v3852 = vpop.xlane.xlu0 %3851
  %v3853 = vsub.f32 %v3833, %v3840
  %v3854 = vsub.f32 %v3834, %v3843
  %v3855 = vsub.f32 %v3835, %v3846
  %v3856 = vsub.f32 %v3836, %v3849
  %v3857 = vsub.f32 %v3837, %v3852
  %v3858 = vmul.f32 %v3853, 1.442695
  %v3859 = vpow.pop %v3858
  %v3860 = vmul.f32 %v3854, 1.442695
  %v3861 = vpow.pop %v3860
  %v3862 = vmul.f32 %v3855, 1.442695
  %v3863 = vpow.pop %v3862
  %v3864 = vmul.f32 %v3856, 1.442695
  %v3865 = vpow.pop %v3864
  %v3866 = vmul.f32 %v3857, 1.442695
  %v3867 = vpow.pop %v3866
  %v3868 = vsel %vm998, %v3859, 0.0
  %3869 = vadd.xlane.f32.xlu0 %v3868
  %v3870 = vpop.xlane.xlu0 %3869
  %v3871 = vsel %vm998, %v3861, 0.0
  %3872 = vadd.xlane.f32.xlu0 %v3871
  %v3873 = vpop.xlane.xlu0 %3872
  %v3874 = vsel %vm998, %v3863, 0.0
  %3875 = vadd.xlane.f32.xlu0 %v3874
  %v3876 = vpop.xlane.xlu0 %3875
  %v3877 = vsel %vm998, %v3865, 0.0
  %3878 = vadd.xlane.f32.xlu0 %v3877
  %v3879 = vpop.xlane.xlu0 %3878
  %v3880 = vsel %vm1392, %v3867, 0.0
  %3881 = vadd.xlane.f32.xlu0 %v3880
  %v3882 = vpop.xlane.xlu0 %3881
  %v3883 = vrcp.pop %v3870
  %v3884 = vrcp.pop %v3873
  %v3885 = vrcp.pop %v3876
  %v3886 = vrcp.pop %v3879
  %v3887 = vrcp.pop %v3882
  %v3888 = vmul.f32 %v3859, %v3883
  %v3889 = vmul.f32 %v3861, %v3884
  %v3890 = vmul.f32 %v3863, %v3885
  %v3891 = vmul.f32 %v3865, %v3886
  %v3892 = vmul.f32 %v3867, %v3887
  %3893 = vrot.lane.b32.xlu0 %v3770, 96
  %v3894 = vpop.permute.xlu0 %3893
  %3895 = vrot.lane.b32.xlu0 %v3773, 96
  %v3896 = vpop.permute.xlu0 %3895
  %v3900 = vsel %vm998, %v3888, 0
  %v3903 = vsel %vm998, %v3889, 0
  %v3906 = vsel %vm998, %v3890, 0
  %v3909 = vsel %vm998, %v3891, 0
  %v3912 = vsel %vm998, %v3892, 0
  %3914 = vmatpush.msra.mxu0 0.0
  %3915 = vmatpush.msra.mxu0 0.0
  %3916 = vmatpush.msra.mxu0 0.0
  %3917 = vmatpush.msra.mxu0 0.0
  %3918 = vmatpush.msra.mxu0 0.0
  %3919 = vmatpush.msra.mxu0 0.0
  %3920 = vmatpush.msra.mxu0 0.0
  %3921 = vmatpush.msra.mxu0 0.0
  %3922 = vmatpush.msra.mxu0 0.0
  %3923 = vmatpush.msra.mxu0 0.0
  %3924 = vmatpush.msra.mxu0 0.0
  %3925 = vmatpush.msra.mxu0 0.0
  %3926 = vmatpush.msra.mxu0 0.0
  %3927 = vmatpush.msra.mxu0 0.0
  %3928 = vmatpush.msra.mxu0 %v3896
  %3929 = vmatpush.msra.mxu0 %v3894
  %3930 = vmatmul.f32.gmra.mxu0 %v3900
  %v3931 = vpop.f32.mrf.mxu0
  %v3932 = vadd.f32 0.0, %v3931
  %3933 = vmatmul.f32.gmra.mxu0 %v3903
  %v3934 = vpop.f32.mrf.mxu0
  %v3935 = vadd.f32 0.0, %v3934
  %3936 = vmatmul.f32.gmra.mxu0 %v3906
  %v3937 = vpop.f32.mrf.mxu0
  %v3938 = vadd.f32 0.0, %v3937
  %3939 = vmatmul.f32.gmra.mxu0 %v3909
  %v3940 = vpop.f32.mrf.mxu0
  %v3941 = vadd.f32 0.0, %v3940
  %3942 = vmatmul.f32.gmra.mxu0 %v3912
  %v3943 = vpop.f32.mrf.mxu0
  %v3944 = vadd.f32 0.0, %v3943
  %3945 = vdwg.mxu0
  %3946 = vrot.lane.b32.xlu0 %v3718, 120
  %v3947 = vpop.permute.xlu0 %3946
  %3948 = vrot.lane.b32.xlu0 %v3721, 120
  %v3949 = vpop.permute.xlu0 %3948
  %3950 = vrot.lane.b32.xlu0 %v3724, 120
  %v3951 = vpop.permute.xlu0 %3950
  %3952 = vrot.lane.b32.xlu0 %v3727, 120
  %v3953 = vpop.permute.xlu0 %3952
  %3954 = vrot.lane.b32.xlu0 %v3730, 120
  %v3955 = vpop.permute.xlu0 %3954
  %3956 = vrot.lane.b32.xlu0 %v3770, 120
  %v3957 = vpop.permute.xlu0 %3956
  %3958 = vrot.lane.b32.xlu0 %v3773, 120
  %v3959 = vpop.permute.xlu0 %3958
  %v3960 = vsel %vm149, %v3947, 0
  %v3962 = vsel %vm149, %v3949, 0
  %v3964 = vsel %vm149, %v3951, 0
  %v3966 = vsel %vm149, %v3953, 0
  %v3968 = vsel %vm149, %v3955, 0
  %v3970 = vsel %vm149, %v3957, 0
  %v3972 = vsel %vm149, %v3959, 0
  %3974 = vmatpush.xpose.msra.mxu0 0.0
  %3975 = vmatpush.xpose.msra.mxu0 0.0
  %3976 = vmatpush.xpose.msra.mxu0 0.0
  %3977 = vmatpush.xpose.msra.mxu0 0.0
  %3978 = vmatpush.xpose.msra.mxu0 0.0
  %3979 = vmatpush.xpose.msra.mxu0 0.0
  %3980 = vmatpush.xpose.msra.mxu0 0.0
  %3981 = vmatpush.xpose.msra.mxu0 0.0
  %3982 = vmatpush.xpose.msra.mxu0 0.0
  %3983 = vmatpush.xpose.msra.mxu0 0.0
  %3984 = vmatpush.xpose.msra.mxu0 0.0
  %3985 = vmatpush.xpose.msra.mxu0 0.0
  %3986 = vmatpush.xpose.msra.mxu0 0.0
  %3987 = vmatpush.xpose.msra.mxu0 0.0
  %3988 = vmatpush.xpose.msra.mxu0 %v3972
  %3989 = vmatpush.xpose.msra.mxu0 %v3970
  %3990 = vmatmul.f32.gmra.mxu0 %v3960
  %v3991 = vpop.f32.mrf.mxu0
  %v3992 = vadd.f32 0.0, %v3991
  %3993 = vmatmul.f32.gmra.mxu0 %v3962
  %v3994 = vpop.f32.mrf.mxu0
  %v3995 = vadd.f32 0.0, %v3994
  %3996 = vmatmul.f32.gmra.mxu0 %v3964
  %v3997 = vpop.f32.mrf.mxu0
  %v3998 = vadd.f32 0.0, %v3997
  %3999 = vmatmul.f32.gmra.mxu0 %v3966
  %v4000 = vpop.f32.mrf.mxu0
  %v4001 = vadd.f32 0.0, %v4000
  %4002 = vmatmul.f32.gmra.mxu0 %v3968
  %v4003 = vpop.f32.mrf.mxu0
  %v4004 = vadd.f32 0.0, %v4003
  %4005 = vdwg.mxu0
  %v4006 = vmul.f32 %v3992, 0.35355338
  %v4007 = vmul.f32 %v3995, 0.35355338
  %v4008 = vmul.f32 %v3998, 0.35355338
  %v4009 = vmul.f32 %v4001, 0.35355338
  %v4010 = vmul.f32 %v4004, 0.35355338
  %v4011 = vadd.f32 %v4006, %v67
  %v4012 = vadd.f32 %v4007, %v68
  %v4013 = vadd.f32 %v4008, %v69
  %v4014 = vadd.f32 %v4009, %v70
  %v4015 = vadd.f32 %v4010, %v71
  %v4016 = vsel %vm998, %v4011, -inf
  %4017 = vmax.xlane.f32.xlu0 %v4016
  %v4018 = vpop.xlane.xlu0 %4017
  %v4019 = vsel %vm998, %v4012, -inf
  %4020 = vmax.xlane.f32.xlu0 %v4019
  %v4021 = vpop.xlane.xlu0 %4020
  %v4022 = vsel %vm998, %v4013, -inf
  %4023 = vmax.xlane.f32.xlu0 %v4022
  %v4024 = vpop.xlane.xlu0 %4023
  %v4025 = vsel %vm998, %v4014, -inf
  %4026 = vmax.xlane.f32.xlu0 %v4025
  %v4027 = vpop.xlane.xlu0 %4026
  %v4028 = vsel %vm1392, %v4015, -inf
  %4029 = vmax.xlane.f32.xlu0 %v4028
  %v4030 = vpop.xlane.xlu0 %4029
  %v4031 = vsub.f32 %v4011, %v4018
  %v4032 = vsub.f32 %v4012, %v4021
  %v4033 = vsub.f32 %v4013, %v4024
  %v4034 = vsub.f32 %v4014, %v4027
  %v4035 = vsub.f32 %v4015, %v4030
  %v4036 = vmul.f32 %v4031, 1.442695
  %v4037 = vpow.pop %v4036
  %v4038 = vmul.f32 %v4032, 1.442695
  %v4039 = vpow.pop %v4038
  %v4040 = vmul.f32 %v4033, 1.442695
  %v4041 = vpow.pop %v4040
  %v4042 = vmul.f32 %v4034, 1.442695
  %v4043 = vpow.pop %v4042
  %v4044 = vmul.f32 %v4035, 1.442695
  %v4045 = vpow.pop %v4044
  %v4046 = vsel %vm998, %v4037, 0.0
  %4047 = vadd.xlane.f32.xlu0 %v4046
  %v4048 = vpop.xlane.xlu0 %4047
  %v4049 = vsel %vm998, %v4039, 0.0
  %4050 = vadd.xlane.f32.xlu0 %v4049
  %v4051 = vpop.xlane.xlu0 %4050
  %v4052 = vsel %vm998, %v4041, 0.0
  %4053 = vadd.xlane.f32.xlu0 %v4052
  %v4054 = vpop.xlane.xlu0 %4053
  %v4055 = vsel %vm998, %v4043, 0.0
  %4056 = vadd.xlane.f32.xlu0 %v4055
  %v4057 = vpop.xlane.xlu0 %4056
  %v4058 = vsel %vm1392, %v4045, 0.0
  %4059 = vadd.xlane.f32.xlu0 %v4058
  %v4060 = vpop.xlane.xlu0 %4059
  %v4061 = vrcp.pop %v4048
  %v4062 = vrcp.pop %v4051
  %v4063 = vrcp.pop %v4054
  %v4064 = vrcp.pop %v4057
  %v4065 = vrcp.pop %v4060
  %v4066 = vmul.f32 %v4037, %v4061
  %v4067 = vmul.f32 %v4039, %v4062
  %v4068 = vmul.f32 %v4041, %v4063
  %v4069 = vmul.f32 %v4043, %v4064
  %v4070 = vmul.f32 %v4045, %v4065
  %4071 = vrot.lane.b32.xlu0 %v3770, 88
  %v4072 = vpop.permute.xlu0 %4071
  %4073 = vrot.lane.b32.xlu0 %v3773, 88
  %v4074 = vpop.permute.xlu0 %4073
  %v4078 = vsel %vm998, %v4066, 0
  %v4081 = vsel %vm998, %v4067, 0
  %v4084 = vsel %vm998, %v4068, 0
  %v4087 = vsel %vm998, %v4069, 0
  %v4090 = vsel %vm998, %v4070, 0
  %4092 = vmatpush.msra.mxu0 0.0
  %4093 = vmatpush.msra.mxu0 0.0
  %4094 = vmatpush.msra.mxu0 0.0
  %4095 = vmatpush.msra.mxu0 0.0
  %4096 = vmatpush.msra.mxu0 0.0
  %4097 = vmatpush.msra.mxu0 0.0
  %4098 = vmatpush.msra.mxu0 0.0
  %4099 = vmatpush.msra.mxu0 0.0
  %4100 = vmatpush.msra.mxu0 0.0
  %4101 = vmatpush.msra.mxu0 0.0
  %4102 = vmatpush.msra.mxu0 0.0
  %4103 = vmatpush.msra.mxu0 0.0
  %4104 = vmatpush.msra.mxu0 0.0
  %4105 = vmatpush.msra.mxu0 0.0
  %4106 = vmatpush.msra.mxu0 %v4074
  %4107 = vmatpush.msra.mxu0 %v4072
  %4108 = vmatmul.f32.gmra.mxu0 %v4078
  %v4109 = vpop.f32.mrf.mxu0
  %v4110 = vadd.f32 0.0, %v4109
  %4111 = vmatmul.f32.gmra.mxu0 %v4081
  %v4112 = vpop.f32.mrf.mxu0
  %v4113 = vadd.f32 0.0, %v4112
  %4114 = vmatmul.f32.gmra.mxu0 %v4084
  %v4115 = vpop.f32.mrf.mxu0
  %v4116 = vadd.f32 0.0, %v4115
  %4117 = vmatmul.f32.gmra.mxu0 %v4087
  %v4118 = vpop.f32.mrf.mxu0
  %v4119 = vadd.f32 0.0, %v4118
  %4120 = vmatmul.f32.gmra.mxu0 %v4090
  %v4121 = vpop.f32.mrf.mxu0
  %v4122 = vadd.f32 0.0, %v4121
  %4123 = vdwg.mxu0
  %4124 = vrot.lane.b32.xlu0 %v3718, 112
  %v4125 = vpop.permute.xlu0 %4124
  %4126 = vrot.lane.b32.xlu0 %v3721, 112
  %v4127 = vpop.permute.xlu0 %4126
  %4128 = vrot.lane.b32.xlu0 %v3724, 112
  %v4129 = vpop.permute.xlu0 %4128
  %4130 = vrot.lane.b32.xlu0 %v3727, 112
  %v4131 = vpop.permute.xlu0 %4130
  %4132 = vrot.lane.b32.xlu0 %v3730, 112
  %v4133 = vpop.permute.xlu0 %4132
  %4134 = vrot.lane.b32.xlu0 %v3770, 112
  %v4135 = vpop.permute.xlu0 %4134
  %4136 = vrot.lane.b32.xlu0 %v3773, 112
  %v4137 = vpop.permute.xlu0 %4136
  %v4138 = vsel %vm149, %v4125, 0
  %v4140 = vsel %vm149, %v4127, 0
  %v4142 = vsel %vm149, %v4129, 0
  %v4144 = vsel %vm149, %v4131, 0
  %v4146 = vsel %vm149, %v4133, 0
  %v4148 = vsel %vm149, %v4135, 0
  %v4150 = vsel %vm149, %v4137, 0
  %4152 = vmatpush.xpose.msra.mxu0 0.0
  %4153 = vmatpush.xpose.msra.mxu0 0.0
  %4154 = vmatpush.xpose.msra.mxu0 0.0
  %4155 = vmatpush.xpose.msra.mxu0 0.0
  %4156 = vmatpush.xpose.msra.mxu0 0.0
  %4157 = vmatpush.xpose.msra.mxu0 0.0
  %4158 = vmatpush.xpose.msra.mxu0 0.0
  %4159 = vmatpush.xpose.msra.mxu0 0.0
  %4160 = vmatpush.xpose.msra.mxu0 0.0
  %4161 = vmatpush.xpose.msra.mxu0 0.0
  %4162 = vmatpush.xpose.msra.mxu0 0.0
  %4163 = vmatpush.xpose.msra.mxu0 0.0
  %4164 = vmatpush.xpose.msra.mxu0 0.0
  %4165 = vmatpush.xpose.msra.mxu0 0.0
  %4166 = vmatpush.xpose.msra.mxu0 %v4150
  %4167 = vmatpush.xpose.msra.mxu0 %v4148
  %4168 = vmatmul.f32.gmra.mxu0 %v4138
  %v4169 = vpop.f32.mrf.mxu0
  %v4170 = vadd.f32 0.0, %v4169
  %4171 = vmatmul.f32.gmra.mxu0 %v4140
  %v4172 = vpop.f32.mrf.mxu0
  %v4173 = vadd.f32 0.0, %v4172
  %4174 = vmatmul.f32.gmra.mxu0 %v4142
  %v4175 = vpop.f32.mrf.mxu0
  %v4176 = vadd.f32 0.0, %v4175
  %4177 = vmatmul.f32.gmra.mxu0 %v4144
  %v4178 = vpop.f32.mrf.mxu0
  %v4179 = vadd.f32 0.0, %v4178
  %4180 = vmatmul.f32.gmra.mxu0 %v4146
  %v4181 = vpop.f32.mrf.mxu0
  %v4182 = vadd.f32 0.0, %v4181
  %4183 = vdwg.mxu0
  %v4184 = vmul.f32 %v4170, 0.35355338
  %v4185 = vmul.f32 %v4173, 0.35355338
  %v4186 = vmul.f32 %v4176, 0.35355338
  %v4187 = vmul.f32 %v4179, 0.35355338
  %v4188 = vmul.f32 %v4182, 0.35355338
  %v4189 = vadd.f32 %v4184, %v67
  %v4190 = vadd.f32 %v4185, %v68
  %v4191 = vadd.f32 %v4186, %v69
  %v4192 = vadd.f32 %v4187, %v70
  %v4193 = vadd.f32 %v4188, %v71
  %v4194 = vsel %vm998, %v4189, -inf
  %4195 = vmax.xlane.f32.xlu0 %v4194
  %v4196 = vpop.xlane.xlu0 %4195
  %v4197 = vsel %vm998, %v4190, -inf
  %4198 = vmax.xlane.f32.xlu0 %v4197
  %v4199 = vpop.xlane.xlu0 %4198
  %v4200 = vsel %vm998, %v4191, -inf
  %4201 = vmax.xlane.f32.xlu0 %v4200
  %v4202 = vpop.xlane.xlu0 %4201
  %v4203 = vsel %vm998, %v4192, -inf
  %4204 = vmax.xlane.f32.xlu0 %v4203
  %v4205 = vpop.xlane.xlu0 %4204
  %v4206 = vsel %vm1392, %v4193, -inf
  %4207 = vmax.xlane.f32.xlu0 %v4206
  %v4208 = vpop.xlane.xlu0 %4207
  %v4209 = vsub.f32 %v4189, %v4196
  %v4210 = vsub.f32 %v4190, %v4199
  %v4211 = vsub.f32 %v4191, %v4202
  %v4212 = vsub.f32 %v4192, %v4205
  %v4213 = vsub.f32 %v4193, %v4208
  %v4214 = vmul.f32 %v4209, 1.442695
  %v4215 = vpow.pop %v4214
  %v4216 = vmul.f32 %v4210, 1.442695
  %v4217 = vpow.pop %v4216
  %v4218 = vmul.f32 %v4211, 1.442695
  %v4219 = vpow.pop %v4218
  %v4220 = vmul.f32 %v4212, 1.442695
  %v4221 = vpow.pop %v4220
  %v4222 = vmul.f32 %v4213, 1.442695
  %v4223 = vpow.pop %v4222
  %v4224 = vsel %vm998, %v4215, 0.0
  %4225 = vadd.xlane.f32.xlu0 %v4224
  %v4226 = vpop.xlane.xlu0 %4225
  %v4227 = vsel %vm998, %v4217, 0.0
  %4228 = vadd.xlane.f32.xlu0 %v4227
  %v4229 = vpop.xlane.xlu0 %4228
  %v4230 = vsel %vm998, %v4219, 0.0
  %4231 = vadd.xlane.f32.xlu0 %v4230
  %v4232 = vpop.xlane.xlu0 %4231
  %v4233 = vsel %vm998, %v4221, 0.0
  %4234 = vadd.xlane.f32.xlu0 %v4233
  %v4235 = vpop.xlane.xlu0 %4234
  %v4236 = vsel %vm1392, %v4223, 0.0
  %4237 = vadd.xlane.f32.xlu0 %v4236
  %v4238 = vpop.xlane.xlu0 %4237
  %v4239 = vrcp.pop %v4226
  %v4240 = vrcp.pop %v4229
  %v4241 = vrcp.pop %v4232
  %v4242 = vrcp.pop %v4235
  %v4243 = vrcp.pop %v4238
  %v4244 = vmul.f32 %v4215, %v4239
  %v4245 = vmul.f32 %v4217, %v4240
  %v4246 = vmul.f32 %v4219, %v4241
  %v4247 = vmul.f32 %v4221, %v4242
  %v4248 = vmul.f32 %v4223, %v4243
  %4249 = vrot.lane.b32.xlu0 %v3770, 80
  %v4250 = vpop.permute.xlu0 %4249
  %4251 = vrot.lane.b32.xlu0 %v3773, 80
  %v4252 = vpop.permute.xlu0 %4251
  %v4256 = vsel %vm998, %v4244, 0
  %v4259 = vsel %vm998, %v4245, 0
  %v4262 = vsel %vm998, %v4246, 0
  %v4265 = vsel %vm998, %v4247, 0
  %v4268 = vsel %vm998, %v4248, 0
  %4270 = vmatpush.msra.mxu0 0.0
  %4271 = vmatpush.msra.mxu0 0.0
  %4272 = vmatpush.msra.mxu0 0.0
  %4273 = vmatpush.msra.mxu0 0.0
  %4274 = vmatpush.msra.mxu0 0.0
  %4275 = vmatpush.msra.mxu0 0.0
  %4276 = vmatpush.msra.mxu0 0.0
  %4277 = vmatpush.msra.mxu0 0.0
  %4278 = vmatpush.msra.mxu0 0.0
  %4279 = vmatpush.msra.mxu0 0.0
  %4280 = vmatpush.msra.mxu0 0.0
  %4281 = vmatpush.msra.mxu0 0.0
  %4282 = vmatpush.msra.mxu0 0.0
  %4283 = vmatpush.msra.mxu0 0.0
  %4284 = vmatpush.msra.mxu0 %v4252
  %4285 = vmatpush.msra.mxu0 %v4250
  %4286 = vmatmul.f32.gmra.mxu0 %v4256
  %v4287 = vpop.f32.mrf.mxu0
  %v4288 = vadd.f32 0.0, %v4287
  %4289 = vmatmul.f32.gmra.mxu0 %v4259
  %v4290 = vpop.f32.mrf.mxu0
  %v4291 = vadd.f32 0.0, %v4290
  %4292 = vmatmul.f32.gmra.mxu0 %v4262
  %v4293 = vpop.f32.mrf.mxu0
  %v4294 = vadd.f32 0.0, %v4293
  %4295 = vmatmul.f32.gmra.mxu0 %v4265
  %v4296 = vpop.f32.mrf.mxu0
  %v4297 = vadd.f32 0.0, %v4296
  %4298 = vmatmul.f32.gmra.mxu0 %v4268
  %v4299 = vpop.f32.mrf.mxu0
  %v4300 = vadd.f32 0.0, %v4299
  %4301 = vdwg.mxu0
  %4302 = vrot.lane.b32.xlu0 %v3718, 104
  %v4303 = vpop.permute.xlu0 %4302
  %4304 = vrot.lane.b32.xlu0 %v3721, 104
  %v4305 = vpop.permute.xlu0 %4304
  %4306 = vrot.lane.b32.xlu0 %v3724, 104
  %v4307 = vpop.permute.xlu0 %4306
  %4308 = vrot.lane.b32.xlu0 %v3727, 104
  %v4309 = vpop.permute.xlu0 %4308
  %4310 = vrot.lane.b32.xlu0 %v3730, 104
  %v4311 = vpop.permute.xlu0 %4310
  %4312 = vrot.lane.b32.xlu0 %v3770, 104
  %v4313 = vpop.permute.xlu0 %4312
  %4314 = vrot.lane.b32.xlu0 %v3773, 104
  %v4315 = vpop.permute.xlu0 %4314
  %v4316 = vsel %vm149, %v4303, 0
  %v4318 = vsel %vm149, %v4305, 0
  %v4320 = vsel %vm149, %v4307, 0
  %v4322 = vsel %vm149, %v4309, 0
  %v4324 = vsel %vm149, %v4311, 0
  %v4326 = vsel %vm149, %v4313, 0
  %v4328 = vsel %vm149, %v4315, 0
  %4330 = vmatpush.xpose.msra.mxu0 0.0
  %4331 = vmatpush.xpose.msra.mxu0 0.0
  %4332 = vmatpush.xpose.msra.mxu0 0.0
  %4333 = vmatpush.xpose.msra.mxu0 0.0
  %4334 = vmatpush.xpose.msra.mxu0 0.0
  %4335 = vmatpush.xpose.msra.mxu0 0.0
  %4336 = vmatpush.xpose.msra.mxu0 0.0
  %4337 = vmatpush.xpose.msra.mxu0 0.0
  %4338 = vmatpush.xpose.msra.mxu0 0.0
  %4339 = vmatpush.xpose.msra.mxu0 0.0
  %4340 = vmatpush.xpose.msra.mxu0 0.0
  %4341 = vmatpush.xpose.msra.mxu0 0.0
  %4342 = vmatpush.xpose.msra.mxu0 0.0
  %4343 = vmatpush.xpose.msra.mxu0 0.0
  %4344 = vmatpush.xpose.msra.mxu0 %v4328
  %4345 = vmatpush.xpose.msra.mxu0 %v4326
  %4346 = vmatmul.f32.gmra.mxu0 %v4316
  %v4347 = vpop.f32.mrf.mxu0
  %v4348 = vadd.f32 0.0, %v4347
  %4349 = vmatmul.f32.gmra.mxu0 %v4318
  %v4350 = vpop.f32.mrf.mxu0
  %v4351 = vadd.f32 0.0, %v4350
  %4352 = vmatmul.f32.gmra.mxu0 %v4320
  %v4353 = vpop.f32.mrf.mxu0
  %v4354 = vadd.f32 0.0, %v4353
  %4355 = vmatmul.f32.gmra.mxu0 %v4322
  %v4356 = vpop.f32.mrf.mxu0
  %v4357 = vadd.f32 0.0, %v4356
  %4358 = vmatmul.f32.gmra.mxu0 %v4324
  %v4359 = vpop.f32.mrf.mxu0
  %v4360 = vadd.f32 0.0, %v4359
  %4361 = vdwg.mxu0
  %v4362 = vmul.f32 %v4348, 0.35355338
  %v4363 = vmul.f32 %v4351, 0.35355338
  %v4364 = vmul.f32 %v4354, 0.35355338
  %v4365 = vmul.f32 %v4357, 0.35355338
  %v4366 = vmul.f32 %v4360, 0.35355338
  %v4367 = vadd.f32 %v4362, %v67
  %v4368 = vadd.f32 %v4363, %v68
  %v4369 = vadd.f32 %v4364, %v69
  %v4370 = vadd.f32 %v4365, %v70
  %v4371 = vadd.f32 %v4366, %v71
  %v4372 = vsel %vm998, %v4367, -inf
  %4373 = vmax.xlane.f32.xlu0 %v4372
  %v4374 = vpop.xlane.xlu0 %4373
  %v4375 = vsel %vm998, %v4368, -inf
  %4376 = vmax.xlane.f32.xlu0 %v4375
  %v4377 = vpop.xlane.xlu0 %4376
  %v4378 = vsel %vm998, %v4369, -inf
  %4379 = vmax.xlane.f32.xlu0 %v4378
  %v4380 = vpop.xlane.xlu0 %4379
  %v4381 = vsel %vm998, %v4370, -inf
  %4382 = vmax.xlane.f32.xlu0 %v4381
  %v4383 = vpop.xlane.xlu0 %4382
  %v4384 = vsel %vm1392, %v4371, -inf
  %4385 = vmax.xlane.f32.xlu0 %v4384
  %v4386 = vpop.xlane.xlu0 %4385
  %v4387 = vsub.f32 %v4367, %v4374
  %v4388 = vsub.f32 %v4368, %v4377
  %v4389 = vsub.f32 %v4369, %v4380
  %v4390 = vsub.f32 %v4370, %v4383
  %v4391 = vsub.f32 %v4371, %v4386
  %v4392 = vmul.f32 %v4387, 1.442695
  %v4393 = vpow.pop %v4392
  %v4394 = vmul.f32 %v4388, 1.442695
  %v4395 = vpow.pop %v4394
  %v4396 = vmul.f32 %v4389, 1.442695
  %v4397 = vpow.pop %v4396
  %v4398 = vmul.f32 %v4390, 1.442695
  %v4399 = vpow.pop %v4398
  %v4400 = vmul.f32 %v4391, 1.442695
  %v4401 = vpow.pop %v4400
  %v4402 = vsel %vm998, %v4393, 0.0
  %4403 = vadd.xlane.f32.xlu0 %v4402
  %v4404 = vpop.xlane.xlu0 %4403
  %v4405 = vsel %vm998, %v4395, 0.0
  %4406 = vadd.xlane.f32.xlu0 %v4405
  %v4407 = vpop.xlane.xlu0 %4406
  %v4408 = vsel %vm998, %v4397, 0.0
  %4409 = vadd.xlane.f32.xlu0 %v4408
  %v4410 = vpop.xlane.xlu0 %4409
  %v4411 = vsel %vm998, %v4399, 0.0
  %4412 = vadd.xlane.f32.xlu0 %v4411
  %v4413 = vpop.xlane.xlu0 %4412
  %v4414 = vsel %vm1392, %v4401, 0.0
  %4415 = vadd.xlane.f32.xlu0 %v4414
  %v4416 = vpop.xlane.xlu0 %4415
  %v4417 = vrcp.pop %v4404
  %v4418 = vrcp.pop %v4407
  %v4419 = vrcp.pop %v4410
  %v4420 = vrcp.pop %v4413
  %v4421 = vrcp.pop %v4416
  %v4422 = vmul.f32 %v4393, %v4417
  %v4423 = vmul.f32 %v4395, %v4418
  %v4424 = vmul.f32 %v4397, %v4419
  %v4425 = vmul.f32 %v4399, %v4420
  %v4426 = vmul.f32 %v4401, %v4421
  %4427 = vrot.lane.b32.xlu0 %v3770, 72
  %v4428 = vpop.permute.xlu0 %4427
  %4429 = vrot.lane.b32.xlu0 %v3773, 72
  %v4430 = vpop.permute.xlu0 %4429
  %v4434 = vsel %vm998, %v4422, 0
  %v4437 = vsel %vm998, %v4423, 0
  %v4440 = vsel %vm998, %v4424, 0
  %v4443 = vsel %vm998, %v4425, 0
  %v4446 = vsel %vm998, %v4426, 0
  %4448 = vmatpush.msra.mxu0 0.0
  %4449 = vmatpush.msra.mxu0 0.0
  %4450 = vmatpush.msra.mxu0 0.0
  %4451 = vmatpush.msra.mxu0 0.0
  %4452 = vmatpush.msra.mxu0 0.0
  %4453 = vmatpush.msra.mxu0 0.0
  %4454 = vmatpush.msra.mxu0 0.0
  %4455 = vmatpush.msra.mxu0 0.0
  %4456 = vmatpush.msra.mxu0 0.0
  %4457 = vmatpush.msra.mxu0 0.0
  %4458 = vmatpush.msra.mxu0 0.0
  %4459 = vmatpush.msra.mxu0 0.0
  %4460 = vmatpush.msra.mxu0 0.0
  %4461 = vmatpush.msra.mxu0 0.0
  %4462 = vmatpush.msra.mxu0 %v4430
  %4463 = vmatpush.msra.mxu0 %v4428
  %4464 = vmatmul.f32.gmra.mxu0 %v4434
  %v4465 = vpop.f32.mrf.mxu0
  %v4466 = vadd.f32 0.0, %v4465
  %4467 = vmatmul.f32.gmra.mxu0 %v4437
  %v4468 = vpop.f32.mrf.mxu0
  %v4469 = vadd.f32 0.0, %v4468
  %4470 = vmatmul.f32.gmra.mxu0 %v4440
  %v4471 = vpop.f32.mrf.mxu0
  %v4472 = vadd.f32 0.0, %v4471
  %4473 = vmatmul.f32.gmra.mxu0 %v4443
  %v4474 = vpop.f32.mrf.mxu0
  %v4475 = vadd.f32 0.0, %v4474
  %4476 = vmatmul.f32.gmra.mxu0 %v4446
  %v4477 = vpop.f32.mrf.mxu0
  %v4478 = vadd.f32 0.0, %v4477
  %4479 = vdwg.mxu0
  %4485 = vrot.lane.b32.xlu0 %v4110, 8
  %v4486 = vpop.permute.xlu0 %4485
  %4487 = vrot.lane.b32.xlu0 %v4113, 8
  %v4488 = vpop.permute.xlu0 %4487
  %4489 = vrot.lane.b32.xlu0 %v4116, 8
  %v4490 = vpop.permute.xlu0 %4489
  %4491 = vrot.lane.b32.xlu0 %v4119, 8
  %v4492 = vpop.permute.xlu0 %4491
  %4493 = vrot.lane.b32.xlu0 %v4122, 8
  %v4494 = vpop.permute.xlu0 %4493
  %4505 = vrot.lane.b32.xlu0 %v4288, 16
  %v4506 = vpop.permute.xlu0 %4505
  %4507 = vrot.lane.b32.xlu0 %v4291, 16
  %v4508 = vpop.permute.xlu0 %4507
  %4509 = vrot.lane.b32.xlu0 %v4294, 16
  %v4510 = vpop.permute.xlu0 %4509
  %4511 = vrot.lane.b32.xlu0 %v4297, 16
  %v4512 = vpop.permute.xlu0 %4511
  %4513 = vrot.lane.b32.xlu0 %v4300, 16
  %v4514 = vpop.permute.xlu0 %4513
  %4525 = vrot.lane.b32.xlu0 %v4466, 24
  %v4526 = vpop.permute.xlu0 %4525
  %4527 = vrot.lane.b32.xlu0 %v4469, 24
  %v4528 = vpop.permute.xlu0 %4527
  %4529 = vrot.lane.b32.xlu0 %v4472, 24
  %v4530 = vpop.permute.xlu0 %4529
  %4531 = vrot.lane.b32.xlu0 %v4475, 24
  %v4532 = vpop.permute.xlu0 %4531
  %4533 = vrot.lane.b32.xlu0 %v4478, 24
  %v4534 = vpop.permute.xlu0 %4533
  %v4540 = vsel %vm149, %v3932, %v4486
  %v4541 = vsel %vm149, %v3935, %v4488
  %v4542 = vsel %vm149, %v3938, %v4490
  %v4543 = vsel %vm149, %v3941, %v4492
  %v4544 = vsel %vm149, %v3944, %v4494
  %v4545 = vsel %vm998, %v4540, %v4506
  %v4546 = vsel %vm998, %v4541, %v4508
  %v4547 = vsel %vm998, %v4542, %v4510
  %v4548 = vsel %vm998, %v4543, %v4512
  %v4549 = vsel %vm998, %v4544, %v4514
  %v4550 = vsel %vm1004, %v4545, %v4526
  %v4551 = vsel %vm1004, %v4546, %v4528
  %v4552 = vsel %vm1004, %v4547, %v4530
  %v4553 = vsel %vm1004, %v4548, %v4532
  %v4554 = vsel %vm1004, %v4549, %v4534
  %4555 = vrot.lane.b32.xlu0 %v2555, 32
  %v4556 = vpop.permute.xlu0 %4555
  %4557 = vrot.lane.b32.xlu0 %v2556, 32
  %v4558 = vpop.permute.xlu0 %4557
  %4559 = vrot.lane.b32.xlu0 %v2557, 32
  %v4560 = vpop.permute.xlu0 %4559
  %4561 = vrot.lane.b32.xlu0 %v2558, 32
  %v4562 = vpop.permute.xlu0 %4561
  %v4568 = vsel %vm86, %v4550, 0
  %v4571 = vsel %vm86, %v4551, 0
  %v4574 = vsel %vm86, %v4552, 0
  %v4577 = vsel %vm86, %v4553, 0
  %v4580 = vsel %vm86, %v4554, 0
  %4582 = vmatpush.msra.mxu0 0.0
  %4583 = vmatpush.msra.mxu0 0.0
  %4584 = vmatpush.msra.mxu0 0.0
  %4585 = vmatpush.msra.mxu0 0.0
  %4586 = vmatpush.msra.mxu0 0.0
  %4587 = vmatpush.msra.mxu0 0.0
  %4588 = vmatpush.msra.mxu0 0.0
  %4589 = vmatpush.msra.mxu0 0.0
  %4590 = vmatpush.msra.mxu0 0.0
  %4591 = vmatpush.msra.mxu0 0.0
  %4592 = vmatpush.msra.mxu0 0.0
  %4593 = vmatpush.msra.mxu0 0.0
  %4594 = vmatpush.msra.mxu0 %v4562
  %4595 = vmatpush.msra.mxu0 %v4560
  %4596 = vmatpush.msra.mxu0 %v4558
  %4597 = vmatpush.msra.mxu0 %v4556
  %4598 = vmatmul.f32.gmra.mxu0 %v4568
  %v4599 = vpop.f32.mrf.mxu0
  %v4600 = vadd.f32 0.0, %v4599
  %4601 = vmatmul.f32.gmra.mxu0 %v4571
  %v4602 = vpop.f32.mrf.mxu0
  %v4603 = vadd.f32 0.0, %v4602
  %4604 = vmatmul.f32.gmra.mxu0 %v4574
  %v4605 = vpop.f32.mrf.mxu0
  %v4606 = vadd.f32 0.0, %v4605
  %4607 = vmatmul.f32.gmra.mxu0 %v4577
  %v4608 = vpop.f32.mrf.mxu0
  %v4609 = vadd.f32 0.0, %v4608
  %4610 = vmatmul.f32.gmra.mxu0 %v4580
  %v4611 = vpop.f32.mrf.mxu0
  %v4612 = vadd.f32 0.0, %v4611
  %4613 = vdwg.mxu0
  %v4614 = vadd.f32 %v3679, %v4600
  %v4615 = vadd.f32 %v3680, %v4603
  %v4616 = vadd.f32 %v3681, %v4606
  %v4617 = vadd.f32 %v3682, %v4609
  %v4618 = vadd.f32 %v3683, %v4612
  %4619 = vrot.lane.b32.xlu0 %v3684, 32
  %v4620 = vpop.permute.xlu0 %4619
  %v4622 = vadd.f32 %v4614, %v4620
  %v4623 = vadd.f32 %v4615, %v4620
  %v4624 = vadd.f32 %v4616, %v4620
  %v4625 = vadd.f32 %v4617, %v4620
  %v4626 = vadd.f32 %v4618, %v4620
  %v4627 = vsel %vm86, %v4622, 0.0
  %4628 = vadd.xlane.f32.xlu0 %v4627
  %v4629 = vpop.xlane.xlu0 %4628
  %v4630 = vsel %vm86, %v4623, 0.0
  %4631 = vadd.xlane.f32.xlu0 %v4630
  %v4632 = vpop.xlane.xlu0 %4631
  %v4633 = vsel %vm86, %v4624, 0.0
  %4634 = vadd.xlane.f32.xlu0 %v4633
  %v4635 = vpop.xlane.xlu0 %4634
  %v4636 = vsel %vm86, %v4625, 0.0
  %4637 = vadd.xlane.f32.xlu0 %v4636
  %v4638 = vpop.xlane.xlu0 %4637
  %v4639 = vsel %vm1099, %v4626, 0.0
  %4640 = vadd.xlane.f32.xlu0 %v4639
  %v4641 = vpop.xlane.xlu0 %4640
  %v4642 = vmul.f32 %v4629, %v1109
  %v4643 = vmul.f32 %v4632, %v1109
  %v4644 = vmul.f32 %v4635, %v1109
  %v4645 = vmul.f32 %v4638, %v1109
  %v4646 = vmul.f32 %v4641, %v1109
  %v4647 = vsub.f32 %v4622, %v4642
  %v4648 = vsub.f32 %v4623, %v4643
  %v4649 = vsub.f32 %v4624, %v4644
  %v4650 = vsub.f32 %v4625, %v4645
  %v4651 = vsub.f32 %v4626, %v4646
  %v4652 = vmul.f32 %v4647, %v4647
  %v4653 = vmul.f32 %v4648, %v4648
  %v4654 = vmul.f32 %v4649, %v4649
  %v4655 = vmul.f32 %v4650, %v4650
  %v4656 = vmul.f32 %v4651, %v4651
  %v4657 = vsel %vm86, %v4652, 0.0
  %4658 = vadd.xlane.f32.xlu0 %v4657
  %v4659 = vpop.xlane.xlu0 %4658
  %v4660 = vsel %vm86, %v4653, 0.0
  %4661 = vadd.xlane.f32.xlu0 %v4660
  %v4662 = vpop.xlane.xlu0 %4661
  %v4663 = vsel %vm86, %v4654, 0.0
  %4664 = vadd.xlane.f32.xlu0 %v4663
  %v4665 = vpop.xlane.xlu0 %4664
  %v4666 = vsel %vm86, %v4655, 0.0
  %4667 = vadd.xlane.f32.xlu0 %v4666
  %v4668 = vpop.xlane.xlu0 %4667
  %v4669 = vsel %vm1099, %v4656, 0.0
  %4670 = vadd.xlane.f32.xlu0 %v4669
  %v4671 = vpop.xlane.xlu0 %4670
  %v4672 = vmul.f32 %v4659, %v1109
  %v4673 = vmul.f32 %v4662, %v1109
  %v4674 = vmul.f32 %v4665, %v1109
  %v4675 = vmul.f32 %v4668, %v1109
  %v4676 = vmul.f32 %v4671, %v1109
  %v4677 = vadd.f32 %v4672, 1e-05
  %v4678 = vadd.f32 %v4673, 1e-05
  %v4679 = vadd.f32 %v4674, 1e-05
  %v4680 = vadd.f32 %v4675, 1e-05
  %v4681 = vadd.f32 %v4676, 1e-05
  %v4682 = vrsqrt.pop %v4677
  %v4683 = vmul.f32 %v4682, %v4677
  %v4684 = vmul.f32 %v4683, %v4682
  %v4685 = vmul.f32 0.5, %v4684
  %v4686 = vsub.f32 1.5, %v4685
  %v4687 = vmul.f32 %v4682, %v4686
  %vm4688 = vweird.f32 %v4677
  %vm4689 = vweird.f32 %v4682
  %vm4690 = vmor %vm4688, %vm4689
  %v4691 = vsel %vm4690, %v4682, %v4687
  %v4692 = vrsqrt.pop %v4678
  %v4693 = vmul.f32 %v4692, %v4678
  %v4694 = vmul.f32 %v4693, %v4692
  %v4695 = vmul.f32 0.5, %v4694
  %v4696 = vsub.f32 1.5, %v4695
  %v4697 = vmul.f32 %v4692, %v4696
  %vm4698 = vweird.f32 %v4678
  %vm4699 = vweird.f32 %v4692
  %vm4700 = vmor %vm4698, %vm4699
  %v4701 = vsel %vm4700, %v4692, %v4697
  %v4702 = vrsqrt.pop %v4679
  %v4703 = vmul.f32 %v4702, %v4679
  %v4704 = vmul.f32 %v4703, %v4702
  %v4705 = vmul.f32 0.5, %v4704
  %v4706 = vsub.f32 1.5, %v4705
  %v4707 = vmul.f32 %v4702, %v4706
  %vm4708 = vweird.f32 %v4679
  %vm4709 = vweird.f32 %v4702
  %vm4710 = vmor %vm4708, %vm4709
  %v4711 = vsel %vm4710, %v4702, %v4707
  %v4712 = vrsqrt.pop %v4680
  %v4713 = vmul.f32 %v4712, %v4680
  %v4714 = vmul.f32 %v4713, %v4712
  %v4715 = vmul.f32 0.5, %v4714
  %v4716 = vsub.f32 1.5, %v4715
  %v4717 = vmul.f32 %v4712, %v4716
  %vm4718 = vweird.f32 %v4680
  %vm4719 = vweird.f32 %v4712
  %vm4720 = vmor %vm4718, %vm4719
  %v4721 = vsel %vm4720, %v4712, %v4717
  %v4722 = vrsqrt.pop %v4681
  %v4723 = vmul.f32 %v4722, %v4681
  %v4724 = vmul.f32 %v4723, %v4722
  %v4725 = vmul.f32 0.5, %v4724
  %v4726 = vsub.f32 1.5, %v4725
  %v4727 = vmul.f32 %v4722, %v4726
  %vm4728 = vweird.f32 %v4681
  %vm4729 = vweird.f32 %v4722
  %vm4730 = vmor %vm4728, %vm4729
  %v4731 = vsel %vm4730, %v4722, %v4727
  %v4732 = vmul.f32 %v4647, %v4691
  %v4733 = vmul.f32 %v4648, %v4701
  %v4734 = vmul.f32 %v4649, %v4711
  %v4735 = vmul.f32 %v4650, %v4721
  %v4736 = vmul.f32 %v4651, %v4731
  %4737 = vrot.lane.b32.xlu0 %v3669, 64
  %v4738 = vpop.permute.xlu0 %4737
  %v4740 = vmul.f32 %v4732, %v4738
  %v4741 = vmul.f32 %v4733, %v4738
  %v4742 = vmul.f32 %v4734, %v4738
  %v4743 = vmul.f32 %v4735, %v4738
  %v4744 = vmul.f32 %v4736, %v4738
  %4745 = vrot.lane.b32.xlu0 %v3669, 32
  %v4746 = vpop.permute.xlu0 %4745
  %v4748 = vadd.f32 %v4740, %v4746
  %v4749 = vadd.f32 %v4741, %v4746
  %v4750 = vadd.f32 %v4742, %v4746
  %v4751 = vadd.f32 %v4743, %v4746
  %v4752 = vadd.f32 %v4744, %v4746
  %v4753 = vperm.slane %v2563, 2
  %v4755 = vsel %vm86, %v4748, 0
  %v4758 = vsel %vm86, %v4749, 0
  %v4761 = vsel %vm86, %v4750, 0
  %v4764 = vsel %vm86, %v4751, 0
  %v4767 = vsel %vm86, %v4752, 0
  %4769 = vmatpush.msra.mxu0 0.0
  %4770 = vmatpush.msra.mxu0 0.0
  %4771 = vmatpush.msra.mxu0 0.0
  %4772 = vmatpush.msra.mxu0 0.0
  %4773 = vmatpush.msra.mxu0 0.0
  %4774 = vmatpush.msra.mxu0 0.0
  %4775 = vmatpush.msra.mxu0 0.0
  %4776 = vmatpush.msra.mxu0 0.0
  %4777 = vmatpush.msra.mxu0 0.0
  %4778 = vmatpush.msra.mxu0 0.0
  %4779 = vmatpush.msra.mxu0 0.0
  %4780 = vmatpush.msra.mxu0 0.0
  %4781 = vmatpush.msra.mxu0 %v2562
  %4782 = vmatpush.msra.mxu0 %v2561
  %4783 = vmatpush.msra.mxu0 %v2560
  %4784 = vmatpush.msra.mxu0 %v2559
  %4785 = vmatmul.f32.gmra.mxu0 %v4755
  %v4786 = vpop.f32.mrf.mxu0
  %v4787 = vadd.f32 %v4753, %v4786
  %4788 = vmatmul.f32.gmra.mxu0 %v4758
  %v4789 = vpop.f32.mrf.mxu0
  %v4790 = vadd.f32 %v4753, %v4789
  %4791 = vmatmul.f32.gmra.mxu0 %v4761
  %v4792 = vpop.f32.mrf.mxu0
  %v4793 = vadd.f32 %v4753, %v4792
  %4794 = vmatmul.f32.gmra.mxu0 %v4764
  %v4795 = vpop.f32.mrf.mxu0
  %v4796 = vadd.f32 %v4753, %v4795
  %4797 = vmatmul.f32.gmra.mxu0 %v4767
  %v4798 = vpop.f32.mrf.mxu0
  %v4799 = vadd.f32 %v4753, %v4798
  %4800 = vdwg.mxu0
  %v4801 = vmax.f32 %v4787, 0.0
  %v4802 = vmax.f32 %v4790, 0.0
  %v4803 = vmax.f32 %v4793, 0.0
  %v4804 = vmax.f32 %v4796, 0.0
  %v4805 = vmax.f32 %v4799, 0.0
  %4810 = vrot.lane.b32.xlu0 %v2559, 64
  %v4811 = vpop.permute.xlu0 %4810
  %4812 = vrot.lane.b32.xlu0 %v2560, 64
  %v4813 = vpop.permute.xlu0 %4812
  %4814 = vrot.lane.b32.xlu0 %v2561, 64
  %v4815 = vpop.permute.xlu0 %4814
  %4816 = vrot.lane.b32.xlu0 %v2562, 64
  %v4817 = vpop.permute.xlu0 %4816
  %4819 = vrot.lane.b32.xlu0 %v4753, 64
  %v4820 = vpop.permute.xlu0 %4819
  %v4823 = vsel %vm2365, %v4801, 0
  %v4826 = vsel %vm2365, %v4802, 0
  %v4829 = vsel %vm2365, %v4803, 0
  %v4832 = vsel %vm2365, %v4804, 0
  %v4835 = vsel %vm2365, %v4805, 0
  %v4837 = vsel %vm2365, %v4811, 0
  %v4839 = vsel %vm2365, %v4813, 0
  %v4841 = vsel %vm2365, %v4815, 0
  %v4843 = vsel %vm2365, %v4817, 0
  %4845 = vmatpush.xpose.msra.mxu0 0.0
  %4846 = vmatpush.xpose.msra.mxu0 0.0
  %4847 = vmatpush.xpose.msra.mxu0 0.0
  %4848 = vmatpush.xpose.msra.mxu0 0.0
  %4849 = vmatpush.xpose.msra.mxu0 0.0
  %4850 = vmatpush.xpose.msra.mxu0 0.0
  %4851 = vmatpush.xpose.msra.mxu0 0.0
  %4852 = vmatpush.xpose.msra.mxu0 0.0
  %4853 = vmatpush.xpose.msra.mxu0 0.0
  %4854 = vmatpush.xpose.msra.mxu0 0.0
  %4855 = vmatpush.xpose.msra.mxu0 0.0
  %4856 = vmatpush.xpose.msra.mxu0 0.0
  %4857 = vmatpush.xpose.msra.mxu0 %v4843
  %4858 = vmatpush.xpose.msra.mxu0 %v4841
  %4859 = vmatpush.xpose.msra.mxu0 %v4839
  %4860 = vmatpush.xpose.msra.mxu0 %v4837
  %4861 = vmatmul.f32.gmra.mxu0 %v4823
  %v4862 = vpop.f32.mrf.mxu0
  %v4863 = vadd.f32 %v4820, %v4862
  %4864 = vmatmul.f32.gmra.mxu0 %v4826
  %v4865 = vpop.f32.mrf.mxu0
  %v4866 = vadd.f32 %v4820, %v4865
  %4867 = vmatmul.f32.gmra.mxu0 %v4829
  %v4868 = vpop.f32.mrf.mxu0
  %v4869 = vadd.f32 %v4820, %v4868
  %4870 = vmatmul.f32.gmra.mxu0 %v4832
  %v4871 = vpop.f32.mrf.mxu0
  %v4872 = vadd.f32 %v4820, %v4871
  %4873 = vmatmul.f32.gmra.mxu0 %v4835
  %v4874 = vpop.f32.mrf.mxu0
  %v4875 = vadd.f32 %v4820, %v4874
  %4876 = vdwg.mxu0
  %v4877 = vadd.f32 %v4748, %v4863
  %v4878 = vadd.f32 %v4749, %v4866
  %v4879 = vadd.f32 %v4750, %v4869
  %v4880 = vadd.f32 %v4751, %v4872
  %v4881 = vadd.f32 %v4752, %v4875
  %v4882 = vsel %vm86, %v4877, 0.0
  %4883 = vadd.xlane.f32.xlu0 %v4882
  %v4884 = vpop.xlane.xlu0 %4883
  %v4885 = vsel %vm86, %v4878, 0.0
  %4886 = vadd.xlane.f32.xlu0 %v4885
  %v4887 = vpop.xlane.xlu0 %4886
  %v4888 = vsel %vm86, %v4879, 0.0
  %4889 = vadd.xlane.f32.xlu0 %v4888
  %v4890 = vpop.xlane.xlu0 %4889
  %v4891 = vsel %vm86, %v4880, 0.0
  %4892 = vadd.xlane.f32.xlu0 %v4891
  %v4893 = vpop.xlane.xlu0 %4892
  %v4894 = vsel %vm1099, %v4881, 0.0
  %4895 = vadd.xlane.f32.xlu0 %v4894
  %v4896 = vpop.xlane.xlu0 %4895
  %v4897 = vmul.f32 %v4884, %v1109
  %v4898 = vmul.f32 %v4887, %v1109
  %v4899 = vmul.f32 %v4890, %v1109
  %v4900 = vmul.f32 %v4893, %v1109
  %v4901 = vmul.f32 %v4896, %v1109
  %v4902 = vsub.f32 %v4877, %v4897
  %v4903 = vsub.f32 %v4878, %v4898
  %v4904 = vsub.f32 %v4879, %v4899
  %v4905 = vsub.f32 %v4880, %v4900
  %v4906 = vsub.f32 %v4881, %v4901
  %v4907 = vmul.f32 %v4902, %v4902
  %v4908 = vmul.f32 %v4903, %v4903
  %v4909 = vmul.f32 %v4904, %v4904
  %v4910 = vmul.f32 %v4905, %v4905
  %v4911 = vmul.f32 %v4906, %v4906
  %v4912 = vsel %vm86, %v4907, 0.0
  %4913 = vadd.xlane.f32.xlu0 %v4912
  %v4914 = vpop.xlane.xlu0 %4913
  %v4915 = vsel %vm86, %v4908, 0.0
  %4916 = vadd.xlane.f32.xlu0 %v4915
  %v4917 = vpop.xlane.xlu0 %4916
  %v4918 = vsel %vm86, %v4909, 0.0
  %4919 = vadd.xlane.f32.xlu0 %v4918
  %v4920 = vpop.xlane.xlu0 %4919
  %v4921 = vsel %vm86, %v4910, 0.0
  %4922 = vadd.xlane.f32.xlu0 %v4921
  %v4923 = vpop.xlane.xlu0 %4922
  %v4924 = vsel %vm1099, %v4911, 0.0
  %4925 = vadd.xlane.f32.xlu0 %v4924
  %v4926 = vpop.xlane.xlu0 %4925
  %v4927 = vmul.f32 %v4914, %v1109
  %v4928 = vmul.f32 %v4917, %v1109
  %v4929 = vmul.f32 %v4920, %v1109
  %v4930 = vmul.f32 %v4923, %v1109
  %v4931 = vmul.f32 %v4926, %v1109
  %v4932 = vadd.f32 %v4927, 1e-05
  %v4933 = vadd.f32 %v4928, 1e-05
  %v4934 = vadd.f32 %v4929, 1e-05
  %v4935 = vadd.f32 %v4930, 1e-05
  %v4936 = vadd.f32 %v4931, 1e-05
  %v4937 = vrsqrt.pop %v4932
  %v4938 = vmul.f32 %v4937, %v4932
  %v4939 = vmul.f32 %v4938, %v4937
  %v4940 = vmul.f32 0.5, %v4939
  %v4941 = vsub.f32 1.5, %v4940
  %v4942 = vmul.f32 %v4937, %v4941
  %vm4943 = vweird.f32 %v4932
  %vm4944 = vweird.f32 %v4937
  %vm4945 = vmor %vm4943, %vm4944
  %v4946 = vsel %vm4945, %v4937, %v4942
  %v4947 = vrsqrt.pop %v4933
  %v4948 = vmul.f32 %v4947, %v4933
  %v4949 = vmul.f32 %v4948, %v4947
  %v4950 = vmul.f32 0.5, %v4949
  %v4951 = vsub.f32 1.5, %v4950
  %v4952 = vmul.f32 %v4947, %v4951
  %vm4953 = vweird.f32 %v4933
  %vm4954 = vweird.f32 %v4947
  %vm4955 = vmor %vm4953, %vm4954
  %v4956 = vsel %vm4955, %v4947, %v4952
  %v4957 = vrsqrt.pop %v4934
  %v4958 = vmul.f32 %v4957, %v4934
  %v4959 = vmul.f32 %v4958, %v4957
  %v4960 = vmul.f32 0.5, %v4959
  %v4961 = vsub.f32 1.5, %v4960
  %v4962 = vmul.f32 %v4957, %v4961
  %vm4963 = vweird.f32 %v4934
  %vm4964 = vweird.f32 %v4957
  %vm4965 = vmor %vm4963, %vm4964
  %v4966 = vsel %vm4965, %v4957, %v4962
  %v4967 = vrsqrt.pop %v4935
  %v4968 = vmul.f32 %v4967, %v4935
  %v4969 = vmul.f32 %v4968, %v4967
  %v4970 = vmul.f32 0.5, %v4969
  %v4971 = vsub.f32 1.5, %v4970
  %v4972 = vmul.f32 %v4967, %v4971
  %vm4973 = vweird.f32 %v4935
  %vm4974 = vweird.f32 %v4967
  %vm4975 = vmor %vm4973, %vm4974
  %v4976 = vsel %vm4975, %v4967, %v4972
  %v4977 = vrsqrt.pop %v4936
  %v4978 = vmul.f32 %v4977, %v4936
  %v4979 = vmul.f32 %v4978, %v4977
  %v4980 = vmul.f32 0.5, %v4979
  %v4981 = vsub.f32 1.5, %v4980
  %v4982 = vmul.f32 %v4977, %v4981
  %vm4983 = vweird.f32 %v4936
  %vm4984 = vweird.f32 %v4977
  %vm4985 = vmor %vm4983, %vm4984
  %v4986 = vsel %vm4985, %v4977, %v4982
  %v4987 = vmul.f32 %v4902, %v4946
  %v4988 = vmul.f32 %v4903, %v4956
  %v4989 = vmul.f32 %v4904, %v4966
  %v4990 = vmul.f32 %v4905, %v4976
  %v4991 = vmul.f32 %v4906, %v4986
  %v4992 = vperm.slane %v2563, 4
  %v4993 = vmul.f32 %v4987, %v4992
  %v4994 = vmul.f32 %v4988, %v4992
  %v4995 = vmul.f32 %v4989, %v4992
  %v4996 = vmul.f32 %v4990, %v4992
  %v4997 = vmul.f32 %v4991, %v4992
  %4999 = vrot.lane.b32.xlu0 %v4992, 96
  %v5000 = vpop.permute.xlu0 %4999
  %v5002 = vadd.f32 %v4993, %v5000
  %v5003 = vadd.f32 %v4994, %v5000
  %v5004 = vadd.f32 %v4995, %v5000
  %v5005 = vadd.f32 %v4996, %v5000
  %v5006 = vadd.f32 %v4997, %v5000
  %v5008 = vrot.slane %v5002, 1
  %5009 = vrot.lane.b32.xlu0 %v5008, 32
  %v5010 = vpop.permute.xlu0 %5009
  %v5012 = vrot.slane %v5002, 2
  %5013 = vrot.lane.b32.xlu0 %v5012, 64
  %v5014 = vpop.permute.xlu0 %5013
  %v5016 = vrot.slane %v5002, 3
  %5017 = vrot.lane.b32.xlu0 %v5016, 96
  %v5018 = vpop.permute.xlu0 %5017
  %v5020 = vrot.slane %v5002, 4
  %v5022 = vrot.slane %v5002, 5
  %5023 = vrot.lane.b32.xlu0 %v5022, 32
  %v5024 = vpop.permute.xlu0 %5023
  %v5026 = vrot.slane %v5002, 6
  %5027 = vrot.lane.b32.xlu0 %v5026, 64
  %v5028 = vpop.permute.xlu0 %5027
  %v5031 = vrot.slane %v5003, 7
  %5032 = vrot.lane.b32.xlu0 %v5031, 96
  %v5033 = vpop.permute.xlu0 %5032
  %v5035 = vrot.slane %v5003, 1
  %5036 = vrot.lane.b32.xlu0 %v5035, 32
  %v5037 = vpop.permute.xlu0 %5036
  %v5039 = vrot.slane %v5003, 2
  %5040 = vrot.lane.b32.xlu0 %v5039, 64
  %v5041 = vpop.permute.xlu0 %5040
  %v5043 = vrot.slane %v5003, 3
  %5044 = vrot.lane.b32.xlu0 %v5043, 96
  %v5045 = vpop.permute.xlu0 %5044
  %v5047 = vrot.slane %v5003, 4
  %v5049 = vrot.slane %v5003, 5
  %5050 = vrot.lane.b32.xlu0 %v5049, 32
  %v5051 = vpop.permute.xlu0 %5050
  %v5053 = vrot.slane %v5003, 6
  %5054 = vrot.lane.b32.xlu0 %v5053, 64
  %v5055 = vpop.permute.xlu0 %5054
  %v5058 = vrot.slane %v5004, 7
  %5059 = vrot.lane.b32.xlu0 %v5058, 96
  %v5060 = vpop.permute.xlu0 %5059
  %v5062 = vsel %vm86, %v5002, %v5010
  %v5063 = vsel %vm2365, %v5062, %v5014
  %vm5064 = vcmask 785408
  %v5065 = vsel %vm5064, %v5063, %v5018
  %v5066 = vsel %vm86, %v5020, %v5024
  %v5067 = vsel %vm2365, %v5066, %v5028
  %v5068 = vsel %vm5064, %v5067, %v5033
  %v5069 = vsel %vm86, %v5003, %v5037
  %v5070 = vsel %vm2365, %v5069, %v5041
  %v5071 = vsel %vm5064, %v5070, %v5045
  %v5072 = vsel %vm86, %v5047, %v5051
  %v5073 = vsel %vm2365, %v5072, %v5055
  %v5074 = vsel %vm5064, %v5073, %v5060
  %v5075 = vrot.slane %v5004, 1
  %5076 = vrot.lane.b32.xlu0 %v5075, 32
  %v5077 = vpop.permute.xlu0 %5076
  %v5079 = vrot.slane %v5004, 2
  %5080 = vrot.lane.b32.xlu0 %v5079, 64
  %v5081 = vpop.permute.xlu0 %5080
  %v5083 = vrot.slane %v5004, 3
  %5084 = vrot.lane.b32.xlu0 %v5083, 96
  %v5085 = vpop.permute.xlu0 %5084
  %v5087 = vrot.slane %v5004, 4
  %v5089 = vrot.slane %v5004, 5
  %5090 = vrot.lane.b32.xlu0 %v5089, 32
  %v5091 = vpop.permute.xlu0 %5090
  %v5094 = vrot.slane %v5005, 6
  %5095 = vrot.lane.b32.xlu0 %v5094, 64
  %v5096 = vpop.permute.xlu0 %5095
  %v5098 = vrot.slane %v5005, 7
  %5099 = vrot.lane.b32.xlu0 %v5098, 96
  %v5100 = vpop.permute.xlu0 %5099
  %v5102 = vrot.slane %v5005, 1
  %5103 = vrot.lane.b32.xlu0 %v5102, 32
  %v5104 = vpop.permute.xlu0 %5103
  %v5106 = vrot.slane %v5005, 2
  %5107 = vrot.lane.b32.xlu0 %v5106, 64
  %v5108 = vpop.permute.xlu0 %5107
  %v5110 = vrot.slane %v5005, 3
  %5111 = vrot.lane.b32.xlu0 %v5110, 96
  %v5112 = vpop.permute.xlu0 %5111
  %v5114 = vrot.slane %v5005, 4
  %v5116 = vrot.slane %v5005, 5
  %5117 = vrot.lane.b32.xlu0 %v5116, 32
  %v5118 = vpop.permute.xlu0 %5117
  %v5121 = vrot.slane %v5006, 6
  %5122 = vrot.lane.b32.xlu0 %v5121, 64
  %v5123 = vpop.permute.xlu0 %5122
  %v5125 = vrot.slane %v5006, 7
  %5126 = vrot.lane.b32.xlu0 %v5125, 96
  %v5127 = vpop.permute.xlu0 %5126
  %v5129 = vsel %vm86, %v5004, %v5077
  %v5130 = vsel %vm2365, %v5129, %v5081
  %v5131 = vsel %vm5064, %v5130, %v5085
  %v5132 = vsel %vm86, %v5087, %v5091
  %v5133 = vsel %vm2365, %v5132, %v5096
  %v5134 = vsel %vm5064, %v5133, %v5100
  %v5135 = vsel %vm86, %v5005, %v5104
  %v5136 = vsel %vm2365, %v5135, %v5108
  %v5137 = vsel %vm5064, %v5136, %v5112
  %v5138 = vsel %vm86, %v5114, %v5118
  %v5139 = vsel %vm2365, %v5138, %v5123
  %v5140 = vsel %vm5064, %v5139, %v5127
  %v5145 = vrot.slane %v5065, 1
  %v5146 = vrot.slane %v5068, 1
  %v5147 = vrot.slane %v5071, 1
  %v5148 = vrot.slane %v5074, 1
  %v5157 = vrot.slane %v5131, 1
  %v5158 = vrot.slane %v5134, 1
  %v5159 = vrot.slane %v5137, 1
  %v5160 = vrot.slane %v5140, 1
  %vm5165 = vcmask 1040384
  %v5166 = vsel %vm5165, %v5145, %v5157
  %v5167 = vsel %vm5165, %v5146, %v5158
  %v5168 = vsel %vm5165, %v5147, %v5159
  %v5169 = vsel %vm5165, %v5148, %v5160
  %v5170 = vpack.c.bf16 %v5166, %v5166
  %v5171 = vpack.c.bf16 %v5167, %v5167
  %v5172 = vpack.c.bf16 %v5168, %v5168
  %v5173 = vpack.c.bf16 %v5169, %v5169
  %s5174 = smul.u32 4, 64
  %s5175 = smul.u32 %s5174, 8
  %s5176 = sshll.u32 %s5175, 4
  %5177 = dma.done [#allocation4], %s5176
  %v5178 = vld [vmem:[#allocation2] sm:$0xff]
  %v5179 = vld [vmem:[#allocation2 + $0x8] sm:$0xff]
  %v5180 = vld [vmem:[#allocation2 + $0x10] sm:$0xff]
  %v5181 = vld [vmem:[#allocation2 + $0x18] sm:$0xff]
  %v5182 = vld [vmem:[#allocation2 + $0x20] sm:$0xff]
  %v5183 = vld [vmem:[#allocation2 + $0x28] sm:$0xff]
  %v5184 = vld [vmem:[#allocation2 + $0x30] sm:$0xff]
  %v5185 = vld [vmem:[#allocation2 + $0x38] sm:$0xff]
  %v5186 = vld [vmem:[#allocation2 + $0x40] sm:$0xff]
  %v5187 = vld [vmem:[#allocation2 + $0x48] sm:$0xff]
  %v5188 = vld [vmem:[#allocation2 + $0x50] sm:$0xff]
  %v5189 = vld [vmem:[#allocation2 + $0x58] sm:$0xff]
  %v5190 = vld [vmem:[#allocation2 + $0x60] sm:$0xff]
  %v5191 = vld [vmem:[#allocation2 + $0x68] sm:$0xff]
  %v5192 = vld [vmem:[#allocation2 + $0x70] sm:$0xff]
  %v5193 = vld [vmem:[#allocation2 + $0x78] sm:$0xff]
  %v5194 = vld [vmem:[#allocation2 + $0x80] sm:$0xff]
  %v5195 = vld [vmem:[#allocation2 + $0x88] sm:$0xff]
  %v5196 = vld [vmem:[#allocation2 + $0x90] sm:$0xff]
  %v5197 = vld [vmem:[#allocation2 + $0x98] sm:$0xff]
  %v5198 = vld [vmem:[#allocation2 + $0xa0] sm:$0xff]
  %v5199 = vld [vmem:[#allocation2 + $0xa8] sm:$0xff]
  %v5200 = vld [vmem:[#allocation2 + $0xb0] sm:$0xff]
  %v5201 = vld [vmem:[#allocation2 + $0xb8] sm:$0xff]
  %v5202 = vld [vmem:[#allocation2 + $0xc0] sm:$0xff]
  %v5203 = vld [vmem:[#allocation2 + $0xc8] sm:$0xff]
  %v5204 = vld [vmem:[#allocation2 + $0xd0] sm:$0xff]
  %v5205 = vld [vmem:[#allocation2 + $0xd8] sm:$0xff]
  %v5206 = vld [vmem:[#allocation2 + $0xe0] sm:$0xff]
  %v5207 = vld [vmem:[#allocation2 + $0xe8] sm:$0xff]
  %v5208 = vld [vmem:[#allocation2 + $0xf0] sm:$0xff]
  %v5209 = vld [vmem:[#allocation2 + $0xf8] sm:$0xff]
  %v5210 = vld [vmem:[#allocation2 + $0x100] sm:$0xff]
  %v5211 = vld [vmem:[#allocation2 + $0x108] sm:$0xff]
  %v5212 = vld [vmem:[#allocation2 + $0x110] sm:$0xff]
  %v5213 = vld [vmem:[#allocation2 + $0x118] sm:$0xff]
  %v5214 = vld [vmem:[#allocation2 + $0x120] sm:$0xff]
  %v5215 = vld [vmem:[#allocation2 + $0x128] sm:$0xff]
  %v5216 = vld [vmem:[#allocation2 + $0x130] sm:$0xff]
  %v5217 = vld [vmem:[#allocation2 + $0x138] sm:$0xff]
  %v5218 = vld [vmem:[#allocation2 + $0x140] sm:$0xff]
  %v5219 = vld [vmem:[#allocation2 + $0x148] sm:$0xff]
  %v5220 = vld [vmem:[#allocation2 + $0x150] sm:$0xff]
  %v5221 = vld [vmem:[#allocation2 + $0x158] sm:$0xff]
  %v5222 = vld [vmem:[#allocation2 + $0x160] sm:$0xff]
  %v5223 = vld [vmem:[#allocation2 + $0x168] sm:$0xff]
  %v5224 = vld [vmem:[#allocation2 + $0x170] sm:$0xff]
  %v5225 = vld [vmem:[#allocation2 + $0x178] sm:$0xff]
  %v5226 = vld [vmem:[#allocation2 + $0x180] sm:$0xff]
  %v5227 = vld [vmem:[#allocation2 + $0x188] sm:$0xff]
  %v5228 = vld [vmem:[#allocation2 + $0x190] sm:$0xff]
  %v5229 = vld [vmem:[#allocation2 + $0x198] sm:$0xff]
  %v5230 = vld [vmem:[#allocation2 + $0x1a0] sm:$0xff]
  %v5231 = vld [vmem:[#allocation2 + $0x1a8] sm:$0xff]
  %v5232 = vld [vmem:[#allocation2 + $0x1b0] sm:$0xff]
  %v5233 = vld [vmem:[#allocation2 + $0x1b8] sm:$0xff]
  %v5234 = vld [vmem:[#allocation2 + $0x1c0] sm:$0xff]
  %v5235 = vld [vmem:[#allocation2 + $0x1c8] sm:$0xff]
  %v5236 = vld [vmem:[#allocation2 + $0x1d0] sm:$0xff]
  %v5237 = vld [vmem:[#allocation2 + $0x1d8] sm:$0xff]
  %v5238 = vld [vmem:[#allocation2 + $0x1e0] sm:$0xff]
  %v5239 = vld [vmem:[#allocation2 + $0x1e8] sm:$0xff]
  %v5240 = vld [vmem:[#allocation2 + $0x1f0] sm:$0xff]
  %v5241 = vld [vmem:[#allocation2 + $0x1f8] sm:$0xff]
  %v5242 = vld [vmem:[#allocation2 + $0x200] sm:$0xff]
  %v5243 = vld [vmem:[#allocation2 + $0x208] sm:$0xff]
  %v5244 = vld [vmem:[#allocation2 + $0x210] sm:$0xff]
  %v5245 = vld [vmem:[#allocation2 + $0x218] sm:$0xff]
  %v5246 = vld [vmem:[#allocation2 + $0x220] sm:$0xff]
  %v5247 = vld [vmem:[#allocation2 + $0x228] sm:$0xff]
  %v5248 = vld [vmem:[#allocation2 + $0x230] sm:$0xff]
  %v5249 = vld [vmem:[#allocation2 + $0x238] sm:$0xff]
  %v5250 = vld [vmem:[#allocation2 + $0x240] sm:$0xff]
  %v5251 = vld [vmem:[#allocation2 + $0x248] sm:$0xff]
  %v5252 = vld [vmem:[#allocation2 + $0x250] sm:$0xff]
  %v5253 = vld [vmem:[#allocation2 + $0x258] sm:$0xff]
  %v5254 = vld [vmem:[#allocation2 + $0x260] sm:$0xff]
  %v5255 = vld [vmem:[#allocation2 + $0x268] sm:$0xff]
  %v5256 = vld [vmem:[#allocation2 + $0x270] sm:$0xff]
  %v5257 = vld [vmem:[#allocation2 + $0x278] sm:$0xff]
  %v5258 = vld [vmem:[#allocation2 + $0x280] sm:$0xff]
  %v5259 = vld [vmem:[#allocation2 + $0x288] sm:$0xff]
  %v5260 = vld [vmem:[#allocation2 + $0x290] sm:$0xff]
  %v5261 = vld [vmem:[#allocation2 + $0x298] sm:$0xff]
  %v5262 = vld [vmem:[#allocation2 + $0x2a0] sm:$0xff]
  %v5263 = vld [vmem:[#allocation2 + $0x2a8] sm:$0xff]
  %v5264 = vld [vmem:[#allocation2 + $0x2b0] sm:$0xff]
  %v5265 = vld [vmem:[#allocation2 + $0x2b8] sm:$0xff]
  %v5266 = vld [vmem:[#allocation2 + $0x2c0] sm:$0xff]
  %v5267 = vld [vmem:[#allocation2 + $0x2c8] sm:$0xff]
  %v5268 = vld [vmem:[#allocation2 + $0x2d0] sm:$0xff]
  %v5269 = vld [vmem:[#allocation2 + $0x2d8] sm:$0xff]
  %v5270 = vld [vmem:[#allocation2 + $0x2e0] sm:$0xff]
  %v5271 = vld [vmem:[#allocation2 + $0x2e8] sm:$0xff]
  %v5272 = vld [vmem:[#allocation2 + $0x2f0] sm:$0xff]
  %v5273 = vld [vmem:[#allocation2 + $0x2f8] sm:$0xff]
  %v5274 = vld [vmem:[#allocation2 + $0x300] sm:$0xff]
  %v5275 = vld [vmem:[#allocation2 + $0x308] sm:$0xff]
  %v5276 = vld [vmem:[#allocation2 + $0x310] sm:$0xff]
  %v5277 = vld [vmem:[#allocation2 + $0x318] sm:$0xff]
  %v5278 = vld [vmem:[#allocation2 + $0x320] sm:$0xff]
  %v5279 = vld [vmem:[#allocation2 + $0x328] sm:$0xff]
  %v5280 = vld [vmem:[#allocation2 + $0x330] sm:$0xff]
  %v5281 = vld [vmem:[#allocation2 + $0x338] sm:$0xff]
  %v5282 = vld [vmem:[#allocation2 + $0x340] sm:$0xff]
  %v5283 = vld [vmem:[#allocation2 + $0x348] sm:$0xff]
  %v5284 = vld [vmem:[#allocation2 + $0x350] sm:$0xff]
  %v5285 = vld [vmem:[#allocation2 + $0x358] sm:$0xff]
  %v5286 = vld [vmem:[#allocation2 + $0x360] sm:$0xff]
  %v5287 = vld [vmem:[#allocation2 + $0x368] sm:$0xff]
  %v5288 = vld [vmem:[#allocation2 + $0x370] sm:$0xff]
  %v5289 = vld [vmem:[#allocation2 + $0x378] sm:$0xff]
  %v5290 = vld [vmem:[#allocation2 + $0x380] sm:$0xff]
  %v5291 = vld [vmem:[#allocation2 + $0x388] sm:$0xff]
  %v5292 = vld [vmem:[#allocation2 + $0x390] sm:$0xff]
  %v5293 = vld [vmem:[#allocation2 + $0x398] sm:$0xff]
  %v5294 = vld [vmem:[#allocation2 + $0x3a0] sm:$0xff]
  %v5295 = vld [vmem:[#allocation2 + $0x3a8] sm:$0xff]
  %v5296 = vld [vmem:[#allocation2 + $0x3b0] sm:$0xff]
  %v5297 = vld [vmem:[#allocation2 + $0x3b8] sm:$0xff]
  %v5298 = vld [vmem:[#allocation2 + $0x3c0] sm:$0xff]
  %v5299 = vld [vmem:[#allocation2 + $0x3c8] sm:$0xff]
  %v5300 = vld [vmem:[#allocation2 + $0x3d0] sm:$0xff]
  %v5301 = vld [vmem:[#allocation2 + $0x3d8] sm:$0xff]
  %v5302 = vld [vmem:[#allocation2 + $0x3e0] sm:$0xff]
  %v5303 = vld [vmem:[#allocation2 + $0x3e8] sm:$0xff]
  %v5304 = vld [vmem:[#allocation2 + $0x3f0] sm:$0xff]
  %v5305 = vld [vmem:[#allocation2 + $0x3f8] sm:$0xff]
  %v5306 = vld [vmem:[#allocation2 + $0x400] sm:$0xff]
  %v5307 = vld [vmem:[#allocation2 + $0x408] sm:$0xff]
  %v5308 = vld [vmem:[#allocation2 + $0x410] sm:$0xff]
  %v5309 = vld [vmem:[#allocation2 + $0x418] sm:$0xff]
  %v5310 = vld [vmem:[#allocation2 + $0x420] sm:$0xff]
  %v5311 = vld [vmem:[#allocation2 + $0x428] sm:$0xff]
  %v5312 = vld [vmem:[#allocation2 + $0x430] sm:$0xff]
  %v5313 = vld [vmem:[#allocation2 + $0x438] sm:$0xff]
  %v5314 = vld [vmem:[#allocation2 + $0x440] sm:$0xff]
  %v5315 = vld [vmem:[#allocation2 + $0x448] sm:$0xff]
  %v5316 = vld [vmem:[#allocation2 + $0x450] sm:$0xff]
  %v5317 = vld [vmem:[#allocation2 + $0x458] sm:$0xff]
  %v5318 = vld [vmem:[#allocation2 + $0x460] sm:$0xff]
  %v5319 = vld [vmem:[#allocation2 + $0x468] sm:$0xff]
  %v5320 = vld [vmem:[#allocation2 + $0x470] sm:$0xff]
  %v5321 = vld [vmem:[#allocation2 + $0x478] sm:$0xff]
  %v5322 = vld [vmem:[#allocation2 + $0x480] sm:$0xff]
  %v5323 = vld [vmem:[#allocation2 + $0x488] sm:$0xff]
  %v5324 = vld [vmem:[#allocation2 + $0x490] sm:$0xff]
  %v5325 = vld [vmem:[#allocation2 + $0x498] sm:$0xff]
  %v5326 = vld [vmem:[#allocation2 + $0x4a0] sm:$0xff]
  %v5327 = vld [vmem:[#allocation2 + $0x4a8] sm:$0xff]
  %v5328 = vld [vmem:[#allocation2 + $0x4b0] sm:$0xff]
  %v5329 = vld [vmem:[#allocation2 + $0x4b8] sm:$0xff]
  %v5330 = vld [vmem:[#allocation2 + $0x4c0] sm:$0xff]
  %v5331 = vld [vmem:[#allocation2 + $0x4c8] sm:$0xff]
  %v5332 = vld [vmem:[#allocation2 + $0x4d0] sm:$0xff]
  %v5333 = vld [vmem:[#allocation2 + $0x4d8] sm:$0xff]
  %v5334 = vld [vmem:[#allocation2 + $0x4e0] sm:$0xff]
  %v5335 = vld [vmem:[#allocation2 + $0x4e8] sm:$0xff]
  %v5336 = vld [vmem:[#allocation2 + $0x4f0] sm:$0xff]
  %v5337 = vld [vmem:[#allocation2 + $0x4f8] sm:$0xff]
  %v5338 = vld [vmem:[#allocation2 + $0x500] sm:$0xff]
  %v5339 = vld [vmem:[#allocation2 + $0x508] sm:$0xff]
  %v5340 = vld [vmem:[#allocation2 + $0x510] sm:$0xff]
  %v5341 = vld [vmem:[#allocation2 + $0x518] sm:$0xff]
  %v5342 = vld [vmem:[#allocation2 + $0x520] sm:$0xff]
  %v5343 = vld [vmem:[#allocation2 + $0x528] sm:$0xff]
  %v5344 = vld [vmem:[#allocation2 + $0x530] sm:$0xff]
  %v5345 = vld [vmem:[#allocation2 + $0x538] sm:$0xff]
  %v5346 = vld [vmem:[#allocation2 + $0x540] sm:$0xff]
  %v5347 = vld [vmem:[#allocation2 + $0x548] sm:$0xff]
  %v5348 = vld [vmem:[#allocation2 + $0x550] sm:$0xff]
  %v5349 = vld [vmem:[#allocation2 + $0x558] sm:$0xff]
  %v5350 = vld [vmem:[#allocation2 + $0x560] sm:$0xff]
  %v5351 = vld [vmem:[#allocation2 + $0x568] sm:$0xff]
  %v5352 = vld [vmem:[#allocation2 + $0x570] sm:$0xff]
  %v5353 = vld [vmem:[#allocation2 + $0x578] sm:$0xff]
  %v5354 = vld [vmem:[#allocation2 + $0x580] sm:$0xff]
  %v5355 = vld [vmem:[#allocation2 + $0x588] sm:$0xff]
  %v5356 = vld [vmem:[#allocation2 + $0x590] sm:$0xff]
  %v5357 = vld [vmem:[#allocation2 + $0x598] sm:$0xff]
  %v5358 = vld [vmem:[#allocation2 + $0x5a0] sm:$0xff]
  %v5359 = vld [vmem:[#allocation2 + $0x5a8] sm:$0xff]
  %v5360 = vld [vmem:[#allocation2 + $0x5b0] sm:$0xff]
  %v5361 = vld [vmem:[#allocation2 + $0x5b8] sm:$0xff]
  %v5362 = vld [vmem:[#allocation2 + $0x5c0] sm:$0xff]
  %v5363 = vld [vmem:[#allocation2 + $0x5c8] sm:$0xff]
  %v5364 = vld [vmem:[#allocation2 + $0x5d0] sm:$0xff]
  %v5365 = vld [vmem:[#allocation2 + $0x5d8] sm:$0xff]
  %v5366 = vld [vmem:[#allocation2 + $0x5e0] sm:$0xff]
  %v5367 = vld [vmem:[#allocation2 + $0x5e8] sm:$0xff]
  %v5368 = vld [vmem:[#allocation2 + $0x5f0] sm:$0xff]
  %v5369 = vld [vmem:[#allocation2 + $0x5f8] sm:$0xff]
  %v5370 = vld [vmem:[#allocation2 + $0x600] sm:$0xff]
  %v5371 = vld [vmem:[#allocation2 + $0x608] sm:$0xff]
  %v5372 = vld [vmem:[#allocation2 + $0x610] sm:$0xff]
  %v5373 = vld [vmem:[#allocation2 + $0x618] sm:$0xff]
  %v5374 = vld [vmem:[#allocation2 + $0x620] sm:$0xff]
  %v5375 = vld [vmem:[#allocation2 + $0x628] sm:$0xff]
  %v5376 = vld [vmem:[#allocation2 + $0x630] sm:$0xff]
  %v5377 = vld [vmem:[#allocation2 + $0x638] sm:$0xff]
  %v5378 = vld [vmem:[#allocation2 + $0x640] sm:$0xff]
  %v5379 = vld [vmem:[#allocation2 + $0x648] sm:$0xff]
  %v5380 = vld [vmem:[#allocation2 + $0x650] sm:$0xff]
  %v5381 = vld [vmem:[#allocation2 + $0x658] sm:$0xff]
  %v5382 = vld [vmem:[#allocation2 + $0x660] sm:$0xff]
  %v5383 = vld [vmem:[#allocation2 + $0x668] sm:$0xff]
  %v5384 = vld [vmem:[#allocation2 + $0x670] sm:$0xff]
  %v5385 = vld [vmem:[#allocation2 + $0x678] sm:$0xff]
  %v5386 = vld [vmem:[#allocation2 + $0x680] sm:$0xff]
  %v5387 = vld [vmem:[#allocation2 + $0x688] sm:$0xff]
  %v5388 = vld [vmem:[#allocation2 + $0x690] sm:$0xff]
  %v5389 = vld [vmem:[#allocation2 + $0x698] sm:$0xff]
  %v5390 = vld [vmem:[#allocation2 + $0x6a0] sm:$0xff]
  %v5391 = vld [vmem:[#allocation2 + $0x6a8] sm:$0xff]
  %v5392 = vld [vmem:[#allocation2 + $0x6b0] sm:$0xff]
  %v5393 = vld [vmem:[#allocation2 + $0x6b8] sm:$0xff]
  %v5394 = vld [vmem:[#allocation2 + $0x6c0] sm:$0xff]
  %v5395 = vld [vmem:[#allocation2 + $0x6c8] sm:$0xff]
  %v5396 = vld [vmem:[#allocation2 + $0x6d0] sm:$0xff]
  %v5397 = vld [vmem:[#allocation2 + $0x6d8] sm:$0xff]
  %v5398 = vld [vmem:[#allocation2 + $0x6e0] sm:$0xff]
  %v5399 = vld [vmem:[#allocation2 + $0x6e8] sm:$0xff]
  %v5400 = vld [vmem:[#allocation2 + $0x6f0] sm:$0xff]
  %v5401 = vld [vmem:[#allocation2 + $0x6f8] sm:$0xff]
  %v5402 = vld [vmem:[#allocation2 + $0x700] sm:$0xff]
  %v5403 = vld [vmem:[#allocation2 + $0x708] sm:$0xff]
  %v5404 = vld [vmem:[#allocation2 + $0x710] sm:$0xff]
  %v5405 = vld [vmem:[#allocation2 + $0x718] sm:$0xff]
  %v5406 = vld [vmem:[#allocation2 + $0x720] sm:$0xff]
  %v5407 = vld [vmem:[#allocation2 + $0x728] sm:$0xff]
  %v5408 = vld [vmem:[#allocation2 + $0x730] sm:$0xff]
  %v5409 = vld [vmem:[#allocation2 + $0x738] sm:$0xff]
  %v5410 = vld [vmem:[#allocation2 + $0x740] sm:$0xff]
  %v5411 = vld [vmem:[#allocation2 + $0x748] sm:$0xff]
  %v5412 = vld [vmem:[#allocation2 + $0x750] sm:$0xff]
  %v5413 = vld [vmem:[#allocation2 + $0x758] sm:$0xff]
  %v5414 = vld [vmem:[#allocation2 + $0x760] sm:$0xff]
  %v5415 = vld [vmem:[#allocation2 + $0x768] sm:$0xff]
  %v5416 = vld [vmem:[#allocation2 + $0x770] sm:$0xff]
  %v5417 = vld [vmem:[#allocation2 + $0x778] sm:$0xff]
  %v5418 = vld [vmem:[#allocation2 + $0x780] sm:$0xff]
  %v5419 = vld [vmem:[#allocation2 + $0x788] sm:$0xff]
  %v5420 = vld [vmem:[#allocation2 + $0x790] sm:$0xff]
  %v5421 = vld [vmem:[#allocation2 + $0x798] sm:$0xff]
  %v5422 = vld [vmem:[#allocation2 + $0x7a0] sm:$0xff]
  %v5423 = vld [vmem:[#allocation2 + $0x7a8] sm:$0xff]
  %v5424 = vld [vmem:[#allocation2 + $0x7b0] sm:$0xff]
  %v5425 = vld [vmem:[#allocation2 + $0x7b8] sm:$0xff]
  %v5426 = vld [vmem:[#allocation2 + $0x7c0] sm:$0xff]
  %v5427 = vld [vmem:[#allocation2 + $0x7c8] sm:$0xff]
  %v5428 = vld [vmem:[#allocation2 + $0x7d0] sm:$0xff]
  %v5429 = vld [vmem:[#allocation2 + $0x7d8] sm:$0xff]
  %v5430 = vld [vmem:[#allocation2 + $0x7e0] sm:$0xff]
  %v5431 = vld [vmem:[#allocation2 + $0x7e8] sm:$0xff]
  %v5432 = vld [vmem:[#allocation2 + $0x7f0] sm:$0xff]
  %v5433 = vld [vmem:[#allocation2 + $0x7f8] sm:$0xff]
  %v5434 = vld [vmem:[%s5] sm:$0xff]
  %v5436 = vperm.slane %v5434, 0
  %v5437 = vperm.slane %v5434, 1
  %v5438 = vperm.slane %v5434, 2
  %v5439 = vperm.slane %v5434, 3
  %v5440 = vperm.slane %v5434, 4
  %v5441 = vperm.slane %v5434, 5
  %v5442 = vperm.slane %v5434, 6
  %v5443 = vperm.slane %v5434, 7
  %v5708 = vunpack.c.l.b16 %v5178
  %v5709 = vunpack.c.h.b16 %v5178
  %v5710 = vunpack.c.l.b16 %v5179
  %v5711 = vunpack.c.h.b16 %v5179
  %v5712 = vunpack.c.l.b16 %v5180
  %v5713 = vunpack.c.h.b16 %v5180
  %v5714 = vunpack.c.l.b16 %v5181
  %v5715 = vunpack.c.h.b16 %v5181
  %v5716 = vunpack.c.l.b16 %v5182
  %v5717 = vunpack.c.h.b16 %v5182
  %v5718 = vunpack.c.l.b16 %v5183
  %v5719 = vunpack.c.h.b16 %v5183
  %v5720 = vunpack.c.l.b16 %v5184
  %v5721 = vunpack.c.h.b16 %v5184
  %v5722 = vunpack.c.l.b16 %v5185
  %v5723 = vunpack.c.h.b16 %v5185
  %v5724 = vunpack.c.l.b16 %v5186
  %v5725 = vunpack.c.h.b16 %v5186
  %v5726 = vunpack.c.l.b16 %v5187
  %v5727 = vunpack.c.h.b16 %v5187
  %v5728 = vunpack.c.l.b16 %v5188
  %v5729 = vunpack.c.h.b16 %v5188
  %v5730 = vunpack.c.l.b16 %v5189
  %v5731 = vunpack.c.h.b16 %v5189
  %v5732 = vunpack.c.l.b16 %v5190
  %v5733 = vunpack.c.h.b16 %v5190
  %v5734 = vunpack.c.l.b16 %v5191
  %v5735 = vunpack.c.h.b16 %v5191
  %v5736 = vunpack.c.l.b16 %v5192
  %v5737 = vunpack.c.h.b16 %v5192
  %v5738 = vunpack.c.l.b16 %v5193
  %v5739 = vunpack.c.h.b16 %v5193
  %v5740 = vunpack.c.l.b16 %v5194
  %v5741 = vunpack.c.h.b16 %v5194
  %v5742 = vunpack.c.l.b16 %v5195
  %v5743 = vunpack.c.h.b16 %v5195
  %v5744 = vunpack.c.l.b16 %v5196
  %v5745 = vunpack.c.h.b16 %v5196
  %v5746 = vunpack.c.l.b16 %v5197
  %v5747 = vunpack.c.h.b16 %v5197
  %v5748 = vunpack.c.l.b16 %v5198
  %v5749 = vunpack.c.h.b16 %v5198
  %v5750 = vunpack.c.l.b16 %v5199
  %v5751 = vunpack.c.h.b16 %v5199
  %v5752 = vunpack.c.l.b16 %v5200
  %v5753 = vunpack.c.h.b16 %v5200
  %v5754 = vunpack.c.l.b16 %v5201
  %v5755 = vunpack.c.h.b16 %v5201
  %v5756 = vunpack.c.l.b16 %v5202
  %v5757 = vunpack.c.h.b16 %v5202
  %v5758 = vunpack.c.l.b16 %v5203
  %v5759 = vunpack.c.h.b16 %v5203
  %v5760 = vunpack.c.l.b16 %v5204
  %v5761 = vunpack.c.h.b16 %v5204
  %v5762 = vunpack.c.l.b16 %v5205
  %v5763 = vunpack.c.h.b16 %v5205
  %v5764 = vunpack.c.l.b16 %v5206
  %v5765 = vunpack.c.h.b16 %v5206
  %v5766 = vunpack.c.l.b16 %v5207
  %v5767 = vunpack.c.h.b16 %v5207
  %v5768 = vunpack.c.l.b16 %v5208
  %v5769 = vunpack.c.h.b16 %v5208
  %v5770 = vunpack.c.l.b16 %v5209
  %v5771 = vunpack.c.h.b16 %v5209
  %v5772 = vunpack.c.l.b16 %v5210
  %v5773 = vunpack.c.h.b16 %v5210
  %v5774 = vunpack.c.l.b16 %v5211
  %v5775 = vunpack.c.h.b16 %v5211
  %v5776 = vunpack.c.l.b16 %v5212
  %v5777 = vunpack.c.h.b16 %v5212
  %v5778 = vunpack.c.l.b16 %v5213
  %v5779 = vunpack.c.h.b16 %v5213
  %v5780 = vunpack.c.l.b16 %v5214
  %v5781 = vunpack.c.h.b16 %v5214
  %v5782 = vunpack.c.l.b16 %v5215
  %v5783 = vunpack.c.h.b16 %v5215
  %v5784 = vunpack.c.l.b16 %v5216
  %v5785 = vunpack.c.h.b16 %v5216
  %v5786 = vunpack.c.l.b16 %v5217
  %v5787 = vunpack.c.h.b16 %v5217
  %v5788 = vunpack.c.l.b16 %v5218
  %v5789 = vunpack.c.h.b16 %v5218
  %v5790 = vunpack.c.l.b16 %v5219
  %v5791 = vunpack.c.h.b16 %v5219
  %v5792 = vunpack.c.l.b16 %v5220
  %v5793 = vunpack.c.h.b16 %v5220
  %v5794 = vunpack.c.l.b16 %v5221
  %v5795 = vunpack.c.h.b16 %v5221
  %v5796 = vunpack.c.l.b16 %v5222
  %v5797 = vunpack.c.h.b16 %v5222
  %v5798 = vunpack.c.l.b16 %v5223
  %v5799 = vunpack.c.h.b16 %v5223
  %v5800 = vunpack.c.l.b16 %v5224
  %v5801 = vunpack.c.h.b16 %v5224
  %v5802 = vunpack.c.l.b16 %v5225
  %v5803 = vunpack.c.h.b16 %v5225
  %v5804 = vunpack.c.l.b16 %v5226
  %v5805 = vunpack.c.h.b16 %v5226
  %v5806 = vunpack.c.l.b16 %v5227
  %v5807 = vunpack.c.h.b16 %v5227
  %v5808 = vunpack.c.l.b16 %v5228
  %v5809 = vunpack.c.h.b16 %v5228
  %v5810 = vunpack.c.l.b16 %v5229
  %v5811 = vunpack.c.h.b16 %v5229
  %v5812 = vunpack.c.l.b16 %v5230
  %v5813 = vunpack.c.h.b16 %v5230
  %v5814 = vunpack.c.l.b16 %v5231
  %v5815 = vunpack.c.h.b16 %v5231
  %v5816 = vunpack.c.l.b16 %v5232
  %v5817 = vunpack.c.h.b16 %v5232
  %v5818 = vunpack.c.l.b16 %v5233
  %v5819 = vunpack.c.h.b16 %v5233
  %v5820 = vunpack.c.l.b16 %v5234
  %v5821 = vunpack.c.h.b16 %v5234
  %v5822 = vunpack.c.l.b16 %v5235
  %v5823 = vunpack.c.h.b16 %v5235
  %v5824 = vunpack.c.l.b16 %v5236
  %v5825 = vunpack.c.h.b16 %v5236
  %v5826 = vunpack.c.l.b16 %v5237
  %v5827 = vunpack.c.h.b16 %v5237
  %v5828 = vunpack.c.l.b16 %v5238
  %v5829 = vunpack.c.h.b16 %v5238
  %v5830 = vunpack.c.l.b16 %v5239
  %v5831 = vunpack.c.h.b16 %v5239
  %v5832 = vunpack.c.l.b16 %v5240
  %v5833 = vunpack.c.h.b16 %v5240
  %v5834 = vunpack.c.l.b16 %v5241
  %v5835 = vunpack.c.h.b16 %v5241
  %v5836 = vunpack.c.l.b16 %v5242
  %v5837 = vunpack.c.h.b16 %v5242
  %v5838 = vunpack.c.l.b16 %v5243
  %v5839 = vunpack.c.h.b16 %v5243
  %v5840 = vunpack.c.l.b16 %v5244
  %v5841 = vunpack.c.h.b16 %v5244
  %v5842 = vunpack.c.l.b16 %v5245
  %v5843 = vunpack.c.h.b16 %v5245
  %v5844 = vunpack.c.l.b16 %v5246
  %v5845 = vunpack.c.h.b16 %v5246
  %v5846 = vunpack.c.l.b16 %v5247
  %v5847 = vunpack.c.h.b16 %v5247
  %v5848 = vunpack.c.l.b16 %v5248
  %v5849 = vunpack.c.h.b16 %v5248
  %v5850 = vunpack.c.l.b16 %v5249
  %v5851 = vunpack.c.h.b16 %v5249
  %v5852 = vunpack.c.l.b16 %v5250
  %v5853 = vunpack.c.h.b16 %v5250
  %v5854 = vunpack.c.l.b16 %v5251
  %v5855 = vunpack.c.h.b16 %v5251
  %v5856 = vunpack.c.l.b16 %v5252
  %v5857 = vunpack.c.h.b16 %v5252
  %v5858 = vunpack.c.l.b16 %v5253
  %v5859 = vunpack.c.h.b16 %v5253
  %v5860 = vunpack.c.l.b16 %v5254
  %v5861 = vunpack.c.h.b16 %v5254
  %v5862 = vunpack.c.l.b16 %v5255
  %v5863 = vunpack.c.h.b16 %v5255
  %v5864 = vunpack.c.l.b16 %v5256
  %v5865 = vunpack.c.h.b16 %v5256
  %v5866 = vunpack.c.l.b16 %v5257
  %v5867 = vunpack.c.h.b16 %v5257
  %v5868 = vunpack.c.l.b16 %v5258
  %v5869 = vunpack.c.h.b16 %v5258
  %v5870 = vunpack.c.l.b16 %v5259
  %v5871 = vunpack.c.h.b16 %v5259
  %v5872 = vunpack.c.l.b16 %v5260
  %v5873 = vunpack.c.h.b16 %v5260
  %v5874 = vunpack.c.l.b16 %v5261
  %v5875 = vunpack.c.h.b16 %v5261
  %v5876 = vunpack.c.l.b16 %v5262
  %v5877 = vunpack.c.h.b16 %v5262
  %v5878 = vunpack.c.l.b16 %v5263
  %v5879 = vunpack.c.h.b16 %v5263
  %v5880 = vunpack.c.l.b16 %v5264
  %v5881 = vunpack.c.h.b16 %v5264
  %v5882 = vunpack.c.l.b16 %v5265
  %v5883 = vunpack.c.h.b16 %v5265
  %v5884 = vunpack.c.l.b16 %v5266
  %v5885 = vunpack.c.h.b16 %v5266
  %v5886 = vunpack.c.l.b16 %v5267
  %v5887 = vunpack.c.h.b16 %v5267
  %v5888 = vunpack.c.l.b16 %v5268
  %v5889 = vunpack.c.h.b16 %v5268
  %v5890 = vunpack.c.l.b16 %v5269
  %v5891 = vunpack.c.h.b16 %v5269
  %v5892 = vunpack.c.l.b16 %v5270
  %v5893 = vunpack.c.h.b16 %v5270
  %v5894 = vunpack.c.l.b16 %v5271
  %v5895 = vunpack.c.h.b16 %v5271
  %v5896 = vunpack.c.l.b16 %v5272
  %v5897 = vunpack.c.h.b16 %v5272
  %v5898 = vunpack.c.l.b16 %v5273
  %v5899 = vunpack.c.h.b16 %v5273
  %v5900 = vunpack.c.l.b16 %v5274
  %v5901 = vunpack.c.h.b16 %v5274
  %v5902 = vunpack.c.l.b16 %v5275
  %v5903 = vunpack.c.h.b16 %v5275
  %v5904 = vunpack.c.l.b16 %v5276
  %v5905 = vunpack.c.h.b16 %v5276
  %v5906 = vunpack.c.l.b16 %v5277
  %v5907 = vunpack.c.h.b16 %v5277
  %v5908 = vunpack.c.l.b16 %v5278
  %v5909 = vunpack.c.h.b16 %v5278
  %v5910 = vunpack.c.l.b16 %v5279
  %v5911 = vunpack.c.h.b16 %v5279
  %v5912 = vunpack.c.l.b16 %v5280
  %v5913 = vunpack.c.h.b16 %v5280
  %v5914 = vunpack.c.l.b16 %v5281
  %v5915 = vunpack.c.h.b16 %v5281
  %v5916 = vunpack.c.l.b16 %v5282
  %v5917 = vunpack.c.h.b16 %v5282
  %v5918 = vunpack.c.l.b16 %v5283
  %v5919 = vunpack.c.h.b16 %v5283
  %v5920 = vunpack.c.l.b16 %v5284
  %v5921 = vunpack.c.h.b16 %v5284
  %v5922 = vunpack.c.l.b16 %v5285
  %v5923 = vunpack.c.h.b16 %v5285
  %v5924 = vunpack.c.l.b16 %v5286
  %v5925 = vunpack.c.h.b16 %v5286
  %v5926 = vunpack.c.l.b16 %v5287
  %v5927 = vunpack.c.h.b16 %v5287
  %v5928 = vunpack.c.l.b16 %v5288
  %v5929 = vunpack.c.h.b16 %v5288
  %v5930 = vunpack.c.l.b16 %v5289
  %v5931 = vunpack.c.h.b16 %v5289
  %v5932 = vunpack.c.l.b16 %v5290
  %v5933 = vunpack.c.h.b16 %v5290
  %v5934 = vunpack.c.l.b16 %v5291
  %v5935 = vunpack.c.h.b16 %v5291
  %v5936 = vunpack.c.l.b16 %v5292
  %v5937 = vunpack.c.h.b16 %v5292
  %v5938 = vunpack.c.l.b16 %v5293
  %v5939 = vunpack.c.h.b16 %v5293
  %v5940 = vunpack.c.l.b16 %v5294
  %v5941 = vunpack.c.h.b16 %v5294
  %v5942 = vunpack.c.l.b16 %v5295
  %v5943 = vunpack.c.h.b16 %v5295
  %v5944 = vunpack.c.l.b16 %v5296
  %v5945 = vunpack.c.h.b16 %v5296
  %v5946 = vunpack.c.l.b16 %v5297
  %v5947 = vunpack.c.h.b16 %v5297
  %v5948 = vunpack.c.l.b16 %v5298
  %v5949 = vunpack.c.h.b16 %v5298
  %v5950 = vunpack.c.l.b16 %v5299
  %v5951 = vunpack.c.h.b16 %v5299
  %v5952 = vunpack.c.l.b16 %v5300
  %v5953 = vunpack.c.h.b16 %v5300
  %v5954 = vunpack.c.l.b16 %v5301
  %v5955 = vunpack.c.h.b16 %v5301
  %v5956 = vunpack.c.l.b16 %v5302
  %v5957 = vunpack.c.h.b16 %v5302
  %v5958 = vunpack.c.l.b16 %v5303
  %v5959 = vunpack.c.h.b16 %v5303
  %v5960 = vunpack.c.l.b16 %v5304
  %v5961 = vunpack.c.h.b16 %v5304
  %v5962 = vunpack.c.l.b16 %v5305
  %v5963 = vunpack.c.h.b16 %v5305
  %v5964 = vunpack.c.l.b16 %v5306
  %v5965 = vunpack.c.h.b16 %v5306
  %v5966 = vunpack.c.l.b16 %v5307
  %v5967 = vunpack.c.h.b16 %v5307
  %v5968 = vunpack.c.l.b16 %v5308
  %v5969 = vunpack.c.h.b16 %v5308
  %v5970 = vunpack.c.l.b16 %v5309
  %v5971 = vunpack.c.h.b16 %v5309
  %v5972 = vunpack.c.l.b16 %v5310
  %v5973 = vunpack.c.h.b16 %v5310
  %v5974 = vunpack.c.l.b16 %v5311
  %v5975 = vunpack.c.h.b16 %v5311
  %v5976 = vunpack.c.l.b16 %v5312
  %v5977 = vunpack.c.h.b16 %v5312
  %v5978 = vunpack.c.l.b16 %v5313
  %v5979 = vunpack.c.h.b16 %v5313
  %v5980 = vunpack.c.l.b16 %v5314
  %v5981 = vunpack.c.h.b16 %v5314
  %v5982 = vunpack.c.l.b16 %v5315
  %v5983 = vunpack.c.h.b16 %v5315
  %v5984 = vunpack.c.l.b16 %v5316
  %v5985 = vunpack.c.h.b16 %v5316
  %v5986 = vunpack.c.l.b16 %v5317
  %v5987 = vunpack.c.h.b16 %v5317
  %v5988 = vunpack.c.l.b16 %v5318
  %v5989 = vunpack.c.h.b16 %v5318
  %v5990 = vunpack.c.l.b16 %v5319
  %v5991 = vunpack.c.h.b16 %v5319
  %v5992 = vunpack.c.l.b16 %v5320
  %v5993 = vunpack.c.h.b16 %v5320
  %v5994 = vunpack.c.l.b16 %v5321
  %v5995 = vunpack.c.h.b16 %v5321
  %v5996 = vunpack.c.l.b16 %v5322
  %v5997 = vunpack.c.h.b16 %v5322
  %v5998 = vunpack.c.l.b16 %v5323
  %v5999 = vunpack.c.h.b16 %v5323
  %v6000 = vunpack.c.l.b16 %v5324
  %v6001 = vunpack.c.h.b16 %v5324
  %v6002 = vunpack.c.l.b16 %v5325
  %v6003 = vunpack.c.h.b16 %v5325
  %v6004 = vunpack.c.l.b16 %v5326
  %v6005 = vunpack.c.h.b16 %v5326
  %v6006 = vunpack.c.l.b16 %v5327
  %v6007 = vunpack.c.h.b16 %v5327
  %v6008 = vunpack.c.l.b16 %v5328
  %v6009 = vunpack.c.h.b16 %v5328
  %v6010 = vunpack.c.l.b16 %v5329
  %v6011 = vunpack.c.h.b16 %v5329
  %v6012 = vunpack.c.l.b16 %v5330
  %v6013 = vunpack.c.h.b16 %v5330
  %v6014 = vunpack.c.l.b16 %v5331
  %v6015 = vunpack.c.h.b16 %v5331
  %v6016 = vunpack.c.l.b16 %v5332
  %v6017 = vunpack.c.h.b16 %v5332
  %v6018 = vunpack.c.l.b16 %v5333
  %v6019 = vunpack.c.h.b16 %v5333
  %v6020 = vunpack.c.l.b16 %v5334
  %v6021 = vunpack.c.h.b16 %v5334
  %v6022 = vunpack.c.l.b16 %v5335
  %v6023 = vunpack.c.h.b16 %v5335
  %v6024 = vunpack.c.l.b16 %v5336
  %v6025 = vunpack.c.h.b16 %v5336
  %v6026 = vunpack.c.l.b16 %v5337
  %v6027 = vunpack.c.h.b16 %v5337
  %v6028 = vunpack.c.l.b16 %v5338
  %v6029 = vunpack.c.h.b16 %v5338
  %v6030 = vunpack.c.l.b16 %v5339
  %v6031 = vunpack.c.h.b16 %v5339
  %v6032 = vunpack.c.l.b16 %v5340
  %v6033 = vunpack.c.h.b16 %v5340
  %v6034 = vunpack.c.l.b16 %v5341
  %v6035 = vunpack.c.h.b16 %v5341
  %v6036 = vunpack.c.l.b16 %v5342
  %v6037 = vunpack.c.h.b16 %v5342
  %v6038 = vunpack.c.l.b16 %v5343
  %v6039 = vunpack.c.h.b16 %v5343
  %v6040 = vunpack.c.l.b16 %v5344
  %v6041 = vunpack.c.h.b16 %v5344
  %v6042 = vunpack.c.l.b16 %v5345
  %v6043 = vunpack.c.h.b16 %v5345
  %v6044 = vunpack.c.l.b16 %v5346
  %v6045 = vunpack.c.h.b16 %v5346
  %v6046 = vunpack.c.l.b16 %v5347
  %v6047 = vunpack.c.h.b16 %v5347
  %v6048 = vunpack.c.l.b16 %v5348
  %v6049 = vunpack.c.h.b16 %v5348
  %v6050 = vunpack.c.l.b16 %v5349
  %v6051 = vunpack.c.h.b16 %v5349
  %v6052 = vunpack.c.l.b16 %v5350
  %v6053 = vunpack.c.h.b16 %v5350
  %v6054 = vunpack.c.l.b16 %v5351
  %v6055 = vunpack.c.h.b16 %v5351
  %v6056 = vunpack.c.l.b16 %v5352
  %v6057 = vunpack.c.h.b16 %v5352
  %v6058 = vunpack.c.l.b16 %v5353
  %v6059 = vunpack.c.h.b16 %v5353
  %v6060 = vunpack.c.l.b16 %v5354
  %v6061 = vunpack.c.h.b16 %v5354
  %v6062 = vunpack.c.l.b16 %v5355
  %v6063 = vunpack.c.h.b16 %v5355
  %v6064 = vunpack.c.l.b16 %v5356
  %v6065 = vunpack.c.h.b16 %v5356
  %v6066 = vunpack.c.l.b16 %v5357
  %v6067 = vunpack.c.h.b16 %v5357
  %v6068 = vunpack.c.l.b16 %v5358
  %v6069 = vunpack.c.h.b16 %v5358
  %v6070 = vunpack.c.l.b16 %v5359
  %v6071 = vunpack.c.h.b16 %v5359
  %v6072 = vunpack.c.l.b16 %v5360
  %v6073 = vunpack.c.h.b16 %v5360
  %v6074 = vunpack.c.l.b16 %v5361
  %v6075 = vunpack.c.h.b16 %v5361
  %v6076 = vunpack.c.l.b16 %v5362
  %v6077 = vunpack.c.h.b16 %v5362
  %v6078 = vunpack.c.l.b16 %v5363
  %v6079 = vunpack.c.h.b16 %v5363
  %v6080 = vunpack.c.l.b16 %v5364
  %v6081 = vunpack.c.h.b16 %v5364
  %v6082 = vunpack.c.l.b16 %v5365
  %v6083 = vunpack.c.h.b16 %v5365
  %v6084 = vunpack.c.l.b16 %v5366
  %v6085 = vunpack.c.h.b16 %v5366
  %v6086 = vunpack.c.l.b16 %v5367
  %v6087 = vunpack.c.h.b16 %v5367
  %v6088 = vunpack.c.l.b16 %v5368
  %v6089 = vunpack.c.h.b16 %v5368
  %v6090 = vunpack.c.l.b16 %v5369
  %v6091 = vunpack.c.h.b16 %v5369
  %v6092 = vunpack.c.l.b16 %v5370
  %v6093 = vunpack.c.h.b16 %v5370
  %v6094 = vunpack.c.l.b16 %v5371
  %v6095 = vunpack.c.h.b16 %v5371
  %v6096 = vunpack.c.l.b16 %v5372
  %v6097 = vunpack.c.h.b16 %v5372
  %v6098 = vunpack.c.l.b16 %v5373
  %v6099 = vunpack.c.h.b16 %v5373
  %v6100 = vunpack.c.l.b16 %v5374
  %v6101 = vunpack.c.h.b16 %v5374
  %v6102 = vunpack.c.l.b16 %v5375
  %v6103 = vunpack.c.h.b16 %v5375
  %v6104 = vunpack.c.l.b16 %v5376
  %v6105 = vunpack.c.h.b16 %v5376
  %v6106 = vunpack.c.l.b16 %v5377
  %v6107 = vunpack.c.h.b16 %v5377
  %v6108 = vunpack.c.l.b16 %v5378
  %v6109 = vunpack.c.h.b16 %v5378
  %v6110 = vunpack.c.l.b16 %v5379
  %v6111 = vunpack.c.h.b16 %v5379
  %v6112 = vunpack.c.l.b16 %v5380
  %v6113 = vunpack.c.h.b16 %v5380
  %v6114 = vunpack.c.l.b16 %v5381
  %v6115 = vunpack.c.h.b16 %v5381
  %v6116 = vunpack.c.l.b16 %v5382
  %v6117 = vunpack.c.h.b16 %v5382
  %v6118 = vunpack.c.l.b16 %v5383
  %v6119 = vunpack.c.h.b16 %v5383
  %v6120 = vunpack.c.l.b16 %v5384
  %v6121 = vunpack.c.h.b16 %v5384
  %v6122 = vunpack.c.l.b16 %v5385
  %v6123 = vunpack.c.h.b16 %v5385
  %v6124 = vunpack.c.l.b16 %v5386
  %v6125 = vunpack.c.h.b16 %v5386
  %v6126 = vunpack.c.l.b16 %v5387
  %v6127 = vunpack.c.h.b16 %v5387
  %v6128 = vunpack.c.l.b16 %v5388
  %v6129 = vunpack.c.h.b16 %v5388
  %v6130 = vunpack.c.l.b16 %v5389
  %v6131 = vunpack.c.h.b16 %v5389
  %v6132 = vunpack.c.l.b16 %v5390
  %v6133 = vunpack.c.h.b16 %v5390
  %v6134 = vunpack.c.l.b16 %v5391
  %v6135 = vunpack.c.h.b16 %v5391
  %v6136 = vunpack.c.l.b16 %v5392
  %v6137 = vunpack.c.h.b16 %v5392
  %v6138 = vunpack.c.l.b16 %v5393
  %v6139 = vunpack.c.h.b16 %v5393
  %v6140 = vunpack.c.l.b16 %v5394
  %v6141 = vunpack.c.h.b16 %v5394
  %v6142 = vunpack.c.l.b16 %v5395
  %v6143 = vunpack.c.h.b16 %v5395
  %v6144 = vunpack.c.l.b16 %v5396
  %v6145 = vunpack.c.h.b16 %v5396
  %v6146 = vunpack.c.l.b16 %v5397
  %v6147 = vunpack.c.h.b16 %v5397
  %v6148 = vunpack.c.l.b16 %v5398
  %v6149 = vunpack.c.h.b16 %v5398
  %v6150 = vunpack.c.l.b16 %v5399
  %v6151 = vunpack.c.h.b16 %v5399
  %v6152 = vunpack.c.l.b16 %v5400
  %v6153 = vunpack.c.h.b16 %v5400
  %v6154 = vunpack.c.l.b16 %v5401
  %v6155 = vunpack.c.h.b16 %v5401
  %v6156 = vunpack.c.l.b16 %v5402
  %v6157 = vunpack.c.h.b16 %v5402
  %v6158 = vunpack.c.l.b16 %v5403
  %v6159 = vunpack.c.h.b16 %v5403
  %v6160 = vunpack.c.l.b16 %v5404
  %v6161 = vunpack.c.h.b16 %v5404
  %v6162 = vunpack.c.l.b16 %v5405
  %v6163 = vunpack.c.h.b16 %v5405
  %v6164 = vunpack.c.l.b16 %v5406
  %v6165 = vunpack.c.h.b16 %v5406
  %v6166 = vunpack.c.l.b16 %v5407
  %v6167 = vunpack.c.h.b16 %v5407
  %v6168 = vunpack.c.l.b16 %v5408
  %v6169 = vunpack.c.h.b16 %v5408
  %v6170 = vunpack.c.l.b16 %v5409
  %v6171 = vunpack.c.h.b16 %v5409
  %v6172 = vunpack.c.l.b16 %v5410
  %v6173 = vunpack.c.h.b16 %v5410
  %v6174 = vunpack.c.l.b16 %v5411
  %v6175 = vunpack.c.h.b16 %v5411
  %v6176 = vunpack.c.l.b16 %v5412
  %v6177 = vunpack.c.h.b16 %v5412
  %v6178 = vunpack.c.l.b16 %v5413
  %v6179 = vunpack.c.h.b16 %v5413
  %v6180 = vunpack.c.l.b16 %v5414
  %v6181 = vunpack.c.h.b16 %v5414
  %v6182 = vunpack.c.l.b16 %v5415
  %v6183 = vunpack.c.h.b16 %v5415
  %v6184 = vunpack.c.l.b16 %v5416
  %v6185 = vunpack.c.h.b16 %v5416
  %v6186 = vunpack.c.l.b16 %v5417
  %v6187 = vunpack.c.h.b16 %v5417
  %v6188 = vunpack.c.l.b16 %v5418
  %v6189 = vunpack.c.h.b16 %v5418
  %v6190 = vunpack.c.l.b16 %v5419
  %v6191 = vunpack.c.h.b16 %v5419
  %v6192 = vunpack.c.l.b16 %v5420
  %v6193 = vunpack.c.h.b16 %v5420
  %v6194 = vunpack.c.l.b16 %v5421
  %v6195 = vunpack.c.h.b16 %v5421
  %v6196 = vunpack.c.l.b16 %v5422
  %v6197 = vunpack.c.h.b16 %v5422
  %v6198 = vunpack.c.l.b16 %v5423
  %v6199 = vunpack.c.h.b16 %v5423
  %v6200 = vunpack.c.l.b16 %v5424
  %v6201 = vunpack.c.h.b16 %v5424
  %v6202 = vunpack.c.l.b16 %v5425
  %v6203 = vunpack.c.h.b16 %v5425
  %v6204 = vunpack.c.l.b16 %v5426
  %v6205 = vunpack.c.h.b16 %v5426
  %v6206 = vunpack.c.l.b16 %v5427
  %v6207 = vunpack.c.h.b16 %v5427
  %v6208 = vunpack.c.l.b16 %v5428
  %v6209 = vunpack.c.h.b16 %v5428
  %v6210 = vunpack.c.l.b16 %v5429
  %v6211 = vunpack.c.h.b16 %v5429
  %v6212 = vunpack.c.l.b16 %v5430
  %v6213 = vunpack.c.h.b16 %v5430
  %v6214 = vunpack.c.l.b16 %v5431
  %v6215 = vunpack.c.h.b16 %v5431
  %v6216 = vunpack.c.l.b16 %v5432
  %v6217 = vunpack.c.h.b16 %v5432
  %v6218 = vunpack.c.l.b16 %v5433
  %v6219 = vunpack.c.h.b16 %v5433
  %v6220 = vpack.c.b16 %v5716, %v5708
  %v6221 = vpack.c.b16 %v5717, %v5709
  %v6222 = vpack.c.b16 %v5718, %v5710
  %v6223 = vpack.c.b16 %v5719, %v5711
  %v6224 = vpack.c.b16 %v5720, %v5712
  %v6225 = vpack.c.b16 %v5721, %v5713
  %v6226 = vpack.c.b16 %v5722, %v5714
  %v6227 = vpack.c.b16 %v5723, %v5715
  %v6228 = vpack.c.b16 %v5732, %v5724
  %v6229 = vpack.c.b16 %v5733, %v5725
  %v6230 = vpack.c.b16 %v5734, %v5726
  %v6231 = vpack.c.b16 %v5735, %v5727
  %v6232 = vpack.c.b16 %v5736, %v5728
  %v6233 = vpack.c.b16 %v5737, %v5729
  %v6234 = vpack.c.b16 %v5738, %v5730
  %v6235 = vpack.c.b16 %v5739, %v5731
  %v6236 = vpack.c.b16 %v5748, %v5740
  %v6237 = vpack.c.b16 %v5749, %v5741
  %v6238 = vpack.c.b16 %v5750, %v5742
  %v6239 = vpack.c.b16 %v5751, %v5743
  %v6240 = vpack.c.b16 %v5752, %v5744
  %v6241 = vpack.c.b16 %v5753, %v5745
  %v6242 = vpack.c.b16 %v5754, %v5746
  %v6243 = vpack.c.b16 %v5755, %v5747
  %v6244 = vpack.c.b16 %v5764, %v5756
  %v6245 = vpack.c.b16 %v5765, %v5757
  %v6246 = vpack.c.b16 %v5766, %v5758
  %v6247 = vpack.c.b16 %v5767, %v5759
  %v6248 = vpack.c.b16 %v5768, %v5760
  %v6249 = vpack.c.b16 %v5769, %v5761
  %v6250 = vpack.c.b16 %v5770, %v5762
  %v6251 = vpack.c.b16 %v5771, %v5763
  %v6252 = vpack.c.b16 %v5780, %v5772
  %v6253 = vpack.c.b16 %v5781, %v5773
  %v6254 = vpack.c.b16 %v5782, %v5774
  %v6255 = vpack.c.b16 %v5783, %v5775
  %v6256 = vpack.c.b16 %v5784, %v5776
  %v6257 = vpack.c.b16 %v5785, %v5777
  %v6258 = vpack.c.b16 %v5786, %v5778
  %v6259 = vpack.c.b16 %v5787, %v5779
  %v6260 = vpack.c.b16 %v5796, %v5788
  %v6261 = vpack.c.b16 %v5797, %v5789
  %v6262 = vpack.c.b16 %v5798, %v5790
  %v6263 = vpack.c.b16 %v5799, %v5791
  %v6264 = vpack.c.b16 %v5800, %v5792
  %v6265 = vpack.c.b16 %v5801, %v5793
  %v6266 = vpack.c.b16 %v5802, %v5794
  %v6267 = vpack.c.b16 %v5803, %v5795
  %v6268 = vpack.c.b16 %v5812, %v5804
  %v6269 = vpack.c.b16 %v5813, %v5805
  %v6270 = vpack.c.b16 %v5814, %v5806
  %v6271 = vpack.c.b16 %v5815, %v5807
  %v6272 = vpack.c.b16 %v5816, %v5808
  %v6273 = vpack.c.b16 %v5817, %v5809
  %v6274 = vpack.c.b16 %v5818, %v5810
  %v6275 = vpack.c.b16 %v5819, %v5811
  %v6276 = vpack.c.b16 %v5828, %v5820
  %v6277 = vpack.c.b16 %v5829, %v5821
  %v6278 = vpack.c.b16 %v5830, %v5822
  %v6279 = vpack.c.b16 %v5831, %v5823
  %v6280 = vpack.c.b16 %v5832, %v5824
  %v6281 = vpack.c.b16 %v5833, %v5825
  %v6282 = vpack.c.b16 %v5834, %v5826
  %v6283 = vpack.c.b16 %v5835, %v5827
  %v6284 = vpack.c.b16 %v5844, %v5836
  %v6285 = vpack.c.b16 %v5845, %v5837
  %v6286 = vpack.c.b16 %v5846, %v5838
  %v6287 = vpack.c.b16 %v5847, %v5839
  %v6288 = vpack.c.b16 %v5848, %v5840
  %v6289 = vpack.c.b16 %v5849, %v5841
  %v6290 = vpack.c.b16 %v5850, %v5842
  %v6291 = vpack.c.b16 %v5851, %v5843
  %v6292 = vpack.c.b16 %v5860, %v5852
  %v6293 = vpack.c.b16 %v5861, %v5853
  %v6294 = vpack.c.b16 %v5862, %v5854
  %v6295 = vpack.c.b16 %v5863, %v5855
  %v6296 = vpack.c.b16 %v5864, %v5856
  %v6297 = vpack.c.b16 %v5865, %v5857
  %v6298 = vpack.c.b16 %v5866, %v5858
  %v6299 = vpack.c.b16 %v5867, %v5859
  %v6300 = vpack.c.b16 %v5876, %v5868
  %v6301 = vpack.c.b16 %v5877, %v5869
  %v6302 = vpack.c.b16 %v5878, %v5870
  %v6303 = vpack.c.b16 %v5879, %v5871
  %v6304 = vpack.c.b16 %v5880, %v5872
  %v6305 = vpack.c.b16 %v5881, %v5873
  %v6306 = vpack.c.b16 %v5882, %v5874
  %v6307 = vpack.c.b16 %v5883, %v5875
  %v6308 = vpack.c.b16 %v5892, %v5884
  %v6309 = vpack.c.b16 %v5893, %v5885
  %v6310 = vpack.c.b16 %v5894, %v5886
  %v6311 = vpack.c.b16 %v5895, %v5887
  %v6312 = vpack.c.b16 %v5896, %v5888
  %v6313 = vpack.c.b16 %v5897, %v5889
  %v6314 = vpack.c.b16 %v5898, %v5890
  %v6315 = vpack.c.b16 %v5899, %v5891
  %v6316 = vpack.c.b16 %v5908, %v5900
  %v6317 = vpack.c.b16 %v5909, %v5901
  %v6318 = vpack.c.b16 %v5910, %v5902
  %v6319 = vpack.c.b16 %v5911, %v5903
  %v6320 = vpack.c.b16 %v5912, %v5904
  %v6321 = vpack.c.b16 %v5913, %v5905
  %v6322 = vpack.c.b16 %v5914, %v5906
  %v6323 = vpack.c.b16 %v5915, %v5907
  %v6324 = vpack.c.b16 %v5924, %v5916
  %v6325 = vpack.c.b16 %v5925, %v5917
  %v6326 = vpack.c.b16 %v5926, %v5918
  %v6327 = vpack.c.b16 %v5927, %v5919
  %v6328 = vpack.c.b16 %v5928, %v5920
  %v6329 = vpack.c.b16 %v5929, %v5921
  %v6330 = vpack.c.b16 %v5930, %v5922
  %v6331 = vpack.c.b16 %v5931, %v5923
  %v6332 = vpack.c.b16 %v5940, %v5932
  %v6333 = vpack.c.b16 %v5941, %v5933
  %v6334 = vpack.c.b16 %v5942, %v5934
  %v6335 = vpack.c.b16 %v5943, %v5935
  %v6336 = vpack.c.b16 %v5944, %v5936
  %v6337 = vpack.c.b16 %v5945, %v5937
  %v6338 = vpack.c.b16 %v5946, %v5938
  %v6339 = vpack.c.b16 %v5947, %v5939
  %v6340 = vpack.c.b16 %v5956, %v5948
  %v6341 = vpack.c.b16 %v5957, %v5949
  %v6342 = vpack.c.b16 %v5958, %v5950
  %v6343 = vpack.c.b16 %v5959, %v5951
  %v6344 = vpack.c.b16 %v5960, %v5952
  %v6345 = vpack.c.b16 %v5961, %v5953
  %v6346 = vpack.c.b16 %v5962, %v5954
  %v6347 = vpack.c.b16 %v5963, %v5955
  %v6348 = vpack.c.b16 %v5972, %v5964
  %v6349 = vpack.c.b16 %v5973, %v5965
  %v6350 = vpack.c.b16 %v5974, %v5966
  %v6351 = vpack.c.b16 %v5975, %v5967
  %v6352 = vpack.c.b16 %v5976, %v5968
  %v6353 = vpack.c.b16 %v5977, %v5969
  %v6354 = vpack.c.b16 %v5978, %v5970
  %v6355 = vpack.c.b16 %v5979, %v5971
  %v6356 = vpack.c.b16 %v5988, %v5980
  %v6357 = vpack.c.b16 %v5989, %v5981
  %v6358 = vpack.c.b16 %v5990, %v5982
  %v6359 = vpack.c.b16 %v5991, %v5983
  %v6360 = vpack.c.b16 %v5992, %v5984
  %v6361 = vpack.c.b16 %v5993, %v5985
  %v6362 = vpack.c.b16 %v5994, %v5986
  %v6363 = vpack.c.b16 %v5995, %v5987
  %v6364 = vpack.c.b16 %v6004, %v5996
  %v6365 = vpack.c.b16 %v6005, %v5997
  %v6366 = vpack.c.b16 %v6006, %v5998
  %v6367 = vpack.c.b16 %v6007, %v5999
  %v6368 = vpack.c.b16 %v6008, %v6000
  %v6369 = vpack.c.b16 %v6009, %v6001
  %v6370 = vpack.c.b16 %v6010, %v6002
  %v6371 = vpack.c.b16 %v6011, %v6003
  %v6372 = vpack.c.b16 %v6020, %v6012
  %v6373 = vpack.c.b16 %v6021, %v6013
  %v6374 = vpack.c.b16 %v6022, %v6014
  %v6375 = vpack.c.b16 %v6023, %v6015
  %v6376 = vpack.c.b16 %v6024, %v6016
  %v6377 = vpack.c.b16 %v6025, %v6017
  %v6378 = vpack.c.b16 %v6026, %v6018
  %v6379 = vpack.c.b16 %v6027, %v6019
  %v6380 = vpack.c.b16 %v6036, %v6028
  %v6381 = vpack.c.b16 %v6037, %v6029
  %v6382 = vpack.c.b16 %v6038, %v6030
  %v6383 = vpack.c.b16 %v6039, %v6031
  %v6384 = vpack.c.b16 %v6040, %v6032
  %v6385 = vpack.c.b16 %v6041, %v6033
  %v6386 = vpack.c.b16 %v6042, %v6034
  %v6387 = vpack.c.b16 %v6043, %v6035
  %v6388 = vpack.c.b16 %v6052, %v6044
  %v6389 = vpack.c.b16 %v6053, %v6045
  %v6390 = vpack.c.b16 %v6054, %v6046
  %v6391 = vpack.c.b16 %v6055, %v6047
  %v6392 = vpack.c.b16 %v6056, %v6048
  %v6393 = vpack.c.b16 %v6057, %v6049
  %v6394 = vpack.c.b16 %v6058, %v6050
  %v6395 = vpack.c.b16 %v6059, %v6051
  %v6396 = vpack.c.b16 %v6068, %v6060
  %v6397 = vpack.c.b16 %v6069, %v6061
  %v6398 = vpack.c.b16 %v6070, %v6062
  %v6399 = vpack.c.b16 %v6071, %v6063
  %v6400 = vpack.c.b16 %v6072, %v6064
  %v6401 = vpack.c.b16 %v6073, %v6065
  %v6402 = vpack.c.b16 %v6074, %v6066
  %v6403 = vpack.c.b16 %v6075, %v6067
  %v6404 = vpack.c.b16 %v6084, %v6076
  %v6405 = vpack.c.b16 %v6085, %v6077
  %v6406 = vpack.c.b16 %v6086, %v6078
  %v6407 = vpack.c.b16 %v6087, %v6079
  %v6408 = vpack.c.b16 %v6088, %v6080
  %v6409 = vpack.c.b16 %v6089, %v6081
  %v6410 = vpack.c.b16 %v6090, %v6082
  %v6411 = vpack.c.b16 %v6091, %v6083
  %v6412 = vpack.c.b16 %v6100, %v6092
  %v6413 = vpack.c.b16 %v6101, %v6093
  %v6414 = vpack.c.b16 %v6102, %v6094
  %v6415 = vpack.c.b16 %v6103, %v6095
  %v6416 = vpack.c.b16 %v6104, %v6096
  %v6417 = vpack.c.b16 %v6105, %v6097
  %v6418 = vpack.c.b16 %v6106, %v6098
  %v6419 = vpack.c.b16 %v6107, %v6099
  %v6420 = vpack.c.b16 %v6116, %v6108
  %v6421 = vpack.c.b16 %v6117, %v6109
  %v6422 = vpack.c.b16 %v6118, %v6110
  %v6423 = vpack.c.b16 %v6119, %v6111
  %v6424 = vpack.c.b16 %v6120, %v6112
  %v6425 = vpack.c.b16 %v6121, %v6113
  %v6426 = vpack.c.b16 %v6122, %v6114
  %v6427 = vpack.c.b16 %v6123, %v6115
  %v6428 = vpack.c.b16 %v6132, %v6124
  %v6429 = vpack.c.b16 %v6133, %v6125
  %v6430 = vpack.c.b16 %v6134, %v6126
  %v6431 = vpack.c.b16 %v6135, %v6127
  %v6432 = vpack.c.b16 %v6136, %v6128
  %v6433 = vpack.c.b16 %v6137, %v6129
  %v6434 = vpack.c.b16 %v6138, %v6130
  %v6435 = vpack.c.b16 %v6139, %v6131
  %v6436 = vpack.c.b16 %v6148, %v6140
  %v6437 = vpack.c.b16 %v6149, %v6141
  %v6438 = vpack.c.b16 %v6150, %v6142
  %v6439 = vpack.c.b16 %v6151, %v6143
  %v6440 = vpack.c.b16 %v6152, %v6144
  %v6441 = vpack.c.b16 %v6153, %v6145
  %v6442 = vpack.c.b16 %v6154, %v6146
  %v6443 = vpack.c.b16 %v6155, %v6147
  %v6444 = vpack.c.b16 %v6164, %v6156
  %v6445 = vpack.c.b16 %v6165, %v6157
  %v6446 = vpack.c.b16 %v6166, %v6158
  %v6447 = vpack.c.b16 %v6167, %v6159
  %v6448 = vpack.c.b16 %v6168, %v6160
  %v6449 = vpack.c.b16 %v6169, %v6161
  %v6450 = vpack.c.b16 %v6170, %v6162
  %v6451 = vpack.c.b16 %v6171, %v6163
  %v6452 = vpack.c.b16 %v6180, %v6172
  %v6453 = vpack.c.b16 %v6181, %v6173
  %v6454 = vpack.c.b16 %v6182, %v6174
  %v6455 = vpack.c.b16 %v6183, %v6175
  %v6456 = vpack.c.b16 %v6184, %v6176
  %v6457 = vpack.c.b16 %v6185, %v6177
  %v6458 = vpack.c.b16 %v6186, %v6178
  %v6459 = vpack.c.b16 %v6187, %v6179
  %v6460 = vpack.c.b16 %v6196, %v6188
  %v6461 = vpack.c.b16 %v6197, %v6189
  %v6462 = vpack.c.b16 %v6198, %v6190
  %v6463 = vpack.c.b16 %v6199, %v6191
  %v6464 = vpack.c.b16 %v6200, %v6192
  %v6465 = vpack.c.b16 %v6201, %v6193
  %v6466 = vpack.c.b16 %v6202, %v6194
  %v6467 = vpack.c.b16 %v6203, %v6195
  %v6468 = vpack.c.b16 %v6212, %v6204
  %v6469 = vpack.c.b16 %v6213, %v6205
  %v6470 = vpack.c.b16 %v6214, %v6206
  %v6471 = vpack.c.b16 %v6215, %v6207
  %v6472 = vpack.c.b16 %v6216, %v6208
  %v6473 = vpack.c.b16 %v6217, %v6209
  %v6474 = vpack.c.b16 %v6218, %v6210
  %v6475 = vpack.c.b16 %v6219, %v6211
  %6732 = vmatpush.bf16.msra.mxu0 %v6276
  %6733 = vmatpush.bf16.msra.mxu0 %v6268
  %6734 = vmatpush.bf16.msra.mxu0 %v6260
  %6735 = vmatpush.bf16.msra.mxu0 %v6252
  %6736 = vmatpush.bf16.msra.mxu0 %v6244
  %6737 = vmatpush.bf16.msra.mxu0 %v6236
  %6738 = vmatpush.bf16.msra.mxu0 %v6228
  %6739 = vmatpush.bf16.msra.mxu0 %v6220
  %6740 = vmatmul.bf16.gmra.mxu0 %v5170
  %v6741 = vpop.f32.mrf.mxu0
  %v6742 = vadd.f32 %v5436, %v6741
  %v6743 = vpop.f32.mrf.mxu0
  %6744 = vdwg.mxu0
  %6745 = vmatpush.bf16.msra.mxu0 %v6340
  %6746 = vmatpush.bf16.msra.mxu0 %v6332
  %6747 = vmatpush.bf16.msra.mxu0 %v6324
  %6748 = vmatpush.bf16.msra.mxu0 %v6316
  %6749 = vmatpush.bf16.msra.mxu0 %v6308
  %6750 = vmatpush.bf16.msra.mxu0 %v6300
  %6751 = vmatpush.bf16.msra.mxu0 %v6292
  %6752 = vmatpush.bf16.msra.mxu0 %v6284
  %6753 = vmatmul.bf16.gmra.mxu0 %v5171
  %v6754 = vpop.f32.mrf.mxu0
  %v6755 = vadd.f32 %v6742, %v6754
  %v6756 = vpop.f32.mrf.mxu0
  %6757 = vdwg.mxu0
  %6758 = vmatpush.bf16.msra.mxu0 %v6404
  %6759 = vmatpush.bf16.msra.mxu0 %v6396
  %6760 = vmatpush.bf16.msra.mxu0 %v6388
  %6761 = vmatpush.bf16.msra.mxu0 %v6380
  %6762 = vmatpush.bf16.msra.mxu0 %v6372
  %6763 = vmatpush.bf16.msra.mxu0 %v6364
  %6764 = vmatpush.bf16.msra.mxu0 %v6356
  %6765 = vmatpush.bf16.msra.mxu0 %v6348
  %6766 = vmatmul.bf16.gmra.mxu0 %v5172
  %v6767 = vpop.f32.mrf.mxu0
  %v6768 = vadd.f32 %v6755, %v6767
  %v6769 = vpop.f32.mrf.mxu0
  %6770 = vdwg.mxu0
  %6771 = vmatpush.bf16.msra.mxu0 %v6468
  %6772 = vmatpush.bf16.msra.mxu0 %v6460
  %6773 = vmatpush.bf16.msra.mxu0 %v6452
  %6774 = vmatpush.bf16.msra.mxu0 %v6444
  %6775 = vmatpush.bf16.msra.mxu0 %v6436
  %6776 = vmatpush.bf16.msra.mxu0 %v6428
  %6777 = vmatpush.bf16.msra.mxu0 %v6420
  %6778 = vmatpush.bf16.msra.mxu0 %v6412
  %6779 = vmatmul.bf16.gmra.mxu0 %v5173
  %v6780 = vpop.f32.mrf.mxu0
  %v6781 = vadd.f32 %v6768, %v6780
  %v6782 = vpop.f32.mrf.mxu0
  %6783 = vdwg.mxu0
  %6784 = vmatpush.bf16.msra.mxu0 %v6277
  %6785 = vmatpush.bf16.msra.mxu0 %v6269
  %6786 = vmatpush.bf16.msra.mxu0 %v6261
  %6787 = vmatpush.bf16.msra.mxu0 %v6253
  %6788 = vmatpush.bf16.msra.mxu0 %v6245
  %6789 = vmatpush.bf16.msra.mxu0 %v6237
  %6790 = vmatpush.bf16.msra.mxu0 %v6229
  %6791 = vmatpush.bf16.msra.mxu0 %v6221
  %6792 = vmatmul.bf16.gmra.mxu0 %v5170
  %v6793 = vpop.f32.mrf.mxu0
  %v6794 = vadd.f32 %v5437, %v6793
  %v6795 = vpop.f32.mrf.mxu0
  %6796 = vdwg.mxu0
  %6797 = vmatpush.bf16.msra.mxu0 %v6341
  %6798 = vmatpush.bf16.msra.mxu0 %v6333
  %6799 = vmatpush.bf16.msra.mxu0 %v6325
  %6800 = vmatpush.bf16.msra.mxu0 %v6317
  %6801 = vmatpush.bf16.msra.mxu0 %v6309
  %6802 = vmatpush.bf16.msra.mxu0 %v6301
  %6803 = vmatpush.bf16.msra.mxu0 %v6293
  %6804 = vmatpush.bf16.msra.mxu0 %v6285
  %6805 = vmatmul.bf16.gmra.mxu0 %v5171
  %v6806 = vpop.f32.mrf.mxu0
  %v6807 = vadd.f32 %v6794, %v6806
  %v6808 = vpop.f32.mrf.mxu0
  %6809 = vdwg.mxu0
  %6810 = vmatpush.bf16.msra.mxu0 %v6405
  %6811 = vmatpush.bf16.msra.mxu0 %v6397
  %6812 = vmatpush.bf16.msra.mxu0 %v6389
  %6813 = vmatpush.bf16.msra.mxu0 %v6381
  %6814 = vmatpush.bf16.msra.mxu0 %v6373
  %6815 = vmatpush.bf16.msra.mxu0 %v6365
  %6816 = vmatpush.bf16.msra.mxu0 %v6357
  %6817 = vmatpush.bf16.msra.mxu0 %v6349
  %6818 = vmatmul.bf16.gmra.mxu0 %v5172
  %v6819 = vpop.f32.mrf.mxu0
  %v6820 = vadd.f32 %v6807, %v6819
  %v6821 = vpop.f32.mrf.mxu0
  %6822 = vdwg.mxu0
  %6823 = vmatpush.bf16.msra.mxu0 %v6469
  %6824 = vmatpush.bf16.msra.mxu0 %v6461
  %6825 = vmatpush.bf16.msra.mxu0 %v6453
  %6826 = vmatpush.bf16.msra.mxu0 %v6445
  %6827 = vmatpush.bf16.msra.mxu0 %v6437
  %6828 = vmatpush.bf16.msra.mxu0 %v6429
  %6829 = vmatpush.bf16.msra.mxu0 %v6421
  %6830 = vmatpush.bf16.msra.mxu0 %v6413
  %6831 = vmatmul.bf16.gmra.mxu0 %v5173
  %v6832 = vpop.f32.mrf.mxu0
  %v6833 = vadd.f32 %v6820, %v6832
  %v6834 = vpop.f32.mrf.mxu0
  %6835 = vdwg.mxu0
  %6836 = vmatpush.bf16.msra.mxu0 %v6278
  %6837 = vmatpush.bf16.msra.mxu0 %v6270
  %6838 = vmatpush.bf16.msra.mxu0 %v6262
  %6839 = vmatpush.bf16.msra.mxu0 %v6254
  %6840 = vmatpush.bf16.msra.mxu0 %v6246
  %6841 = vmatpush.bf16.msra.mxu0 %v6238
  %6842 = vmatpush.bf16.msra.mxu0 %v6230
  %6843 = vmatpush.bf16.msra.mxu0 %v6222
  %6844 = vmatmul.bf16.gmra.mxu0 %v5170
  %v6845 = vpop.f32.mrf.mxu0
  %v6846 = vadd.f32 %v5438, %v6845
  %v6847 = vpop.f32.mrf.mxu0
  %6848 = vdwg.mxu0
  %6849 = vmatpush.bf16.msra.mxu0 %v6342
  %6850 = vmatpush.bf16.msra.mxu0 %v6334
  %6851 = vmatpush.bf16.msra.mxu0 %v6326
  %6852 = vmatpush.bf16.msra.mxu0 %v6318
  %6853 = vmatpush.bf16.msra.mxu0 %v6310
  %6854 = vmatpush.bf16.msra.mxu0 %v6302
  %6855 = vmatpush.bf16.msra.mxu0 %v6294
  %6856 = vmatpush.bf16.msra.mxu0 %v6286
  %6857 = vmatmul.bf16.gmra.mxu0 %v5171
  %v6858 = vpop.f32.mrf.mxu0
  %v6859 = vadd.f32 %v6846, %v6858
  %v6860 = vpop.f32.mrf.mxu0
  %6861 = vdwg.mxu0
  %6862 = vmatpush.bf16.msra.mxu0 %v6406
  %6863 = vmatpush.bf16.msra.mxu0 %v6398
  %6864 = vmatpush.bf16.msra.mxu0 %v6390
  %6865 = vmatpush.bf16.msra.mxu0 %v6382
  %6866 = vmatpush.bf16.msra.mxu0 %v6374
  %6867 = vmatpush.bf16.msra.mxu0 %v6366
  %6868 = vmatpush.bf16.msra.mxu0 %v6358
  %6869 = vmatpush.bf16.msra.mxu0 %v6350
  %6870 = vmatmul.bf16.gmra.mxu0 %v5172
  %v6871 = vpop.f32.mrf.mxu0
  %v6872 = vadd.f32 %v6859, %v6871
  %v6873 = vpop.f32.mrf.mxu0
  %6874 = vdwg.mxu0
  %6875 = vmatpush.bf16.msra.mxu0 %v6470
  %6876 = vmatpush.bf16.msra.mxu0 %v6462
  %6877 = vmatpush.bf16.msra.mxu0 %v6454
  %6878 = vmatpush.bf16.msra.mxu0 %v6446
  %6879 = vmatpush.bf16.msra.mxu0 %v6438
  %6880 = vmatpush.bf16.msra.mxu0 %v6430
  %6881 = vmatpush.bf16.msra.mxu0 %v6422
  %6882 = vmatpush.bf16.msra.mxu0 %v6414
  %6883 = vmatmul.bf16.gmra.mxu0 %v5173
  %v6884 = vpop.f32.mrf.mxu0
  %v6885 = vadd.f32 %v6872, %v6884
  %v6886 = vpop.f32.mrf.mxu0
  %6887 = vdwg.mxu0
  %6888 = vmatpush.bf16.msra.mxu0 %v6279
  %6889 = vmatpush.bf16.msra.mxu0 %v6271
  %6890 = vmatpush.bf16.msra.mxu0 %v6263
  %6891 = vmatpush.bf16.msra.mxu0 %v6255
  %6892 = vmatpush.bf16.msra.mxu0 %v6247
  %6893 = vmatpush.bf16.msra.mxu0 %v6239
  %6894 = vmatpush.bf16.msra.mxu0 %v6231
  %6895 = vmatpush.bf16.msra.mxu0 %v6223
  %6896 = vmatmul.bf16.gmra.mxu0 %v5170
  %v6897 = vpop.f32.mrf.mxu0
  %v6898 = vadd.f32 %v5439, %v6897
  %v6899 = vpop.f32.mrf.mxu0
  %6900 = vdwg.mxu0
  %6901 = vmatpush.bf16.msra.mxu0 %v6343
  %6902 = vmatpush.bf16.msra.mxu0 %v6335
  %6903 = vmatpush.bf16.msra.mxu0 %v6327
  %6904 = vmatpush.bf16.msra.mxu0 %v6319
  %6905 = vmatpush.bf16.msra.mxu0 %v6311
  %6906 = vmatpush.bf16.msra.mxu0 %v6303
  %6907 = vmatpush.bf16.msra.mxu0 %v6295
  %6908 = vmatpush.bf16.msra.mxu0 %v6287
  %6909 = vmatmul.bf16.gmra.mxu0 %v5171
  %v6910 = vpop.f32.mrf.mxu0
  %v6911 = vadd.f32 %v6898, %v6910
  %v6912 = vpop.f32.mrf.mxu0
  %6913 = vdwg.mxu0
  %6914 = vmatpush.bf16.msra.mxu0 %v6407
  %6915 = vmatpush.bf16.msra.mxu0 %v6399
  %6916 = vmatpush.bf16.msra.mxu0 %v6391
  %6917 = vmatpush.bf16.msra.mxu0 %v6383
  %6918 = vmatpush.bf16.msra.mxu0 %v6375
  %6919 = vmatpush.bf16.msra.mxu0 %v6367
  %6920 = vmatpush.bf16.msra.mxu0 %v6359
  %6921 = vmatpush.bf16.msra.mxu0 %v6351
  %6922 = vmatmul.bf16.gmra.mxu0 %v5172
  %v6923 = vpop.f32.mrf.mxu0
  %v6924 = vadd.f32 %v6911, %v6923
  %v6925 = vpop.f32.mrf.mxu0
  %6926 = vdwg.mxu0
  %6927 = vmatpush.bf16.msra.mxu0 %v6471
  %6928 = vmatpush.bf16.msra.mxu0 %v6463
  %6929 = vmatpush.bf16.msra.mxu0 %v6455
  %6930 = vmatpush.bf16.msra.mxu0 %v6447
  %6931 = vmatpush.bf16.msra.mxu0 %v6439
  %6932 = vmatpush.bf16.msra.mxu0 %v6431
  %6933 = vmatpush.bf16.msra.mxu0 %v6423
  %6934 = vmatpush.bf16.msra.mxu0 %v6415
  %6935 = vmatmul.bf16.gmra.mxu0 %v5173
  %v6936 = vpop.f32.mrf.mxu0
  %v6937 = vadd.f32 %v6924, %v6936
  %v6938 = vpop.f32.mrf.mxu0
  %6939 = vdwg.mxu0
  %6940 = vmatpush.bf16.msra.mxu0 %v6280
  %6941 = vmatpush.bf16.msra.mxu0 %v6272
  %6942 = vmatpush.bf16.msra.mxu0 %v6264
  %6943 = vmatpush.bf16.msra.mxu0 %v6256
  %6944 = vmatpush.bf16.msra.mxu0 %v6248
  %6945 = vmatpush.bf16.msra.mxu0 %v6240
  %6946 = vmatpush.bf16.msra.mxu0 %v6232
  %6947 = vmatpush.bf16.msra.mxu0 %v6224
  %6948 = vmatmul.bf16.gmra.mxu0 %v5170
  %v6949 = vpop.f32.mrf.mxu0
  %v6950 = vadd.f32 %v5440, %v6949
  %v6951 = vpop.f32.mrf.mxu0
  %6952 = vdwg.mxu0
  %6953 = vmatpush.bf16.msra.mxu0 %v6344
  %6954 = vmatpush.bf16.msra.mxu0 %v6336
  %6955 = vmatpush.bf16.msra.mxu0 %v6328
  %6956 = vmatpush.bf16.msra.mxu0 %v6320
  %6957 = vmatpush.bf16.msra.mxu0 %v6312
  %6958 = vmatpush.bf16.msra.mxu0 %v6304
  %6959 = vmatpush.bf16.msra.mxu0 %v6296
  %6960 = vmatpush.bf16.msra.mxu0 %v6288
  %6961 = vmatmul.bf16.gmra.mxu0 %v5171
  %v6962 = vpop.f32.mrf.mxu0
  %v6963 = vadd.f32 %v6950, %v6962
  %v6964 = vpop.f32.mrf.mxu0
  %6965 = vdwg.mxu0
  %6966 = vmatpush.bf16.msra.mxu0 %v6408
  %6967 = vmatpush.bf16.msra.mxu0 %v6400
  %6968 = vmatpush.bf16.msra.mxu0 %v6392
  %6969 = vmatpush.bf16.msra.mxu0 %v6384
  %6970 = vmatpush.bf16.msra.mxu0 %v6376
  %6971 = vmatpush.bf16.msra.mxu0 %v6368
  %6972 = vmatpush.bf16.msra.mxu0 %v6360
  %6973 = vmatpush.bf16.msra.mxu0 %v6352
  %6974 = vmatmul.bf16.gmra.mxu0 %v5172
  %v6975 = vpop.f32.mrf.mxu0
  %v6976 = vadd.f32 %v6963, %v6975
  %v6977 = vpop.f32.mrf.mxu0
  %6978 = vdwg.mxu0
  %6979 = vmatpush.bf16.msra.mxu0 %v6472
  %6980 = vmatpush.bf16.msra.mxu0 %v6464
  %6981 = vmatpush.bf16.msra.mxu0 %v6456
  %6982 = vmatpush.bf16.msra.mxu0 %v6448
  %6983 = vmatpush.bf16.msra.mxu0 %v6440
  %6984 = vmatpush.bf16.msra.mxu0 %v6432
  %6985 = vmatpush.bf16.msra.mxu0 %v6424
  %6986 = vmatpush.bf16.msra.mxu0 %v6416
  %6987 = vmatmul.bf16.gmra.mxu0 %v5173
  %v6988 = vpop.f32.mrf.mxu0
  %v6989 = vadd.f32 %v6976, %v6988
  %v6990 = vpop.f32.mrf.mxu0
  %6991 = vdwg.mxu0
  %6992 = vmatpush.bf16.msra.mxu0 %v6281
  %6993 = vmatpush.bf16.msra.mxu0 %v6273
  %6994 = vmatpush.bf16.msra.mxu0 %v6265
  %6995 = vmatpush.bf16.msra.mxu0 %v6257
  %6996 = vmatpush.bf16.msra.mxu0 %v6249
  %6997 = vmatpush.bf16.msra.mxu0 %v6241
  %6998 = vmatpush.bf16.msra.mxu0 %v6233
  %6999 = vmatpush.bf16.msra.mxu0 %v6225
  %7000 = vmatmul.bf16.gmra.mxu0 %v5170
  %v7001 = vpop.f32.mrf.mxu0
  %v7002 = vadd.f32 %v5441, %v7001
  %v7003 = vpop.f32.mrf.mxu0
  %7004 = vdwg.mxu0
  %7005 = vmatpush.bf16.msra.mxu0 %v6345
  %7006 = vmatpush.bf16.msra.mxu0 %v6337
  %7007 = vmatpush.bf16.msra.mxu0 %v6329
  %7008 = vmatpush.bf16.msra.mxu0 %v6321
  %7009 = vmatpush.bf16.msra.mxu0 %v6313
  %7010 = vmatpush.bf16.msra.mxu0 %v6305
  %7011 = vmatpush.bf16.msra.mxu0 %v6297
  %7012 = vmatpush.bf16.msra.mxu0 %v6289
  %7013 = vmatmul.bf16.gmra.mxu0 %v5171
  %v7014 = vpop.f32.mrf.mxu0
  %v7015 = vadd.f32 %v7002, %v7014
  %v7016 = vpop.f32.mrf.mxu0
  %7017 = vdwg.mxu0
  %7018 = vmatpush.bf16.msra.mxu0 %v6409
  %7019 = vmatpush.bf16.msra.mxu0 %v6401
  %7020 = vmatpush.bf16.msra.mxu0 %v6393
  %7021 = vmatpush.bf16.msra.mxu0 %v6385
  %7022 = vmatpush.bf16.msra.mxu0 %v6377
  %7023 = vmatpush.bf16.msra.mxu0 %v6369
  %7024 = vmatpush.bf16.msra.mxu0 %v6361
  %7025 = vmatpush.bf16.msra.mxu0 %v6353
  %7026 = vmatmul.bf16.gmra.mxu0 %v5172
  %v7027 = vpop.f32.mrf.mxu0
  %v7028 = vadd.f32 %v7015, %v7027
  %v7029 = vpop.f32.mrf.mxu0
  %7030 = vdwg.mxu0
  %7031 = vmatpush.bf16.msra.mxu0 %v6473
  %7032 = vmatpush.bf16.msra.mxu0 %v6465
  %7033 = vmatpush.bf16.msra.mxu0 %v6457
  %7034 = vmatpush.bf16.msra.mxu0 %v6449
  %7035 = vmatpush.bf16.msra.mxu0 %v6441
  %7036 = vmatpush.bf16.msra.mxu0 %v6433
  %7037 = vmatpush.bf16.msra.mxu0 %v6425
  %7038 = vmatpush.bf16.msra.mxu0 %v6417
  %7039 = vmatmul.bf16.gmra.mxu0 %v5173
  %v7040 = vpop.f32.mrf.mxu0
  %v7041 = vadd.f32 %v7028, %v7040
  %v7042 = vpop.f32.mrf.mxu0
  %7043 = vdwg.mxu0
  %7044 = vmatpush.bf16.msra.mxu0 %v6282
  %7045 = vmatpush.bf16.msra.mxu0 %v6274
  %7046 = vmatpush.bf16.msra.mxu0 %v6266
  %7047 = vmatpush.bf16.msra.mxu0 %v6258
  %7048 = vmatpush.bf16.msra.mxu0 %v6250
  %7049 = vmatpush.bf16.msra.mxu0 %v6242
  %7050 = vmatpush.bf16.msra.mxu0 %v6234
  %7051 = vmatpush.bf16.msra.mxu0 %v6226
  %7052 = vmatmul.bf16.gmra.mxu0 %v5170
  %v7053 = vpop.f32.mrf.mxu0
  %v7054 = vadd.f32 %v5442, %v7053
  %v7055 = vpop.f32.mrf.mxu0
  %7056 = vdwg.mxu0
  %7057 = vmatpush.bf16.msra.mxu0 %v6346
  %7058 = vmatpush.bf16.msra.mxu0 %v6338
  %7059 = vmatpush.bf16.msra.mxu0 %v6330
  %7060 = vmatpush.bf16.msra.mxu0 %v6322
  %7061 = vmatpush.bf16.msra.mxu0 %v6314
  %7062 = vmatpush.bf16.msra.mxu0 %v6306
  %7063 = vmatpush.bf16.msra.mxu0 %v6298
  %7064 = vmatpush.bf16.msra.mxu0 %v6290
  %7065 = vmatmul.bf16.gmra.mxu0 %v5171
  %v7066 = vpop.f32.mrf.mxu0
  %v7067 = vadd.f32 %v7054, %v7066
  %v7068 = vpop.f32.mrf.mxu0
  %7069 = vdwg.mxu0
  %7070 = vmatpush.bf16.msra.mxu0 %v6410
  %7071 = vmatpush.bf16.msra.mxu0 %v6402
  %7072 = vmatpush.bf16.msra.mxu0 %v6394
  %7073 = vmatpush.bf16.msra.mxu0 %v6386
  %7074 = vmatpush.bf16.msra.mxu0 %v6378
  %7075 = vmatpush.bf16.msra.mxu0 %v6370
  %7076 = vmatpush.bf16.msra.mxu0 %v6362
  %7077 = vmatpush.bf16.msra.mxu0 %v6354
  %7078 = vmatmul.bf16.gmra.mxu0 %v5172
  %v7079 = vpop.f32.mrf.mxu0
  %v7080 = vadd.f32 %v7067, %v7079
  %v7081 = vpop.f32.mrf.mxu0
  %7082 = vdwg.mxu0
  %7083 = vmatpush.bf16.msra.mxu0 %v6474
  %7084 = vmatpush.bf16.msra.mxu0 %v6466
  %7085 = vmatpush.bf16.msra.mxu0 %v6458
  %7086 = vmatpush.bf16.msra.mxu0 %v6450
  %7087 = vmatpush.bf16.msra.mxu0 %v6442
  %7088 = vmatpush.bf16.msra.mxu0 %v6434
  %7089 = vmatpush.bf16.msra.mxu0 %v6426
  %7090 = vmatpush.bf16.msra.mxu0 %v6418
  %7091 = vmatmul.bf16.gmra.mxu0 %v5173
  %v7092 = vpop.f32.mrf.mxu0
  %v7093 = vadd.f32 %v7080, %v7092
  %v7094 = vpop.f32.mrf.mxu0
  %7095 = vdwg.mxu0
  %7096 = vmatpush.bf16.msra.mxu0 %v6283
  %7097 = vmatpush.bf16.msra.mxu0 %v6275
  %7098 = vmatpush.bf16.msra.mxu0 %v6267
  %7099 = vmatpush.bf16.msra.mxu0 %v6259
  %7100 = vmatpush.bf16.msra.mxu0 %v6251
  %7101 = vmatpush.bf16.msra.mxu0 %v6243
  %7102 = vmatpush.bf16.msra.mxu0 %v6235
  %7103 = vmatpush.bf16.msra.mxu0 %v6227
  %7104 = vmatmul.bf16.gmra.mxu0 %v5170
  %v7105 = vpop.f32.mrf.mxu0
  %v7106 = vadd.f32 %v5443, %v7105
  %v7107 = vpop.f32.mrf.mxu0
  %7108 = vdwg.mxu0
  %7109 = vmatpush.bf16.msra.mxu0 %v6347
  %7110 = vmatpush.bf16.msra.mxu0 %v6339
  %7111 = vmatpush.bf16.msra.mxu0 %v6331
  %7112 = vmatpush.bf16.msra.mxu0 %v6323
  %7113 = vmatpush.bf16.msra.mxu0 %v6315
  %7114 = vmatpush.bf16.msra.mxu0 %v6307
  %7115 = vmatpush.bf16.msra.mxu0 %v6299
  %7116 = vmatpush.bf16.msra.mxu0 %v6291
  %7117 = vmatmul.bf16.gmra.mxu0 %v5171
  %v7118 = vpop.f32.mrf.mxu0
  %v7119 = vadd.f32 %v7106, %v7118
  %v7120 = vpop.f32.mrf.mxu0
  %7121 = vdwg.mxu0
  %7122 = vmatpush.bf16.msra.mxu0 %v6411
  %7123 = vmatpush.bf16.msra.mxu0 %v6403
  %7124 = vmatpush.bf16.msra.mxu0 %v6395
  %7125 = vmatpush.bf16.msra.mxu0 %v6387
  %7126 = vmatpush.bf16.msra.mxu0 %v6379
  %7127 = vmatpush.bf16.msra.mxu0 %v6371
  %7128 = vmatpush.bf16.msra.mxu0 %v6363
  %7129 = vmatpush.bf16.msra.mxu0 %v6355
  %7130 = vmatmul.bf16.gmra.mxu0 %v5172
  %v7131 = vpop.f32.mrf.mxu0
  %v7132 = vadd.f32 %v7119, %v7131
  %v7133 = vpop.f32.mrf.mxu0
  %7134 = vdwg.mxu0
  %7135 = vmatpush.bf16.msra.mxu0 %v6475
  %7136 = vmatpush.bf16.msra.mxu0 %v6467
  %7137 = vmatpush.bf16.msra.mxu0 %v6459
  %7138 = vmatpush.bf16.msra.mxu0 %v6451
  %7139 = vmatpush.bf16.msra.mxu0 %v6443
  %7140 = vmatpush.bf16.msra.mxu0 %v6435
  %7141 = vmatpush.bf16.msra.mxu0 %v6427
  %7142 = vmatpush.bf16.msra.mxu0 %v6419
  %7143 = vmatmul.bf16.gmra.mxu0 %v5173
  %v7144 = vpop.f32.mrf.mxu0
  %v7145 = vadd.f32 %v7132, %v7144
  %v7146 = vpop.f32.mrf.mxu0
  %7147 = vdwg.mxu0
  %v7148 = vmax.f32 %v6781, 0.0
  %v7149 = vmax.f32 %v6833, 0.0
  %v7150 = vmax.f32 %v6885, 0.0
  %v7151 = vmax.f32 %v6937, 0.0
  %v7152 = vmax.f32 %v6989, 0.0
  %v7153 = vmax.f32 %v7041, 0.0
  %v7154 = vmax.f32 %v7093, 0.0
  %v7155 = vmax.f32 %v7145, 0.0
  %v7156 = vpack.c.bf16 %v7148, %v7148
  %v7157 = vpack.c.bf16 %v7149, %v7149
  %v7158 = vpack.c.bf16 %v7150, %v7150
  %v7159 = vpack.c.bf16 %v7151, %v7151
  %v7160 = vpack.c.bf16 %v7152, %v7152
  %v7161 = vpack.c.bf16 %v7153, %v7153
  %v7162 = vpack.c.bf16 %v7154, %v7154
  %v7163 = vpack.c.bf16 %v7155, %v7155
  %s7164 = smul.u32 4, 128
  %s7165 = smul.u32 %s7164, 2
  %s7166 = sshll.u32 %s7165, 4
  %7167 = dma.done %s41, %s7166
  %v7168 = vld [vmem:[#allocation3] sm:$0xff]
  %v7169 = vld [vmem:[#allocation3 + $0x8] sm:$0xff]
  %v7170 = vld [vmem:[#allocation3 + $0x10] sm:$0xff]
  %v7171 = vld [vmem:[#allocation3 + $0x18] sm:$0xff]
  %v7172 = vld [vmem:[#allocation3 + $0x20] sm:$0xff]
  %v7173 = vld [vmem:[#allocation3 + $0x28] sm:$0xff]
  %v7174 = vld [vmem:[#allocation3 + $0x30] sm:$0xff]
  %v7175 = vld [vmem:[#allocation3 + $0x38] sm:$0xff]
  %v7176 = vld [vmem:[#allocation3 + $0x40] sm:$0xff]
  %v7177 = vld [vmem:[#allocation3 + $0x48] sm:$0xff]
  %v7178 = vld [vmem:[#allocation3 + $0x50] sm:$0xff]
  %v7179 = vld [vmem:[#allocation3 + $0x58] sm:$0xff]
  %v7180 = vld [vmem:[#allocation3 + $0x60] sm:$0xff]
  %v7181 = vld [vmem:[#allocation3 + $0x68] sm:$0xff]
  %v7182 = vld [vmem:[#allocation3 + $0x70] sm:$0xff]
  %v7183 = vld [vmem:[#allocation3 + $0x78] sm:$0xff]
  %v7184 = vld [vmem:[#allocation3 + $0x80] sm:$0xff]
  %v7185 = vld [vmem:[#allocation3 + $0x88] sm:$0xff]
  %v7186 = vld [vmem:[#allocation3 + $0x90] sm:$0xff]
  %v7187 = vld [vmem:[#allocation3 + $0x98] sm:$0xff]
  %v7188 = vld [vmem:[#allocation3 + $0xa0] sm:$0xff]
  %v7189 = vld [vmem:[#allocation3 + $0xa8] sm:$0xff]
  %v7190 = vld [vmem:[#allocation3 + $0xb0] sm:$0xff]
  %v7191 = vld [vmem:[#allocation3 + $0xb8] sm:$0xff]
  %v7192 = vld [vmem:[#allocation3 + $0xc0] sm:$0xff]
  %v7193 = vld [vmem:[#allocation3 + $0xc8] sm:$0xff]
  %v7194 = vld [vmem:[#allocation3 + $0xd0] sm:$0xff]
  %v7195 = vld [vmem:[#allocation3 + $0xd8] sm:$0xff]
  %v7196 = vld [vmem:[#allocation3 + $0xe0] sm:$0xff]
  %v7197 = vld [vmem:[#allocation3 + $0xe8] sm:$0xff]
  %v7198 = vld [vmem:[#allocation3 + $0xf0] sm:$0xff]
  %v7199 = vld [vmem:[#allocation3 + $0xf8] sm:$0xff]
  %v7200 = vld [vmem:[#allocation3 + $0x100] sm:$0xff]
  %v7201 = vld [vmem:[#allocation3 + $0x108] sm:$0xff]
  %v7202 = vld [vmem:[#allocation3 + $0x110] sm:$0xff]
  %v7203 = vld [vmem:[#allocation3 + $0x118] sm:$0xff]
  %v7204 = vld [vmem:[#allocation3 + $0x120] sm:$0xff]
  %v7205 = vld [vmem:[#allocation3 + $0x128] sm:$0xff]
  %v7206 = vld [vmem:[#allocation3 + $0x130] sm:$0xff]
  %v7207 = vld [vmem:[#allocation3 + $0x138] sm:$0xff]
  %v7208 = vld [vmem:[#allocation3 + $0x140] sm:$0xff]
  %v7209 = vld [vmem:[#allocation3 + $0x148] sm:$0xff]
  %v7210 = vld [vmem:[#allocation3 + $0x150] sm:$0xff]
  %v7211 = vld [vmem:[#allocation3 + $0x158] sm:$0xff]
  %v7212 = vld [vmem:[#allocation3 + $0x160] sm:$0xff]
  %v7213 = vld [vmem:[#allocation3 + $0x168] sm:$0xff]
  %v7214 = vld [vmem:[#allocation3 + $0x170] sm:$0xff]
  %v7215 = vld [vmem:[#allocation3 + $0x178] sm:$0xff]
  %v7216 = vld [vmem:[#allocation3 + $0x180] sm:$0xff]
  %v7217 = vld [vmem:[#allocation3 + $0x188] sm:$0xff]
  %v7218 = vld [vmem:[#allocation3 + $0x190] sm:$0xff]
  %v7219 = vld [vmem:[#allocation3 + $0x198] sm:$0xff]
  %v7220 = vld [vmem:[#allocation3 + $0x1a0] sm:$0xff]
  %v7221 = vld [vmem:[#allocation3 + $0x1a8] sm:$0xff]
  %v7222 = vld [vmem:[#allocation3 + $0x1b0] sm:$0xff]
  %v7223 = vld [vmem:[#allocation3 + $0x1b8] sm:$0xff]
  %v7224 = vld [vmem:[#allocation3 + $0x1c0] sm:$0xff]
  %v7225 = vld [vmem:[#allocation3 + $0x1c8] sm:$0xff]
  %v7226 = vld [vmem:[#allocation3 + $0x1d0] sm:$0xff]
  %v7227 = vld [vmem:[#allocation3 + $0x1d8] sm:$0xff]
  %v7228 = vld [vmem:[#allocation3 + $0x1e0] sm:$0xff]
  %v7229 = vld [vmem:[#allocation3 + $0x1e8] sm:$0xff]
  %v7230 = vld [vmem:[#allocation3 + $0x1f0] sm:$0xff]
  %v7231 = vld [vmem:[#allocation3 + $0x1f8] sm:$0xff]
  %v7232 = vld [vmem:[#allocation3 + $0x200] sm:$0xff]
  %v7233 = vld [vmem:[#allocation3 + $0x208] sm:$0xff]
  %v7234 = vld [vmem:[#allocation3 + $0x210] sm:$0xff]
  %v7235 = vld [vmem:[#allocation3 + $0x218] sm:$0xff]
  %v7236 = vld [vmem:[#allocation3 + $0x220] sm:$0xff]
  %v7237 = vld [vmem:[#allocation3 + $0x228] sm:$0xff]
  %v7238 = vld [vmem:[#allocation3 + $0x230] sm:$0xff]
  %v7239 = vld [vmem:[#allocation3 + $0x238] sm:$0xff]
  %v7240 = vld [vmem:[#allocation3 + $0x240] sm:$0xff]
  %v7241 = vld [vmem:[#allocation3 + $0x248] sm:$0xff]
  %v7242 = vld [vmem:[#allocation3 + $0x250] sm:$0xff]
  %v7243 = vld [vmem:[#allocation3 + $0x258] sm:$0xff]
  %v7244 = vld [vmem:[#allocation3 + $0x260] sm:$0xff]
  %v7245 = vld [vmem:[#allocation3 + $0x268] sm:$0xff]
  %v7246 = vld [vmem:[#allocation3 + $0x270] sm:$0xff]
  %v7247 = vld [vmem:[#allocation3 + $0x278] sm:$0xff]
  %v7248 = vld [vmem:[#allocation3 + $0x280] sm:$0xff]
  %v7249 = vld [vmem:[#allocation3 + $0x288] sm:$0xff]
  %v7250 = vld [vmem:[#allocation3 + $0x290] sm:$0xff]
  %v7251 = vld [vmem:[#allocation3 + $0x298] sm:$0xff]
  %v7252 = vld [vmem:[#allocation3 + $0x2a0] sm:$0xff]
  %v7253 = vld [vmem:[#allocation3 + $0x2a8] sm:$0xff]
  %v7254 = vld [vmem:[#allocation3 + $0x2b0] sm:$0xff]
  %v7255 = vld [vmem:[#allocation3 + $0x2b8] sm:$0xff]
  %v7256 = vld [vmem:[#allocation3 + $0x2c0] sm:$0xff]
  %v7257 = vld [vmem:[#allocation3 + $0x2c8] sm:$0xff]
  %v7258 = vld [vmem:[#allocation3 + $0x2d0] sm:$0xff]
  %v7259 = vld [vmem:[#allocation3 + $0x2d8] sm:$0xff]
  %v7260 = vld [vmem:[#allocation3 + $0x2e0] sm:$0xff]
  %v7261 = vld [vmem:[#allocation3 + $0x2e8] sm:$0xff]
  %v7262 = vld [vmem:[#allocation3 + $0x2f0] sm:$0xff]
  %v7263 = vld [vmem:[#allocation3 + $0x2f8] sm:$0xff]
  %v7264 = vld [vmem:[#allocation3 + $0x300] sm:$0xff]
  %v7265 = vld [vmem:[#allocation3 + $0x308] sm:$0xff]
  %v7266 = vld [vmem:[#allocation3 + $0x310] sm:$0xff]
  %v7267 = vld [vmem:[#allocation3 + $0x318] sm:$0xff]
  %v7268 = vld [vmem:[#allocation3 + $0x320] sm:$0xff]
  %v7269 = vld [vmem:[#allocation3 + $0x328] sm:$0xff]
  %v7270 = vld [vmem:[#allocation3 + $0x330] sm:$0xff]
  %v7271 = vld [vmem:[#allocation3 + $0x338] sm:$0xff]
  %v7272 = vld [vmem:[#allocation3 + $0x340] sm:$0xff]
  %v7273 = vld [vmem:[#allocation3 + $0x348] sm:$0xff]
  %v7274 = vld [vmem:[#allocation3 + $0x350] sm:$0xff]
  %v7275 = vld [vmem:[#allocation3 + $0x358] sm:$0xff]
  %v7276 = vld [vmem:[#allocation3 + $0x360] sm:$0xff]
  %v7277 = vld [vmem:[#allocation3 + $0x368] sm:$0xff]
  %v7278 = vld [vmem:[#allocation3 + $0x370] sm:$0xff]
  %v7279 = vld [vmem:[#allocation3 + $0x378] sm:$0xff]
  %v7280 = vld [vmem:[#allocation3 + $0x380] sm:$0xff]
  %v7281 = vld [vmem:[#allocation3 + $0x388] sm:$0xff]
  %v7282 = vld [vmem:[#allocation3 + $0x390] sm:$0xff]
  %v7283 = vld [vmem:[#allocation3 + $0x398] sm:$0xff]
  %v7284 = vld [vmem:[#allocation3 + $0x3a0] sm:$0xff]
  %v7285 = vld [vmem:[#allocation3 + $0x3a8] sm:$0xff]
  %v7286 = vld [vmem:[#allocation3 + $0x3b0] sm:$0xff]
  %v7287 = vld [vmem:[#allocation3 + $0x3b8] sm:$0xff]
  %v7288 = vld [vmem:[#allocation3 + $0x3c0] sm:$0xff]
  %v7289 = vld [vmem:[#allocation3 + $0x3c8] sm:$0xff]
  %v7290 = vld [vmem:[#allocation3 + $0x3d0] sm:$0xff]
  %v7291 = vld [vmem:[#allocation3 + $0x3d8] sm:$0xff]
  %v7292 = vld [vmem:[#allocation3 + $0x3e0] sm:$0xff]
  %v7293 = vld [vmem:[#allocation3 + $0x3e8] sm:$0xff]
  %v7294 = vld [vmem:[#allocation3 + $0x3f0] sm:$0xff]
  %v7295 = vld [vmem:[#allocation3 + $0x3f8] sm:$0xff]
  %v7296 = vld [vmem:[%s6] sm:$0x3]
  %v7298 = vperm.slane %v7296, 0
  %v7299 = vperm.slane %v7296, 1
  %v7430 = vunpack.c.l.b16 %v7168
  %v7431 = vunpack.c.h.b16 %v7168
  %v7432 = vunpack.c.l.b16 %v7169
  %v7433 = vunpack.c.h.b16 %v7169
  %v7434 = vunpack.c.l.b16 %v7170
  %v7435 = vunpack.c.h.b16 %v7170
  %v7436 = vunpack.c.l.b16 %v7171
  %v7437 = vunpack.c.h.b16 %v7171
  %v7438 = vunpack.c.l.b16 %v7172
  %v7439 = vunpack.c.h.b16 %v7172
  %v7440 = vunpack.c.l.b16 %v7173
  %v7441 = vunpack.c.h.b16 %v7173
  %v7442 = vunpack.c.l.b16 %v7174
  %v7443 = vunpack.c.h.b16 %v7174
  %v7444 = vunpack.c.l.b16 %v7175
  %v7445 = vunpack.c.h.b16 %v7175
  %v7446 = vunpack.c.l.b16 %v7176
  %v7447 = vunpack.c.h.b16 %v7176
  %v7448 = vunpack.c.l.b16 %v7177
  %v7449 = vunpack.c.h.b16 %v7177
  %v7450 = vunpack.c.l.b16 %v7178
  %v7451 = vunpack.c.h.b16 %v7178
  %v7452 = vunpack.c.l.b16 %v7179
  %v7453 = vunpack.c.h.b16 %v7179
  %v7454 = vunpack.c.l.b16 %v7180
  %v7455 = vunpack.c.h.b16 %v7180
  %v7456 = vunpack.c.l.b16 %v7181
  %v7457 = vunpack.c.h.b16 %v7181
  %v7458 = vunpack.c.l.b16 %v7182
  %v7459 = vunpack.c.h.b16 %v7182
  %v7460 = vunpack.c.l.b16 %v7183
  %v7461 = vunpack.c.h.b16 %v7183
  %v7462 = vunpack.c.l.b16 %v7184
  %v7463 = vunpack.c.h.b16 %v7184
  %v7464 = vunpack.c.l.b16 %v7185
  %v7465 = vunpack.c.h.b16 %v7185
  %v7466 = vunpack.c.l.b16 %v7186
  %v7467 = vunpack.c.h.b16 %v7186
  %v7468 = vunpack.c.l.b16 %v7187
  %v7469 = vunpack.c.h.b16 %v7187
  %v7470 = vunpack.c.l.b16 %v7188
  %v7471 = vunpack.c.h.b16 %v7188
  %v7472 = vunpack.c.l.b16 %v7189
  %v7473 = vunpack.c.h.b16 %v7189
  %v7474 = vunpack.c.l.b16 %v7190
  %v7475 = vunpack.c.h.b16 %v7190
  %v7476 = vunpack.c.l.b16 %v7191
  %v7477 = vunpack.c.h.b16 %v7191
  %v7478 = vunpack.c.l.b16 %v7192
  %v7479 = vunpack.c.h.b16 %v7192
  %v7480 = vunpack.c.l.b16 %v7193
  %v7481 = vunpack.c.h.b16 %v7193
  %v7482 = vunpack.c.l.b16 %v7194
  %v7483 = vunpack.c.h.b16 %v7194
  %v7484 = vunpack.c.l.b16 %v7195
  %v7485 = vunpack.c.h.b16 %v7195
  %v7486 = vunpack.c.l.b16 %v7196
  %v7487 = vunpack.c.h.b16 %v7196
  %v7488 = vunpack.c.l.b16 %v7197
  %v7489 = vunpack.c.h.b16 %v7197
  %v7490 = vunpack.c.l.b16 %v7198
  %v7491 = vunpack.c.h.b16 %v7198
  %v7492 = vunpack.c.l.b16 %v7199
  %v7493 = vunpack.c.h.b16 %v7199
  %v7494 = vunpack.c.l.b16 %v7200
  %v7495 = vunpack.c.h.b16 %v7200
  %v7496 = vunpack.c.l.b16 %v7201
  %v7497 = vunpack.c.h.b16 %v7201
  %v7498 = vunpack.c.l.b16 %v7202
  %v7499 = vunpack.c.h.b16 %v7202
  %v7500 = vunpack.c.l.b16 %v7203
  %v7501 = vunpack.c.h.b16 %v7203
  %v7502 = vunpack.c.l.b16 %v7204
  %v7503 = vunpack.c.h.b16 %v7204
  %v7504 = vunpack.c.l.b16 %v7205
  %v7505 = vunpack.c.h.b16 %v7205
  %v7506 = vunpack.c.l.b16 %v7206
  %v7507 = vunpack.c.h.b16 %v7206
  %v7508 = vunpack.c.l.b16 %v7207
  %v7509 = vunpack.c.h.b16 %v7207
  %v7510 = vunpack.c.l.b16 %v7208
  %v7511 = vunpack.c.h.b16 %v7208
  %v7512 = vunpack.c.l.b16 %v7209
  %v7513 = vunpack.c.h.b16 %v7209
  %v7514 = vunpack.c.l.b16 %v7210
  %v7515 = vunpack.c.h.b16 %v7210
  %v7516 = vunpack.c.l.b16 %v7211
  %v7517 = vunpack.c.h.b16 %v7211
  %v7518 = vunpack.c.l.b16 %v7212
  %v7519 = vunpack.c.h.b16 %v7212
  %v7520 = vunpack.c.l.b16 %v7213
  %v7521 = vunpack.c.h.b16 %v7213
  %v7522 = vunpack.c.l.b16 %v7214
  %v7523 = vunpack.c.h.b16 %v7214
  %v7524 = vunpack.c.l.b16 %v7215
  %v7525 = vunpack.c.h.b16 %v7215
  %v7526 = vunpack.c.l.b16 %v7216
  %v7527 = vunpack.c.h.b16 %v7216
  %v7528 = vunpack.c.l.b16 %v7217
  %v7529 = vunpack.c.h.b16 %v7217
  %v7530 = vunpack.c.l.b16 %v7218
  %v7531 = vunpack.c.h.b16 %v7218
  %v7532 = vunpack.c.l.b16 %v7219
  %v7533 = vunpack.c.h.b16 %v7219
  %v7534 = vunpack.c.l.b16 %v7220
  %v7535 = vunpack.c.h.b16 %v7220
  %v7536 = vunpack.c.l.b16 %v7221
  %v7537 = vunpack.c.h.b16 %v7221
  %v7538 = vunpack.c.l.b16 %v7222
  %v7539 = vunpack.c.h.b16 %v7222
  %v7540 = vunpack.c.l.b16 %v7223
  %v7541 = vunpack.c.h.b16 %v7223
  %v7542 = vunpack.c.l.b16 %v7224
  %v7543 = vunpack.c.h.b16 %v7224
  %v7544 = vunpack.c.l.b16 %v7225
  %v7545 = vunpack.c.h.b16 %v7225
  %v7546 = vunpack.c.l.b16 %v7226
  %v7547 = vunpack.c.h.b16 %v7226
  %v7548 = vunpack.c.l.b16 %v7227
  %v7549 = vunpack.c.h.b16 %v7227
  %v7550 = vunpack.c.l.b16 %v7228
  %v7551 = vunpack.c.h.b16 %v7228
  %v7552 = vunpack.c.l.b16 %v7229
  %v7553 = vunpack.c.h.b16 %v7229
  %v7554 = vunpack.c.l.b16 %v7230
  %v7555 = vunpack.c.h.b16 %v7230
  %v7556 = vunpack.c.l.b16 %v7231
  %v7557 = vunpack.c.h.b16 %v7231
  %v7558 = vunpack.c.l.b16 %v7232
  %v7559 = vunpack.c.h.b16 %v7232
  %v7560 = vunpack.c.l.b16 %v7233
  %v7561 = vunpack.c.h.b16 %v7233
  %v7562 = vunpack.c.l.b16 %v7234
  %v7563 = vunpack.c.h.b16 %v7234
  %v7564 = vunpack.c.l.b16 %v7235
  %v7565 = vunpack.c.h.b16 %v7235
  %v7566 = vunpack.c.l.b16 %v7236
  %v7567 = vunpack.c.h.b16 %v7236
  %v7568 = vunpack.c.l.b16 %v7237
  %v7569 = vunpack.c.h.b16 %v7237
  %v7570 = vunpack.c.l.b16 %v7238
  %v7571 = vunpack.c.h.b16 %v7238
  %v7572 = vunpack.c.l.b16 %v7239
  %v7573 = vunpack.c.h.b16 %v7239
  %v7574 = vunpack.c.l.b16 %v7240
  %v7575 = vunpack.c.h.b16 %v7240
  %v7576 = vunpack.c.l.b16 %v7241
  %v7577 = vunpack.c.h.b16 %v7241
  %v7578 = vunpack.c.l.b16 %v7242
  %v7579 = vunpack.c.h.b16 %v7242
  %v7580 = vunpack.c.l.b16 %v7243
  %v7581 = vunpack.c.h.b16 %v7243
  %v7582 = vunpack.c.l.b16 %v7244
  %v7583 = vunpack.c.h.b16 %v7244
  %v7584 = vunpack.c.l.b16 %v7245
  %v7585 = vunpack.c.h.b16 %v7245
  %v7586 = vunpack.c.l.b16 %v7246
  %v7587 = vunpack.c.h.b16 %v7246
  %v7588 = vunpack.c.l.b16 %v7247
  %v7589 = vunpack.c.h.b16 %v7247
  %v7590 = vunpack.c.l.b16 %v7248
  %v7591 = vunpack.c.h.b16 %v7248
  %v7592 = vunpack.c.l.b16 %v7249
  %v7593 = vunpack.c.h.b16 %v7249
  %v7594 = vunpack.c.l.b16 %v7250
  %v7595 = vunpack.c.h.b16 %v7250
  %v7596 = vunpack.c.l.b16 %v7251
  %v7597 = vunpack.c.h.b16 %v7251
  %v7598 = vunpack.c.l.b16 %v7252
  %v7599 = vunpack.c.h.b16 %v7252
  %v7600 = vunpack.c.l.b16 %v7253
  %v7601 = vunpack.c.h.b16 %v7253
  %v7602 = vunpack.c.l.b16 %v7254
  %v7603 = vunpack.c.h.b16 %v7254
  %v7604 = vunpack.c.l.b16 %v7255
  %v7605 = vunpack.c.h.b16 %v7255
  %v7606 = vunpack.c.l.b16 %v7256
  %v7607 = vunpack.c.h.b16 %v7256
  %v7608 = vunpack.c.l.b16 %v7257
  %v7609 = vunpack.c.h.b16 %v7257
  %v7610 = vunpack.c.l.b16 %v7258
  %v7611 = vunpack.c.h.b16 %v7258
  %v7612 = vunpack.c.l.b16 %v7259
  %v7613 = vunpack.c.h.b16 %v7259
  %v7614 = vunpack.c.l.b16 %v7260
  %v7615 = vunpack.c.h.b16 %v7260
  %v7616 = vunpack.c.l.b16 %v7261
  %v7617 = vunpack.c.h.b16 %v7261
  %v7618 = vunpack.c.l.b16 %v7262
  %v7619 = vunpack.c.h.b16 %v7262
  %v7620 = vunpack.c.l.b16 %v7263
  %v7621 = vunpack.c.h.b16 %v7263
  %v7622 = vunpack.c.l.b16 %v7264
  %v7623 = vunpack.c.h.b16 %v7264
  %v7624 = vunpack.c.l.b16 %v7265
  %v7625 = vunpack.c.h.b16 %v7265
  %v7626 = vunpack.c.l.b16 %v7266
  %v7627 = vunpack.c.h.b16 %v7266
  %v7628 = vunpack.c.l.b16 %v7267
  %v7629 = vunpack.c.h.b16 %v7267
  %v7630 = vunpack.c.l.b16 %v7268
  %v7631 = vunpack.c.h.b16 %v7268
  %v7632 = vunpack.c.l.b16 %v7269
  %v7633 = vunpack.c.h.b16 %v7269
  %v7634 = vunpack.c.l.b16 %v7270
  %v7635 = vunpack.c.h.b16 %v7270
  %v7636 = vunpack.c.l.b16 %v7271
  %v7637 = vunpack.c.h.b16 %v7271
  %v7638 = vunpack.c.l.b16 %v7272
  %v7639 = vunpack.c.h.b16 %v7272
  %v7640 = vunpack.c.l.b16 %v7273
  %v7641 = vunpack.c.h.b16 %v7273
  %v7642 = vunpack.c.l.b16 %v7274
  %v7643 = vunpack.c.h.b16 %v7274
  %v7644 = vunpack.c.l.b16 %v7275
  %v7645 = vunpack.c.h.b16 %v7275
  %v7646 = vunpack.c.l.b16 %v7276
  %v7647 = vunpack.c.h.b16 %v7276
  %v7648 = vunpack.c.l.b16 %v7277
  %v7649 = vunpack.c.h.b16 %v7277
  %v7650 = vunpack.c.l.b16 %v7278
  %v7651 = vunpack.c.h.b16 %v7278
  %v7652 = vunpack.c.l.b16 %v7279
  %v7653 = vunpack.c.h.b16 %v7279
  %v7654 = vunpack.c.l.b16 %v7280
  %v7655 = vunpack.c.h.b16 %v7280
  %v7656 = vunpack.c.l.b16 %v7281
  %v7657 = vunpack.c.h.b16 %v7281
  %v7658 = vunpack.c.l.b16 %v7282
  %v7659 = vunpack.c.h.b16 %v7282
  %v7660 = vunpack.c.l.b16 %v7283
  %v7661 = vunpack.c.h.b16 %v7283
  %v7662 = vunpack.c.l.b16 %v7284
  %v7663 = vunpack.c.h.b16 %v7284
  %v7664 = vunpack.c.l.b16 %v7285
  %v7665 = vunpack.c.h.b16 %v7285
  %v7666 = vunpack.c.l.b16 %v7286
  %v7667 = vunpack.c.h.b16 %v7286
  %v7668 = vunpack.c.l.b16 %v7287
  %v7669 = vunpack.c.h.b16 %v7287
  %v7670 = vunpack.c.l.b16 %v7288
  %v7671 = vunpack.c.h.b16 %v7288
  %v7672 = vunpack.c.l.b16 %v7289
  %v7673 = vunpack.c.h.b16 %v7289
  %v7674 = vunpack.c.l.b16 %v7290
  %v7675 = vunpack.c.h.b16 %v7290
  %v7676 = vunpack.c.l.b16 %v7291
  %v7677 = vunpack.c.h.b16 %v7291
  %v7678 = vunpack.c.l.b16 %v7292
  %v7679 = vunpack.c.h.b16 %v7292
  %v7680 = vunpack.c.l.b16 %v7293
  %v7681 = vunpack.c.h.b16 %v7293
  %v7682 = vunpack.c.l.b16 %v7294
  %v7683 = vunpack.c.h.b16 %v7294
  %v7684 = vunpack.c.l.b16 %v7295
  %v7685 = vunpack.c.h.b16 %v7295
  %v7686 = vpack.c.b16 %v7432, %v7430
  %v7687 = vpack.c.b16 %v7433, %v7431
  %v7688 = vpack.c.b16 %v7436, %v7434
  %v7689 = vpack.c.b16 %v7437, %v7435
  %v7690 = vpack.c.b16 %v7440, %v7438
  %v7691 = vpack.c.b16 %v7441, %v7439
  %v7692 = vpack.c.b16 %v7444, %v7442
  %v7693 = vpack.c.b16 %v7445, %v7443
  %v7694 = vpack.c.b16 %v7448, %v7446
  %v7695 = vpack.c.b16 %v7449, %v7447
  %v7696 = vpack.c.b16 %v7452, %v7450
  %v7697 = vpack.c.b16 %v7453, %v7451
  %v7698 = vpack.c.b16 %v7456, %v7454
  %v7699 = vpack.c.b16 %v7457, %v7455
  %v7700 = vpack.c.b16 %v7460, %v7458
  %v7701 = vpack.c.b16 %v7461, %v7459
  %v7702 = vpack.c.b16 %v7464, %v7462
  %v7703 = vpack.c.b16 %v7465, %v7463
  %v7704 = vpack.c.b16 %v7468, %v7466
  %v7705 = vpack.c.b16 %v7469, %v7467
  %v7706 = vpack.c.b16 %v7472, %v7470
  %v7707 = vpack.c.b16 %v7473, %v7471
  %v7708 = vpack.c.b16 %v7476, %v7474
  %v7709 = vpack.c.b16 %v7477, %v7475
  %v7710 = vpack.c.b16 %v7480, %v7478
  %v7711 = vpack.c.b16 %v7481, %v7479
  %v7712 = vpack.c.b16 %v7484, %v7482
  %v7713 = vpack.c.b16 %v7485, %v7483
  %v7714 = vpack.c.b16 %v7488, %v7486
  %v7715 = vpack.c.b16 %v7489, %v7487
  %v7716 = vpack.c.b16 %v7492, %v7490
  %v7717 = vpack.c.b16 %v7493, %v7491
  %v7718 = vpack.c.b16 %v7496, %v7494
  %v7719 = vpack.c.b16 %v7497, %v7495
  %v7720 = vpack.c.b16 %v7500, %v7498
  %v7721 = vpack.c.b16 %v7501, %v7499
  %v7722 = vpack.c.b16 %v7504, %v7502
  %v7723 = vpack.c.b16 %v7505, %v7503
  %v7724 = vpack.c.b16 %v7508, %v7506
  %v7725 = vpack.c.b16 %v7509, %v7507
  %v7726 = vpack.c.b16 %v7512, %v7510
  %v7727 = vpack.c.b16 %v7513, %v7511
  %v7728 = vpack.c.b16 %v7516, %v7514
  %v7729 = vpack.c.b16 %v7517, %v7515
  %v7730 = vpack.c.b16 %v7520, %v7518
  %v7731 = vpack.c.b16 %v7521, %v7519
  %v7732 = vpack.c.b16 %v7524, %v7522
  %v7733 = vpack.c.b16 %v7525, %v7523
  %v7734 = vpack.c.b16 %v7528, %v7526
  %v7735 = vpack.c.b16 %v7529, %v7527
  %v7736 = vpack.c.b16 %v7532, %v7530
  %v7737 = vpack.c.b16 %v7533, %v7531
  %v7738 = vpack.c.b16 %v7536, %v7534
  %v7739 = vpack.c.b16 %v7537, %v7535
  %v7740 = vpack.c.b16 %v7540, %v7538
  %v7741 = vpack.c.b16 %v7541, %v7539
  %v7742 = vpack.c.b16 %v7544, %v7542
  %v7743 = vpack.c.b16 %v7545, %v7543
  %v7744 = vpack.c.b16 %v7548, %v7546
  %v7745 = vpack.c.b16 %v7549, %v7547
  %v7746 = vpack.c.b16 %v7552, %v7550
  %v7747 = vpack.c.b16 %v7553, %v7551
  %v7748 = vpack.c.b16 %v7556, %v7554
  %v7749 = vpack.c.b16 %v7557, %v7555
  %v7750 = vpack.c.b16 %v7560, %v7558
  %v7751 = vpack.c.b16 %v7561, %v7559
  %v7752 = vpack.c.b16 %v7564, %v7562
  %v7753 = vpack.c.b16 %v7565, %v7563
  %v7754 = vpack.c.b16 %v7568, %v7566
  %v7755 = vpack.c.b16 %v7569, %v7567
  %v7756 = vpack.c.b16 %v7572, %v7570
  %v7757 = vpack.c.b16 %v7573, %v7571
  %v7758 = vpack.c.b16 %v7576, %v7574
  %v7759 = vpack.c.b16 %v7577, %v7575
  %v7760 = vpack.c.b16 %v7580, %v7578
  %v7761 = vpack.c.b16 %v7581, %v7579
  %v7762 = vpack.c.b16 %v7584, %v7582
  %v7763 = vpack.c.b16 %v7585, %v7583
  %v7764 = vpack.c.b16 %v7588, %v7586
  %v7765 = vpack.c.b16 %v7589, %v7587
  %v7766 = vpack.c.b16 %v7592, %v7590
  %v7767 = vpack.c.b16 %v7593, %v7591
  %v7768 = vpack.c.b16 %v7596, %v7594
  %v7769 = vpack.c.b16 %v7597, %v7595
  %v7770 = vpack.c.b16 %v7600, %v7598
  %v7771 = vpack.c.b16 %v7601, %v7599
  %v7772 = vpack.c.b16 %v7604, %v7602
  %v7773 = vpack.c.b16 %v7605, %v7603
  %v7774 = vpack.c.b16 %v7608, %v7606
  %v7775 = vpack.c.b16 %v7609, %v7607
  %v7776 = vpack.c.b16 %v7612, %v7610
  %v7777 = vpack.c.b16 %v7613, %v7611
  %v7778 = vpack.c.b16 %v7616, %v7614
  %v7779 = vpack.c.b16 %v7617, %v7615
  %v7780 = vpack.c.b16 %v7620, %v7618
  %v7781 = vpack.c.b16 %v7621, %v7619
  %v7782 = vpack.c.b16 %v7624, %v7622
  %v7783 = vpack.c.b16 %v7625, %v7623
  %v7784 = vpack.c.b16 %v7628, %v7626
  %v7785 = vpack.c.b16 %v7629, %v7627
  %v7786 = vpack.c.b16 %v7632, %v7630
  %v7787 = vpack.c.b16 %v7633, %v7631
  %v7788 = vpack.c.b16 %v7636, %v7634
  %v7789 = vpack.c.b16 %v7637, %v7635
  %v7790 = vpack.c.b16 %v7640, %v7638
  %v7791 = vpack.c.b16 %v7641, %v7639
  %v7792 = vpack.c.b16 %v7644, %v7642
  %v7793 = vpack.c.b16 %v7645, %v7643
  %v7794 = vpack.c.b16 %v7648, %v7646
  %v7795 = vpack.c.b16 %v7649, %v7647
  %v7796 = vpack.c.b16 %v7652, %v7650
  %v7797 = vpack.c.b16 %v7653, %v7651
  %v7798 = vpack.c.b16 %v7656, %v7654
  %v7799 = vpack.c.b16 %v7657, %v7655
  %v7800 = vpack.c.b16 %v7660, %v7658
  %v7801 = vpack.c.b16 %v7661, %v7659
  %v7802 = vpack.c.b16 %v7664, %v7662
  %v7803 = vpack.c.b16 %v7665, %v7663
  %v7804 = vpack.c.b16 %v7668, %v7666
  %v7805 = vpack.c.b16 %v7669, %v7667
  %v7806 = vpack.c.b16 %v7672, %v7670
  %v7807 = vpack.c.b16 %v7673, %v7671
  %v7808 = vpack.c.b16 %v7676, %v7674
  %v7809 = vpack.c.b16 %v7677, %v7675
  %v7810 = vpack.c.b16 %v7680, %v7678
  %v7811 = vpack.c.b16 %v7681, %v7679
  %v7812 = vpack.c.b16 %v7684, %v7682
  %v7813 = vpack.c.b16 %v7685, %v7683
  %7942 = vmatpush.bf16.msra.mxu0 %v7700
  %7943 = vmatpush.bf16.msra.mxu0 %v7698
  %7944 = vmatpush.bf16.msra.mxu0 %v7696
  %7945 = vmatpush.bf16.msra.mxu0 %v7694
  %7946 = vmatpush.bf16.msra.mxu0 %v7692
  %7947 = vmatpush.bf16.msra.mxu0 %v7690
  %7948 = vmatpush.bf16.msra.mxu0 %v7688
  %7949 = vmatpush.bf16.msra.mxu0 %v7686
  %7950 = vmatmul.bf16.gmra.mxu0 %v7156
  %v7951 = vpop.f32.mrf.mxu0
  %v7952 = vadd.f32 %v7298, %v7951
  %v7953 = vpop.f32.mrf.mxu0
  %7954 = vdwg.mxu0
  %7955 = vmatpush.bf16.msra.mxu0 %v7716
  %7956 = vmatpush.bf16.msra.mxu0 %v7714
  %7957 = vmatpush.bf16.msra.mxu0 %v7712
  %7958 = vmatpush.bf16.msra.mxu0 %v7710
  %7959 = vmatpush.bf16.msra.mxu0 %v7708
  %7960 = vmatpush.bf16.msra.mxu0 %v7706
  %7961 = vmatpush.bf16.msra.mxu0 %v7704
  %7962 = vmatpush.bf16.msra.mxu0 %v7702
  %7963 = vmatmul.bf16.gmra.mxu0 %v7157
  %v7964 = vpop.f32.mrf.mxu0
  %v7965 = vadd.f32 %v7952, %v7964
  %v7966 = vpop.f32.mrf.mxu0
  %7967 = vdwg.mxu0
  %7968 = vmatpush.bf16.msra.mxu0 %v7732
  %7969 = vmatpush.bf16.msra.mxu0 %v7730
  %7970 = vmatpush.bf16.msra.mxu0 %v7728
  %7971 = vmatpush.bf16.msra.mxu0 %v7726
  %7972 = vmatpush.bf16.msra.mxu0 %v7724
  %7973 = vmatpush.bf16.msra.mxu0 %v7722
  %7974 = vmatpush.bf16.msra.mxu0 %v7720
  %7975 = vmatpush.bf16.msra.mxu0 %v7718
  %7976 = vmatmul.bf16.gmra.mxu0 %v7158
  %v7977 = vpop.f32.mrf.mxu0
  %v7978 = vadd.f32 %v7965, %v7977
  %v7979 = vpop.f32.mrf.mxu0
  %7980 = vdwg.mxu0
  %7981 = vmatpush.bf16.msra.mxu0 %v7748
  %7982 = vmatpush.bf16.msra.mxu0 %v7746
  %7983 = vmatpush.bf16.msra.mxu0 %v7744
  %7984 = vmatpush.bf16.msra.mxu0 %v7742
  %7985 = vmatpush.bf16.msra.mxu0 %v7740
  %7986 = vmatpush.bf16.msra.mxu0 %v7738
  %7987 = vmatpush.bf16.msra.mxu0 %v7736
  %7988 = vmatpush.bf16.msra.mxu0 %v7734
  %7989 = vmatmul.bf16.gmra.mxu0 %v7159
  %v7990 = vpop.f32.mrf.mxu0
  %v7991 = vadd.f32 %v7978, %v7990
  %v7992 = vpop.f32.mrf.mxu0
  %7993 = vdwg.mxu0
  %7994 = vmatpush.bf16.msra.mxu0 %v7764
  %7995 = vmatpush.bf16.msra.mxu0 %v7762
  %7996 = vmatpush.bf16.msra.mxu0 %v7760
  %7997 = vmatpush.bf16.msra.mxu0 %v7758
  %7998 = vmatpush.bf16.msra.mxu0 %v7756
  %7999 = vmatpush.bf16.msra.mxu0 %v7754
  %8000 = vmatpush.bf16.msra.mxu0 %v7752
  %8001 = vmatpush.bf16.msra.mxu0 %v7750
  %8002 = vmatmul.bf16.gmra.mxu0 %v7160
  %v8003 = vpop.f32.mrf.mxu0
  %v8004 = vadd.f32 %v7991, %v8003
  %v8005 = vpop.f32.mrf.mxu0
  %8006 = vdwg.mxu0
  %8007 = vmatpush.bf16.msra.mxu0 %v7780
  %8008 = vmatpush.bf16.msra.mxu0 %v7778
  %8009 = vmatpush.bf16.msra.mxu0 %v7776
  %8010 = vmatpush.bf16.msra.mxu0 %v7774
  %8011 = vmatpush.bf16.msra.mxu0 %v7772
  %8012 = vmatpush.bf16.msra.mxu0 %v7770
  %8013 = vmatpush.bf16.msra.mxu0 %v7768
  %8014 = vmatpush.bf16.msra.mxu0 %v7766
  %8015 = vmatmul.bf16.gmra.mxu0 %v7161
  %v8016 = vpop.f32.mrf.mxu0
  %v8017 = vadd.f32 %v8004, %v8016
  %v8018 = vpop.f32.mrf.mxu0
  %8019 = vdwg.mxu0
  %8020 = vmatpush.bf16.msra.mxu0 %v7796
  %8021 = vmatpush.bf16.msra.mxu0 %v7794
  %8022 = vmatpush.bf16.msra.mxu0 %v7792
  %8023 = vmatpush.bf16.msra.mxu0 %v7790
  %8024 = vmatpush.bf16.msra.mxu0 %v7788
  %8025 = vmatpush.bf16.msra.mxu0 %v7786
  %8026 = vmatpush.bf16.msra.mxu0 %v7784
  %8027 = vmatpush.bf16.msra.mxu0 %v7782
  %8028 = vmatmul.bf16.gmra.mxu0 %v7162
  %v8029 = vpop.f32.mrf.mxu0
  %v8030 = vadd.f32 %v8017, %v8029
  %v8031 = vpop.f32.mrf.mxu0
  %8032 = vdwg.mxu0
  %8033 = vmatpush.bf16.msra.mxu0 %v7812
  %8034 = vmatpush.bf16.msra.mxu0 %v7810
  %8035 = vmatpush.bf16.msra.mxu0 %v7808
  %8036 = vmatpush.bf16.msra.mxu0 %v7806
  %8037 = vmatpush.bf16.msra.mxu0 %v7804
  %8038 = vmatpush.bf16.msra.mxu0 %v7802
  %8039 = vmatpush.bf16.msra.mxu0 %v7800
  %8040 = vmatpush.bf16.msra.mxu0 %v7798
  %8041 = vmatmul.bf16.gmra.mxu0 %v7163
  %v8042 = vpop.f32.mrf.mxu0
  %v8043 = vadd.f32 %v8030, %v8042
  %v8044 = vpop.f32.mrf.mxu0
  %8045 = vdwg.mxu0
  %8046 = vmatpush.bf16.msra.mxu0 %v7701
  %8047 = vmatpush.bf16.msra.mxu0 %v7699
  %8048 = vmatpush.bf16.msra.mxu0 %v7697
  %8049 = vmatpush.bf16.msra.mxu0 %v7695
  %8050 = vmatpush.bf16.msra.mxu0 %v7693
  %8051 = vmatpush.bf16.msra.mxu0 %v7691
  %8052 = vmatpush.bf16.msra.mxu0 %v7689
  %8053 = vmatpush.bf16.msra.mxu0 %v7687
  %8054 = vmatmul.bf16.gmra.mxu0 %v7156
  %v8055 = vpop.f32.mrf.mxu0
  %v8056 = vadd.f32 %v7299, %v8055
  %v8057 = vpop.f32.mrf.mxu0
  %8058 = vdwg.mxu0
  %8059 = vmatpush.bf16.msra.mxu0 %v7717
  %8060 = vmatpush.bf16.msra.mxu0 %v7715
  %8061 = vmatpush.bf16.msra.mxu0 %v7713
  %8062 = vmatpush.bf16.msra.mxu0 %v7711
  %8063 = vmatpush.bf16.msra.mxu0 %v7709
  %8064 = vmatpush.bf16.msra.mxu0 %v7707
  %8065 = vmatpush.bf16.msra.mxu0 %v7705
  %8066 = vmatpush.bf16.msra.mxu0 %v7703
  %8067 = vmatmul.bf16.gmra.mxu0 %v7157
  %v8068 = vpop.f32.mrf.mxu0
  %v8069 = vadd.f32 %v8056, %v8068
  %v8070 = vpop.f32.mrf.mxu0
  %8071 = vdwg.mxu0
  %8072 = vmatpush.bf16.msra.mxu0 %v7733
  %8073 = vmatpush.bf16.msra.mxu0 %v7731
  %8074 = vmatpush.bf16.msra.mxu0 %v7729
  %8075 = vmatpush.bf16.msra.mxu0 %v7727
  %8076 = vmatpush.bf16.msra.mxu0 %v7725
  %8077 = vmatpush.bf16.msra.mxu0 %v7723
  %8078 = vmatpush.bf16.msra.mxu0 %v7721
  %8079 = vmatpush.bf16.msra.mxu0 %v7719
  %8080 = vmatmul.bf16.gmra.mxu0 %v7158
  %v8081 = vpop.f32.mrf.mxu0
  %v8082 = vadd.f32 %v8069, %v8081
  %v8083 = vpop.f32.mrf.mxu0
  %8084 = vdwg.mxu0
  %8085 = vmatpush.bf16.msra.mxu0 %v7749
  %8086 = vmatpush.bf16.msra.mxu0 %v7747
  %8087 = vmatpush.bf16.msra.mxu0 %v7745
  %8088 = vmatpush.bf16.msra.mxu0 %v7743
  %8089 = vmatpush.bf16.msra.mxu0 %v7741
  %8090 = vmatpush.bf16.msra.mxu0 %v7739
  %8091 = vmatpush.bf16.msra.mxu0 %v7737
  %8092 = vmatpush.bf16.msra.mxu0 %v7735
  %8093 = vmatmul.bf16.gmra.mxu0 %v7159
  %v8094 = vpop.f32.mrf.mxu0
  %v8095 = vadd.f32 %v8082, %v8094
  %v8096 = vpop.f32.mrf.mxu0
  %8097 = vdwg.mxu0
  %8098 = vmatpush.bf16.msra.mxu0 %v7765
  %8099 = vmatpush.bf16.msra.mxu0 %v7763
  %8100 = vmatpush.bf16.msra.mxu0 %v7761
  %8101 = vmatpush.bf16.msra.mxu0 %v7759
  %8102 = vmatpush.bf16.msra.mxu0 %v7757
  %8103 = vmatpush.bf16.msra.mxu0 %v7755
  %8104 = vmatpush.bf16.msra.mxu0 %v7753
  %8105 = vmatpush.bf16.msra.mxu0 %v7751
  %8106 = vmatmul.bf16.gmra.mxu0 %v7160
  %v8107 = vpop.f32.mrf.mxu0
  %v8108 = vadd.f32 %v8095, %v8107
  %v8109 = vpop.f32.mrf.mxu0
  %8110 = vdwg.mxu0
  %8111 = vmatpush.bf16.msra.mxu0 %v7781
  %8112 = vmatpush.bf16.msra.mxu0 %v7779
  %8113 = vmatpush.bf16.msra.mxu0 %v7777
  %8114 = vmatpush.bf16.msra.mxu0 %v7775
  %8115 = vmatpush.bf16.msra.mxu0 %v7773
  %8116 = vmatpush.bf16.msra.mxu0 %v7771
  %8117 = vmatpush.bf16.msra.mxu0 %v7769
  %8118 = vmatpush.bf16.msra.mxu0 %v7767
  %8119 = vmatmul.bf16.gmra.mxu0 %v7161
  %v8120 = vpop.f32.mrf.mxu0
  %v8121 = vadd.f32 %v8108, %v8120
  %v8122 = vpop.f32.mrf.mxu0
  %8123 = vdwg.mxu0
  %8124 = vmatpush.bf16.msra.mxu0 %v7797
  %8125 = vmatpush.bf16.msra.mxu0 %v7795
  %8126 = vmatpush.bf16.msra.mxu0 %v7793
  %8127 = vmatpush.bf16.msra.mxu0 %v7791
  %8128 = vmatpush.bf16.msra.mxu0 %v7789
  %8129 = vmatpush.bf16.msra.mxu0 %v7787
  %8130 = vmatpush.bf16.msra.mxu0 %v7785
  %8131 = vmatpush.bf16.msra.mxu0 %v7783
  %8132 = vmatmul.bf16.gmra.mxu0 %v7162
  %v8133 = vpop.f32.mrf.mxu0
  %v8134 = vadd.f32 %v8121, %v8133
  %v8135 = vpop.f32.mrf.mxu0
  %8136 = vdwg.mxu0
  %8137 = vmatpush.bf16.msra.mxu0 %v7813
  %8138 = vmatpush.bf16.msra.mxu0 %v7811
  %8139 = vmatpush.bf16.msra.mxu0 %v7809
  %8140 = vmatpush.bf16.msra.mxu0 %v7807
  %8141 = vmatpush.bf16.msra.mxu0 %v7805
  %8142 = vmatpush.bf16.msra.mxu0 %v7803
  %8143 = vmatpush.bf16.msra.mxu0 %v7801
  %8144 = vmatpush.bf16.msra.mxu0 %v7799
  %8145 = vmatmul.bf16.gmra.mxu0 %v7163
  %v8146 = vpop.f32.mrf.mxu0
  %v8147 = vadd.f32 %v8134, %v8146
  %v8148 = vpop.f32.mrf.mxu0
  %8149 = vdwg.mxu0
  %v8152 = vrot.slane %v8147, 6
  %v8153 = vsel %vm298, %v8043, %v8152
  %8155 = vst [vmem:[%s9] sm:$0xf] %v8153
  // Predicated region
  $region38: #{trans_decoder_forward.1} parent=0 // pred_check
    _
  $region39: #{trans_decoder_forward.1} parent=0 // pred_check_branch
    %8157 = sbr.rel (0) target = $region41
  $region40: #{trans_decoder_forward.1} parent=0 // pred_region
    _
  $region41: #{trans_decoder_forward.1} parent=0 // pred_fallthru
    _
  // Predicated region
  $region42: #{trans_decoder_forward.1} parent=0 // pred_check
    _
  $region43: #{trans_decoder_forward.1} parent=0 // pred_check_branch
    %8159 = sbr.rel (0) target = $region45
  $region44: #{trans_decoder_forward.1} parent=0 // pred_region
    _
  $region45: #{trans_decoder_forward.1} parent=0 // pred_fallthru
    _
  %8160 = vsyncmov [#allocation4]
  %s8161 = vpop.sfrf %8160
  %p8162 = scmp.eq.s32.totalorder %s8161, 0
  %p8163 = pneg %p8162
  %8165 = shalt.err (%p8163)
  %s8166 = scalar_lea.sflag [#allocation4], 1
  %8167 = vsyncmov %s8166
  %s8168 = vpop.sfrf %8167
  %p8169 = scmp.eq.s32.totalorder %s8168, 0
  %p8170 = pneg %p8169
  %8172 = shalt.err (%p8170)

</llo_original>
